<compile_context>
chip_gen: v7x
topology: tpu7x:2x2x1
jax: 0.10.0
libtpu: 0.0.40
codegen_flags: <defaults>
</compile_context>

<pallas_src>
import functools

import numpy as np
import jax
import jax.numpy as jnp
from jax.experimental import pallas as pl
from jax.experimental.pallas import tpu as pltpu


def _round_up(x, m):
    return ((x + m - 1) // m) * m


def _tree_sum(xs):
    xs = list(xs)
    while len(xs) > 1:
        nxt = [xs[i] + xs[i + 1] for i in range(0, len(xs) - 1, 2)]
        if len(xs) % 2:
            nxt.append(xs[-1])
        xs = nxt
    return xs[0]


# ----------------------------------------------------------------------------
# Fused forward kernel: TB images per grid step, batch along the sublane dim.
#   x4_ref : [1, 4, 8*TB, 96]  bf16, plane=row%4, sublane=u*TB+img, lane=3*col+c
#   e1_ref : [20, 96, 42]      bf16 banded conv1 weights, [4 col-phases x 5 row-taps]
#   e2_ref : [20, 42, 80]      bf16 banded conv2 weights, [(q,c') x 5 row-taps]
#   wf1_ref: [5, 80, 120]      bf16 fc1 weight with the NCHW flatten folded in
# ----------------------------------------------------------------------------
def _cnn_cifar_kernel(x4_ref, e1_ref, b1_ref, e2_ref, b2_ref,
                      wf1_ref, bf1_ref, wf2_ref, bf2_ref, wf3_ref, bf3_ref,
                      o_ref, *, tb):
    f32 = jnp.float32
    bf16 = jnp.bfloat16
    b1 = b1_ref[...]                                   # [1, 42]
    b2 = b2_ref[...]                                   # [1, 80]

    # 8 distinct row-shifted input slabs, each [7*TB, 96] (full-lane slices).
    xs = {}
    for rm in range(4):
        for s in range(2):
            xs[(rm, s)] = x4_ref[0, rm, s * tb:(s + 7) * tb, :]

    # ---- conv1 + relu + pool1: 4 parity slabs z[(r,c')] of [7*TB, 42] -------
    zs = {}
    for r in range(2):
        for cp in range(2):
            ys = []
            for m in (2 * r, 2 * r + 1):
                for n in (2 * cp, 2 * cp + 1):
                    parts = []
                    for i in range(5):
                        rm, s = (m + i) % 4, (m + i) // 4
                        parts.append(jnp.dot(xs[(rm, s)], e1_ref[n * 5 + i],
                                             preferred_element_type=f32))
                    ys.append(jnp.maximum(_tree_sum(parts) + b1, 0.0))
            z_rc = jnp.maximum(jnp.maximum(ys[0], ys[1]),
                               jnp.maximum(ys[2], ys[3])).astype(bf16)
            for s in range(3):                         # pre-slice the 3 shifts
                zs[(r, cp, s)] = z_rc[s * tb:(s + 5) * tb, :]   # [5*TB, 42]

    # ---- conv2 + relu + pool2 -> p2 [5*TB, 80] -------------------------------
    p2 = None
    for p in range(2):
        for q in range(2):
            parts = []
            for i in range(5):
                r, s = (p + i) % 2, (p + i) // 2
                for cp in range(2):
                    parts.append(jnp.dot(zs[(r, cp, s)],
                                         e2_ref[(q * 2 + cp) * 5 + i],
                                         preferred_element_type=f32))
            y2 = jnp.maximum(_tree_sum(parts) + b2, 0.0)
            p2 = y2 if p2 is None else jnp.maximum(p2, y2)
    p2 = p2.astype(bf16)

    # ---- fc1 -> relu -> fc2 -> relu -> fc3 ----------------------------------
    hs = [jnp.dot(p2[Pw * tb:(Pw + 1) * tb, :], wf1_ref[Pw],
                  preferred_element_type=f32) for Pw in range(5)]
    h = jnp.maximum(_tree_sum(hs) + bf1_ref[...], 0.0).astype(bf16)   # [TB,120]
    h = jnp.maximum(jnp.dot(h, wf2_ref[...], preferred_element_type=f32)
                    + bf2_ref[...], 0.0).astype(bf16)                 # [TB, 84]
    out = jnp.dot(h, wf3_ref[...],
                  preferred_element_type=f32) + bf3_ref[...]          # [TB, C]
    o_ref[...] = out[None]


# ----------------------------------------------------------------------------
# Parameter prep (once, outside jit): lane-dense banded conv weights (column
# taps + shifts folded in), fc1 flatten-permutation fold, bf16 casts.
# ----------------------------------------------------------------------------
def prepare_params(params):
    W1 = np.asarray(params["conv1_w"], np.float32)     # [6, 3, 5, 5]  OIHW
    W2 = np.asarray(params["conv2_w"], np.float32)     # [16, 6, 5, 5]

    # E1[n, i][3*col + c, 6*V + oc] = W1[oc, c, i, col - (4*V + n)]
    E1 = np.zeros((4, 5, 96, 42), np.float32)
    for n in range(4):
        for i in range(5):
            for V in range(7):
                for j in range(5):
                    col = 4 * V + n + j
                    E1[n, i, 3 * col:3 * col + 3, 6 * V:6 * V + 6] = W1[:, :, i, j].T

    # E2[q, c', i][6*V' + ic, 16*Q + oc2] = W2[oc2, ic, i, 2*(V'-Q) + c' - q]
    E2 = np.zeros((2, 2, 5, 42, 80), np.float32)
    for q in range(2):
        for cp in range(2):
            for i in range(5):
                for Vp in range(7):
                    for Q in range(5):
                        j = 2 * (Vp - Q) + cp - q
                        if 0 <= j <= 4:
                            E2[q, cp, i, 6 * Vp:6 * Vp + 6,
                               16 * Q:16 * Q + 16] = W2[:, :, i, j].T

    # fc1: fold PyTorch's NCHW flatten (oc*25 + P*5 + Q) into lane order 16Q+oc
    wf1 = (np.asarray(params["fc1_w"], np.float32)
           .reshape(120, 16, 5, 5).transpose(2, 3, 1, 0).reshape(5, 80, 120))

    return {
        "e1": jnp.asarray(E1.reshape(20, 96, 42), jnp.bfloat16),
        "b1": jnp.asarray(np.tile(np.asarray(params["conv1_b"], np.float32), 7))[None, :],
        "e2": jnp.asarray(E2.reshape(20, 42, 80), jnp.bfloat16),
        "b2": jnp.asarray(np.tile(np.asarray(params["conv2_b"], np.float32), 5))[None, :],
        "wf1": jnp.asarray(wf1, jnp.bfloat16),
        "bf1": jnp.asarray(params["fc1_b"], jnp.float32)[None, :],
        "wf2": jnp.asarray(np.asarray(params["fc2_w"], np.float32).T, jnp.bfloat16),
        "bf2": jnp.asarray(params["fc2_b"], jnp.float32)[None, :],
        "wf3": jnp.asarray(np.asarray(params["fc3_w"], np.float32).T, jnp.bfloat16),
        "bf3": jnp.asarray(params["fc3_b"], jnp.float32)[None, :],
    }


# ----------------------------------------------------------------------------
# Forward wrapper: one pallas_call, grid over batch tiles of TB images.
# ----------------------------------------------------------------------------
def cnn_cifar_forward(prepared, x_nchw, block_b=32):
    B = x_nchw.shape[0]
    C = prepared["bf3"].shape[-1]
    TB = min(block_b, _round_up(B, 8))        # batch tile (multiple of 8)
    Bp = _round_up(B, TB)
    G = Bp // TB

    # NCHW -> NHWC bf16, pad batch, layout-only regroup:
    #   x4[g, row%4, (row//4)*TB + img, 3*col + c]  -> [G, 4, 8*TB, 96]
    x_nhwc = jnp.transpose(x_nchw, (0, 2, 3, 1)).astype(jnp.bfloat16)
    if Bp != B:
        x_nhwc = jnp.pad(x_nhwc, ((0, Bp - B), (0, 0), (0, 0), (0, 0)))
    x4 = x_nhwc.reshape(Bp, 8, 4, 96)
    x4 = (x4.reshape(G, TB, 8, 4, 96)
             .transpose(0, 3, 2, 1, 4)
             .reshape(G, 4, 8 * TB, 96))

    kernel = functools.partial(_cnn_cifar_kernel, tb=TB)
    out = pl.pallas_call(
        kernel,
        out_shape=jax.ShapeDtypeStruct((G, TB, C), jnp.float32),
        grid=(G,),
        in_specs=[
            pl.BlockSpec((1, 4, 8 * TB, 96), lambda g: (g, 0, 0, 0)),
            pl.BlockSpec((20, 96, 42), lambda g: (0, 0, 0)),
            pl.BlockSpec((1, 42), lambda g: (0, 0)),
            pl.BlockSpec((20, 42, 80), lambda g: (0, 0, 0)),
            pl.BlockSpec((1, 80), lambda g: (0, 0)),
            pl.BlockSpec((5, 80, 120), lambda g: (0, 0, 0)),
            pl.BlockSpec((1, 120), lambda g: (0, 0)),
            pl.BlockSpec((120, 84), lambda g: (0, 0)),
            pl.BlockSpec((1, 84), lambda g: (0, 0)),
            pl.BlockSpec((84, C), lambda g: (0, 0)),
            pl.BlockSpec((1, C), lambda g: (0, 0)),
        ],
        out_specs=pl.BlockSpec((1, TB, C), lambda g: (g, 0, 0)),
        compiler_params=pltpu.CompilerParams(
            dimension_semantics=("parallel",)),
    )(x4, prepared["e1"], prepared["b1"], prepared["e2"], prepared["b2"],
      prepared["wf1"], prepared["bf1"], prepared["wf2"], prepared["bf2"],
      prepared["wf3"], prepared["bf3"])
    return out.reshape(Bp, C)[:B]


# ----------------------------------------------------------------------------
# PyTorch-layout parameter init + pure-JAX reference (correctness check)
# ----------------------------------------------------------------------------
def init_params(key, num_classes=10):
    ks = jax.random.split(key, 10)
    return {
        "conv1_w": 0.15 * jax.random.normal(ks[0], (6, 3, 5, 5), jnp.float32),
        "conv1_b": 0.05 * jax.random.normal(ks[1], (6,), jnp.float32),
        "conv2_w": 0.12 * jax.random.normal(ks[2], (16, 6, 5, 5), jnp.float32),
        "conv2_b": 0.05 * jax.random.normal(ks[3], (16,), jnp.float32),
        "fc1_w": 0.07 * jax.random.normal(ks[4], (120, 400), jnp.float32),
        "fc1_b": 0.05 * jax.random.normal(ks[5], (120,), jnp.float32),
        "fc2_w": 0.13 * jax.random.normal(ks[6], (84, 120), jnp.float32),
        "fc2_b": 0.05 * jax.random.normal(ks[7], (84,), jnp.float32),
        "fc3_w": 0.15 * jax.random.normal(ks[8], (num_classes, 84), jnp.float32),
        "fc3_b": 0.05 * jax.random.normal(ks[9], (num_classes,), jnp.float32),
    }


def reference_forward(params, x_nchw):
    dn = ("NCHW", "OIHW", "NCHW")
    y = jax.lax.conv_general_dilated(x_nchw, params["conv1_w"], (1, 1), "VALID",
                                     dimension_numbers=dn)
    y = jax.nn.relu(y + params["conv1_b"][None, :, None, None])
    B, c, h, w = y.shape
    y = y.reshape(B, c, h // 2, 2, w // 2, 2).max(axis=(3, 5))
    y = jax.lax.conv_general_dilated(y, params["conv2_w"], (1, 1), "VALID",
                                     dimension_numbers=dn)
    y = jax.nn.relu(y + params["conv2_b"][None, :, None, None])
    B, c, h, w = y.shape
    y = y.reshape(B, c, h // 2, 2, w // 2, 2).max(axis=(3, 5))
    f = y.reshape(B, -1)
    h1 = jax.nn.relu(f @ params["fc1_w"].T + params["fc1_b"])
    h2 = jax.nn.relu(h1 @ params["fc2_w"].T + params["fc2_b"])
    return h2 @ params["fc3_w"].T + params["fc3_b"]


if __name__ == "__main__":
    num_classes = 10
    key = jax.random.PRNGKey(0)
    k_params, k_x = jax.random.split(key)
    params = init_params(k_params, num_classes=num_classes)
    # Geometry is fixed by the module: fc1 = 16*5*5 requires 3x32x32 inputs.
    x = jax.random.normal(k_x, (2, 3, 32, 32), jnp.float32)

    prepared = jax.block_until_ready(prepare_params(params))  # once, outside jit
    fwd = jax.jit(cnn_cifar_forward)
    out = jax.block_until_ready(fwd(prepared, x))

    assert out.shape == (2, num_classes), out.shape
    assert out.dtype == jnp.float32, out.dtype
    ref = reference_forward(params, x)
    max_err = float(jnp.max(jnp.abs(out - ref)))
    assert jnp.allclose(out, ref, atol=5e-2, rtol=5e-2), f"max_abs_err={max_err}"
    print("KERNEL_OK")
</pallas_src>

<mosaic_0001>
module attributes {stable_mosaic.version = 11 : i64} {
  func.func @_cnn_cifar_kernel(%arg0: i32, %arg1: memref<1x4x64x96xbf16, #tpu.memory_space<vmem>>, %arg2: memref<20x96x42xbf16, #tpu.memory_space<vmem>>, %arg3: memref<1x42xf32, #tpu.memory_space<vmem>>, %arg4: memref<20x42x80xbf16, #tpu.memory_space<vmem>>, %arg5: memref<1x80xf32, #tpu.memory_space<vmem>>, %arg6: memref<5x80x120xbf16, #tpu.memory_space<vmem>>, %arg7: memref<1x120xf32, #tpu.memory_space<vmem>>, %arg8: memref<120x84xbf16, #tpu.memory_space<vmem>>, %arg9: memref<1x84xf32, #tpu.memory_space<vmem>>, %arg10: memref<84x10xbf16, #tpu.memory_space<vmem>>, %arg11: memref<1x10xf32, #tpu.memory_space<vmem>>, %arg12: memref<1x8x10xf32, #tpu.memory_space<vmem>>) attributes {dimension_semantics = [#tpu.dimension_semantics<parallel>], iteration_bounds = array<i64: 1>, scalar_prefetch = 0 : i64, scratch_operands = 0 : i64, tpu.core_type = #tpu.core_type<tc>, window_params = [{transform_indices = @transform_0, window_bounds = array<i64: 1, 4, 64, 96>}, {pipeline_mode = #tpu.pipeline_mode<synchronous>, transform_indices = @transform_1, window_bounds = array<i64: 20, 96, 42>}, {pipeline_mode = #tpu.pipeline_mode<synchronous>, transform_indices = @transform_2, window_bounds = array<i64: 1, 42>}, {pipeline_mode = #tpu.pipeline_mode<synchronous>, transform_indices = @transform_3, window_bounds = array<i64: 20, 42, 80>}, {pipeline_mode = #tpu.pipeline_mode<synchronous>, transform_indices = @transform_4, window_bounds = array<i64: 1, 80>}, {pipeline_mode = #tpu.pipeline_mode<synchronous>, transform_indices = @transform_5, window_bounds = array<i64: 5, 80, 120>}, {pipeline_mode = #tpu.pipeline_mode<synchronous>, transform_indices = @transform_6, window_bounds = array<i64: 1, 120>}, {pipeline_mode = #tpu.pipeline_mode<synchronous>, transform_indices = @transform_7, window_bounds = array<i64: 120, 84>}, {pipeline_mode = #tpu.pipeline_mode<synchronous>, transform_indices = @transform_8, window_bounds = array<i64: 1, 84>}, {pipeline_mode = #tpu.pipeline_mode<synchronous>, transform_indices = @transform_9, window_bounds = array<i64: 84, 10>}, {pipeline_mode = #tpu.pipeline_mode<synchronous>, transform_indices = @transform_10, window_bounds = array<i64: 1, 10>}, {transform_indices = @transform_11, window_bounds = array<i64: 1, 8, 10>}]} {
    %c0 = arith.constant 0 : index
    %c0_0 = arith.constant 0 : index
    %0 = vector.load %arg3[%c0, %c0_0] : memref<1x42xf32, #tpu.memory_space<vmem>>, vector<1x42xf32>
    %c0_1 = arith.constant 0 : index
    %c0_2 = arith.constant 0 : index
    %1 = vector.load %arg5[%c0_1, %c0_2] : memref<1x80xf32, #tpu.memory_space<vmem>>, vector<1x80xf32>
    %c0_3 = arith.constant 0 : index
    %c0_4 = arith.constant 0 : index
    %c0_5 = arith.constant 0 : index
    %c0_6 = arith.constant 0 : index
    %2 = vector.load %arg1[%c0_3, %c0_4, %c0_5, %c0_6] : memref<1x4x64x96xbf16, #tpu.memory_space<vmem>>, vector<1x1x56x96xbf16>
    %3 = vector.shape_cast %2 : vector<1x1x56x96xbf16> to vector<56x96xbf16>
    %c0_7 = arith.constant 0 : index
    %c0_8 = arith.constant 0 : index
    %c8 = arith.constant 8 : index
    %c0_9 = arith.constant 0 : index
    %4 = vector.load %arg1[%c0_7, %c0_8, %c8, %c0_9] : memref<1x4x64x96xbf16, #tpu.memory_space<vmem>>, vector<1x1x56x96xbf16>
    %5 = vector.shape_cast %4 : vector<1x1x56x96xbf16> to vector<56x96xbf16>
    %c0_10 = arith.constant 0 : index
    %c1 = arith.constant 1 : index
    %c0_11 = arith.constant 0 : index
    %c0_12 = arith.constant 0 : index
    %6 = vector.load %arg1[%c0_10, %c1, %c0_11, %c0_12] : memref<1x4x64x96xbf16, #tpu.memory_space<vmem>>, vector<1x1x56x96xbf16>
    %7 = vector.shape_cast %6 : vector<1x1x56x96xbf16> to vector<56x96xbf16>
    %c0_13 = arith.constant 0 : index
    %c1_14 = arith.constant 1 : index
    %c8_15 = arith.constant 8 : index
    %c0_16 = arith.constant 0 : index
    %8 = vector.load %arg1[%c0_13, %c1_14, %c8_15, %c0_16] : memref<1x4x64x96xbf16, #tpu.memory_space<vmem>>, vector<1x1x56x96xbf16>
    %9 = vector.shape_cast %8 : vector<1x1x56x96xbf16> to vector<56x96xbf16>
    %c0_17 = arith.constant 0 : index
    %c2 = arith.constant 2 : index
    %c0_18 = arith.constant 0 : index
    %c0_19 = arith.constant 0 : index
    %10 = vector.load %arg1[%c0_17, %c2, %c0_18, %c0_19] : memref<1x4x64x96xbf16, #tpu.memory_space<vmem>>, vector<1x1x56x96xbf16>
    %11 = vector.shape_cast %10 : vector<1x1x56x96xbf16> to vector<56x96xbf16>
    %c0_20 = arith.constant 0 : index
    %c2_21 = arith.constant 2 : index
    %c8_22 = arith.constant 8 : index
    %c0_23 = arith.constant 0 : index
    %12 = vector.load %arg1[%c0_20, %c2_21, %c8_22, %c0_23] : memref<1x4x64x96xbf16, #tpu.memory_space<vmem>>, vector<1x1x56x96xbf16>
    %13 = vector.shape_cast %12 : vector<1x1x56x96xbf16> to vector<56x96xbf16>
    %c0_24 = arith.constant 0 : index
    %c3 = arith.constant 3 : index
    %c0_25 = arith.constant 0 : index
    %c0_26 = arith.constant 0 : index
    %14 = vector.load %arg1[%c0_24, %c3, %c0_25, %c0_26] : memref<1x4x64x96xbf16, #tpu.memory_space<vmem>>, vector<1x1x56x96xbf16>
    %15 = vector.shape_cast %14 : vector<1x1x56x96xbf16> to vector<56x96xbf16>
    %c0_27 = arith.constant 0 : index
    %c3_28 = arith.constant 3 : index
    %c8_29 = arith.constant 8 : index
    %c0_30 = arith.constant 0 : index
    %16 = vector.load %arg1[%c0_27, %c3_28, %c8_29, %c0_30] : memref<1x4x64x96xbf16, #tpu.memory_space<vmem>>, vector<1x1x56x96xbf16>
    %17 = vector.shape_cast %16 : vector<1x1x56x96xbf16> to vector<56x96xbf16>
    %c0_31 = arith.constant 0 : index
    %c0_32 = arith.constant 0 : index
    %c0_33 = arith.constant 0 : index
    %18 = vector.load %arg2[%c0_31, %c0_32, %c0_33] : memref<20x96x42xbf16, #tpu.memory_space<vmem>>, vector<1x96x42xbf16>
    %19 = vector.shape_cast %18 : vector<1x96x42xbf16> to vector<96x42xbf16>
    %cst = arith.constant dense<0.000000e+00> : vector<56x42xf32>
    %20 = tpu.matmul %3, %19, %cst {dimension_numbers = #tpu.dot_dimension_numbers<[1], [0], [0], [1], [0, 0, 1, 1], [], []>} : vector<56x96xbf16>, vector<96x42xbf16>, vector<56x42xf32> -> vector<56x42xf32>
    %c1_34 = arith.constant 1 : index
    %c0_35 = arith.constant 0 : index
    %c0_36 = arith.constant 0 : index
    %21 = vector.load %arg2[%c1_34, %c0_35, %c0_36] : memref<20x96x42xbf16, #tpu.memory_space<vmem>>, vector<1x96x42xbf16>
    %22 = vector.shape_cast %21 : vector<1x96x42xbf16> to vector<96x42xbf16>
    %cst_37 = arith.constant dense<0.000000e+00> : vector<56x42xf32>
    %23 = tpu.matmul %7, %22, %cst_37 {dimension_numbers = #tpu.dot_dimension_numbers<[1], [0], [0], [1], [0, 0, 1, 1], [], []>} : vector<56x96xbf16>, vector<96x42xbf16>, vector<56x42xf32> -> vector<56x42xf32>
    %c2_38 = arith.constant 2 : index
    %c0_39 = arith.constant 0 : index
    %c0_40 = arith.constant 0 : index
    %24 = vector.load %arg2[%c2_38, %c0_39, %c0_40] : memref<20x96x42xbf16, #tpu.memory_space<vmem>>, vector<1x96x42xbf16>
    %25 = vector.shape_cast %24 : vector<1x96x42xbf16> to vector<96x42xbf16>
    %cst_41 = arith.constant dense<0.000000e+00> : vector<56x42xf32>
    %26 = tpu.matmul %11, %25, %cst_41 {dimension_numbers = #tpu.dot_dimension_numbers<[1], [0], [0], [1], [0, 0, 1, 1], [], []>} : vector<56x96xbf16>, vector<96x42xbf16>, vector<56x42xf32> -> vector<56x42xf32>
    %c3_42 = arith.constant 3 : index
    %c0_43 = arith.constant 0 : index
    %c0_44 = arith.constant 0 : index
    %27 = vector.load %arg2[%c3_42, %c0_43, %c0_44] : memref<20x96x42xbf16, #tpu.memory_space<vmem>>, vector<1x96x42xbf16>
    %28 = vector.shape_cast %27 : vector<1x96x42xbf16> to vector<96x42xbf16>
    %cst_45 = arith.constant dense<0.000000e+00> : vector<56x42xf32>
    %29 = tpu.matmul %15, %28, %cst_45 {dimension_numbers = #tpu.dot_dimension_numbers<[1], [0], [0], [1], [0, 0, 1, 1], [], []>} : vector<56x96xbf16>, vector<96x42xbf16>, vector<56x42xf32> -> vector<56x42xf32>
    %c4 = arith.constant 4 : index
    %c0_46 = arith.constant 0 : index
    %c0_47 = arith.constant 0 : index
    %30 = vector.load %arg2[%c4, %c0_46, %c0_47] : memref<20x96x42xbf16, #tpu.memory_space<vmem>>, vector<1x96x42xbf16>
    %31 = vector.shape_cast %30 : vector<1x96x42xbf16> to vector<96x42xbf16>
    %cst_48 = arith.constant dense<0.000000e+00> : vector<56x42xf32>
    %32 = tpu.matmul %5, %31, %cst_48 {dimension_numbers = #tpu.dot_dimension_numbers<[1], [0], [0], [1], [0, 0, 1, 1], [], []>} : vector<56x96xbf16>, vector<96x42xbf16>, vector<56x42xf32> -> vector<56x42xf32>
    %33 = arith.addf %20, %23 : vector<56x42xf32>
    %34 = arith.addf %26, %29 : vector<56x42xf32>
    %35 = arith.addf %33, %34 : vector<56x42xf32>
    %36 = arith.addf %35, %32 : vector<56x42xf32>
    %37 = vector.broadcast %0 : vector<1x42xf32> to vector<56x42xf32>
    %38 = arith.addf %36, %37 : vector<56x42xf32>
    %cst_49 = arith.constant 0.000000e+00 : f32
    %39 = vector.broadcast %cst_49 : f32 to vector<56x42xf32>
    %40 = arith.maximumf %38, %39 : vector<56x42xf32>
    %c5 = arith.constant 5 : index
    %c0_50 = arith.constant 0 : index
    %c0_51 = arith.constant 0 : index
    %41 = vector.load %arg2[%c5, %c0_50, %c0_51] : memref<20x96x42xbf16, #tpu.memory_space<vmem>>, vector<1x96x42xbf16>
    %42 = vector.shape_cast %41 : vector<1x96x42xbf16> to vector<96x42xbf16>
    %cst_52 = arith.constant dense<0.000000e+00> : vector<56x42xf32>
    %43 = tpu.matmul %3, %42, %cst_52 {dimension_numbers = #tpu.dot_dimension_numbers<[1], [0], [0], [1], [0, 0, 1, 1], [], []>} : vector<56x96xbf16>, vector<96x42xbf16>, vector<56x42xf32> -> vector<56x42xf32>
    %c6 = arith.constant 6 : index
    %c0_53 = arith.constant 0 : index
    %c0_54 = arith.constant 0 : index
    %44 = vector.load %arg2[%c6, %c0_53, %c0_54] : memref<20x96x42xbf16, #tpu.memory_space<vmem>>, vector<1x96x42xbf16>
    %45 = vector.shape_cast %44 : vector<1x96x42xbf16> to vector<96x42xbf16>
    %cst_55 = arith.constant dense<0.000000e+00> : vector<56x42xf32>
    %46 = tpu.matmul %7, %45, %cst_55 {dimension_numbers = #tpu.dot_dimension_numbers<[1], [0], [0], [1], [0, 0, 1, 1], [], []>} : vector<56x96xbf16>, vector<96x42xbf16>, vector<56x42xf32> -> vector<56x42xf32>
    %c7 = arith.constant 7 : index
    %c0_56 = arith.constant 0 : index
    %c0_57 = arith.constant 0 : index
    %47 = vector.load %arg2[%c7, %c0_56, %c0_57] : memref<20x96x42xbf16, #tpu.memory_space<vmem>>, vector<1x96x42xbf16>
    %48 = vector.shape_cast %47 : vector<1x96x42xbf16> to vector<96x42xbf16>
    %cst_58 = arith.constant dense<0.000000e+00> : vector<56x42xf32>
    %49 = tpu.matmul %11, %48, %cst_58 {dimension_numbers = #tpu.dot_dimension_numbers<[1], [0], [0], [1], [0, 0, 1, 1], [], []>} : vector<56x96xbf16>, vector<96x42xbf16>, vector<56x42xf32> -> vector<56x42xf32>
    %c8_59 = arith.constant 8 : index
    %c0_60 = arith.constant 0 : index
    %c0_61 = arith.constant 0 : index
    %50 = vector.load %arg2[%c8_59, %c0_60, %c0_61] : memref<20x96x42xbf16, #tpu.memory_space<vmem>>, vector<1x96x42xbf16>
    %51 = vector.shape_cast %50 : vector<1x96x42xbf16> to vector<96x42xbf16>
    %cst_62 = arith.constant dense<0.000000e+00> : vector<56x42xf32>
    %52 = tpu.matmul %15, %51, %cst_62 {dimension_numbers = #tpu.dot_dimension_numbers<[1], [0], [0], [1], [0, 0, 1, 1], [], []>} : vector<56x96xbf16>, vector<96x42xbf16>, vector<56x42xf32> -> vector<56x42xf32>
    %c9 = arith.constant 9 : index
    %c0_63 = arith.constant 0 : index
    %c0_64 = arith.constant 0 : index
    %53 = vector.load %arg2[%c9, %c0_63, %c0_64] : memref<20x96x42xbf16, #tpu.memory_space<vmem>>, vector<1x96x42xbf16>
    %54 = vector.shape_cast %53 : vector<1x96x42xbf16> to vector<96x42xbf16>
    %cst_65 = arith.constant dense<0.000000e+00> : vector<56x42xf32>
    %55 = tpu.matmul %5, %54, %cst_65 {dimension_numbers = #tpu.dot_dimension_numbers<[1], [0], [0], [1], [0, 0, 1, 1], [], []>} : vector<56x96xbf16>, vector<96x42xbf16>, vector<56x42xf32> -> vector<56x42xf32>
    %56 = arith.addf %43, %46 : vector<56x42xf32>
    %57 = arith.addf %49, %52 : vector<56x42xf32>
    %58 = arith.addf %56, %57 : vector<56x42xf32>
    %59 = arith.addf %58, %55 : vector<56x42xf32>
    %60 = vector.broadcast %0 : vector<1x42xf32> to vector<56x42xf32>
    %61 = arith.addf %59, %60 : vector<56x42xf32>
    %cst_66 = arith.constant 0.000000e+00 : f32
    %62 = vector.broadcast %cst_66 : f32 to vector<56x42xf32>
    %63 = arith.maximumf %61, %62 : vector<56x42xf32>
    %c0_67 = arith.constant 0 : index
    %c0_68 = arith.constant 0 : index
    %c0_69 = arith.constant 0 : index
    %64 = vector.load %arg2[%c0_67, %c0_68, %c0_69] : memref<20x96x42xbf16, #tpu.memory_space<vmem>>, vector<1x96x42xbf16>
    %65 = vector.shape_cast %64 : vector<1x96x42xbf16> to vector<96x42xbf16>
    %cst_70 = arith.constant dense<0.000000e+00> : vector<56x42xf32>
    %66 = tpu.matmul %7, %65, %cst_70 {dimension_numbers = #tpu.dot_dimension_numbers<[1], [0], [0], [1], [0, 0, 1, 1], [], []>} : vector<56x96xbf16>, vector<96x42xbf16>, vector<56x42xf32> -> vector<56x42xf32>
    %c1_71 = arith.constant 1 : index
    %c0_72 = arith.constant 0 : index
    %c0_73 = arith.constant 0 : index
    %67 = vector.load %arg2[%c1_71, %c0_72, %c0_73] : memref<20x96x42xbf16, #tpu.memory_space<vmem>>, vector<1x96x42xbf16>
    %68 = vector.shape_cast %67 : vector<1x96x42xbf16> to vector<96x42xbf16>
    %cst_74 = arith.constant dense<0.000000e+00> : vector<56x42xf32>
    %69 = tpu.matmul %11, %68, %cst_74 {dimension_numbers = #tpu.dot_dimension_numbers<[1], [0], [0], [1], [0, 0, 1, 1], [], []>} : vector<56x96xbf16>, vector<96x42xbf16>, vector<56x42xf32> -> vector<56x42xf32>
    %c2_75 = arith.constant 2 : index
    %c0_76 = arith.constant 0 : index
    %c0_77 = arith.constant 0 : index
    %70 = vector.load %arg2[%c2_75, %c0_76, %c0_77] : memref<20x96x42xbf16, #tpu.memory_space<vmem>>, vector<1x96x42xbf16>
    %71 = vector.shape_cast %70 : vector<1x96x42xbf16> to vector<96x42xbf16>
    %cst_78 = arith.constant dense<0.000000e+00> : vector<56x42xf32>
    %72 = tpu.matmul %15, %71, %cst_78 {dimension_numbers = #tpu.dot_dimension_numbers<[1], [0], [0], [1], [0, 0, 1, 1], [], []>} : vector<56x96xbf16>, vector<96x42xbf16>, vector<56x42xf32> -> vector<56x42xf32>
    %c3_79 = arith.constant 3 : index
    %c0_80 = arith.constant 0 : index
    %c0_81 = arith.constant 0 : index
    %73 = vector.load %arg2[%c3_79, %c0_80, %c0_81] : memref<20x96x42xbf16, #tpu.memory_space<vmem>>, vector<1x96x42xbf16>
    %74 = vector.shape_cast %73 : vector<1x96x42xbf16> to vector<96x42xbf16>
    %cst_82 = arith.constant dense<0.000000e+00> : vector<56x42xf32>
    %75 = tpu.matmul %5, %74, %cst_82 {dimension_numbers = #tpu.dot_dimension_numbers<[1], [0], [0], [1], [0, 0, 1, 1], [], []>} : vector<56x96xbf16>, vector<96x42xbf16>, vector<56x42xf32> -> vector<56x42xf32>
    %c4_83 = arith.constant 4 : index
    %c0_84 = arith.constant 0 : index
    %c0_85 = arith.constant 0 : index
    %76 = vector.load %arg2[%c4_83, %c0_84, %c0_85] : memref<20x96x42xbf16, #tpu.memory_space<vmem>>, vector<1x96x42xbf16>
    %77 = vector.shape_cast %76 : vector<1x96x42xbf16> to vector<96x42xbf16>
    %cst_86 = arith.constant dense<0.000000e+00> : vector<56x42xf32>
    %78 = tpu.matmul %9, %77, %cst_86 {dimension_numbers = #tpu.dot_dimension_numbers<[1], [0], [0], [1], [0, 0, 1, 1], [], []>} : vector<56x96xbf16>, vector<96x42xbf16>, vector<56x42xf32> -> vector<56x42xf32>
    %79 = arith.addf %66, %69 : vector<56x42xf32>
    %80 = arith.addf %72, %75 : vector<56x42xf32>
    %81 = arith.addf %79, %80 : vector<56x42xf32>
    %82 = arith.addf %81, %78 : vector<56x42xf32>
    %83 = vector.broadcast %0 : vector<1x42xf32> to vector<56x42xf32>
    %84 = arith.addf %82, %83 : vector<56x42xf32>
    %cst_87 = arith.constant 0.000000e+00 : f32
    %85 = vector.broadcast %cst_87 : f32 to vector<56x42xf32>
    %86 = arith.maximumf %84, %85 : vector<56x42xf32>
    %c5_88 = arith.constant 5 : index
    %c0_89 = arith.constant 0 : index
    %c0_90 = arith.constant 0 : index
    %87 = vector.load %arg2[%c5_88, %c0_89, %c0_90] : memref<20x96x42xbf16, #tpu.memory_space<vmem>>, vector<1x96x42xbf16>
    %88 = vector.shape_cast %87 : vector<1x96x42xbf16> to vector<96x42xbf16>
    %cst_91 = arith.constant dense<0.000000e+00> : vector<56x42xf32>
    %89 = tpu.matmul %7, %88, %cst_91 {dimension_numbers = #tpu.dot_dimension_numbers<[1], [0], [0], [1], [0, 0, 1, 1], [], []>} : vector<56x96xbf16>, vector<96x42xbf16>, vector<56x42xf32> -> vector<56x42xf32>
    %c6_92 = arith.constant 6 : index
    %c0_93 = arith.constant 0 : index
    %c0_94 = arith.constant 0 : index
    %90 = vector.load %arg2[%c6_92, %c0_93, %c0_94] : memref<20x96x42xbf16, #tpu.memory_space<vmem>>, vector<1x96x42xbf16>
    %91 = vector.shape_cast %90 : vector<1x96x42xbf16> to vector<96x42xbf16>
    %cst_95 = arith.constant dense<0.000000e+00> : vector<56x42xf32>
    %92 = tpu.matmul %11, %91, %cst_95 {dimension_numbers = #tpu.dot_dimension_numbers<[1], [0], [0], [1], [0, 0, 1, 1], [], []>} : vector<56x96xbf16>, vector<96x42xbf16>, vector<56x42xf32> -> vector<56x42xf32>
    %c7_96 = arith.constant 7 : index
    %c0_97 = arith.constant 0 : index
    %c0_98 = arith.constant 0 : index
    %93 = vector.load %arg2[%c7_96, %c0_97, %c0_98] : memref<20x96x42xbf16, #tpu.memory_space<vmem>>, vector<1x96x42xbf16>
    %94 = vector.shape_cast %93 : vector<1x96x42xbf16> to vector<96x42xbf16>
    %cst_99 = arith.constant dense<0.000000e+00> : vector<56x42xf32>
    %95 = tpu.matmul %15, %94, %cst_99 {dimension_numbers = #tpu.dot_dimension_numbers<[1], [0], [0], [1], [0, 0, 1, 1], [], []>} : vector<56x96xbf16>, vector<96x42xbf16>, vector<56x42xf32> -> vector<56x42xf32>
    %c8_100 = arith.constant 8 : index
    %c0_101 = arith.constant 0 : index
    %c0_102 = arith.constant 0 : index
    %96 = vector.load %arg2[%c8_100, %c0_101, %c0_102] : memref<20x96x42xbf16, #tpu.memory_space<vmem>>, vector<1x96x42xbf16>
    %97 = vector.shape_cast %96 : vector<1x96x42xbf16> to vector<96x42xbf16>
    %cst_103 = arith.constant dense<0.000000e+00> : vector<56x42xf32>
    %98 = tpu.matmul %5, %97, %cst_103 {dimension_numbers = #tpu.dot_dimension_numbers<[1], [0], [0], [1], [0, 0, 1, 1], [], []>} : vector<56x96xbf16>, vector<96x42xbf16>, vector<56x42xf32> -> vector<56x42xf32>
    %c9_104 = arith.constant 9 : index
    %c0_105 = arith.constant 0 : index
    %c0_106 = arith.constant 0 : index
    %99 = vector.load %arg2[%c9_104, %c0_105, %c0_106] : memref<20x96x42xbf16, #tpu.memory_space<vmem>>, vector<1x96x42xbf16>
    %100 = vector.shape_cast %99 : vector<1x96x42xbf16> to vector<96x42xbf16>
    %cst_107 = arith.constant dense<0.000000e+00> : vector<56x42xf32>
    %101 = tpu.matmul %9, %100, %cst_107 {dimension_numbers = #tpu.dot_dimension_numbers<[1], [0], [0], [1], [0, 0, 1, 1], [], []>} : vector<56x96xbf16>, vector<96x42xbf16>, vector<56x42xf32> -> vector<56x42xf32>
    %102 = arith.addf %89, %92 : vector<56x42xf32>
    %103 = arith.addf %95, %98 : vector<56x42xf32>
    %104 = arith.addf %102, %103 : vector<56x42xf32>
    %105 = arith.addf %104, %101 : vector<56x42xf32>
    %106 = vector.broadcast %0 : vector<1x42xf32> to vector<56x42xf32>
    %107 = arith.addf %105, %106 : vector<56x42xf32>
    %cst_108 = arith.constant 0.000000e+00 : f32
    %108 = vector.broadcast %cst_108 : f32 to vector<56x42xf32>
    %109 = arith.maximumf %107, %108 : vector<56x42xf32>
    %110 = arith.maximumf %40, %63 : vector<56x42xf32>
    %111 = arith.maximumf %86, %109 : vector<56x42xf32>
    %112 = arith.maximumf %110, %111 : vector<56x42xf32>
    %113 = arith.truncf %112 : vector<56x42xf32> to vector<56x42xbf16>
    %114 = vector.extract_strided_slice %113 {offsets = [0, 0], sizes = [40, 42], strides = [1, 1]} : vector<56x42xbf16> to vector<40x42xbf16>
    %115 = vector.extract_strided_slice %113 {offsets = [8, 0], sizes = [40, 42], strides = [1, 1]} : vector<56x42xbf16> to vector<40x42xbf16>
    %116 = vector.extract_strided_slice %113 {offsets = [16, 0], sizes = [40, 42], strides = [1, 1]} : vector<56x42xbf16> to vector<40x42xbf16>
    %c10 = arith.constant 10 : index
    %c0_109 = arith.constant 0 : index
    %c0_110 = arith.constant 0 : index
    %117 = vector.load %arg2[%c10, %c0_109, %c0_110] : memref<20x96x42xbf16, #tpu.memory_space<vmem>>, vector<1x96x42xbf16>
    %118 = vector.shape_cast %117 : vector<1x96x42xbf16> to vector<96x42xbf16>
    %cst_111 = arith.constant dense<0.000000e+00> : vector<56x42xf32>
    %119 = tpu.matmul %3, %118, %cst_111 {dimension_numbers = #tpu.dot_dimension_numbers<[1], [0], [0], [1], [0, 0, 1, 1], [], []>} : vector<56x96xbf16>, vector<96x42xbf16>, vector<56x42xf32> -> vector<56x42xf32>
    %c11 = arith.constant 11 : index
    %c0_112 = arith.constant 0 : index
    %c0_113 = arith.constant 0 : index
    %120 = vector.load %arg2[%c11, %c0_112, %c0_113] : memref<20x96x42xbf16, #tpu.memory_space<vmem>>, vector<1x96x42xbf16>
    %121 = vector.shape_cast %120 : vector<1x96x42xbf16> to vector<96x42xbf16>
    %cst_114 = arith.constant dense<0.000000e+00> : vector<56x42xf32>
    %122 = tpu.matmul %7, %121, %cst_114 {dimension_numbers = #tpu.dot_dimension_numbers<[1], [0], [0], [1], [0, 0, 1, 1], [], []>} : vector<56x96xbf16>, vector<96x42xbf16>, vector<56x42xf32> -> vector<56x42xf32>
    %c12 = arith.constant 12 : index
    %c0_115 = arith.constant 0 : index
    %c0_116 = arith.constant 0 : index
    %123 = vector.load %arg2[%c12, %c0_115, %c0_116] : memref<20x96x42xbf16, #tpu.memory_space<vmem>>, vector<1x96x42xbf16>
    %124 = vector.shape_cast %123 : vector<1x96x42xbf16> to vector<96x42xbf16>
    %cst_117 = arith.constant dense<0.000000e+00> : vector<56x42xf32>
    %125 = tpu.matmul %11, %124, %cst_117 {dimension_numbers = #tpu.dot_dimension_numbers<[1], [0], [0], [1], [0, 0, 1, 1], [], []>} : vector<56x96xbf16>, vector<96x42xbf16>, vector<56x42xf32> -> vector<56x42xf32>
    %c13 = arith.constant 13 : index
    %c0_118 = arith.constant 0 : index
    %c0_119 = arith.constant 0 : index
    %126 = vector.load %arg2[%c13, %c0_118, %c0_119] : memref<20x96x42xbf16, #tpu.memory_space<vmem>>, vector<1x96x42xbf16>
    %127 = vector.shape_cast %126 : vector<1x96x42xbf16> to vector<96x42xbf16>
    %cst_120 = arith.constant dense<0.000000e+00> : vector<56x42xf32>
    %128 = tpu.matmul %15, %127, %cst_120 {dimension_numbers = #tpu.dot_dimension_numbers<[1], [0], [0], [1], [0, 0, 1, 1], [], []>} : vector<56x96xbf16>, vector<96x42xbf16>, vector<56x42xf32> -> vector<56x42xf32>
    %c14 = arith.constant 14 : index
    %c0_121 = arith.constant 0 : index
    %c0_122 = arith.constant 0 : index
    %129 = vector.load %arg2[%c14, %c0_121, %c0_122] : memref<20x96x42xbf16, #tpu.memory_space<vmem>>, vector<1x96x42xbf16>
    %130 = vector.shape_cast %129 : vector<1x96x42xbf16> to vector<96x42xbf16>
    %cst_123 = arith.constant dense<0.000000e+00> : vector<56x42xf32>
    %131 = tpu.matmul %5, %130, %cst_123 {dimension_numbers = #tpu.dot_dimension_numbers<[1], [0], [0], [1], [0, 0, 1, 1], [], []>} : vector<56x96xbf16>, vector<96x42xbf16>, vector<56x42xf32> -> vector<56x42xf32>
    %132 = arith.addf %119, %122 : vector<56x42xf32>
    %133 = arith.addf %125, %128 : vector<56x42xf32>
    %134 = arith.addf %132, %133 : vector<56x42xf32>
    %135 = arith.addf %134, %131 : vector<56x42xf32>
    %136 = vector.broadcast %0 : vector<1x42xf32> to vector<56x42xf32>
    %137 = arith.addf %135, %136 : vector<56x42xf32>
    %cst_124 = arith.constant 0.000000e+00 : f32
    %138 = vector.broadcast %cst_124 : f32 to vector<56x42xf32>
    %139 = arith.maximumf %137, %138 : vector<56x42xf32>
    %c15 = arith.constant 15 : index
    %c0_125 = arith.constant 0 : index
    %c0_126 = arith.constant 0 : index
    %140 = vector.load %arg2[%c15, %c0_125, %c0_126] : memref<20x96x42xbf16, #tpu.memory_space<vmem>>, vector<1x96x42xbf16>
    %141 = vector.shape_cast %140 : vector<1x96x42xbf16> to vector<96x42xbf16>
    %cst_127 = arith.constant dense<0.000000e+00> : vector<56x42xf32>
    %142 = tpu.matmul %3, %141, %cst_127 {dimension_numbers = #tpu.dot_dimension_numbers<[1], [0], [0], [1], [0, 0, 1, 1], [], []>} : vector<56x96xbf16>, vector<96x42xbf16>, vector<56x42xf32> -> vector<56x42xf32>
    %c16 = arith.constant 16 : index
    %c0_128 = arith.constant 0 : index
    %c0_129 = arith.constant 0 : index
    %143 = vector.load %arg2[%c16, %c0_128, %c0_129] : memref<20x96x42xbf16, #tpu.memory_space<vmem>>, vector<1x96x42xbf16>
    %144 = vector.shape_cast %143 : vector<1x96x42xbf16> to vector<96x42xbf16>
    %cst_130 = arith.constant dense<0.000000e+00> : vector<56x42xf32>
    %145 = tpu.matmul %7, %144, %cst_130 {dimension_numbers = #tpu.dot_dimension_numbers<[1], [0], [0], [1], [0, 0, 1, 1], [], []>} : vector<56x96xbf16>, vector<96x42xbf16>, vector<56x42xf32> -> vector<56x42xf32>
    %c17 = arith.constant 17 : index
    %c0_131 = arith.constant 0 : index
    %c0_132 = arith.constant 0 : index
    %146 = vector.load %arg2[%c17, %c0_131, %c0_132] : memref<20x96x42xbf16, #tpu.memory_space<vmem>>, vector<1x96x42xbf16>
    %147 = vector.shape_cast %146 : vector<1x96x42xbf16> to vector<96x42xbf16>
    %cst_133 = arith.constant dense<0.000000e+00> : vector<56x42xf32>
    %148 = tpu.matmul %11, %147, %cst_133 {dimension_numbers = #tpu.dot_dimension_numbers<[1], [0], [0], [1], [0, 0, 1, 1], [], []>} : vector<56x96xbf16>, vector<96x42xbf16>, vector<56x42xf32> -> vector<56x42xf32>
    %c18 = arith.constant 18 : index
    %c0_134 = arith.constant 0 : index
    %c0_135 = arith.constant 0 : index
    %149 = vector.load %arg2[%c18, %c0_134, %c0_135] : memref<20x96x42xbf16, #tpu.memory_space<vmem>>, vector<1x96x42xbf16>
    %150 = vector.shape_cast %149 : vector<1x96x42xbf16> to vector<96x42xbf16>
    %cst_136 = arith.constant dense<0.000000e+00> : vector<56x42xf32>
    %151 = tpu.matmul %15, %150, %cst_136 {dimension_numbers = #tpu.dot_dimension_numbers<[1], [0], [0], [1], [0, 0, 1, 1], [], []>} : vector<56x96xbf16>, vector<96x42xbf16>, vector<56x42xf32> -> vector<56x42xf32>
    %c19 = arith.constant 19 : index
    %c0_137 = arith.constant 0 : index
    %c0_138 = arith.constant 0 : index
    %152 = vector.load %arg2[%c19, %c0_137, %c0_138] : memref<20x96x42xbf16, #tpu.memory_space<vmem>>, vector<1x96x42xbf16>
    %153 = vector.shape_cast %152 : vector<1x96x42xbf16> to vector<96x42xbf16>
    %cst_139 = arith.constant dense<0.000000e+00> : vector<56x42xf32>
    %154 = tpu.matmul %5, %153, %cst_139 {dimension_numbers = #tpu.dot_dimension_numbers<[1], [0], [0], [1], [0, 0, 1, 1], [], []>} : vector<56x96xbf16>, vector<96x42xbf16>, vector<56x42xf32> -> vector<56x42xf32>
    %155 = arith.addf %142, %145 : vector<56x42xf32>
    %156 = arith.addf %148, %151 : vector<56x42xf32>
    %157 = arith.addf %155, %156 : vector<56x42xf32>
    %158 = arith.addf %157, %154 : vector<56x42xf32>
    %159 = vector.broadcast %0 : vector<1x42xf32> to vector<56x42xf32>
    %160 = arith.addf %158, %159 : vector<56x42xf32>
    %cst_140 = arith.constant 0.000000e+00 : f32
    %161 = vector.broadcast %cst_140 : f32 to vector<56x42xf32>
    %162 = arith.maximumf %160, %161 : vector<56x42xf32>
    %c10_141 = arith.constant 10 : index
    %c0_142 = arith.constant 0 : index
    %c0_143 = arith.constant 0 : index
    %163 = vector.load %arg2[%c10_141, %c0_142, %c0_143] : memref<20x96x42xbf16, #tpu.memory_space<vmem>>, vector<1x96x42xbf16>
    %164 = vector.shape_cast %163 : vector<1x96x42xbf16> to vector<96x42xbf16>
    %cst_144 = arith.constant dense<0.000000e+00> : vector<56x42xf32>
    %165 = tpu.matmul %7, %164, %cst_144 {dimension_numbers = #tpu.dot_dimension_numbers<[1], [0], [0], [1], [0, 0, 1, 1], [], []>} : vector<56x96xbf16>, vector<96x42xbf16>, vector<56x42xf32> -> vector<56x42xf32>
    %c11_145 = arith.constant 11 : index
    %c0_146 = arith.constant 0 : index
    %c0_147 = arith.constant 0 : index
    %166 = vector.load %arg2[%c11_145, %c0_146, %c0_147] : memref<20x96x42xbf16, #tpu.memory_space<vmem>>, vector<1x96x42xbf16>
    %167 = vector.shape_cast %166 : vector<1x96x42xbf16> to vector<96x42xbf16>
    %cst_148 = arith.constant dense<0.000000e+00> : vector<56x42xf32>
    %168 = tpu.matmul %11, %167, %cst_148 {dimension_numbers = #tpu.dot_dimension_numbers<[1], [0], [0], [1], [0, 0, 1, 1], [], []>} : vector<56x96xbf16>, vector<96x42xbf16>, vector<56x42xf32> -> vector<56x42xf32>
    %c12_149 = arith.constant 12 : index
    %c0_150 = arith.constant 0 : index
    %c0_151 = arith.constant 0 : index
    %169 = vector.load %arg2[%c12_149, %c0_150, %c0_151] : memref<20x96x42xbf16, #tpu.memory_space<vmem>>, vector<1x96x42xbf16>
    %170 = vector.shape_cast %169 : vector<1x96x42xbf16> to vector<96x42xbf16>
    %cst_152 = arith.constant dense<0.000000e+00> : vector<56x42xf32>
    %171 = tpu.matmul %15, %170, %cst_152 {dimension_numbers = #tpu.dot_dimension_numbers<[1], [0], [0], [1], [0, 0, 1, 1], [], []>} : vector<56x96xbf16>, vector<96x42xbf16>, vector<56x42xf32> -> vector<56x42xf32>
    %c13_153 = arith.constant 13 : index
    %c0_154 = arith.constant 0 : index
    %c0_155 = arith.constant 0 : index
    %172 = vector.load %arg2[%c13_153, %c0_154, %c0_155] : memref<20x96x42xbf16, #tpu.memory_space<vmem>>, vector<1x96x42xbf16>
    %173 = vector.shape_cast %172 : vector<1x96x42xbf16> to vector<96x42xbf16>
    %cst_156 = arith.constant dense<0.000000e+00> : vector<56x42xf32>
    %174 = tpu.matmul %5, %173, %cst_156 {dimension_numbers = #tpu.dot_dimension_numbers<[1], [0], [0], [1], [0, 0, 1, 1], [], []>} : vector<56x96xbf16>, vector<96x42xbf16>, vector<56x42xf32> -> vector<56x42xf32>
    %c14_157 = arith.constant 14 : index
    %c0_158 = arith.constant 0 : index
    %c0_159 = arith.constant 0 : index
    %175 = vector.load %arg2[%c14_157, %c0_158, %c0_159] : memref<20x96x42xbf16, #tpu.memory_space<vmem>>, vector<1x96x42xbf16>
    %176 = vector.shape_cast %175 : vector<1x96x42xbf16> to vector<96x42xbf16>
    %cst_160 = arith.constant dense<0.000000e+00> : vector<56x42xf32>
    %177 = tpu.matmul %9, %176, %cst_160 {dimension_numbers = #tpu.dot_dimension_numbers<[1], [0], [0], [1], [0, 0, 1, 1], [], []>} : vector<56x96xbf16>, vector<96x42xbf16>, vector<56x42xf32> -> vector<56x42xf32>
    %178 = arith.addf %165, %168 : vector<56x42xf32>
    %179 = arith.addf %171, %174 : vector<56x42xf32>
    %180 = arith.addf %178, %179 : vector<56x42xf32>
    %181 = arith.addf %180, %177 : vector<56x42xf32>
    %182 = vector.broadcast %0 : vector<1x42xf32> to vector<56x42xf32>
    %183 = arith.addf %181, %182 : vector<56x42xf32>
    %cst_161 = arith.constant 0.000000e+00 : f32
    %184 = vector.broadcast %cst_161 : f32 to vector<56x42xf32>
    %185 = arith.maximumf %183, %184 : vector<56x42xf32>
    %c15_162 = arith.constant 15 : index
    %c0_163 = arith.constant 0 : index
    %c0_164 = arith.constant 0 : index
    %186 = vector.load %arg2[%c15_162, %c0_163, %c0_164] : memref<20x96x42xbf16, #tpu.memory_space<vmem>>, vector<1x96x42xbf16>
    %187 = vector.shape_cast %186 : vector<1x96x42xbf16> to vector<96x42xbf16>
    %cst_165 = arith.constant dense<0.000000e+00> : vector<56x42xf32>
    %188 = tpu.matmul %7, %187, %cst_165 {dimension_numbers = #tpu.dot_dimension_numbers<[1], [0], [0], [1], [0, 0, 1, 1], [], []>} : vector<56x96xbf16>, vector<96x42xbf16>, vector<56x42xf32> -> vector<56x42xf32>
    %c16_166 = arith.constant 16 : index
    %c0_167 = arith.constant 0 : index
    %c0_168 = arith.constant 0 : index
    %189 = vector.load %arg2[%c16_166, %c0_167, %c0_168] : memref<20x96x42xbf16, #tpu.memory_space<vmem>>, vector<1x96x42xbf16>
    %190 = vector.shape_cast %189 : vector<1x96x42xbf16> to vector<96x42xbf16>
    %cst_169 = arith.constant dense<0.000000e+00> : vector<56x42xf32>
    %191 = tpu.matmul %11, %190, %cst_169 {dimension_numbers = #tpu.dot_dimension_numbers<[1], [0], [0], [1], [0, 0, 1, 1], [], []>} : vector<56x96xbf16>, vector<96x42xbf16>, vector<56x42xf32> -> vector<56x42xf32>
    %c17_170 = arith.constant 17 : index
    %c0_171 = arith.constant 0 : index
    %c0_172 = arith.constant 0 : index
    %192 = vector.load %arg2[%c17_170, %c0_171, %c0_172] : memref<20x96x42xbf16, #tpu.memory_space<vmem>>, vector<1x96x42xbf16>
    %193 = vector.shape_cast %192 : vector<1x96x42xbf16> to vector<96x42xbf16>
    %cst_173 = arith.constant dense<0.000000e+00> : vector<56x42xf32>
    %194 = tpu.matmul %15, %193, %cst_173 {dimension_numbers = #tpu.dot_dimension_numbers<[1], [0], [0], [1], [0, 0, 1, 1], [], []>} : vector<56x96xbf16>, vector<96x42xbf16>, vector<56x42xf32> -> vector<56x42xf32>
    %c18_174 = arith.constant 18 : index
    %c0_175 = arith.constant 0 : index
    %c0_176 = arith.constant 0 : index
    %195 = vector.load %arg2[%c18_174, %c0_175, %c0_176] : memref<20x96x42xbf16, #tpu.memory_space<vmem>>, vector<1x96x42xbf16>
    %196 = vector.shape_cast %195 : vector<1x96x42xbf16> to vector<96x42xbf16>
    %cst_177 = arith.constant dense<0.000000e+00> : vector<56x42xf32>
    %197 = tpu.matmul %5, %196, %cst_177 {dimension_numbers = #tpu.dot_dimension_numbers<[1], [0], [0], [1], [0, 0, 1, 1], [], []>} : vector<56x96xbf16>, vector<96x42xbf16>, vector<56x42xf32> -> vector<56x42xf32>
    %c19_178 = arith.constant 19 : index
    %c0_179 = arith.constant 0 : index
    %c0_180 = arith.constant 0 : index
    %198 = vector.load %arg2[%c19_178, %c0_179, %c0_180] : memref<20x96x42xbf16, #tpu.memory_space<vmem>>, vector<1x96x42xbf16>
    %199 = vector.shape_cast %198 : vector<1x96x42xbf16> to vector<96x42xbf16>
    %cst_181 = arith.constant dense<0.000000e+00> : vector<56x42xf32>
    %200 = tpu.matmul %9, %199, %cst_181 {dimension_numbers = #tpu.dot_dimension_numbers<[1], [0], [0], [1], [0, 0, 1, 1], [], []>} : vector<56x96xbf16>, vector<96x42xbf16>, vector<56x42xf32> -> vector<56x42xf32>
    %201 = arith.addf %188, %191 : vector<56x42xf32>
    %202 = arith.addf %194, %197 : vector<56x42xf32>
    %203 = arith.addf %201, %202 : vector<56x42xf32>
    %204 = arith.addf %203, %200 : vector<56x42xf32>
    %205 = vector.broadcast %0 : vector<1x42xf32> to vector<56x42xf32>
    %206 = arith.addf %204, %205 : vector<56x42xf32>
    %cst_182 = arith.constant 0.000000e+00 : f32
    %207 = vector.broadcast %cst_182 : f32 to vector<56x42xf32>
    %208 = arith.maximumf %206, %207 : vector<56x42xf32>
    %209 = arith.maximumf %139, %162 : vector<56x42xf32>
    %210 = arith.maximumf %185, %208 : vector<56x42xf32>
    %211 = arith.maximumf %209, %210 : vector<56x42xf32>
    %212 = arith.truncf %211 : vector<56x42xf32> to vector<56x42xbf16>
    %213 = vector.extract_strided_slice %212 {offsets = [0, 0], sizes = [40, 42], strides = [1, 1]} : vector<56x42xbf16> to vector<40x42xbf16>
    %214 = vector.extract_strided_slice %212 {offsets = [8, 0], sizes = [40, 42], strides = [1, 1]} : vector<56x42xbf16> to vector<40x42xbf16>
    %215 = vector.extract_strided_slice %212 {offsets = [16, 0], sizes = [40, 42], strides = [1, 1]} : vector<56x42xbf16> to vector<40x42xbf16>
    %c0_183 = arith.constant 0 : index
    %c0_184 = arith.constant 0 : index
    %c0_185 = arith.constant 0 : index
    %216 = vector.load %arg2[%c0_183, %c0_184, %c0_185] : memref<20x96x42xbf16, #tpu.memory_space<vmem>>, vector<1x96x42xbf16>
    %217 = vector.shape_cast %216 : vector<1x96x42xbf16> to vector<96x42xbf16>
    %cst_186 = arith.constant dense<0.000000e+00> : vector<56x42xf32>
    %218 = tpu.matmul %11, %217, %cst_186 {dimension_numbers = #tpu.dot_dimension_numbers<[1], [0], [0], [1], [0, 0, 1, 1], [], []>} : vector<56x96xbf16>, vector<96x42xbf16>, vector<56x42xf32> -> vector<56x42xf32>
    %c1_187 = arith.constant 1 : index
    %c0_188 = arith.constant 0 : index
    %c0_189 = arith.constant 0 : index
    %219 = vector.load %arg2[%c1_187, %c0_188, %c0_189] : memref<20x96x42xbf16, #tpu.memory_space<vmem>>, vector<1x96x42xbf16>
    %220 = vector.shape_cast %219 : vector<1x96x42xbf16> to vector<96x42xbf16>
    %cst_190 = arith.constant dense<0.000000e+00> : vector<56x42xf32>
    %221 = tpu.matmul %15, %220, %cst_190 {dimension_numbers = #tpu.dot_dimension_numbers<[1], [0], [0], [1], [0, 0, 1, 1], [], []>} : vector<56x96xbf16>, vector<96x42xbf16>, vector<56x42xf32> -> vector<56x42xf32>
    %c2_191 = arith.constant 2 : index
    %c0_192 = arith.constant 0 : index
    %c0_193 = arith.constant 0 : index
    %222 = vector.load %arg2[%c2_191, %c0_192, %c0_193] : memref<20x96x42xbf16, #tpu.memory_space<vmem>>, vector<1x96x42xbf16>
    %223 = vector.shape_cast %222 : vector<1x96x42xbf16> to vector<96x42xbf16>
    %cst_194 = arith.constant dense<0.000000e+00> : vector<56x42xf32>
    %224 = tpu.matmul %5, %223, %cst_194 {dimension_numbers = #tpu.dot_dimension_numbers<[1], [0], [0], [1], [0, 0, 1, 1], [], []>} : vector<56x96xbf16>, vector<96x42xbf16>, vector<56x42xf32> -> vector<56x42xf32>
    %c3_195 = arith.constant 3 : index
    %c0_196 = arith.constant 0 : index
    %c0_197 = arith.constant 0 : index
    %225 = vector.load %arg2[%c3_195, %c0_196, %c0_197] : memref<20x96x42xbf16, #tpu.memory_space<vmem>>, vector<1x96x42xbf16>
    %226 = vector.shape_cast %225 : vector<1x96x42xbf16> to vector<96x42xbf16>
    %cst_198 = arith.constant dense<0.000000e+00> : vector<56x42xf32>
    %227 = tpu.matmul %9, %226, %cst_198 {dimension_numbers = #tpu.dot_dimension_numbers<[1], [0], [0], [1], [0, 0, 1, 1], [], []>} : vector<56x96xbf16>, vector<96x42xbf16>, vector<56x42xf32> -> vector<56x42xf32>
    %c4_199 = arith.constant 4 : index
    %c0_200 = arith.constant 0 : index
    %c0_201 = arith.constant 0 : index
    %228 = vector.load %arg2[%c4_199, %c0_200, %c0_201] : memref<20x96x42xbf16, #tpu.memory_space<vmem>>, vector<1x96x42xbf16>
    %229 = vector.shape_cast %228 : vector<1x96x42xbf16> to vector<96x42xbf16>
    %cst_202 = arith.constant dense<0.000000e+00> : vector<56x42xf32>
    %230 = tpu.matmul %13, %229, %cst_202 {dimension_numbers = #tpu.dot_dimension_numbers<[1], [0], [0], [1], [0, 0, 1, 1], [], []>} : vector<56x96xbf16>, vector<96x42xbf16>, vector<56x42xf32> -> vector<56x42xf32>
    %231 = arith.addf %218, %221 : vector<56x42xf32>
    %232 = arith.addf %224, %227 : vector<56x42xf32>
    %233 = arith.addf %231, %232 : vector<56x42xf32>
    %234 = arith.addf %233, %230 : vector<56x42xf32>
    %235 = vector.broadcast %0 : vector<1x42xf32> to vector<56x42xf32>
    %236 = arith.addf %234, %235 : vector<56x42xf32>
    %cst_203 = arith.constant 0.000000e+00 : f32
    %237 = vector.broadcast %cst_203 : f32 to vector<56x42xf32>
    %238 = arith.maximumf %236, %237 : vector<56x42xf32>
    %c5_204 = arith.constant 5 : index
    %c0_205 = arith.constant 0 : index
    %c0_206 = arith.constant 0 : index
    %239 = vector.load %arg2[%c5_204, %c0_205, %c0_206] : memref<20x96x42xbf16, #tpu.memory_space<vmem>>, vector<1x96x42xbf16>
    %240 = vector.shape_cast %239 : vector<1x96x42xbf16> to vector<96x42xbf16>
    %cst_207 = arith.constant dense<0.000000e+00> : vector<56x42xf32>
    %241 = tpu.matmul %11, %240, %cst_207 {dimension_numbers = #tpu.dot_dimension_numbers<[1], [0], [0], [1], [0, 0, 1, 1], [], []>} : vector<56x96xbf16>, vector<96x42xbf16>, vector<56x42xf32> -> vector<56x42xf32>
    %c6_208 = arith.constant 6 : index
    %c0_209 = arith.constant 0 : index
    %c0_210 = arith.constant 0 : index
    %242 = vector.load %arg2[%c6_208, %c0_209, %c0_210] : memref<20x96x42xbf16, #tpu.memory_space<vmem>>, vector<1x96x42xbf16>
    %243 = vector.shape_cast %242 : vector<1x96x42xbf16> to vector<96x42xbf16>
    %cst_211 = arith.constant dense<0.000000e+00> : vector<56x42xf32>
    %244 = tpu.matmul %15, %243, %cst_211 {dimension_numbers = #tpu.dot_dimension_numbers<[1], [0], [0], [1], [0, 0, 1, 1], [], []>} : vector<56x96xbf16>, vector<96x42xbf16>, vector<56x42xf32> -> vector<56x42xf32>
    %c7_212 = arith.constant 7 : index
    %c0_213 = arith.constant 0 : index
    %c0_214 = arith.constant 0 : index
    %245 = vector.load %arg2[%c7_212, %c0_213, %c0_214] : memref<20x96x42xbf16, #tpu.memory_space<vmem>>, vector<1x96x42xbf16>
    %246 = vector.shape_cast %245 : vector<1x96x42xbf16> to vector<96x42xbf16>
    %cst_215 = arith.constant dense<0.000000e+00> : vector<56x42xf32>
    %247 = tpu.matmul %5, %246, %cst_215 {dimension_numbers = #tpu.dot_dimension_numbers<[1], [0], [0], [1], [0, 0, 1, 1], [], []>} : vector<56x96xbf16>, vector<96x42xbf16>, vector<56x42xf32> -> vector<56x42xf32>
    %c8_216 = arith.constant 8 : index
    %c0_217 = arith.constant 0 : index
    %c0_218 = arith.constant 0 : index
    %248 = vector.load %arg2[%c8_216, %c0_217, %c0_218] : memref<20x96x42xbf16, #tpu.memory_space<vmem>>, vector<1x96x42xbf16>
    %249 = vector.shape_cast %248 : vector<1x96x42xbf16> to vector<96x42xbf16>
    %cst_219 = arith.constant dense<0.000000e+00> : vector<56x42xf32>
    %250 = tpu.matmul %9, %249, %cst_219 {dimension_numbers = #tpu.dot_dimension_numbers<[1], [0], [0], [1], [0, 0, 1, 1], [], []>} : vector<56x96xbf16>, vector<96x42xbf16>, vector<56x42xf32> -> vector<56x42xf32>
    %c9_220 = arith.constant 9 : index
    %c0_221 = arith.constant 0 : index
    %c0_222 = arith.constant 0 : index
    %251 = vector.load %arg2[%c9_220, %c0_221, %c0_222] : memref<20x96x42xbf16, #tpu.memory_space<vmem>>, vector<1x96x42xbf16>
    %252 = vector.shape_cast %251 : vector<1x96x42xbf16> to vector<96x42xbf16>
    %cst_223 = arith.constant dense<0.000000e+00> : vector<56x42xf32>
    %253 = tpu.matmul %13, %252, %cst_223 {dimension_numbers = #tpu.dot_dimension_numbers<[1], [0], [0], [1], [0, 0, 1, 1], [], []>} : vector<56x96xbf16>, vector<96x42xbf16>, vector<56x42xf32> -> vector<56x42xf32>
    %254 = arith.addf %241, %244 : vector<56x42xf32>
    %255 = arith.addf %247, %250 : vector<56x42xf32>
    %256 = arith.addf %254, %255 : vector<56x42xf32>
    %257 = arith.addf %256, %253 : vector<56x42xf32>
    %258 = vector.broadcast %0 : vector<1x42xf32> to vector<56x42xf32>
    %259 = arith.addf %257, %258 : vector<56x42xf32>
    %cst_224 = arith.constant 0.000000e+00 : f32
    %260 = vector.broadcast %cst_224 : f32 to vector<56x42xf32>
    %261 = arith.maximumf %259, %260 : vector<56x42xf32>
    %c0_225 = arith.constant 0 : index
    %c0_226 = arith.constant 0 : index
    %c0_227 = arith.constant 0 : index
    %262 = vector.load %arg2[%c0_225, %c0_226, %c0_227] : memref<20x96x42xbf16, #tpu.memory_space<vmem>>, vector<1x96x42xbf16>
    %263 = vector.shape_cast %262 : vector<1x96x42xbf16> to vector<96x42xbf16>
    %cst_228 = arith.constant dense<0.000000e+00> : vector<56x42xf32>
    %264 = tpu.matmul %15, %263, %cst_228 {dimension_numbers = #tpu.dot_dimension_numbers<[1], [0], [0], [1], [0, 0, 1, 1], [], []>} : vector<56x96xbf16>, vector<96x42xbf16>, vector<56x42xf32> -> vector<56x42xf32>
    %c1_229 = arith.constant 1 : index
    %c0_230 = arith.constant 0 : index
    %c0_231 = arith.constant 0 : index
    %265 = vector.load %arg2[%c1_229, %c0_230, %c0_231] : memref<20x96x42xbf16, #tpu.memory_space<vmem>>, vector<1x96x42xbf16>
    %266 = vector.shape_cast %265 : vector<1x96x42xbf16> to vector<96x42xbf16>
    %cst_232 = arith.constant dense<0.000000e+00> : vector<56x42xf32>
    %267 = tpu.matmul %5, %266, %cst_232 {dimension_numbers = #tpu.dot_dimension_numbers<[1], [0], [0], [1], [0, 0, 1, 1], [], []>} : vector<56x96xbf16>, vector<96x42xbf16>, vector<56x42xf32> -> vector<56x42xf32>
    %c2_233 = arith.constant 2 : index
    %c0_234 = arith.constant 0 : index
    %c0_235 = arith.constant 0 : index
    %268 = vector.load %arg2[%c2_233, %c0_234, %c0_235] : memref<20x96x42xbf16, #tpu.memory_space<vmem>>, vector<1x96x42xbf16>
    %269 = vector.shape_cast %268 : vector<1x96x42xbf16> to vector<96x42xbf16>
    %cst_236 = arith.constant dense<0.000000e+00> : vector<56x42xf32>
    %270 = tpu.matmul %9, %269, %cst_236 {dimension_numbers = #tpu.dot_dimension_numbers<[1], [0], [0], [1], [0, 0, 1, 1], [], []>} : vector<56x96xbf16>, vector<96x42xbf16>, vector<56x42xf32> -> vector<56x42xf32>
    %c3_237 = arith.constant 3 : index
    %c0_238 = arith.constant 0 : index
    %c0_239 = arith.constant 0 : index
    %271 = vector.load %arg2[%c3_237, %c0_238, %c0_239] : memref<20x96x42xbf16, #tpu.memory_space<vmem>>, vector<1x96x42xbf16>
    %272 = vector.shape_cast %271 : vector<1x96x42xbf16> to vector<96x42xbf16>
    %cst_240 = arith.constant dense<0.000000e+00> : vector<56x42xf32>
    %273 = tpu.matmul %13, %272, %cst_240 {dimension_numbers = #tpu.dot_dimension_numbers<[1], [0], [0], [1], [0, 0, 1, 1], [], []>} : vector<56x96xbf16>, vector<96x42xbf16>, vector<56x42xf32> -> vector<56x42xf32>
    %c4_241 = arith.constant 4 : index
    %c0_242 = arith.constant 0 : index
    %c0_243 = arith.constant 0 : index
    %274 = vector.load %arg2[%c4_241, %c0_242, %c0_243] : memref<20x96x42xbf16, #tpu.memory_space<vmem>>, vector<1x96x42xbf16>
    %275 = vector.shape_cast %274 : vector<1x96x42xbf16> to vector<96x42xbf16>
    %cst_244 = arith.constant dense<0.000000e+00> : vector<56x42xf32>
    %276 = tpu.matmul %17, %275, %cst_244 {dimension_numbers = #tpu.dot_dimension_numbers<[1], [0], [0], [1], [0, 0, 1, 1], [], []>} : vector<56x96xbf16>, vector<96x42xbf16>, vector<56x42xf32> -> vector<56x42xf32>
    %277 = arith.addf %264, %267 : vector<56x42xf32>
    %278 = arith.addf %270, %273 : vector<56x42xf32>
    %279 = arith.addf %277, %278 : vector<56x42xf32>
    %280 = arith.addf %279, %276 : vector<56x42xf32>
    %281 = vector.broadcast %0 : vector<1x42xf32> to vector<56x42xf32>
    %282 = arith.addf %280, %281 : vector<56x42xf32>
    %cst_245 = arith.constant 0.000000e+00 : f32
    %283 = vector.broadcast %cst_245 : f32 to vector<56x42xf32>
    %284 = arith.maximumf %282, %283 : vector<56x42xf32>
    %c5_246 = arith.constant 5 : index
    %c0_247 = arith.constant 0 : index
    %c0_248 = arith.constant 0 : index
    %285 = vector.load %arg2[%c5_246, %c0_247, %c0_248] : memref<20x96x42xbf16, #tpu.memory_space<vmem>>, vector<1x96x42xbf16>
    %286 = vector.shape_cast %285 : vector<1x96x42xbf16> to vector<96x42xbf16>
    %cst_249 = arith.constant dense<0.000000e+00> : vector<56x42xf32>
    %287 = tpu.matmul %15, %286, %cst_249 {dimension_numbers = #tpu.dot_dimension_numbers<[1], [0], [0], [1], [0, 0, 1, 1], [], []>} : vector<56x96xbf16>, vector<96x42xbf16>, vector<56x42xf32> -> vector<56x42xf32>
    %c6_250 = arith.constant 6 : index
    %c0_251 = arith.constant 0 : index
    %c0_252 = arith.constant 0 : index
    %288 = vector.load %arg2[%c6_250, %c0_251, %c0_252] : memref<20x96x42xbf16, #tpu.memory_space<vmem>>, vector<1x96x42xbf16>
    %289 = vector.shape_cast %288 : vector<1x96x42xbf16> to vector<96x42xbf16>
    %cst_253 = arith.constant dense<0.000000e+00> : vector<56x42xf32>
    %290 = tpu.matmul %5, %289, %cst_253 {dimension_numbers = #tpu.dot_dimension_numbers<[1], [0], [0], [1], [0, 0, 1, 1], [], []>} : vector<56x96xbf16>, vector<96x42xbf16>, vector<56x42xf32> -> vector<56x42xf32>
    %c7_254 = arith.constant 7 : index
    %c0_255 = arith.constant 0 : index
    %c0_256 = arith.constant 0 : index
    %291 = vector.load %arg2[%c7_254, %c0_255, %c0_256] : memref<20x96x42xbf16, #tpu.memory_space<vmem>>, vector<1x96x42xbf16>
    %292 = vector.shape_cast %291 : vector<1x96x42xbf16> to vector<96x42xbf16>
    %cst_257 = arith.constant dense<0.000000e+00> : vector<56x42xf32>
    %293 = tpu.matmul %9, %292, %cst_257 {dimension_numbers = #tpu.dot_dimension_numbers<[1], [0], [0], [1], [0, 0, 1, 1], [], []>} : vector<56x96xbf16>, vector<96x42xbf16>, vector<56x42xf32> -> vector<56x42xf32>
    %c8_258 = arith.constant 8 : index
    %c0_259 = arith.constant 0 : index
    %c0_260 = arith.constant 0 : index
    %294 = vector.load %arg2[%c8_258, %c0_259, %c0_260] : memref<20x96x42xbf16, #tpu.memory_space<vmem>>, vector<1x96x42xbf16>
    %295 = vector.shape_cast %294 : vector<1x96x42xbf16> to vector<96x42xbf16>
    %cst_261 = arith.constant dense<0.000000e+00> : vector<56x42xf32>
    %296 = tpu.matmul %13, %295, %cst_261 {dimension_numbers = #tpu.dot_dimension_numbers<[1], [0], [0], [1], [0, 0, 1, 1], [], []>} : vector<56x96xbf16>, vector<96x42xbf16>, vector<56x42xf32> -> vector<56x42xf32>
    %c9_262 = arith.constant 9 : index
    %c0_263 = arith.constant 0 : index
    %c0_264 = arith.constant 0 : index
    %297 = vector.load %arg2[%c9_262, %c0_263, %c0_264] : memref<20x96x42xbf16, #tpu.memory_space<vmem>>, vector<1x96x42xbf16>
    %298 = vector.shape_cast %297 : vector<1x96x42xbf16> to vector<96x42xbf16>
    %cst_265 = arith.constant dense<0.000000e+00> : vector<56x42xf32>
    %299 = tpu.matmul %17, %298, %cst_265 {dimension_numbers = #tpu.dot_dimension_numbers<[1], [0], [0], [1], [0, 0, 1, 1], [], []>} : vector<56x96xbf16>, vector<96x42xbf16>, vector<56x42xf32> -> vector<56x42xf32>
    %300 = arith.addf %287, %290 : vector<56x42xf32>
    %301 = arith.addf %293, %296 : vector<56x42xf32>
    %302 = arith.addf %300, %301 : vector<56x42xf32>
    %303 = arith.addf %302, %299 : vector<56x42xf32>
    %304 = vector.broadcast %0 : vector<1x42xf32> to vector<56x42xf32>
    %305 = arith.addf %303, %304 : vector<56x42xf32>
    %cst_266 = arith.constant 0.000000e+00 : f32
    %306 = vector.broadcast %cst_266 : f32 to vector<56x42xf32>
    %307 = arith.maximumf %305, %306 : vector<56x42xf32>
    %308 = arith.maximumf %238, %261 : vector<56x42xf32>
    %309 = arith.maximumf %284, %307 : vector<56x42xf32>
    %310 = arith.maximumf %308, %309 : vector<56x42xf32>
    %311 = arith.truncf %310 : vector<56x42xf32> to vector<56x42xbf16>
    %312 = vector.extract_strided_slice %311 {offsets = [0, 0], sizes = [40, 42], strides = [1, 1]} : vector<56x42xbf16> to vector<40x42xbf16>
    %313 = vector.extract_strided_slice %311 {offsets = [8, 0], sizes = [40, 42], strides = [1, 1]} : vector<56x42xbf16> to vector<40x42xbf16>
    %314 = vector.extract_strided_slice %311 {offsets = [16, 0], sizes = [40, 42], strides = [1, 1]} : vector<56x42xbf16> to vector<40x42xbf16>
    %c10_267 = arith.constant 10 : index
    %c0_268 = arith.constant 0 : index
    %c0_269 = arith.constant 0 : index
    %315 = vector.load %arg2[%c10_267, %c0_268, %c0_269] : memref<20x96x42xbf16, #tpu.memory_space<vmem>>, vector<1x96x42xbf16>
    %316 = vector.shape_cast %315 : vector<1x96x42xbf16> to vector<96x42xbf16>
    %cst_270 = arith.constant dense<0.000000e+00> : vector<56x42xf32>
    %317 = tpu.matmul %11, %316, %cst_270 {dimension_numbers = #tpu.dot_dimension_numbers<[1], [0], [0], [1], [0, 0, 1, 1], [], []>} : vector<56x96xbf16>, vector<96x42xbf16>, vector<56x42xf32> -> vector<56x42xf32>
    %c11_271 = arith.constant 11 : index
    %c0_272 = arith.constant 0 : index
    %c0_273 = arith.constant 0 : index
    %318 = vector.load %arg2[%c11_271, %c0_272, %c0_273] : memref<20x96x42xbf16, #tpu.memory_space<vmem>>, vector<1x96x42xbf16>
    %319 = vector.shape_cast %318 : vector<1x96x42xbf16> to vector<96x42xbf16>
    %cst_274 = arith.constant dense<0.000000e+00> : vector<56x42xf32>
    %320 = tpu.matmul %15, %319, %cst_274 {dimension_numbers = #tpu.dot_dimension_numbers<[1], [0], [0], [1], [0, 0, 1, 1], [], []>} : vector<56x96xbf16>, vector<96x42xbf16>, vector<56x42xf32> -> vector<56x42xf32>
    %c12_275 = arith.constant 12 : index
    %c0_276 = arith.constant 0 : index
    %c0_277 = arith.constant 0 : index
    %321 = vector.load %arg2[%c12_275, %c0_276, %c0_277] : memref<20x96x42xbf16, #tpu.memory_space<vmem>>, vector<1x96x42xbf16>
    %322 = vector.shape_cast %321 : vector<1x96x42xbf16> to vector<96x42xbf16>
    %cst_278 = arith.constant dense<0.000000e+00> : vector<56x42xf32>
    %323 = tpu.matmul %5, %322, %cst_278 {dimension_numbers = #tpu.dot_dimension_numbers<[1], [0], [0], [1], [0, 0, 1, 1], [], []>} : vector<56x96xbf16>, vector<96x42xbf16>, vector<56x42xf32> -> vector<56x42xf32>
    %c13_279 = arith.constant 13 : index
    %c0_280 = arith.constant 0 : index
    %c0_281 = arith.constant 0 : index
    %324 = vector.load %arg2[%c13_279, %c0_280, %c0_281] : memref<20x96x42xbf16, #tpu.memory_space<vmem>>, vector<1x96x42xbf16>
    %325 = vector.shape_cast %324 : vector<1x96x42xbf16> to vector<96x42xbf16>
    %cst_282 = arith.constant dense<0.000000e+00> : vector<56x42xf32>
    %326 = tpu.matmul %9, %325, %cst_282 {dimension_numbers = #tpu.dot_dimension_numbers<[1], [0], [0], [1], [0, 0, 1, 1], [], []>} : vector<56x96xbf16>, vector<96x42xbf16>, vector<56x42xf32> -> vector<56x42xf32>
    %c14_283 = arith.constant 14 : index
    %c0_284 = arith.constant 0 : index
    %c0_285 = arith.constant 0 : index
    %327 = vector.load %arg2[%c14_283, %c0_284, %c0_285] : memref<20x96x42xbf16, #tpu.memory_space<vmem>>, vector<1x96x42xbf16>
    %328 = vector.shape_cast %327 : vector<1x96x42xbf16> to vector<96x42xbf16>
    %cst_286 = arith.constant dense<0.000000e+00> : vector<56x42xf32>
    %329 = tpu.matmul %13, %328, %cst_286 {dimension_numbers = #tpu.dot_dimension_numbers<[1], [0], [0], [1], [0, 0, 1, 1], [], []>} : vector<56x96xbf16>, vector<96x42xbf16>, vector<56x42xf32> -> vector<56x42xf32>
    %330 = arith.addf %317, %320 : vector<56x42xf32>
    %331 = arith.addf %323, %326 : vector<56x42xf32>
    %332 = arith.addf %330, %331 : vector<56x42xf32>
    %333 = arith.addf %332, %329 : vector<56x42xf32>
    %334 = vector.broadcast %0 : vector<1x42xf32> to vector<56x42xf32>
    %335 = arith.addf %333, %334 : vector<56x42xf32>
    %cst_287 = arith.constant 0.000000e+00 : f32
    %336 = vector.broadcast %cst_287 : f32 to vector<56x42xf32>
    %337 = arith.maximumf %335, %336 : vector<56x42xf32>
    %c15_288 = arith.constant 15 : index
    %c0_289 = arith.constant 0 : index
    %c0_290 = arith.constant 0 : index
    %338 = vector.load %arg2[%c15_288, %c0_289, %c0_290] : memref<20x96x42xbf16, #tpu.memory_space<vmem>>, vector<1x96x42xbf16>
    %339 = vector.shape_cast %338 : vector<1x96x42xbf16> to vector<96x42xbf16>
    %cst_291 = arith.constant dense<0.000000e+00> : vector<56x42xf32>
    %340 = tpu.matmul %11, %339, %cst_291 {dimension_numbers = #tpu.dot_dimension_numbers<[1], [0], [0], [1], [0, 0, 1, 1], [], []>} : vector<56x96xbf16>, vector<96x42xbf16>, vector<56x42xf32> -> vector<56x42xf32>
    %c16_292 = arith.constant 16 : index
    %c0_293 = arith.constant 0 : index
    %c0_294 = arith.constant 0 : index
    %341 = vector.load %arg2[%c16_292, %c0_293, %c0_294] : memref<20x96x42xbf16, #tpu.memory_space<vmem>>, vector<1x96x42xbf16>
    %342 = vector.shape_cast %341 : vector<1x96x42xbf16> to vector<96x42xbf16>
    %cst_295 = arith.constant dense<0.000000e+00> : vector<56x42xf32>
    %343 = tpu.matmul %15, %342, %cst_295 {dimension_numbers = #tpu.dot_dimension_numbers<[1], [0], [0], [1], [0, 0, 1, 1], [], []>} : vector<56x96xbf16>, vector<96x42xbf16>, vector<56x42xf32> -> vector<56x42xf32>
    %c17_296 = arith.constant 17 : index
    %c0_297 = arith.constant 0 : index
    %c0_298 = arith.constant 0 : index
    %344 = vector.load %arg2[%c17_296, %c0_297, %c0_298] : memref<20x96x42xbf16, #tpu.memory_space<vmem>>, vector<1x96x42xbf16>
    %345 = vector.shape_cast %344 : vector<1x96x42xbf16> to vector<96x42xbf16>
    %cst_299 = arith.constant dense<0.000000e+00> : vector<56x42xf32>
    %346 = tpu.matmul %5, %345, %cst_299 {dimension_numbers = #tpu.dot_dimension_numbers<[1], [0], [0], [1], [0, 0, 1, 1], [], []>} : vector<56x96xbf16>, vector<96x42xbf16>, vector<56x42xf32> -> vector<56x42xf32>
    %c18_300 = arith.constant 18 : index
    %c0_301 = arith.constant 0 : index
    %c0_302 = arith.constant 0 : index
    %347 = vector.load %arg2[%c18_300, %c0_301, %c0_302] : memref<20x96x42xbf16, #tpu.memory_space<vmem>>, vector<1x96x42xbf16>
    %348 = vector.shape_cast %347 : vector<1x96x42xbf16> to vector<96x42xbf16>
    %cst_303 = arith.constant dense<0.000000e+00> : vector<56x42xf32>
    %349 = tpu.matmul %9, %348, %cst_303 {dimension_numbers = #tpu.dot_dimension_numbers<[1], [0], [0], [1], [0, 0, 1, 1], [], []>} : vector<56x96xbf16>, vector<96x42xbf16>, vector<56x42xf32> -> vector<56x42xf32>
    %c19_304 = arith.constant 19 : index
    %c0_305 = arith.constant 0 : index
    %c0_306 = arith.constant 0 : index
    %350 = vector.load %arg2[%c19_304, %c0_305, %c0_306] : memref<20x96x42xbf16, #tpu.memory_space<vmem>>, vector<1x96x42xbf16>
    %351 = vector.shape_cast %350 : vector<1x96x42xbf16> to vector<96x42xbf16>
    %cst_307 = arith.constant dense<0.000000e+00> : vector<56x42xf32>
    %352 = tpu.matmul %13, %351, %cst_307 {dimension_numbers = #tpu.dot_dimension_numbers<[1], [0], [0], [1], [0, 0, 1, 1], [], []>} : vector<56x96xbf16>, vector<96x42xbf16>, vector<56x42xf32> -> vector<56x42xf32>
    %353 = arith.addf %340, %343 : vector<56x42xf32>
    %354 = arith.addf %346, %349 : vector<56x42xf32>
    %355 = arith.addf %353, %354 : vector<56x42xf32>
    %356 = arith.addf %355, %352 : vector<56x42xf32>
    %357 = vector.broadcast %0 : vector<1x42xf32> to vector<56x42xf32>
    %358 = arith.addf %356, %357 : vector<56x42xf32>
    %cst_308 = arith.constant 0.000000e+00 : f32
    %359 = vector.broadcast %cst_308 : f32 to vector<56x42xf32>
    %360 = arith.maximumf %358, %359 : vector<56x42xf32>
    %c10_309 = arith.constant 10 : index
    %c0_310 = arith.constant 0 : index
    %c0_311 = arith.constant 0 : index
    %361 = vector.load %arg2[%c10_309, %c0_310, %c0_311] : memref<20x96x42xbf16, #tpu.memory_space<vmem>>, vector<1x96x42xbf16>
    %362 = vector.shape_cast %361 : vector<1x96x42xbf16> to vector<96x42xbf16>
    %cst_312 = arith.constant dense<0.000000e+00> : vector<56x42xf32>
    %363 = tpu.matmul %15, %362, %cst_312 {dimension_numbers = #tpu.dot_dimension_numbers<[1], [0], [0], [1], [0, 0, 1, 1], [], []>} : vector<56x96xbf16>, vector<96x42xbf16>, vector<56x42xf32> -> vector<56x42xf32>
    %c11_313 = arith.constant 11 : index
    %c0_314 = arith.constant 0 : index
    %c0_315 = arith.constant 0 : index
    %364 = vector.load %arg2[%c11_313, %c0_314, %c0_315] : memref<20x96x42xbf16, #tpu.memory_space<vmem>>, vector<1x96x42xbf16>
    %365 = vector.shape_cast %364 : vector<1x96x42xbf16> to vector<96x42xbf16>
    %cst_316 = arith.constant dense<0.000000e+00> : vector<56x42xf32>
    %366 = tpu.matmul %5, %365, %cst_316 {dimension_numbers = #tpu.dot_dimension_numbers<[1], [0], [0], [1], [0, 0, 1, 1], [], []>} : vector<56x96xbf16>, vector<96x42xbf16>, vector<56x42xf32> -> vector<56x42xf32>
    %c12_317 = arith.constant 12 : index
    %c0_318 = arith.constant 0 : index
    %c0_319 = arith.constant 0 : index
    %367 = vector.load %arg2[%c12_317, %c0_318, %c0_319] : memref<20x96x42xbf16, #tpu.memory_space<vmem>>, vector<1x96x42xbf16>
    %368 = vector.shape_cast %367 : vector<1x96x42xbf16> to vector<96x42xbf16>
    %cst_320 = arith.constant dense<0.000000e+00> : vector<56x42xf32>
    %369 = tpu.matmul %9, %368, %cst_320 {dimension_numbers = #tpu.dot_dimension_numbers<[1], [0], [0], [1], [0, 0, 1, 1], [], []>} : vector<56x96xbf16>, vector<96x42xbf16>, vector<56x42xf32> -> vector<56x42xf32>
    %c13_321 = arith.constant 13 : index
    %c0_322 = arith.constant 0 : index
    %c0_323 = arith.constant 0 : index
    %370 = vector.load %arg2[%c13_321, %c0_322, %c0_323] : memref<20x96x42xbf16, #tpu.memory_space<vmem>>, vector<1x96x42xbf16>
    %371 = vector.shape_cast %370 : vector<1x96x42xbf16> to vector<96x42xbf16>
    %cst_324 = arith.constant dense<0.000000e+00> : vector<56x42xf32>
    %372 = tpu.matmul %13, %371, %cst_324 {dimension_numbers = #tpu.dot_dimension_numbers<[1], [0], [0], [1], [0, 0, 1, 1], [], []>} : vector<56x96xbf16>, vector<96x42xbf16>, vector<56x42xf32> -> vector<56x42xf32>
    %c14_325 = arith.constant 14 : index
    %c0_326 = arith.constant 0 : index
    %c0_327 = arith.constant 0 : index
    %373 = vector.load %arg2[%c14_325, %c0_326, %c0_327] : memref<20x96x42xbf16, #tpu.memory_space<vmem>>, vector<1x96x42xbf16>
    %374 = vector.shape_cast %373 : vector<1x96x42xbf16> to vector<96x42xbf16>
    %cst_328 = arith.constant dense<0.000000e+00> : vector<56x42xf32>
    %375 = tpu.matmul %17, %374, %cst_328 {dimension_numbers = #tpu.dot_dimension_numbers<[1], [0], [0], [1], [0, 0, 1, 1], [], []>} : vector<56x96xbf16>, vector<96x42xbf16>, vector<56x42xf32> -> vector<56x42xf32>
    %376 = arith.addf %363, %366 : vector<56x42xf32>
    %377 = arith.addf %369, %372 : vector<56x42xf32>
    %378 = arith.addf %376, %377 : vector<56x42xf32>
    %379 = arith.addf %378, %375 : vector<56x42xf32>
    %380 = vector.broadcast %0 : vector<1x42xf32> to vector<56x42xf32>
    %381 = arith.addf %379, %380 : vector<56x42xf32>
    %cst_329 = arith.constant 0.000000e+00 : f32
    %382 = vector.broadcast %cst_329 : f32 to vector<56x42xf32>
    %383 = arith.maximumf %381, %382 : vector<56x42xf32>
    %c15_330 = arith.constant 15 : index
    %c0_331 = arith.constant 0 : index
    %c0_332 = arith.constant 0 : index
    %384 = vector.load %arg2[%c15_330, %c0_331, %c0_332] : memref<20x96x42xbf16, #tpu.memory_space<vmem>>, vector<1x96x42xbf16>
    %385 = vector.shape_cast %384 : vector<1x96x42xbf16> to vector<96x42xbf16>
    %cst_333 = arith.constant dense<0.000000e+00> : vector<56x42xf32>
    %386 = tpu.matmul %15, %385, %cst_333 {dimension_numbers = #tpu.dot_dimension_numbers<[1], [0], [0], [1], [0, 0, 1, 1], [], []>} : vector<56x96xbf16>, vector<96x42xbf16>, vector<56x42xf32> -> vector<56x42xf32>
    %c16_334 = arith.constant 16 : index
    %c0_335 = arith.constant 0 : index
    %c0_336 = arith.constant 0 : index
    %387 = vector.load %arg2[%c16_334, %c0_335, %c0_336] : memref<20x96x42xbf16, #tpu.memory_space<vmem>>, vector<1x96x42xbf16>
    %388 = vector.shape_cast %387 : vector<1x96x42xbf16> to vector<96x42xbf16>
    %cst_337 = arith.constant dense<0.000000e+00> : vector<56x42xf32>
    %389 = tpu.matmul %5, %388, %cst_337 {dimension_numbers = #tpu.dot_dimension_numbers<[1], [0], [0], [1], [0, 0, 1, 1], [], []>} : vector<56x96xbf16>, vector<96x42xbf16>, vector<56x42xf32> -> vector<56x42xf32>
    %c17_338 = arith.constant 17 : index
    %c0_339 = arith.constant 0 : index
    %c0_340 = arith.constant 0 : index
    %390 = vector.load %arg2[%c17_338, %c0_339, %c0_340] : memref<20x96x42xbf16, #tpu.memory_space<vmem>>, vector<1x96x42xbf16>
    %391 = vector.shape_cast %390 : vector<1x96x42xbf16> to vector<96x42xbf16>
    %cst_341 = arith.constant dense<0.000000e+00> : vector<56x42xf32>
    %392 = tpu.matmul %9, %391, %cst_341 {dimension_numbers = #tpu.dot_dimension_numbers<[1], [0], [0], [1], [0, 0, 1, 1], [], []>} : vector<56x96xbf16>, vector<96x42xbf16>, vector<56x42xf32> -> vector<56x42xf32>
    %c18_342 = arith.constant 18 : index
    %c0_343 = arith.constant 0 : index
    %c0_344 = arith.constant 0 : index
    %393 = vector.load %arg2[%c18_342, %c0_343, %c0_344] : memref<20x96x42xbf16, #tpu.memory_space<vmem>>, vector<1x96x42xbf16>
    %394 = vector.shape_cast %393 : vector<1x96x42xbf16> to vector<96x42xbf16>
    %cst_345 = arith.constant dense<0.000000e+00> : vector<56x42xf32>
    %395 = tpu.matmul %13, %394, %cst_345 {dimension_numbers = #tpu.dot_dimension_numbers<[1], [0], [0], [1], [0, 0, 1, 1], [], []>} : vector<56x96xbf16>, vector<96x42xbf16>, vector<56x42xf32> -> vector<56x42xf32>
    %c19_346 = arith.constant 19 : index
    %c0_347 = arith.constant 0 : index
    %c0_348 = arith.constant 0 : index
    %396 = vector.load %arg2[%c19_346, %c0_347, %c0_348] : memref<20x96x42xbf16, #tpu.memory_space<vmem>>, vector<1x96x42xbf16>
    %397 = vector.shape_cast %396 : vector<1x96x42xbf16> to vector<96x42xbf16>
    %cst_349 = arith.constant dense<0.000000e+00> : vector<56x42xf32>
    %398 = tpu.matmul %17, %397, %cst_349 {dimension_numbers = #tpu.dot_dimension_numbers<[1], [0], [0], [1], [0, 0, 1, 1], [], []>} : vector<56x96xbf16>, vector<96x42xbf16>, vector<56x42xf32> -> vector<56x42xf32>
    %399 = arith.addf %386, %389 : vector<56x42xf32>
    %400 = arith.addf %392, %395 : vector<56x42xf32>
    %401 = arith.addf %399, %400 : vector<56x42xf32>
    %402 = arith.addf %401, %398 : vector<56x42xf32>
    %403 = vector.broadcast %0 : vector<1x42xf32> to vector<56x42xf32>
    %404 = arith.addf %402, %403 : vector<56x42xf32>
    %cst_350 = arith.constant 0.000000e+00 : f32
    %405 = vector.broadcast %cst_350 : f32 to vector<56x42xf32>
    %406 = arith.maximumf %404, %405 : vector<56x42xf32>
    %407 = arith.maximumf %337, %360 : vector<56x42xf32>
    %408 = arith.maximumf %383, %406 : vector<56x42xf32>
    %409 = arith.maximumf %407, %408 : vector<56x42xf32>
    %410 = arith.truncf %409 : vector<56x42xf32> to vector<56x42xbf16>
    %411 = vector.extract_strided_slice %410 {offsets = [0, 0], sizes = [40, 42], strides = [1, 1]} : vector<56x42xbf16> to vector<40x42xbf16>
    %412 = vector.extract_strided_slice %410 {offsets = [8, 0], sizes = [40, 42], strides = [1, 1]} : vector<56x42xbf16> to vector<40x42xbf16>
    %413 = vector.extract_strided_slice %410 {offsets = [16, 0], sizes = [40, 42], strides = [1, 1]} : vector<56x42xbf16> to vector<40x42xbf16>
    %c0_351 = arith.constant 0 : index
    %c0_352 = arith.constant 0 : index
    %c0_353 = arith.constant 0 : index
    %414 = vector.load %arg4[%c0_351, %c0_352, %c0_353] : memref<20x42x80xbf16, #tpu.memory_space<vmem>>, vector<1x42x80xbf16>
    %415 = vector.shape_cast %414 : vector<1x42x80xbf16> to vector<42x80xbf16>
    %cst_354 = arith.constant dense<0.000000e+00> : vector<40x80xf32>
    %416 = tpu.matmul %114, %415, %cst_354 {dimension_numbers = #tpu.dot_dimension_numbers<[1], [0], [0], [1], [0, 0, 1, 1], [], []>} : vector<40x42xbf16>, vector<42x80xbf16>, vector<40x80xf32> -> vector<40x80xf32>
    %c5_355 = arith.constant 5 : index
    %c0_356 = arith.constant 0 : index
    %c0_357 = arith.constant 0 : index
    %417 = vector.load %arg4[%c5_355, %c0_356, %c0_357] : memref<20x42x80xbf16, #tpu.memory_space<vmem>>, vector<1x42x80xbf16>
    %418 = vector.shape_cast %417 : vector<1x42x80xbf16> to vector<42x80xbf16>
    %cst_358 = arith.constant dense<0.000000e+00> : vector<40x80xf32>
    %419 = tpu.matmul %213, %418, %cst_358 {dimension_numbers = #tpu.dot_dimension_numbers<[1], [0], [0], [1], [0, 0, 1, 1], [], []>} : vector<40x42xbf16>, vector<42x80xbf16>, vector<40x80xf32> -> vector<40x80xf32>
    %c1_359 = arith.constant 1 : index
    %c0_360 = arith.constant 0 : index
    %c0_361 = arith.constant 0 : index
    %420 = vector.load %arg4[%c1_359, %c0_360, %c0_361] : memref<20x42x80xbf16, #tpu.memory_space<vmem>>, vector<1x42x80xbf16>
    %421 = vector.shape_cast %420 : vector<1x42x80xbf16> to vector<42x80xbf16>
    %cst_362 = arith.constant dense<0.000000e+00> : vector<40x80xf32>
    %422 = tpu.matmul %312, %421, %cst_362 {dimension_numbers = #tpu.dot_dimension_numbers<[1], [0], [0], [1], [0, 0, 1, 1], [], []>} : vector<40x42xbf16>, vector<42x80xbf16>, vector<40x80xf32> -> vector<40x80xf32>
    %c6_363 = arith.constant 6 : index
    %c0_364 = arith.constant 0 : index
    %c0_365 = arith.constant 0 : index
    %423 = vector.load %arg4[%c6_363, %c0_364, %c0_365] : memref<20x42x80xbf16, #tpu.memory_space<vmem>>, vector<1x42x80xbf16>
    %424 = vector.shape_cast %423 : vector<1x42x80xbf16> to vector<42x80xbf16>
    %cst_366 = arith.constant dense<0.000000e+00> : vector<40x80xf32>
    %425 = tpu.matmul %411, %424, %cst_366 {dimension_numbers = #tpu.dot_dimension_numbers<[1], [0], [0], [1], [0, 0, 1, 1], [], []>} : vector<40x42xbf16>, vector<42x80xbf16>, vector<40x80xf32> -> vector<40x80xf32>
    %c2_367 = arith.constant 2 : index
    %c0_368 = arith.constant 0 : index
    %c0_369 = arith.constant 0 : index
    %426 = vector.load %arg4[%c2_367, %c0_368, %c0_369] : memref<20x42x80xbf16, #tpu.memory_space<vmem>>, vector<1x42x80xbf16>
    %427 = vector.shape_cast %426 : vector<1x42x80xbf16> to vector<42x80xbf16>
    %cst_370 = arith.constant dense<0.000000e+00> : vector<40x80xf32>
    %428 = tpu.matmul %115, %427, %cst_370 {dimension_numbers = #tpu.dot_dimension_numbers<[1], [0], [0], [1], [0, 0, 1, 1], [], []>} : vector<40x42xbf16>, vector<42x80xbf16>, vector<40x80xf32> -> vector<40x80xf32>
    %c7_371 = arith.constant 7 : index
    %c0_372 = arith.constant 0 : index
    %c0_373 = arith.constant 0 : index
    %429 = vector.load %arg4[%c7_371, %c0_372, %c0_373] : memref<20x42x80xbf16, #tpu.memory_space<vmem>>, vector<1x42x80xbf16>
    %430 = vector.shape_cast %429 : vector<1x42x80xbf16> to vector<42x80xbf16>
    %cst_374 = arith.constant dense<0.000000e+00> : vector<40x80xf32>
    %431 = tpu.matmul %214, %430, %cst_374 {dimension_numbers = #tpu.dot_dimension_numbers<[1], [0], [0], [1], [0, 0, 1, 1], [], []>} : vector<40x42xbf16>, vector<42x80xbf16>, vector<40x80xf32> -> vector<40x80xf32>
    %c3_375 = arith.constant 3 : index
    %c0_376 = arith.constant 0 : index
    %c0_377 = arith.constant 0 : index
    %432 = vector.load %arg4[%c3_375, %c0_376, %c0_377] : memref<20x42x80xbf16, #tpu.memory_space<vmem>>, vector<1x42x80xbf16>
    %433 = vector.shape_cast %432 : vector<1x42x80xbf16> to vector<42x80xbf16>
    %cst_378 = arith.constant dense<0.000000e+00> : vector<40x80xf32>
    %434 = tpu.matmul %313, %433, %cst_378 {dimension_numbers = #tpu.dot_dimension_numbers<[1], [0], [0], [1], [0, 0, 1, 1], [], []>} : vector<40x42xbf16>, vector<42x80xbf16>, vector<40x80xf32> -> vector<40x80xf32>
    %c8_379 = arith.constant 8 : index
    %c0_380 = arith.constant 0 : index
    %c0_381 = arith.constant 0 : index
    %435 = vector.load %arg4[%c8_379, %c0_380, %c0_381] : memref<20x42x80xbf16, #tpu.memory_space<vmem>>, vector<1x42x80xbf16>
    %436 = vector.shape_cast %435 : vector<1x42x80xbf16> to vector<42x80xbf16>
    %cst_382 = arith.constant dense<0.000000e+00> : vector<40x80xf32>
    %437 = tpu.matmul %412, %436, %cst_382 {dimension_numbers = #tpu.dot_dimension_numbers<[1], [0], [0], [1], [0, 0, 1, 1], [], []>} : vector<40x42xbf16>, vector<42x80xbf16>, vector<40x80xf32> -> vector<40x80xf32>
    %c4_383 = arith.constant 4 : index
    %c0_384 = arith.constant 0 : index
    %c0_385 = arith.constant 0 : index
    %438 = vector.load %arg4[%c4_383, %c0_384, %c0_385] : memref<20x42x80xbf16, #tpu.memory_space<vmem>>, vector<1x42x80xbf16>
    %439 = vector.shape_cast %438 : vector<1x42x80xbf16> to vector<42x80xbf16>
    %cst_386 = arith.constant dense<0.000000e+00> : vector<40x80xf32>
    %440 = tpu.matmul %116, %439, %cst_386 {dimension_numbers = #tpu.dot_dimension_numbers<[1], [0], [0], [1], [0, 0, 1, 1], [], []>} : vector<40x42xbf16>, vector<42x80xbf16>, vector<40x80xf32> -> vector<40x80xf32>
    %c9_387 = arith.constant 9 : index
    %c0_388 = arith.constant 0 : index
    %c0_389 = arith.constant 0 : index
    %441 = vector.load %arg4[%c9_387, %c0_388, %c0_389] : memref<20x42x80xbf16, #tpu.memory_space<vmem>>, vector<1x42x80xbf16>
    %442 = vector.shape_cast %441 : vector<1x42x80xbf16> to vector<42x80xbf16>
    %cst_390 = arith.constant dense<0.000000e+00> : vector<40x80xf32>
    %443 = tpu.matmul %215, %442, %cst_390 {dimension_numbers = #tpu.dot_dimension_numbers<[1], [0], [0], [1], [0, 0, 1, 1], [], []>} : vector<40x42xbf16>, vector<42x80xbf16>, vector<40x80xf32> -> vector<40x80xf32>
    %444 = arith.addf %416, %419 : vector<40x80xf32>
    %445 = arith.addf %422, %425 : vector<40x80xf32>
    %446 = arith.addf %428, %431 : vector<40x80xf32>
    %447 = arith.addf %434, %437 : vector<40x80xf32>
    %448 = arith.addf %440, %443 : vector<40x80xf32>
    %449 = arith.addf %444, %445 : vector<40x80xf32>
    %450 = arith.addf %446, %447 : vector<40x80xf32>
    %451 = arith.addf %449, %450 : vector<40x80xf32>
    %452 = arith.addf %451, %448 : vector<40x80xf32>
    %453 = vector.broadcast %1 : vector<1x80xf32> to vector<40x80xf32>
    %454 = arith.addf %452, %453 : vector<40x80xf32>
    %cst_391 = arith.constant 0.000000e+00 : f32
    %455 = vector.broadcast %cst_391 : f32 to vector<40x80xf32>
    %456 = arith.maximumf %454, %455 : vector<40x80xf32>
    %c10_392 = arith.constant 10 : index
    %c0_393 = arith.constant 0 : index
    %c0_394 = arith.constant 0 : index
    %457 = vector.load %arg4[%c10_392, %c0_393, %c0_394] : memref<20x42x80xbf16, #tpu.memory_space<vmem>>, vector<1x42x80xbf16>
    %458 = vector.shape_cast %457 : vector<1x42x80xbf16> to vector<42x80xbf16>
    %cst_395 = arith.constant dense<0.000000e+00> : vector<40x80xf32>
    %459 = tpu.matmul %114, %458, %cst_395 {dimension_numbers = #tpu.dot_dimension_numbers<[1], [0], [0], [1], [0, 0, 1, 1], [], []>} : vector<40x42xbf16>, vector<42x80xbf16>, vector<40x80xf32> -> vector<40x80xf32>
    %c15_396 = arith.constant 15 : index
    %c0_397 = arith.constant 0 : index
    %c0_398 = arith.constant 0 : index
    %460 = vector.load %arg4[%c15_396, %c0_397, %c0_398] : memref<20x42x80xbf16, #tpu.memory_space<vmem>>, vector<1x42x80xbf16>
    %461 = vector.shape_cast %460 : vector<1x42x80xbf16> to vector<42x80xbf16>
    %cst_399 = arith.constant dense<0.000000e+00> : vector<40x80xf32>
    %462 = tpu.matmul %213, %461, %cst_399 {dimension_numbers = #tpu.dot_dimension_numbers<[1], [0], [0], [1], [0, 0, 1, 1], [], []>} : vector<40x42xbf16>, vector<42x80xbf16>, vector<40x80xf32> -> vector<40x80xf32>
    %c11_400 = arith.constant 11 : index
    %c0_401 = arith.constant 0 : index
    %c0_402 = arith.constant 0 : index
    %463 = vector.load %arg4[%c11_400, %c0_401, %c0_402] : memref<20x42x80xbf16, #tpu.memory_space<vmem>>, vector<1x42x80xbf16>
    %464 = vector.shape_cast %463 : vector<1x42x80xbf16> to vector<42x80xbf16>
    %cst_403 = arith.constant dense<0.000000e+00> : vector<40x80xf32>
    %465 = tpu.matmul %312, %464, %cst_403 {dimension_numbers = #tpu.dot_dimension_numbers<[1], [0], [0], [1], [0, 0, 1, 1], [], []>} : vector<40x42xbf16>, vector<42x80xbf16>, vector<40x80xf32> -> vector<40x80xf32>
    %c16_404 = arith.constant 16 : index
    %c0_405 = arith.constant 0 : index
    %c0_406 = arith.constant 0 : index
    %466 = vector.load %arg4[%c16_404, %c0_405, %c0_406] : memref<20x42x80xbf16, #tpu.memory_space<vmem>>, vector<1x42x80xbf16>
    %467 = vector.shape_cast %466 : vector<1x42x80xbf16> to vector<42x80xbf16>
    %cst_407 = arith.constant dense<0.000000e+00> : vector<40x80xf32>
    %468 = tpu.matmul %411, %467, %cst_407 {dimension_numbers = #tpu.dot_dimension_numbers<[1], [0], [0], [1], [0, 0, 1, 1], [], []>} : vector<40x42xbf16>, vector<42x80xbf16>, vector<40x80xf32> -> vector<40x80xf32>
    %c12_408 = arith.constant 12 : index
    %c0_409 = arith.constant 0 : index
    %c0_410 = arith.constant 0 : index
    %469 = vector.load %arg4[%c12_408, %c0_409, %c0_410] : memref<20x42x80xbf16, #tpu.memory_space<vmem>>, vector<1x42x80xbf16>
    %470 = vector.shape_cast %469 : vector<1x42x80xbf16> to vector<42x80xbf16>
    %cst_411 = arith.constant dense<0.000000e+00> : vector<40x80xf32>
    %471 = tpu.matmul %115, %470, %cst_411 {dimension_numbers = #tpu.dot_dimension_numbers<[1], [0], [0], [1], [0, 0, 1, 1], [], []>} : vector<40x42xbf16>, vector<42x80xbf16>, vector<40x80xf32> -> vector<40x80xf32>
    %c17_412 = arith.constant 17 : index
    %c0_413 = arith.constant 0 : index
    %c0_414 = arith.constant 0 : index
    %472 = vector.load %arg4[%c17_412, %c0_413, %c0_414] : memref<20x42x80xbf16, #tpu.memory_space<vmem>>, vector<1x42x80xbf16>
    %473 = vector.shape_cast %472 : vector<1x42x80xbf16> to vector<42x80xbf16>
    %cst_415 = arith.constant dense<0.000000e+00> : vector<40x80xf32>
    %474 = tpu.matmul %214, %473, %cst_415 {dimension_numbers = #tpu.dot_dimension_numbers<[1], [0], [0], [1], [0, 0, 1, 1], [], []>} : vector<40x42xbf16>, vector<42x80xbf16>, vector<40x80xf32> -> vector<40x80xf32>
    %c13_416 = arith.constant 13 : index
    %c0_417 = arith.constant 0 : index
    %c0_418 = arith.constant 0 : index
    %475 = vector.load %arg4[%c13_416, %c0_417, %c0_418] : memref<20x42x80xbf16, #tpu.memory_space<vmem>>, vector<1x42x80xbf16>
    %476 = vector.shape_cast %475 : vector<1x42x80xbf16> to vector<42x80xbf16>
    %cst_419 = arith.constant dense<0.000000e+00> : vector<40x80xf32>
    %477 = tpu.matmul %313, %476, %cst_419 {dimension_numbers = #tpu.dot_dimension_numbers<[1], [0], [0], [1], [0, 0, 1, 1], [], []>} : vector<40x42xbf16>, vector<42x80xbf16>, vector<40x80xf32> -> vector<40x80xf32>
    %c18_420 = arith.constant 18 : index
    %c0_421 = arith.constant 0 : index
    %c0_422 = arith.constant 0 : index
    %478 = vector.load %arg4[%c18_420, %c0_421, %c0_422] : memref<20x42x80xbf16, #tpu.memory_space<vmem>>, vector<1x42x80xbf16>
    %479 = vector.shape_cast %478 : vector<1x42x80xbf16> to vector<42x80xbf16>
    %cst_423 = arith.constant dense<0.000000e+00> : vector<40x80xf32>
    %480 = tpu.matmul %412, %479, %cst_423 {dimension_numbers = #tpu.dot_dimension_numbers<[1], [0], [0], [1], [0, 0, 1, 1], [], []>} : vector<40x42xbf16>, vector<42x80xbf16>, vector<40x80xf32> -> vector<40x80xf32>
    %c14_424 = arith.constant 14 : index
    %c0_425 = arith.constant 0 : index
    %c0_426 = arith.constant 0 : index
    %481 = vector.load %arg4[%c14_424, %c0_425, %c0_426] : memref<20x42x80xbf16, #tpu.memory_space<vmem>>, vector<1x42x80xbf16>
    %482 = vector.shape_cast %481 : vector<1x42x80xbf16> to vector<42x80xbf16>
    %cst_427 = arith.constant dense<0.000000e+00> : vector<40x80xf32>
    %483 = tpu.matmul %116, %482, %cst_427 {dimension_numbers = #tpu.dot_dimension_numbers<[1], [0], [0], [1], [0, 0, 1, 1], [], []>} : vector<40x42xbf16>, vector<42x80xbf16>, vector<40x80xf32> -> vector<40x80xf32>
    %c19_428 = arith.constant 19 : index
    %c0_429 = arith.constant 0 : index
    %c0_430 = arith.constant 0 : index
    %484 = vector.load %arg4[%c19_428, %c0_429, %c0_430] : memref<20x42x80xbf16, #tpu.memory_space<vmem>>, vector<1x42x80xbf16>
    %485 = vector.shape_cast %484 : vector<1x42x80xbf16> to vector<42x80xbf16>
    %cst_431 = arith.constant dense<0.000000e+00> : vector<40x80xf32>
    %486 = tpu.matmul %215, %485, %cst_431 {dimension_numbers = #tpu.dot_dimension_numbers<[1], [0], [0], [1], [0, 0, 1, 1], [], []>} : vector<40x42xbf16>, vector<42x80xbf16>, vector<40x80xf32> -> vector<40x80xf32>
    %487 = arith.addf %459, %462 : vector<40x80xf32>
    %488 = arith.addf %465, %468 : vector<40x80xf32>
    %489 = arith.addf %471, %474 : vector<40x80xf32>
    %490 = arith.addf %477, %480 : vector<40x80xf32>
    %491 = arith.addf %483, %486 : vector<40x80xf32>
    %492 = arith.addf %487, %488 : vector<40x80xf32>
    %493 = arith.addf %489, %490 : vector<40x80xf32>
    %494 = arith.addf %492, %493 : vector<40x80xf32>
    %495 = arith.addf %494, %491 : vector<40x80xf32>
    %496 = vector.broadcast %1 : vector<1x80xf32> to vector<40x80xf32>
    %497 = arith.addf %495, %496 : vector<40x80xf32>
    %cst_432 = arith.constant 0.000000e+00 : f32
    %498 = vector.broadcast %cst_432 : f32 to vector<40x80xf32>
    %499 = arith.maximumf %497, %498 : vector<40x80xf32>
    %500 = arith.maximumf %456, %499 : vector<40x80xf32>
    %c0_433 = arith.constant 0 : index
    %c0_434 = arith.constant 0 : index
    %c0_435 = arith.constant 0 : index
    %501 = vector.load %arg4[%c0_433, %c0_434, %c0_435] : memref<20x42x80xbf16, #tpu.memory_space<vmem>>, vector<1x42x80xbf16>
    %502 = vector.shape_cast %501 : vector<1x42x80xbf16> to vector<42x80xbf16>
    %cst_436 = arith.constant dense<0.000000e+00> : vector<40x80xf32>
    %503 = tpu.matmul %312, %502, %cst_436 {dimension_numbers = #tpu.dot_dimension_numbers<[1], [0], [0], [1], [0, 0, 1, 1], [], []>} : vector<40x42xbf16>, vector<42x80xbf16>, vector<40x80xf32> -> vector<40x80xf32>
    %c5_437 = arith.constant 5 : index
    %c0_438 = arith.constant 0 : index
    %c0_439 = arith.constant 0 : index
    %504 = vector.load %arg4[%c5_437, %c0_438, %c0_439] : memref<20x42x80xbf16, #tpu.memory_space<vmem>>, vector<1x42x80xbf16>
    %505 = vector.shape_cast %504 : vector<1x42x80xbf16> to vector<42x80xbf16>
    %cst_440 = arith.constant dense<0.000000e+00> : vector<40x80xf32>
    %506 = tpu.matmul %411, %505, %cst_440 {dimension_numbers = #tpu.dot_dimension_numbers<[1], [0], [0], [1], [0, 0, 1, 1], [], []>} : vector<40x42xbf16>, vector<42x80xbf16>, vector<40x80xf32> -> vector<40x80xf32>
    %c1_441 = arith.constant 1 : index
    %c0_442 = arith.constant 0 : index
    %c0_443 = arith.constant 0 : index
    %507 = vector.load %arg4[%c1_441, %c0_442, %c0_443] : memref<20x42x80xbf16, #tpu.memory_space<vmem>>, vector<1x42x80xbf16>
    %508 = vector.shape_cast %507 : vector<1x42x80xbf16> to vector<42x80xbf16>
    %cst_444 = arith.constant dense<0.000000e+00> : vector<40x80xf32>
    %509 = tpu.matmul %115, %508, %cst_444 {dimension_numbers = #tpu.dot_dimension_numbers<[1], [0], [0], [1], [0, 0, 1, 1], [], []>} : vector<40x42xbf16>, vector<42x80xbf16>, vector<40x80xf32> -> vector<40x80xf32>
    %c6_445 = arith.constant 6 : index
    %c0_446 = arith.constant 0 : index
    %c0_447 = arith.constant 0 : index
    %510 = vector.load %arg4[%c6_445, %c0_446, %c0_447] : memref<20x42x80xbf16, #tpu.memory_space<vmem>>, vector<1x42x80xbf16>
    %511 = vector.shape_cast %510 : vector<1x42x80xbf16> to vector<42x80xbf16>
    %cst_448 = arith.constant dense<0.000000e+00> : vector<40x80xf32>
    %512 = tpu.matmul %214, %511, %cst_448 {dimension_numbers = #tpu.dot_dimension_numbers<[1], [0], [0], [1], [0, 0, 1, 1], [], []>} : vector<40x42xbf16>, vector<42x80xbf16>, vector<40x80xf32> -> vector<40x80xf32>
    %c2_449 = arith.constant 2 : index
    %c0_450 = arith.constant 0 : index
    %c0_451 = arith.constant 0 : index
    %513 = vector.load %arg4[%c2_449, %c0_450, %c0_451] : memref<20x42x80xbf16, #tpu.memory_space<vmem>>, vector<1x42x80xbf16>
    %514 = vector.shape_cast %513 : vector<1x42x80xbf16> to vector<42x80xbf16>
    %cst_452 = arith.constant dense<0.000000e+00> : vector<40x80xf32>
    %515 = tpu.matmul %313, %514, %cst_452 {dimension_numbers = #tpu.dot_dimension_numbers<[1], [0], [0], [1], [0, 0, 1, 1], [], []>} : vector<40x42xbf16>, vector<42x80xbf16>, vector<40x80xf32> -> vector<40x80xf32>
    %c7_453 = arith.constant 7 : index
    %c0_454 = arith.constant 0 : index
    %c0_455 = arith.constant 0 : index
    %516 = vector.load %arg4[%c7_453, %c0_454, %c0_455] : memref<20x42x80xbf16, #tpu.memory_space<vmem>>, vector<1x42x80xbf16>
    %517 = vector.shape_cast %516 : vector<1x42x80xbf16> to vector<42x80xbf16>
    %cst_456 = arith.constant dense<0.000000e+00> : vector<40x80xf32>
    %518 = tpu.matmul %412, %517, %cst_456 {dimension_numbers = #tpu.dot_dimension_numbers<[1], [0], [0], [1], [0, 0, 1, 1], [], []>} : vector<40x42xbf16>, vector<42x80xbf16>, vector<40x80xf32> -> vector<40x80xf32>
    %c3_457 = arith.constant 3 : index
    %c0_458 = arith.constant 0 : index
    %c0_459 = arith.constant 0 : index
    %519 = vector.load %arg4[%c3_457, %c0_458, %c0_459] : memref<20x42x80xbf16, #tpu.memory_space<vmem>>, vector<1x42x80xbf16>
    %520 = vector.shape_cast %519 : vector<1x42x80xbf16> to vector<42x80xbf16>
    %cst_460 = arith.constant dense<0.000000e+00> : vector<40x80xf32>
    %521 = tpu.matmul %116, %520, %cst_460 {dimension_numbers = #tpu.dot_dimension_numbers<[1], [0], [0], [1], [0, 0, 1, 1], [], []>} : vector<40x42xbf16>, vector<42x80xbf16>, vector<40x80xf32> -> vector<40x80xf32>
    %c8_461 = arith.constant 8 : index
    %c0_462 = arith.constant 0 : index
    %c0_463 = arith.constant 0 : index
    %522 = vector.load %arg4[%c8_461, %c0_462, %c0_463] : memref<20x42x80xbf16, #tpu.memory_space<vmem>>, vector<1x42x80xbf16>
    %523 = vector.shape_cast %522 : vector<1x42x80xbf16> to vector<42x80xbf16>
    %cst_464 = arith.constant dense<0.000000e+00> : vector<40x80xf32>
    %524 = tpu.matmul %215, %523, %cst_464 {dimension_numbers = #tpu.dot_dimension_numbers<[1], [0], [0], [1], [0, 0, 1, 1], [], []>} : vector<40x42xbf16>, vector<42x80xbf16>, vector<40x80xf32> -> vector<40x80xf32>
    %c4_465 = arith.constant 4 : index
    %c0_466 = arith.constant 0 : index
    %c0_467 = arith.constant 0 : index
    %525 = vector.load %arg4[%c4_465, %c0_466, %c0_467] : memref<20x42x80xbf16, #tpu.memory_space<vmem>>, vector<1x42x80xbf16>
    %526 = vector.shape_cast %525 : vector<1x42x80xbf16> to vector<42x80xbf16>
    %cst_468 = arith.constant dense<0.000000e+00> : vector<40x80xf32>
    %527 = tpu.matmul %314, %526, %cst_468 {dimension_numbers = #tpu.dot_dimension_numbers<[1], [0], [0], [1], [0, 0, 1, 1], [], []>} : vector<40x42xbf16>, vector<42x80xbf16>, vector<40x80xf32> -> vector<40x80xf32>
    %c9_469 = arith.constant 9 : index
    %c0_470 = arith.constant 0 : index
    %c0_471 = arith.constant 0 : index
    %528 = vector.load %arg4[%c9_469, %c0_470, %c0_471] : memref<20x42x80xbf16, #tpu.memory_space<vmem>>, vector<1x42x80xbf16>
    %529 = vector.shape_cast %528 : vector<1x42x80xbf16> to vector<42x80xbf16>
    %cst_472 = arith.constant dense<0.000000e+00> : vector<40x80xf32>
    %530 = tpu.matmul %413, %529, %cst_472 {dimension_numbers = #tpu.dot_dimension_numbers<[1], [0], [0], [1], [0, 0, 1, 1], [], []>} : vector<40x42xbf16>, vector<42x80xbf16>, vector<40x80xf32> -> vector<40x80xf32>
    %531 = arith.addf %503, %506 : vector<40x80xf32>
    %532 = arith.addf %509, %512 : vector<40x80xf32>
    %533 = arith.addf %515, %518 : vector<40x80xf32>
    %534 = arith.addf %521, %524 : vector<40x80xf32>
    %535 = arith.addf %527, %530 : vector<40x80xf32>
    %536 = arith.addf %531, %532 : vector<40x80xf32>
    %537 = arith.addf %533, %534 : vector<40x80xf32>
    %538 = arith.addf %536, %537 : vector<40x80xf32>
    %539 = arith.addf %538, %535 : vector<40x80xf32>
    %540 = vector.broadcast %1 : vector<1x80xf32> to vector<40x80xf32>
    %541 = arith.addf %539, %540 : vector<40x80xf32>
    %cst_473 = arith.constant 0.000000e+00 : f32
    %542 = vector.broadcast %cst_473 : f32 to vector<40x80xf32>
    %543 = arith.maximumf %541, %542 : vector<40x80xf32>
    %544 = arith.maximumf %500, %543 : vector<40x80xf32>
    %c10_474 = arith.constant 10 : index
    %c0_475 = arith.constant 0 : index
    %c0_476 = arith.constant 0 : index
    %545 = vector.load %arg4[%c10_474, %c0_475, %c0_476] : memref<20x42x80xbf16, #tpu.memory_space<vmem>>, vector<1x42x80xbf16>
    %546 = vector.shape_cast %545 : vector<1x42x80xbf16> to vector<42x80xbf16>
    %cst_477 = arith.constant dense<0.000000e+00> : vector<40x80xf32>
    %547 = tpu.matmul %312, %546, %cst_477 {dimension_numbers = #tpu.dot_dimension_numbers<[1], [0], [0], [1], [0, 0, 1, 1], [], []>} : vector<40x42xbf16>, vector<42x80xbf16>, vector<40x80xf32> -> vector<40x80xf32>
    %c15_478 = arith.constant 15 : index
    %c0_479 = arith.constant 0 : index
    %c0_480 = arith.constant 0 : index
    %548 = vector.load %arg4[%c15_478, %c0_479, %c0_480] : memref<20x42x80xbf16, #tpu.memory_space<vmem>>, vector<1x42x80xbf16>
    %549 = vector.shape_cast %548 : vector<1x42x80xbf16> to vector<42x80xbf16>
    %cst_481 = arith.constant dense<0.000000e+00> : vector<40x80xf32>
    %550 = tpu.matmul %411, %549, %cst_481 {dimension_numbers = #tpu.dot_dimension_numbers<[1], [0], [0], [1], [0, 0, 1, 1], [], []>} : vector<40x42xbf16>, vector<42x80xbf16>, vector<40x80xf32> -> vector<40x80xf32>
    %c11_482 = arith.constant 11 : index
    %c0_483 = arith.constant 0 : index
    %c0_484 = arith.constant 0 : index
    %551 = vector.load %arg4[%c11_482, %c0_483, %c0_484] : memref<20x42x80xbf16, #tpu.memory_space<vmem>>, vector<1x42x80xbf16>
    %552 = vector.shape_cast %551 : vector<1x42x80xbf16> to vector<42x80xbf16>
    %cst_485 = arith.constant dense<0.000000e+00> : vector<40x80xf32>
    %553 = tpu.matmul %115, %552, %cst_485 {dimension_numbers = #tpu.dot_dimension_numbers<[1], [0], [0], [1], [0, 0, 1, 1], [], []>} : vector<40x42xbf16>, vector<42x80xbf16>, vector<40x80xf32> -> vector<40x80xf32>
    %c16_486 = arith.constant 16 : index
    %c0_487 = arith.constant 0 : index
    %c0_488 = arith.constant 0 : index
    %554 = vector.load %arg4[%c16_486, %c0_487, %c0_488] : memref<20x42x80xbf16, #tpu.memory_space<vmem>>, vector<1x42x80xbf16>
    %555 = vector.shape_cast %554 : vector<1x42x80xbf16> to vector<42x80xbf16>
    %cst_489 = arith.constant dense<0.000000e+00> : vector<40x80xf32>
    %556 = tpu.matmul %214, %555, %cst_489 {dimension_numbers = #tpu.dot_dimension_numbers<[1], [0], [0], [1], [0, 0, 1, 1], [], []>} : vector<40x42xbf16>, vector<42x80xbf16>, vector<40x80xf32> -> vector<40x80xf32>
    %c12_490 = arith.constant 12 : index
    %c0_491 = arith.constant 0 : index
    %c0_492 = arith.constant 0 : index
    %557 = vector.load %arg4[%c12_490, %c0_491, %c0_492] : memref<20x42x80xbf16, #tpu.memory_space<vmem>>, vector<1x42x80xbf16>
    %558 = vector.shape_cast %557 : vector<1x42x80xbf16> to vector<42x80xbf16>
    %cst_493 = arith.constant dense<0.000000e+00> : vector<40x80xf32>
    %559 = tpu.matmul %313, %558, %cst_493 {dimension_numbers = #tpu.dot_dimension_numbers<[1], [0], [0], [1], [0, 0, 1, 1], [], []>} : vector<40x42xbf16>, vector<42x80xbf16>, vector<40x80xf32> -> vector<40x80xf32>
    %c17_494 = arith.constant 17 : index
    %c0_495 = arith.constant 0 : index
    %c0_496 = arith.constant 0 : index
    %560 = vector.load %arg4[%c17_494, %c0_495, %c0_496] : memref<20x42x80xbf16, #tpu.memory_space<vmem>>, vector<1x42x80xbf16>
    %561 = vector.shape_cast %560 : vector<1x42x80xbf16> to vector<42x80xbf16>
    %cst_497 = arith.constant dense<0.000000e+00> : vector<40x80xf32>
    %562 = tpu.matmul %412, %561, %cst_497 {dimension_numbers = #tpu.dot_dimension_numbers<[1], [0], [0], [1], [0, 0, 1, 1], [], []>} : vector<40x42xbf16>, vector<42x80xbf16>, vector<40x80xf32> -> vector<40x80xf32>
    %c13_498 = arith.constant 13 : index
    %c0_499 = arith.constant 0 : index
    %c0_500 = arith.constant 0 : index
    %563 = vector.load %arg4[%c13_498, %c0_499, %c0_500] : memref<20x42x80xbf16, #tpu.memory_space<vmem>>, vector<1x42x80xbf16>
    %564 = vector.shape_cast %563 : vector<1x42x80xbf16> to vector<42x80xbf16>
    %cst_501 = arith.constant dense<0.000000e+00> : vector<40x80xf32>
    %565 = tpu.matmul %116, %564, %cst_501 {dimension_numbers = #tpu.dot_dimension_numbers<[1], [0], [0], [1], [0, 0, 1, 1], [], []>} : vector<40x42xbf16>, vector<42x80xbf16>, vector<40x80xf32> -> vector<40x80xf32>
    %c18_502 = arith.constant 18 : index
    %c0_503 = arith.constant 0 : index
    %c0_504 = arith.constant 0 : index
    %566 = vector.load %arg4[%c18_502, %c0_503, %c0_504] : memref<20x42x80xbf16, #tpu.memory_space<vmem>>, vector<1x42x80xbf16>
    %567 = vector.shape_cast %566 : vector<1x42x80xbf16> to vector<42x80xbf16>
    %cst_505 = arith.constant dense<0.000000e+00> : vector<40x80xf32>
    %568 = tpu.matmul %215, %567, %cst_505 {dimension_numbers = #tpu.dot_dimension_numbers<[1], [0], [0], [1], [0, 0, 1, 1], [], []>} : vector<40x42xbf16>, vector<42x80xbf16>, vector<40x80xf32> -> vector<40x80xf32>
    %c14_506 = arith.constant 14 : index
    %c0_507 = arith.constant 0 : index
    %c0_508 = arith.constant 0 : index
    %569 = vector.load %arg4[%c14_506, %c0_507, %c0_508] : memref<20x42x80xbf16, #tpu.memory_space<vmem>>, vector<1x42x80xbf16>
    %570 = vector.shape_cast %569 : vector<1x42x80xbf16> to vector<42x80xbf16>
    %cst_509 = arith.constant dense<0.000000e+00> : vector<40x80xf32>
    %571 = tpu.matmul %314, %570, %cst_509 {dimension_numbers = #tpu.dot_dimension_numbers<[1], [0], [0], [1], [0, 0, 1, 1], [], []>} : vector<40x42xbf16>, vector<42x80xbf16>, vector<40x80xf32> -> vector<40x80xf32>
    %c19_510 = arith.constant 19 : index
    %c0_511 = arith.constant 0 : index
    %c0_512 = arith.constant 0 : index
    %572 = vector.load %arg4[%c19_510, %c0_511, %c0_512] : memref<20x42x80xbf16, #tpu.memory_space<vmem>>, vector<1x42x80xbf16>
    %573 = vector.shape_cast %572 : vector<1x42x80xbf16> to vector<42x80xbf16>
    %cst_513 = arith.constant dense<0.000000e+00> : vector<40x80xf32>
    %574 = tpu.matmul %413, %573, %cst_513 {dimension_numbers = #tpu.dot_dimension_numbers<[1], [0], [0], [1], [0, 0, 1, 1], [], []>} : vector<40x42xbf16>, vector<42x80xbf16>, vector<40x80xf32> -> vector<40x80xf32>
    %575 = arith.addf %547, %550 : vector<40x80xf32>
    %576 = arith.addf %553, %556 : vector<40x80xf32>
    %577 = arith.addf %559, %562 : vector<40x80xf32>
    %578 = arith.addf %565, %568 : vector<40x80xf32>
    %579 = arith.addf %571, %574 : vector<40x80xf32>
    %580 = arith.addf %575, %576 : vector<40x80xf32>
    %581 = arith.addf %577, %578 : vector<40x80xf32>
    %582 = arith.addf %580, %581 : vector<40x80xf32>
    %583 = arith.addf %582, %579 : vector<40x80xf32>
    %584 = vector.broadcast %1 : vector<1x80xf32> to vector<40x80xf32>
    %585 = arith.addf %583, %584 : vector<40x80xf32>
    %cst_514 = arith.constant 0.000000e+00 : f32
    %586 = vector.broadcast %cst_514 : f32 to vector<40x80xf32>
    %587 = arith.maximumf %585, %586 : vector<40x80xf32>
    %588 = arith.maximumf %544, %587 : vector<40x80xf32>
    %589 = arith.truncf %588 : vector<40x80xf32> to vector<40x80xbf16>
    %590 = vector.extract_strided_slice %589 {offsets = [0, 0], sizes = [8, 80], strides = [1, 1]} : vector<40x80xbf16> to vector<8x80xbf16>
    %c0_515 = arith.constant 0 : index
    %c0_516 = arith.constant 0 : index
    %c0_517 = arith.constant 0 : index
    %591 = vector.load %arg6[%c0_515, %c0_516, %c0_517] : memref<5x80x120xbf16, #tpu.memory_space<vmem>>, vector<1x80x120xbf16>
    %592 = vector.shape_cast %591 : vector<1x80x120xbf16> to vector<80x120xbf16>
    %cst_518 = arith.constant dense<0.000000e+00> : vector<8x120xf32>
    %593 = tpu.matmul %590, %592, %cst_518 {dimension_numbers = #tpu.dot_dimension_numbers<[1], [0], [0], [1], [0, 0, 1, 1], [], []>} : vector<8x80xbf16>, vector<80x120xbf16>, vector<8x120xf32> -> vector<8x120xf32>
    %594 = vector.extract_strided_slice %589 {offsets = [8, 0], sizes = [8, 80], strides = [1, 1]} : vector<40x80xbf16> to vector<8x80xbf16>
    %c1_519 = arith.constant 1 : index
    %c0_520 = arith.constant 0 : index
    %c0_521 = arith.constant 0 : index
    %595 = vector.load %arg6[%c1_519, %c0_520, %c0_521] : memref<5x80x120xbf16, #tpu.memory_space<vmem>>, vector<1x80x120xbf16>
    %596 = vector.shape_cast %595 : vector<1x80x120xbf16> to vector<80x120xbf16>
    %cst_522 = arith.constant dense<0.000000e+00> : vector<8x120xf32>
    %597 = tpu.matmul %594, %596, %cst_522 {dimension_numbers = #tpu.dot_dimension_numbers<[1], [0], [0], [1], [0, 0, 1, 1], [], []>} : vector<8x80xbf16>, vector<80x120xbf16>, vector<8x120xf32> -> vector<8x120xf32>
    %598 = vector.extract_strided_slice %589 {offsets = [16, 0], sizes = [8, 80], strides = [1, 1]} : vector<40x80xbf16> to vector<8x80xbf16>
    %c2_523 = arith.constant 2 : index
    %c0_524 = arith.constant 0 : index
    %c0_525 = arith.constant 0 : index
    %599 = vector.load %arg6[%c2_523, %c0_524, %c0_525] : memref<5x80x120xbf16, #tpu.memory_space<vmem>>, vector<1x80x120xbf16>
    %600 = vector.shape_cast %599 : vector<1x80x120xbf16> to vector<80x120xbf16>
    %cst_526 = arith.constant dense<0.000000e+00> : vector<8x120xf32>
    %601 = tpu.matmul %598, %600, %cst_526 {dimension_numbers = #tpu.dot_dimension_numbers<[1], [0], [0], [1], [0, 0, 1, 1], [], []>} : vector<8x80xbf16>, vector<80x120xbf16>, vector<8x120xf32> -> vector<8x120xf32>
    %602 = vector.extract_strided_slice %589 {offsets = [24, 0], sizes = [8, 80], strides = [1, 1]} : vector<40x80xbf16> to vector<8x80xbf16>
    %c3_527 = arith.constant 3 : index
    %c0_528 = arith.constant 0 : index
    %c0_529 = arith.constant 0 : index
    %603 = vector.load %arg6[%c3_527, %c0_528, %c0_529] : memref<5x80x120xbf16, #tpu.memory_space<vmem>>, vector<1x80x120xbf16>
    %604 = vector.shape_cast %603 : vector<1x80x120xbf16> to vector<80x120xbf16>
    %cst_530 = arith.constant dense<0.000000e+00> : vector<8x120xf32>
    %605 = tpu.matmul %602, %604, %cst_530 {dimension_numbers = #tpu.dot_dimension_numbers<[1], [0], [0], [1], [0, 0, 1, 1], [], []>} : vector<8x80xbf16>, vector<80x120xbf16>, vector<8x120xf32> -> vector<8x120xf32>
    %606 = vector.extract_strided_slice %589 {offsets = [32, 0], sizes = [8, 80], strides = [1, 1]} : vector<40x80xbf16> to vector<8x80xbf16>
    %c4_531 = arith.constant 4 : index
    %c0_532 = arith.constant 0 : index
    %c0_533 = arith.constant 0 : index
    %607 = vector.load %arg6[%c4_531, %c0_532, %c0_533] : memref<5x80x120xbf16, #tpu.memory_space<vmem>>, vector<1x80x120xbf16>
    %608 = vector.shape_cast %607 : vector<1x80x120xbf16> to vector<80x120xbf16>
    %cst_534 = arith.constant dense<0.000000e+00> : vector<8x120xf32>
    %609 = tpu.matmul %606, %608, %cst_534 {dimension_numbers = #tpu.dot_dimension_numbers<[1], [0], [0], [1], [0, 0, 1, 1], [], []>} : vector<8x80xbf16>, vector<80x120xbf16>, vector<8x120xf32> -> vector<8x120xf32>
    %610 = arith.addf %593, %597 : vector<8x120xf32>
    %611 = arith.addf %601, %605 : vector<8x120xf32>
    %612 = arith.addf %610, %611 : vector<8x120xf32>
    %613 = arith.addf %612, %609 : vector<8x120xf32>
    %c0_535 = arith.constant 0 : index
    %c0_536 = arith.constant 0 : index
    %614 = vector.load %arg7[%c0_535, %c0_536] : memref<1x120xf32, #tpu.memory_space<vmem>>, vector<1x120xf32>
    %615 = vector.broadcast %614 : vector<1x120xf32> to vector<8x120xf32>
    %616 = arith.addf %613, %615 : vector<8x120xf32>
    %cst_537 = arith.constant 0.000000e+00 : f32
    %617 = vector.broadcast %cst_537 : f32 to vector<8x120xf32>
    %618 = arith.maximumf %616, %617 : vector<8x120xf32>
    %619 = arith.truncf %618 : vector<8x120xf32> to vector<8x120xbf16>
    %c0_538 = arith.constant 0 : index
    %c0_539 = arith.constant 0 : index
    %620 = vector.load %arg8[%c0_538, %c0_539] : memref<120x84xbf16, #tpu.memory_space<vmem>>, vector<120x84xbf16>
    %cst_540 = arith.constant dense<0.000000e+00> : vector<8x84xf32>
    %621 = tpu.matmul %619, %620, %cst_540 {dimension_numbers = #tpu.dot_dimension_numbers<[1], [0], [0], [1], [0, 0, 1, 1], [], []>} : vector<8x120xbf16>, vector<120x84xbf16>, vector<8x84xf32> -> vector<8x84xf32>
    %c0_541 = arith.constant 0 : index
    %c0_542 = arith.constant 0 : index
    %622 = vector.load %arg9[%c0_541, %c0_542] : memref<1x84xf32, #tpu.memory_space<vmem>>, vector<1x84xf32>
    %623 = vector.broadcast %622 : vector<1x84xf32> to vector<8x84xf32>
    %624 = arith.addf %621, %623 : vector<8x84xf32>
    %cst_543 = arith.constant 0.000000e+00 : f32
    %625 = vector.broadcast %cst_543 : f32 to vector<8x84xf32>
    %626 = arith.maximumf %624, %625 : vector<8x84xf32>
    %627 = arith.truncf %626 : vector<8x84xf32> to vector<8x84xbf16>
    %c0_544 = arith.constant 0 : index
    %c0_545 = arith.constant 0 : index
    %628 = vector.load %arg10[%c0_544, %c0_545] : memref<84x10xbf16, #tpu.memory_space<vmem>>, vector<84x10xbf16>
    %cst_546 = arith.constant dense<0.000000e+00> : vector<8x10xf32>
    %629 = tpu.matmul %627, %628, %cst_546 {dimension_numbers = #tpu.dot_dimension_numbers<[1], [0], [0], [1], [0, 0, 1, 1], [], []>} : vector<8x84xbf16>, vector<84x10xbf16>, vector<8x10xf32> -> vector<8x10xf32>
    %c0_547 = arith.constant 0 : index
    %c0_548 = arith.constant 0 : index
    %630 = vector.load %arg11[%c0_547, %c0_548] : memref<1x10xf32, #tpu.memory_space<vmem>>, vector<1x10xf32>
    %631 = vector.broadcast %630 : vector<1x10xf32> to vector<8x10xf32>
    %632 = arith.addf %629, %631 : vector<8x10xf32>
    %633 = vector.shape_cast %632 : vector<8x10xf32> to vector<1x8x10xf32>
    %c0_549 = arith.constant 0 : index
    %c0_550 = arith.constant 0 : index
    %c0_551 = arith.constant 0 : index
    %634 = vector.load %arg12[%c0_549, %c0_550, %c0_551] : memref<1x8x10xf32, #tpu.memory_space<vmem>>, vector<1x8x10xf32>
    tpu.vector_store %arg12[%c0_549, %c0_550, %c0_551], %633 {strides = array<i32>} : memref<1x8x10xf32, #tpu.memory_space<vmem>>, vector<1x8x10xf32>,
    return
  }
  func.func @transform_0(%arg0: i32) -> (i32, i32, i32, i32) {
    %c0_i32 = arith.constant 0 : i32
    %c0_i32_0 = arith.constant 0 : i32
    %c0_i32_1 = arith.constant 0 : i32
    %c0_i32_2 = arith.constant 0 : i32
    return %arg0, %c0_i32, %c0_i32_0, %c0_i32_1 : i32, i32, i32, i32
  }
  func.func @transform_1(%arg0: i32) -> (i32, i32, i32) {
    %c0_i32 = arith.constant 0 : i32
    %c0_i32_0 = arith.constant 0 : i32
    %c0_i32_1 = arith.constant 0 : i32
    %c0_i32_2 = arith.constant 0 : i32
    return %c0_i32, %c0_i32_0, %c0_i32_1 : i32, i32, i32
  }
  func.func @transform_2(%arg0: i32) -> (i32, i32) {
    %c0_i32 = arith.constant 0 : i32
    %c0_i32_0 = arith.constant 0 : i32
    %c0_i32_1 = arith.constant 0 : i32
    return %c0_i32, %c0_i32_0 : i32, i32
  }
  func.func @transform_3(%arg0: i32) -> (i32, i32, i32) {
    %c0_i32 = arith.constant 0 : i32
    %c0_i32_0 = arith.constant 0 : i32
    %c0_i32_1 = arith.constant 0 : i32
    %c0_i32_2 = arith.constant 0 : i32
    return %c0_i32, %c0_i32_0, %c0_i32_1 : i32, i32, i32
  }
  func.func @transform_4(%arg0: i32) -> (i32, i32) {
    %c0_i32 = arith.constant 0 : i32
    %c0_i32_0 = arith.constant 0 : i32
    %c0_i32_1 = arith.constant 0 : i32
    return %c0_i32, %c0_i32_0 : i32, i32
  }
  func.func @transform_5(%arg0: i32) -> (i32, i32, i32) {
    %c0_i32 = arith.constant 0 : i32
    %c0_i32_0 = arith.constant 0 : i32
    %c0_i32_1 = arith.constant 0 : i32
    %c0_i32_2 = arith.constant 0 : i32
    return %c0_i32, %c0_i32_0, %c0_i32_1 : i32, i32, i32
  }
  func.func @transform_6(%arg0: i32) -> (i32, i32) {
    %c0_i32 = arith.constant 0 : i32
    %c0_i32_0 = arith.constant 0 : i32
    %c0_i32_1 = arith.constant 0 : i32
    return %c0_i32, %c0_i32_0 : i32, i32
  }
  func.func @transform_7(%arg0: i32) -> (i32, i32) {
    %c0_i32 = arith.constant 0 : i32
    %c0_i32_0 = arith.constant 0 : i32
    %c0_i32_1 = arith.constant 0 : i32
    return %c0_i32, %c0_i32_0 : i32, i32
  }
  func.func @transform_8(%arg0: i32) -> (i32, i32) {
    %c0_i32 = arith.constant 0 : i32
    %c0_i32_0 = arith.constant 0 : i32
    %c0_i32_1 = arith.constant 0 : i32
    return %c0_i32, %c0_i32_0 : i32, i32
  }
  func.func @transform_9(%arg0: i32) -> (i32, i32) {
    %c0_i32 = arith.constant 0 : i32
    %c0_i32_0 = arith.constant 0 : i32
    %c0_i32_1 = arith.constant 0 : i32
    return %c0_i32, %c0_i32_0 : i32, i32
  }
  func.func @transform_10(%arg0: i32) -> (i32, i32) {
    %c0_i32 = arith.constant 0 : i32
    %c0_i32_0 = arith.constant 0 : i32
    %c0_i32_1 = arith.constant 0 : i32
    return %c0_i32, %c0_i32_0 : i32, i32
  }
  func.func @transform_11(%arg0: i32) -> (i32, i32, i32) {
    %c0_i32 = arith.constant 0 : i32
    %c0_i32_0 = arith.constant 0 : i32
    %c0_i32_1 = arith.constant 0 : i32
    return %arg0, %c0_i32, %c0_i32_0 : i32, i32, i32
  }
}

</mosaic_0001>

<llo_original>
// kernel: cnn_cifar_forward.1
$region0: #{cnn_cifar_forward.1}
  #allocation0 [shape = 'u32[]', space=smem, size = 0x4, offset = 0x4, fixed_abs, tag = 'smem constant byte address 0x4 - core index']
  #allocation1 [shape = 'u32[144,128]{1,0:T(1,128)}', space=vmem, size = 0x12000, scoped, tag = 'internal scratch']
  %s0 = inlined_call_operand.vmem [shape: bf16[1,4,64,96], index: 0, kind: input, shape index: {}]
  %s1 = inlined_call_operand.vmem [shape: bf16[20,96,42], index: 1, kind: input, shape index: {}]
  %s2 = inlined_call_operand.vmem [shape: f32[1,42], index: 2, kind: input, shape index: {}]
  %s3 = inlined_call_operand.vmem [shape: bf16[20,42,80], index: 3, kind: input, shape index: {}]
  %s4 = inlined_call_operand.vmem [shape: f32[1,80], index: 4, kind: input, shape index: {}]
  %s5 = inlined_call_operand.vmem [shape: bf16[5,80,120], index: 5, kind: input, shape index: {}]
  %s6 = inlined_call_operand.vmem [shape: f32[1,120], index: 6, kind: input, shape index: {}]
  %s7 = inlined_call_operand.vmem [shape: bf16[120,84], index: 7, kind: input, shape index: {}]
  %s8 = inlined_call_operand.vmem [shape: f32[1,84], index: 8, kind: input, shape index: {}]
  %s9 = inlined_call_operand.vmem [shape: bf16[84,10], index: 9, kind: input, shape index: {}]
  %s10 = inlined_call_operand.vmem [shape: f32[1,10], index: 10, kind: input, shape index: {}]
  %s11 = inlined_call_operand.vmem [shape: f32[1,8,10], index: 11, kind: output, shape index: {}]
  %s12 = sld [smem:[#allocation0]]
  $region54: #{cnn_cifar_forward.1} parent=0
    _
  %s14 = ssub.s32 1, %s12
  %s15 = scalar_select 0, %s14, %s12
  // Predicated region
  $region2: #{cnn_cifar_forward.1} parent=0 // pred_check
    _
  $region3: #{cnn_cifar_forward.1} parent=0 // pred_check_branch
    %17 = sbr.rel (0) target = $region5
  $region4: #{cnn_cifar_forward.1} parent=0 // pred_region
    _
  $region5: #{cnn_cifar_forward.1} parent=0 // pred_fallthru
    _
  // Predicated region
  $region6: #{cnn_cifar_forward.1} parent=0 // pred_check
    _
  $region7: #{cnn_cifar_forward.1} parent=0 // pred_check_branch
    %19 = sbr.rel (0) target = $region9
  $region8: #{cnn_cifar_forward.1} parent=0 // pred_region
    _
  $region9: #{cnn_cifar_forward.1} parent=0 // pred_fallthru
    _
  // Predicated region
  $region10: #{cnn_cifar_forward.1} parent=0 // pred_check
    _
  $region11: #{cnn_cifar_forward.1} parent=0 // pred_check_branch
    %21 = sbr.rel (0) target = $region13
  $region12: #{cnn_cifar_forward.1} parent=0 // pred_region
    _
  $region13: #{cnn_cifar_forward.1} parent=0 // pred_fallthru
    _
  // Predicated region
  $region14: #{cnn_cifar_forward.1} parent=0 // pred_check
    _
  $region15: #{cnn_cifar_forward.1} parent=0 // pred_check_branch
    %23 = sbr.rel (0) target = $region17
  $region16: #{cnn_cifar_forward.1} parent=0 // pred_region
    _
  $region17: #{cnn_cifar_forward.1} parent=0 // pred_fallthru
    _
  // Predicated region
  $region18: #{cnn_cifar_forward.1} parent=0 // pred_check
    _
  $region19: #{cnn_cifar_forward.1} parent=0 // pred_check_branch
    %25 = sbr.rel (0) target = $region21
  $region20: #{cnn_cifar_forward.1} parent=0 // pred_region
    _
  $region21: #{cnn_cifar_forward.1} parent=0 // pred_fallthru
    _
  // Predicated region
  $region22: #{cnn_cifar_forward.1} parent=0 // pred_check
    _
  $region23: #{cnn_cifar_forward.1} parent=0 // pred_check_branch
    %27 = sbr.rel (0) target = $region25
  $region24: #{cnn_cifar_forward.1} parent=0 // pred_region
    _
  $region25: #{cnn_cifar_forward.1} parent=0 // pred_fallthru
    _
  // Predicated region
  $region26: #{cnn_cifar_forward.1} parent=0 // pred_check
    _
  $region27: #{cnn_cifar_forward.1} parent=0 // pred_check_branch
    %29 = sbr.rel (0) target = $region29
  $region28: #{cnn_cifar_forward.1} parent=0 // pred_region
    _
  $region29: #{cnn_cifar_forward.1} parent=0 // pred_fallthru
    _
  // Predicated region
  $region30: #{cnn_cifar_forward.1} parent=0 // pred_check
    _
  $region31: #{cnn_cifar_forward.1} parent=0 // pred_check_branch
    %31 = sbr.rel (0) target = $region33
  $region32: #{cnn_cifar_forward.1} parent=0 // pred_region
    _
  $region33: #{cnn_cifar_forward.1} parent=0 // pred_fallthru
    _
  // Predicated region
  $region34: #{cnn_cifar_forward.1} parent=0 // pred_check
    _
  $region35: #{cnn_cifar_forward.1} parent=0 // pred_check_branch
    %33 = sbr.rel (0) target = $region37
  $region36: #{cnn_cifar_forward.1} parent=0 // pred_region
    _
  $region37: #{cnn_cifar_forward.1} parent=0 // pred_fallthru
    _
  // Predicated region
  $region38: #{cnn_cifar_forward.1} parent=0 // pred_check
    _
  $region39: #{cnn_cifar_forward.1} parent=0 // pred_check_branch
    %35 = sbr.rel (0) target = $region41
  $region40: #{cnn_cifar_forward.1} parent=0 // pred_region
    _
  $region41: #{cnn_cifar_forward.1} parent=0 // pred_fallthru
    _
  // Predicated region
  $region42: #{cnn_cifar_forward.1} parent=0 // pred_check
    _
  $region43: #{cnn_cifar_forward.1} parent=0 // pred_check_branch
    %37 = sbr.rel (0) target = $region45
  $region44: #{cnn_cifar_forward.1} parent=0 // pred_region
    _
  $region45: #{cnn_cifar_forward.1} parent=0 // pred_fallthru
    _
  %v39 = vld [vmem:[%s2] sm:$0x1]
  %v40 = vld [vmem:[%s4] sm:$0x1]
  %v41 = vld [vmem:[%s0] sm:$0xf]
  %v42 = vld [vmem:[%s0 + $0x4] sm:$0xf]
  %v43 = vld [vmem:[%s0 + $0x8] sm:$0xf]
  %v44 = vld [vmem:[%s0 + $0xc] sm:$0xf]
  %v45 = vld [vmem:[%s0 + $0x10] sm:$0xf]
  %v46 = vld [vmem:[%s0 + $0x14] sm:$0xf]
  %v47 = vld [vmem:[%s0 + $0x18] sm:$0xf]
  %v48 = vld [vmem:[%s0 + $0x1c] sm:$0xf]
  %s49 = scalar_lea.vmem %s0, 32
  %v50 = vld [vmem:[%s49] sm:$0xf]
  %v51 = vld [vmem:[%s49 + $0x4] sm:$0xf]
  %v52 = vld [vmem:[%s49 + $0x8] sm:$0xf]
  %v53 = vld [vmem:[%s49 + $0xc] sm:$0xf]
  %v54 = vld [vmem:[%s49 + $0x10] sm:$0xf]
  %v55 = vld [vmem:[%s49 + $0x14] sm:$0xf]
  %v56 = vld [vmem:[%s49 + $0x18] sm:$0xf]
  %v57 = vld [vmem:[%s49 + $0x1c] sm:$0xf]
  %s58 = scalar_lea.vmem %s0, 64
  %v59 = vld [vmem:[%s58] sm:$0xf]
  %v60 = vld [vmem:[%s58 + $0x4] sm:$0xf]
  %v61 = vld [vmem:[%s58 + $0x8] sm:$0xf]
  %v62 = vld [vmem:[%s58 + $0xc] sm:$0xf]
  %v63 = vld [vmem:[%s58 + $0x10] sm:$0xf]
  %v64 = vld [vmem:[%s58 + $0x14] sm:$0xf]
  %v65 = vld [vmem:[%s58 + $0x18] sm:$0xf]
  %v66 = vld [vmem:[%s58 + $0x1c] sm:$0xf]
  %s67 = scalar_lea.vmem %s0, 96
  %v68 = vld [vmem:[%s67] sm:$0xf]
  %v69 = vld [vmem:[%s67 + $0x4] sm:$0xf]
  %v70 = vld [vmem:[%s67 + $0x8] sm:$0xf]
  %v71 = vld [vmem:[%s67 + $0xc] sm:$0xf]
  %v72 = vld [vmem:[%s67 + $0x10] sm:$0xf]
  %v73 = vld [vmem:[%s67 + $0x14] sm:$0xf]
  %v74 = vld [vmem:[%s67 + $0x18] sm:$0xf]
  %v75 = vld [vmem:[%s67 + $0x1c] sm:$0xf]
  %v76 = vld [vmem:[%s1] sm:$0xf]
  %v77 = vld [vmem:[%s1 + $0x4] sm:$0xf]
  %v78 = vld [vmem:[%s1 + $0x8] sm:$0xf]
  %v79 = vld [vmem:[%s1 + $0xc] sm:$0xf]
  %v80 = vld [vmem:[%s1 + $0x10] sm:$0xf]
  %v81 = vld [vmem:[%s1 + $0x14] sm:$0xf]
  %v82 = vld [vmem:[%s1 + $0x18] sm:$0xf]
  %v83 = vld [vmem:[%s1 + $0x1c] sm:$0xf]
  %v84 = vld [vmem:[%s1 + $0x20] sm:$0xf]
  %v85 = vld [vmem:[%s1 + $0x24] sm:$0xf]
  %v86 = vld [vmem:[%s1 + $0x28] sm:$0xf]
  %v87 = vld [vmem:[%s1 + $0x2c] sm:$0xf]
  %s88 = scalar_lea.vmem %s1, 48
  %v89 = vld [vmem:[%s88] sm:$0xf]
  %v90 = vld [vmem:[%s88 + $0x4] sm:$0xf]
  %v91 = vld [vmem:[%s88 + $0x8] sm:$0xf]
  %v92 = vld [vmem:[%s88 + $0xc] sm:$0xf]
  %v93 = vld [vmem:[%s88 + $0x10] sm:$0xf]
  %v94 = vld [vmem:[%s88 + $0x14] sm:$0xf]
  %v95 = vld [vmem:[%s88 + $0x18] sm:$0xf]
  %v96 = vld [vmem:[%s88 + $0x1c] sm:$0xf]
  %v97 = vld [vmem:[%s88 + $0x20] sm:$0xf]
  %v98 = vld [vmem:[%s88 + $0x24] sm:$0xf]
  %v99 = vld [vmem:[%s88 + $0x28] sm:$0xf]
  %v100 = vld [vmem:[%s88 + $0x2c] sm:$0xf]
  %v108 = vunpack.c.l.b16 %v50
  %v109 = vunpack.c.l.b16 %v51
  %v110 = vunpack.c.l.b16 %v52
  %v111 = vunpack.c.l.b16 %v53
  %v112 = vunpack.c.l.b16 %v54
  %v113 = vunpack.c.l.b16 %v55
  %v114 = vunpack.c.l.b16 %v56
  %v115 = vpack.c.b16 %v109, %v108
  %v116 = vpack.c.b16 %v111, %v110
  %v117 = vpack.c.b16 %v113, %v112
  %v118 = vpack.c.b16 %v114, %v114
  %v131 = vunpack.c.l.b16 %v89
  %v132 = vunpack.c.l.b16 %v90
  %v133 = vunpack.c.l.b16 %v91
  %v134 = vunpack.c.l.b16 %v92
  %v135 = vunpack.c.l.b16 %v93
  %v136 = vunpack.c.l.b16 %v94
  %v137 = vunpack.c.l.b16 %v95
  %v138 = vunpack.c.l.b16 %v96
  %v139 = vunpack.c.l.b16 %v97
  %v140 = vunpack.c.l.b16 %v98
  %v141 = vunpack.c.l.b16 %v99
  %v142 = vunpack.c.l.b16 %v100
  %v143 = vpack.c.b16 %v132, %v131
  %v144 = vpack.c.b16 %v134, %v133
  %v145 = vpack.c.b16 %v136, %v135
  %v146 = vpack.c.b16 %v138, %v137
  %v147 = vpack.c.b16 %v140, %v139
  %v148 = vpack.c.b16 %v142, %v141
  %vm155 = vcmask 785408
  %v157 = vsel %vm155, %v115, 0
  %v160 = vsel %vm155, %v116, 0
  %v163 = vsel %vm155, %v117, 0
  %v166 = vsel %vm155, %v118, 0
  %168 = vmatprep.subr.bf16.mxu0 0
  %169 = vmatpush1.bf16.msra.mxu0 %v143
  %170 = vmatprep.subr.bf16.mxu0 0
  %171 = vmatpush1.bf16.msra.mxu0 %v144
  %172 = vmatprep.subr.bf16.mxu0 0
  %173 = vmatpush1.bf16.msra.mxu0 %v145
  %174 = vmatprep.subr.bf16.mxu0 0
  %175 = vmatpush1.bf16.msra.mxu0 %v146
  %176 = vmatprep.subr.bf16.mxu0 0
  %177 = vmatpush1.bf16.msra.mxu0 %v147
  %178 = vmatprep.subr.bf16.mxu0 0
  %179 = vmatpush1.bf16.msra.mxu0 %v148
  %180 = vmatprep.subr.bf16.mxu0 0
  %181 = vmatpush1.bf16.msra.mxu0 0
  %182 = vmatprep.subr.bf16.mxu0 0
  %183 = vmatpush1.bf16.msra.mxu0 0
  %184 = vmatprep.subr.bf16.mxu0 0
  %185 = vmatpush1.bf16.msra.mxu0 0
  %186 = vmatprep.subr.bf16.mxu0 0
  %187 = vmatpush1.bf16.msra.mxu0 0
  %188 = vmatprep.subr.bf16.mxu0 0
  %189 = vmatpush1.bf16.msra.mxu0 0
  %190 = vmatprep.subr.bf16.mxu0 0
  %191 = vmatpush1.bf16.msra.mxu0 0
  %192 = vmatprep.subr.bf16.mxu0 0
  %193 = vmatpush1.bf16.msra.mxu0 0
  %194 = vmatprep.subr.bf16.mxu0 0
  %195 = vmatpush1.bf16.msra.mxu0 0
  %196 = vmatprep.subr.bf16.mxu0 0
  %197 = vmatpush1.bf16.msra.mxu0 0
  %198 = vmatprep.subr.bf16.mxu0 0
  %199 = vmatpush1.bf16.msra.mxu0 0
  %200 = vmatprep.mubr.bf16.mxu0 0
  %201 = vmatmul.mubr.bf16.gmra.mrb[0].mxu0 %v157
  %v202 = vpop.f32.mrb[0].mxu0
  %v203 = vadd.f32 0.0, %v202
  %v204 = vpop.f32.mrb[0].mxu0
  %v205 = vpop.f32.mrb[0].mxu0
  %v206 = vadd.f32 0.0, %v205
  %v207 = vpop.f32.mrb[0].mxu0
  %208 = vmatprep.mubr.bf16.mxu0 0
  %209 = vmatmul.mubr.bf16.gmra.mrb[0].mxu0 %v160
  %v210 = vpop.f32.mrb[0].mxu0
  %v211 = vadd.f32 0.0, %v210
  %v212 = vpop.f32.mrb[0].mxu0
  %v213 = vpop.f32.mrb[0].mxu0
  %v214 = vadd.f32 0.0, %v213
  %v215 = vpop.f32.mrb[0].mxu0
  %216 = vmatprep.mubr.bf16.mxu0 0
  %217 = vmatmul.mubr.bf16.gmra.mrb[0].mxu0 %v163
  %v218 = vpop.f32.mrb[0].mxu0
  %v219 = vadd.f32 0.0, %v218
  %v220 = vpop.f32.mrb[0].mxu0
  %v221 = vpop.f32.mrb[0].mxu0
  %v222 = vadd.f32 0.0, %v221
  %v223 = vpop.f32.mrb[0].mxu0
  %224 = vmatprep.mubr.bf16.mxu0 0
  %225 = vmatmul.mubr.bf16.gmra.mrb[0].mxu0 %v166
  %v226 = vpop.f32.mrb[0].mxu0
  %v227 = vadd.f32 0.0, %v226
  %v228 = vpop.f32.mrb[0].mxu0
  %v229 = vpop.f32.mrb[0].mxu0
  %v230 = vpop.f32.mrb[0].mxu0
  %231 = vdwg.mxu0
  %s232 = scalar_lea.vmem %s1, 96
  %v233 = vld [vmem:[%s232] sm:$0xf]
  %v234 = vld [vmem:[%s232 + $0x4] sm:$0xf]
  %v235 = vld [vmem:[%s232 + $0x8] sm:$0xf]
  %v236 = vld [vmem:[%s232 + $0xc] sm:$0xf]
  %v237 = vld [vmem:[%s232 + $0x10] sm:$0xf]
  %v238 = vld [vmem:[%s232 + $0x14] sm:$0xf]
  %v239 = vld [vmem:[%s232 + $0x18] sm:$0xf]
  %v240 = vld [vmem:[%s232 + $0x1c] sm:$0xf]
  %v241 = vld [vmem:[%s232 + $0x20] sm:$0xf]
  %v242 = vld [vmem:[%s232 + $0x24] sm:$0xf]
  %v243 = vld [vmem:[%s232 + $0x28] sm:$0xf]
  %v244 = vld [vmem:[%s232 + $0x2c] sm:$0xf]
  %s245 = scalar_lea.vmem %s1, 144
  %v246 = vld [vmem:[%s245] sm:$0xf]
  %v247 = vld [vmem:[%s245 + $0x4] sm:$0xf]
  %v248 = vld [vmem:[%s245 + $0x8] sm:$0xf]
  %v249 = vld [vmem:[%s245 + $0xc] sm:$0xf]
  %v250 = vld [vmem:[%s245 + $0x10] sm:$0xf]
  %v251 = vld [vmem:[%s245 + $0x14] sm:$0xf]
  %v252 = vld [vmem:[%s245 + $0x18] sm:$0xf]
  %v253 = vld [vmem:[%s245 + $0x1c] sm:$0xf]
  %v254 = vld [vmem:[%s245 + $0x20] sm:$0xf]
  %v255 = vld [vmem:[%s245 + $0x24] sm:$0xf]
  %v256 = vld [vmem:[%s245 + $0x28] sm:$0xf]
  %v257 = vld [vmem:[%s245 + $0x2c] sm:$0xf]
  %v265 = vunpack.c.l.b16 %v68
  %v266 = vunpack.c.l.b16 %v69
  %v267 = vunpack.c.l.b16 %v70
  %v268 = vunpack.c.l.b16 %v71
  %v269 = vunpack.c.l.b16 %v72
  %v270 = vunpack.c.l.b16 %v73
  %v271 = vunpack.c.l.b16 %v74
  %v272 = vpack.c.b16 %v266, %v265
  %v273 = vpack.c.b16 %v268, %v267
  %v274 = vpack.c.b16 %v270, %v269
  %v275 = vpack.c.b16 %v271, %v271
  %v288 = vunpack.c.l.b16 %v246
  %v289 = vunpack.c.l.b16 %v247
  %v290 = vunpack.c.l.b16 %v248
  %v291 = vunpack.c.l.b16 %v249
  %v292 = vunpack.c.l.b16 %v250
  %v293 = vunpack.c.l.b16 %v251
  %v294 = vunpack.c.l.b16 %v252
  %v295 = vunpack.c.l.b16 %v253
  %v296 = vunpack.c.l.b16 %v254
  %v297 = vunpack.c.l.b16 %v255
  %v298 = vunpack.c.l.b16 %v256
  %v299 = vunpack.c.l.b16 %v257
  %v300 = vpack.c.b16 %v289, %v288
  %v301 = vpack.c.b16 %v291, %v290
  %v302 = vpack.c.b16 %v293, %v292
  %v303 = vpack.c.b16 %v295, %v294
  %v304 = vpack.c.b16 %v297, %v296
  %v305 = vpack.c.b16 %v299, %v298
  %v313 = vsel %vm155, %v272, 0
  %v316 = vsel %vm155, %v273, 0
  %v319 = vsel %vm155, %v274, 0
  %v322 = vsel %vm155, %v275, 0
  %324 = vmatprep.subr.bf16.mxu0 0
  %325 = vmatpush1.bf16.msra.mxu0 %v300
  %326 = vmatprep.subr.bf16.mxu0 0
  %327 = vmatpush1.bf16.msra.mxu0 %v301
  %328 = vmatprep.subr.bf16.mxu0 0
  %329 = vmatpush1.bf16.msra.mxu0 %v302
  %330 = vmatprep.subr.bf16.mxu0 0
  %331 = vmatpush1.bf16.msra.mxu0 %v303
  %332 = vmatprep.subr.bf16.mxu0 0
  %333 = vmatpush1.bf16.msra.mxu0 %v304
  %334 = vmatprep.subr.bf16.mxu0 0
  %335 = vmatpush1.bf16.msra.mxu0 %v305
  %336 = vmatprep.subr.bf16.mxu0 0
  %337 = vmatpush1.bf16.msra.mxu0 0
  %338 = vmatprep.subr.bf16.mxu0 0
  %339 = vmatpush1.bf16.msra.mxu0 0
  %340 = vmatprep.subr.bf16.mxu0 0
  %341 = vmatpush1.bf16.msra.mxu0 0
  %342 = vmatprep.subr.bf16.mxu0 0
  %343 = vmatpush1.bf16.msra.mxu0 0
  %344 = vmatprep.subr.bf16.mxu0 0
  %345 = vmatpush1.bf16.msra.mxu0 0
  %346 = vmatprep.subr.bf16.mxu0 0
  %347 = vmatpush1.bf16.msra.mxu0 0
  %348 = vmatprep.subr.bf16.mxu0 0
  %349 = vmatpush1.bf16.msra.mxu0 0
  %350 = vmatprep.subr.bf16.mxu0 0
  %351 = vmatpush1.bf16.msra.mxu0 0
  %352 = vmatprep.subr.bf16.mxu0 0
  %353 = vmatpush1.bf16.msra.mxu0 0
  %354 = vmatprep.subr.bf16.mxu0 0
  %355 = vmatpush1.bf16.msra.mxu0 0
  %356 = vmatprep.mubr.bf16.mxu0 0
  %357 = vmatmul.mubr.bf16.gmra.mrb[0].mxu0 %v313
  %v358 = vpop.f32.mrb[0].mxu0
  %v359 = vadd.f32 0.0, %v358
  %v360 = vpop.f32.mrb[0].mxu0
  %v361 = vpop.f32.mrb[0].mxu0
  %v362 = vadd.f32 0.0, %v361
  %v363 = vpop.f32.mrb[0].mxu0
  %364 = vmatprep.mubr.bf16.mxu0 0
  %365 = vmatmul.mubr.bf16.gmra.mrb[0].mxu0 %v316
  %v366 = vpop.f32.mrb[0].mxu0
  %v367 = vadd.f32 0.0, %v366
  %v368 = vpop.f32.mrb[0].mxu0
  %v369 = vpop.f32.mrb[0].mxu0
  %v370 = vadd.f32 0.0, %v369
  %v371 = vpop.f32.mrb[0].mxu0
  %372 = vmatprep.mubr.bf16.mxu0 0
  %373 = vmatmul.mubr.bf16.gmra.mrb[0].mxu0 %v319
  %v374 = vpop.f32.mrb[0].mxu0
  %v375 = vadd.f32 0.0, %v374
  %v376 = vpop.f32.mrb[0].mxu0
  %v377 = vpop.f32.mrb[0].mxu0
  %v378 = vadd.f32 0.0, %v377
  %v379 = vpop.f32.mrb[0].mxu0
  %380 = vmatprep.mubr.bf16.mxu0 0
  %381 = vmatmul.mubr.bf16.gmra.mrb[0].mxu0 %v322
  %v382 = vpop.f32.mrb[0].mxu0
  %v383 = vadd.f32 0.0, %v382
  %v384 = vpop.f32.mrb[0].mxu0
  %v385 = vpop.f32.mrb[0].mxu0
  %v386 = vpop.f32.mrb[0].mxu0
  %387 = vdwg.mxu0
  %s388 = scalar_lea.vmem %s1, 192
  %v389 = vld [vmem:[%s388] sm:$0xf]
  %v390 = vld [vmem:[%s388 + $0x4] sm:$0xf]
  %v391 = vld [vmem:[%s388 + $0x8] sm:$0xf]
  %v392 = vld [vmem:[%s388 + $0xc] sm:$0xf]
  %v393 = vld [vmem:[%s388 + $0x10] sm:$0xf]
  %v394 = vld [vmem:[%s388 + $0x14] sm:$0xf]
  %v395 = vld [vmem:[%s388 + $0x18] sm:$0xf]
  %v396 = vld [vmem:[%s388 + $0x1c] sm:$0xf]
  %v397 = vld [vmem:[%s388 + $0x20] sm:$0xf]
  %v398 = vld [vmem:[%s388 + $0x24] sm:$0xf]
  %v399 = vld [vmem:[%s388 + $0x28] sm:$0xf]
  %v400 = vld [vmem:[%s388 + $0x2c] sm:$0xf]
  %v408 = vunpack.c.l.b16 %v42
  %v409 = vunpack.c.l.b16 %v43
  %v410 = vunpack.c.l.b16 %v44
  %v411 = vunpack.c.l.b16 %v45
  %v412 = vunpack.c.l.b16 %v46
  %v413 = vunpack.c.l.b16 %v47
  %v414 = vunpack.c.l.b16 %v48
  %v415 = vpack.c.b16 %v409, %v408
  %v416 = vpack.c.b16 %v411, %v410
  %v417 = vpack.c.b16 %v413, %v412
  %v418 = vpack.c.b16 %v414, %v414
  %v431 = vunpack.c.l.b16 %v389
  %v432 = vunpack.c.l.b16 %v390
  %v433 = vunpack.c.l.b16 %v391
  %v434 = vunpack.c.l.b16 %v392
  %v435 = vunpack.c.l.b16 %v393
  %v436 = vunpack.c.l.b16 %v394
  %v437 = vunpack.c.l.b16 %v395
  %v438 = vunpack.c.l.b16 %v396
  %v439 = vunpack.c.l.b16 %v397
  %v440 = vunpack.c.l.b16 %v398
  %v441 = vunpack.c.l.b16 %v399
  %v442 = vunpack.c.l.b16 %v400
  %v443 = vpack.c.b16 %v432, %v431
  %v444 = vpack.c.b16 %v434, %v433
  %v445 = vpack.c.b16 %v436, %v435
  %v446 = vpack.c.b16 %v438, %v437
  %v447 = vpack.c.b16 %v440, %v439
  %v448 = vpack.c.b16 %v442, %v441
  %v456 = vsel %vm155, %v415, 0
  %v459 = vsel %vm155, %v416, 0
  %v462 = vsel %vm155, %v417, 0
  %v465 = vsel %vm155, %v418, 0
  %467 = vmatprep.subr.bf16.mxu0 0
  %468 = vmatpush1.bf16.msra.mxu0 %v443
  %469 = vmatprep.subr.bf16.mxu0 0
  %470 = vmatpush1.bf16.msra.mxu0 %v444
  %471 = vmatprep.subr.bf16.mxu0 0
  %472 = vmatpush1.bf16.msra.mxu0 %v445
  %473 = vmatprep.subr.bf16.mxu0 0
  %474 = vmatpush1.bf16.msra.mxu0 %v446
  %475 = vmatprep.subr.bf16.mxu0 0
  %476 = vmatpush1.bf16.msra.mxu0 %v447
  %477 = vmatprep.subr.bf16.mxu0 0
  %478 = vmatpush1.bf16.msra.mxu0 %v448
  %479 = vmatprep.subr.bf16.mxu0 0
  %480 = vmatpush1.bf16.msra.mxu0 0
  %481 = vmatprep.subr.bf16.mxu0 0
  %482 = vmatpush1.bf16.msra.mxu0 0
  %483 = vmatprep.subr.bf16.mxu0 0
  %484 = vmatpush1.bf16.msra.mxu0 0
  %485 = vmatprep.subr.bf16.mxu0 0
  %486 = vmatpush1.bf16.msra.mxu0 0
  %487 = vmatprep.subr.bf16.mxu0 0
  %488 = vmatpush1.bf16.msra.mxu0 0
  %489 = vmatprep.subr.bf16.mxu0 0
  %490 = vmatpush1.bf16.msra.mxu0 0
  %491 = vmatprep.subr.bf16.mxu0 0
  %492 = vmatpush1.bf16.msra.mxu0 0
  %493 = vmatprep.subr.bf16.mxu0 0
  %494 = vmatpush1.bf16.msra.mxu0 0
  %495 = vmatprep.subr.bf16.mxu0 0
  %496 = vmatpush1.bf16.msra.mxu0 0
  %497 = vmatprep.subr.bf16.mxu0 0
  %498 = vmatpush1.bf16.msra.mxu0 0
  %499 = vmatprep.mubr.bf16.mxu0 0
  %500 = vmatmul.mubr.bf16.gmra.mrb[0].mxu0 %v456
  %v501 = vpop.f32.mrb[0].mxu0
  %v502 = vadd.f32 0.0, %v501
  %v503 = vpop.f32.mrb[0].mxu0
  %v504 = vpop.f32.mrb[0].mxu0
  %v505 = vadd.f32 0.0, %v504
  %v506 = vpop.f32.mrb[0].mxu0
  %507 = vmatprep.mubr.bf16.mxu0 0
  %508 = vmatmul.mubr.bf16.gmra.mrb[0].mxu0 %v459
  %v509 = vpop.f32.mrb[0].mxu0
  %v510 = vadd.f32 0.0, %v509
  %v511 = vpop.f32.mrb[0].mxu0
  %v512 = vpop.f32.mrb[0].mxu0
  %v513 = vadd.f32 0.0, %v512
  %v514 = vpop.f32.mrb[0].mxu0
  %515 = vmatprep.mubr.bf16.mxu0 0
  %516 = vmatmul.mubr.bf16.gmra.mrb[0].mxu0 %v462
  %v517 = vpop.f32.mrb[0].mxu0
  %v518 = vadd.f32 0.0, %v517
  %v519 = vpop.f32.mrb[0].mxu0
  %v520 = vpop.f32.mrb[0].mxu0
  %v521 = vadd.f32 0.0, %v520
  %v522 = vpop.f32.mrb[0].mxu0
  %523 = vmatprep.mubr.bf16.mxu0 0
  %524 = vmatmul.mubr.bf16.gmra.mrb[0].mxu0 %v465
  %v525 = vpop.f32.mrb[0].mxu0
  %v526 = vadd.f32 0.0, %v525
  %v527 = vpop.f32.mrb[0].mxu0
  %v528 = vpop.f32.mrb[0].mxu0
  %v529 = vpop.f32.mrb[0].mxu0
  %530 = vdwg.mxu0
  %v532 = vunpack.c.l.b16 %v41
  %v533 = vpack.c.b16 %v408, %v532
  %v534 = vpack.c.b16 %v410, %v409
  %v535 = vpack.c.b16 %v412, %v411
  %v536 = vpack.c.b16 %v413, %v413
  %v549 = vunpack.c.l.b16 %v76
  %v550 = vunpack.c.l.b16 %v77
  %v551 = vunpack.c.l.b16 %v78
  %v552 = vunpack.c.l.b16 %v79
  %v553 = vunpack.c.l.b16 %v80
  %v554 = vunpack.c.l.b16 %v81
  %v555 = vunpack.c.l.b16 %v82
  %v556 = vunpack.c.l.b16 %v83
  %v557 = vunpack.c.l.b16 %v84
  %v558 = vunpack.c.l.b16 %v85
  %v559 = vunpack.c.l.b16 %v86
  %v560 = vunpack.c.l.b16 %v87
  %v561 = vpack.c.b16 %v550, %v549
  %v562 = vpack.c.b16 %v552, %v551
  %v563 = vpack.c.b16 %v554, %v553
  %v564 = vpack.c.b16 %v556, %v555
  %v565 = vpack.c.b16 %v558, %v557
  %v566 = vpack.c.b16 %v560, %v559
  %v574 = vsel %vm155, %v533, 0
  %v577 = vsel %vm155, %v534, 0
  %v580 = vsel %vm155, %v535, 0
  %v583 = vsel %vm155, %v536, 0
  %585 = vmatprep.subr.bf16.mxu0 0
  %586 = vmatpush1.bf16.msra.mxu0 %v561
  %587 = vmatprep.subr.bf16.mxu0 0
  %588 = vmatpush1.bf16.msra.mxu0 %v562
  %589 = vmatprep.subr.bf16.mxu0 0
  %590 = vmatpush1.bf16.msra.mxu0 %v563
  %591 = vmatprep.subr.bf16.mxu0 0
  %592 = vmatpush1.bf16.msra.mxu0 %v564
  %593 = vmatprep.subr.bf16.mxu0 0
  %594 = vmatpush1.bf16.msra.mxu0 %v565
  %595 = vmatprep.subr.bf16.mxu0 0
  %596 = vmatpush1.bf16.msra.mxu0 %v566
  %597 = vmatprep.subr.bf16.mxu0 0
  %598 = vmatpush1.bf16.msra.mxu0 0
  %599 = vmatprep.subr.bf16.mxu0 0
  %600 = vmatpush1.bf16.msra.mxu0 0
  %601 = vmatprep.subr.bf16.mxu0 0
  %602 = vmatpush1.bf16.msra.mxu0 0
  %603 = vmatprep.subr.bf16.mxu0 0
  %604 = vmatpush1.bf16.msra.mxu0 0
  %605 = vmatprep.subr.bf16.mxu0 0
  %606 = vmatpush1.bf16.msra.mxu0 0
  %607 = vmatprep.subr.bf16.mxu0 0
  %608 = vmatpush1.bf16.msra.mxu0 0
  %609 = vmatprep.subr.bf16.mxu0 0
  %610 = vmatpush1.bf16.msra.mxu0 0
  %611 = vmatprep.subr.bf16.mxu0 0
  %612 = vmatpush1.bf16.msra.mxu0 0
  %613 = vmatprep.subr.bf16.mxu0 0
  %614 = vmatpush1.bf16.msra.mxu0 0
  %615 = vmatprep.subr.bf16.mxu0 0
  %616 = vmatpush1.bf16.msra.mxu0 0
  %617 = vmatprep.mubr.bf16.mxu0 0
  %618 = vmatmul.mubr.bf16.gmra.mrb[0].mxu0 %v574
  %v619 = vpop.f32.mrb[0].mxu0
  %v620 = vadd.f32 %v203, %v619
  %v621 = vpop.f32.mrb[0].mxu0
  %v622 = vpop.f32.mrb[0].mxu0
  %v623 = vadd.f32 %v206, %v622
  %v624 = vpop.f32.mrb[0].mxu0
  %625 = vmatprep.mubr.bf16.mxu0 0
  %626 = vmatmul.mubr.bf16.gmra.mrb[0].mxu0 %v577
  %v627 = vpop.f32.mrb[0].mxu0
  %v628 = vadd.f32 %v211, %v627
  %v629 = vpop.f32.mrb[0].mxu0
  %v630 = vpop.f32.mrb[0].mxu0
  %v631 = vadd.f32 %v214, %v630
  %v632 = vpop.f32.mrb[0].mxu0
  %633 = vmatprep.mubr.bf16.mxu0 0
  %634 = vmatmul.mubr.bf16.gmra.mrb[0].mxu0 %v580
  %v635 = vpop.f32.mrb[0].mxu0
  %v636 = vadd.f32 %v219, %v635
  %v637 = vpop.f32.mrb[0].mxu0
  %v638 = vpop.f32.mrb[0].mxu0
  %v639 = vadd.f32 %v222, %v638
  %v640 = vpop.f32.mrb[0].mxu0
  %641 = vmatprep.mubr.bf16.mxu0 0
  %642 = vmatmul.mubr.bf16.gmra.mrb[0].mxu0 %v583
  %v643 = vpop.f32.mrb[0].mxu0
  %v644 = vadd.f32 %v227, %v643
  %v645 = vpop.f32.mrb[0].mxu0
  %v646 = vpop.f32.mrb[0].mxu0
  %v647 = vpop.f32.mrb[0].mxu0
  %648 = vdwg.mxu0
  %v656 = vunpack.c.l.b16 %v59
  %v657 = vunpack.c.l.b16 %v60
  %v658 = vunpack.c.l.b16 %v61
  %v659 = vunpack.c.l.b16 %v62
  %v660 = vunpack.c.l.b16 %v63
  %v661 = vunpack.c.l.b16 %v64
  %v662 = vunpack.c.l.b16 %v65
  %v663 = vpack.c.b16 %v657, %v656
  %v664 = vpack.c.b16 %v659, %v658
  %v665 = vpack.c.b16 %v661, %v660
  %v666 = vpack.c.b16 %v662, %v662
  %v679 = vunpack.c.l.b16 %v233
  %v680 = vunpack.c.l.b16 %v234
  %v681 = vunpack.c.l.b16 %v235
  %v682 = vunpack.c.l.b16 %v236
  %v683 = vunpack.c.l.b16 %v237
  %v684 = vunpack.c.l.b16 %v238
  %v685 = vunpack.c.l.b16 %v239
  %v686 = vunpack.c.l.b16 %v240
  %v687 = vunpack.c.l.b16 %v241
  %v688 = vunpack.c.l.b16 %v242
  %v689 = vunpack.c.l.b16 %v243
  %v690 = vunpack.c.l.b16 %v244
  %v691 = vpack.c.b16 %v680, %v679
  %v692 = vpack.c.b16 %v682, %v681
  %v693 = vpack.c.b16 %v684, %v683
  %v694 = vpack.c.b16 %v686, %v685
  %v695 = vpack.c.b16 %v688, %v687
  %v696 = vpack.c.b16 %v690, %v689
  %v704 = vsel %vm155, %v663, 0
  %v707 = vsel %vm155, %v664, 0
  %v710 = vsel %vm155, %v665, 0
  %v713 = vsel %vm155, %v666, 0
  %715 = vmatprep.subr.bf16.mxu0 0
  %716 = vmatpush1.bf16.msra.mxu0 %v691
  %717 = vmatprep.subr.bf16.mxu0 0
  %718 = vmatpush1.bf16.msra.mxu0 %v692
  %719 = vmatprep.subr.bf16.mxu0 0
  %720 = vmatpush1.bf16.msra.mxu0 %v693
  %721 = vmatprep.subr.bf16.mxu0 0
  %722 = vmatpush1.bf16.msra.mxu0 %v694
  %723 = vmatprep.subr.bf16.mxu0 0
  %724 = vmatpush1.bf16.msra.mxu0 %v695
  %725 = vmatprep.subr.bf16.mxu0 0
  %726 = vmatpush1.bf16.msra.mxu0 %v696
  %727 = vmatprep.subr.bf16.mxu0 0
  %728 = vmatpush1.bf16.msra.mxu0 0
  %729 = vmatprep.subr.bf16.mxu0 0
  %730 = vmatpush1.bf16.msra.mxu0 0
  %731 = vmatprep.subr.bf16.mxu0 0
  %732 = vmatpush1.bf16.msra.mxu0 0
  %733 = vmatprep.subr.bf16.mxu0 0
  %734 = vmatpush1.bf16.msra.mxu0 0
  %735 = vmatprep.subr.bf16.mxu0 0
  %736 = vmatpush1.bf16.msra.mxu0 0
  %737 = vmatprep.subr.bf16.mxu0 0
  %738 = vmatpush1.bf16.msra.mxu0 0
  %739 = vmatprep.subr.bf16.mxu0 0
  %740 = vmatpush1.bf16.msra.mxu0 0
  %741 = vmatprep.subr.bf16.mxu0 0
  %742 = vmatpush1.bf16.msra.mxu0 0
  %743 = vmatprep.subr.bf16.mxu0 0
  %744 = vmatpush1.bf16.msra.mxu0 0
  %745 = vmatprep.subr.bf16.mxu0 0
  %746 = vmatpush1.bf16.msra.mxu0 0
  %747 = vmatprep.mubr.bf16.mxu0 0
  %748 = vmatmul.mubr.bf16.gmra.mrb[0].mxu0 %v704
  %v749 = vpop.f32.mrb[0].mxu0
  %v750 = vadd.f32 %v359, %v749
  %v751 = vpop.f32.mrb[0].mxu0
  %v752 = vpop.f32.mrb[0].mxu0
  %v753 = vadd.f32 %v362, %v752
  %v754 = vpop.f32.mrb[0].mxu0
  %755 = vmatprep.mubr.bf16.mxu0 0
  %756 = vmatmul.mubr.bf16.gmra.mrb[0].mxu0 %v707
  %v757 = vpop.f32.mrb[0].mxu0
  %v758 = vadd.f32 %v367, %v757
  %v759 = vpop.f32.mrb[0].mxu0
  %v760 = vpop.f32.mrb[0].mxu0
  %v761 = vadd.f32 %v370, %v760
  %v762 = vpop.f32.mrb[0].mxu0
  %763 = vmatprep.mubr.bf16.mxu0 0
  %764 = vmatmul.mubr.bf16.gmra.mrb[0].mxu0 %v710
  %v765 = vpop.f32.mrb[0].mxu0
  %v766 = vadd.f32 %v375, %v765
  %v767 = vpop.f32.mrb[0].mxu0
  %v768 = vpop.f32.mrb[0].mxu0
  %v769 = vadd.f32 %v378, %v768
  %v770 = vpop.f32.mrb[0].mxu0
  %771 = vmatprep.mubr.bf16.mxu0 0
  %772 = vmatmul.mubr.bf16.gmra.mrb[0].mxu0 %v713
  %v773 = vpop.f32.mrb[0].mxu0
  %v774 = vadd.f32 %v383, %v773
  %v775 = vpop.f32.mrb[0].mxu0
  %v776 = vpop.f32.mrb[0].mxu0
  %v777 = vpop.f32.mrb[0].mxu0
  %778 = vdwg.mxu0
  %v779 = vadd.f32 %v620, %v750
  %v780 = vadd.f32 %v623, %v753
  %v781 = vadd.f32 %v628, %v758
  %v782 = vadd.f32 %v631, %v761
  %v783 = vadd.f32 %v636, %v766
  %v784 = vadd.f32 %v639, %v769
  %v785 = vadd.f32 %v644, %v774
  %v786 = vadd.f32 %v779, %v502
  %v787 = vadd.f32 %v780, %v505
  %v788 = vadd.f32 %v781, %v510
  %v789 = vadd.f32 %v782, %v513
  %v790 = vadd.f32 %v783, %v518
  %v791 = vadd.f32 %v784, %v521
  %v792 = vadd.f32 %v785, %v526
  %v794 = vlaneseq
  %v795 = vshrl.u32 %v794, 7
  %v796 = vsub.s32 0, %v795
  %v797 = vrot.slane %v39, %v796
  %v799 = vadd.f32 %v786, %v797
  %v800 = vadd.f32 %v787, %v797
  %v801 = vadd.f32 %v788, %v797
  %v802 = vadd.f32 %v789, %v797
  %v803 = vadd.f32 %v790, %v797
  %v804 = vadd.f32 %v791, %v797
  %v805 = vadd.f32 %v792, %v797
  %v806 = vmax.f32 %v799, 0.0
  %v807 = vmax.f32 %v800, 0.0
  %v808 = vmax.f32 %v801, 0.0
  %v809 = vmax.f32 %v802, 0.0
  %v810 = vmax.f32 %v803, 0.0
  %v811 = vmax.f32 %v804, 0.0
  %v812 = vmax.f32 %v805, 0.0
  %s813 = scalar_lea.vmem %s1, 240
  %v814 = vld [vmem:[%s813] sm:$0xf]
  %v815 = vld [vmem:[%s813 + $0x4] sm:$0xf]
  %v816 = vld [vmem:[%s813 + $0x8] sm:$0xf]
  %v817 = vld [vmem:[%s813 + $0xc] sm:$0xf]
  %v818 = vld [vmem:[%s813 + $0x10] sm:$0xf]
  %v819 = vld [vmem:[%s813 + $0x14] sm:$0xf]
  %v820 = vld [vmem:[%s813 + $0x18] sm:$0xf]
  %v821 = vld [vmem:[%s813 + $0x1c] sm:$0xf]
  %v822 = vld [vmem:[%s813 + $0x20] sm:$0xf]
  %v823 = vld [vmem:[%s813 + $0x24] sm:$0xf]
  %v824 = vld [vmem:[%s813 + $0x28] sm:$0xf]
  %v825 = vld [vmem:[%s813 + $0x2c] sm:$0xf]
  %s826 = scalar_lea.vmem %s1, 288
  %v827 = vld [vmem:[%s826] sm:$0xf]
  %v828 = vld [vmem:[%s826 + $0x4] sm:$0xf]
  %v829 = vld [vmem:[%s826 + $0x8] sm:$0xf]
  %v830 = vld [vmem:[%s826 + $0xc] sm:$0xf]
  %v831 = vld [vmem:[%s826 + $0x10] sm:$0xf]
  %v832 = vld [vmem:[%s826 + $0x14] sm:$0xf]
  %v833 = vld [vmem:[%s826 + $0x18] sm:$0xf]
  %v834 = vld [vmem:[%s826 + $0x1c] sm:$0xf]
  %v835 = vld [vmem:[%s826 + $0x20] sm:$0xf]
  %v836 = vld [vmem:[%s826 + $0x24] sm:$0xf]
  %v837 = vld [vmem:[%s826 + $0x28] sm:$0xf]
  %v838 = vld [vmem:[%s826 + $0x2c] sm:$0xf]
  %v851 = vunpack.c.l.b16 %v827
  %v852 = vunpack.c.l.b16 %v828
  %v853 = vunpack.c.l.b16 %v829
  %v854 = vunpack.c.l.b16 %v830
  %v855 = vunpack.c.l.b16 %v831
  %v856 = vunpack.c.l.b16 %v832
  %v857 = vunpack.c.l.b16 %v833
  %v858 = vunpack.c.l.b16 %v834
  %v859 = vunpack.c.l.b16 %v835
  %v860 = vunpack.c.l.b16 %v836
  %v861 = vunpack.c.l.b16 %v837
  %v862 = vunpack.c.l.b16 %v838
  %v863 = vpack.c.b16 %v852, %v851
  %v864 = vpack.c.b16 %v854, %v853
  %v865 = vpack.c.b16 %v856, %v855
  %v866 = vpack.c.b16 %v858, %v857
  %v867 = vpack.c.b16 %v860, %v859
  %v868 = vpack.c.b16 %v862, %v861
  %875 = vmatprep.subr.bf16.mxu0 0
  %876 = vmatpush1.bf16.msra.mxu0 %v863
  %877 = vmatprep.subr.bf16.mxu0 0
  %878 = vmatpush1.bf16.msra.mxu0 %v864
  %879 = vmatprep.subr.bf16.mxu0 0
  %880 = vmatpush1.bf16.msra.mxu0 %v865
  %881 = vmatprep.subr.bf16.mxu0 0
  %882 = vmatpush1.bf16.msra.mxu0 %v866
  %883 = vmatprep.subr.bf16.mxu0 0
  %884 = vmatpush1.bf16.msra.mxu0 %v867
  %885 = vmatprep.subr.bf16.mxu0 0
  %886 = vmatpush1.bf16.msra.mxu0 %v868
  %887 = vmatprep.subr.bf16.mxu0 0
  %888 = vmatpush1.bf16.msra.mxu0 0
  %889 = vmatprep.subr.bf16.mxu0 0
  %890 = vmatpush1.bf16.msra.mxu0 0
  %891 = vmatprep.subr.bf16.mxu0 0
  %892 = vmatpush1.bf16.msra.mxu0 0
  %893 = vmatprep.subr.bf16.mxu0 0
  %894 = vmatpush1.bf16.msra.mxu0 0
  %895 = vmatprep.subr.bf16.mxu0 0
  %896 = vmatpush1.bf16.msra.mxu0 0
  %897 = vmatprep.subr.bf16.mxu0 0
  %898 = vmatpush1.bf16.msra.mxu0 0
  %899 = vmatprep.subr.bf16.mxu0 0
  %900 = vmatpush1.bf16.msra.mxu0 0
  %901 = vmatprep.subr.bf16.mxu0 0
  %902 = vmatpush1.bf16.msra.mxu0 0
  %903 = vmatprep.subr.bf16.mxu0 0
  %904 = vmatpush1.bf16.msra.mxu0 0
  %905 = vmatprep.subr.bf16.mxu0 0
  %906 = vmatpush1.bf16.msra.mxu0 0
  %907 = vmatprep.mubr.bf16.mxu0 0
  %908 = vmatmul.mubr.bf16.gmra.mrb[0].mxu0 %v157
  %v909 = vpop.f32.mrb[0].mxu0
  %v910 = vadd.f32 0.0, %v909
  %v911 = vpop.f32.mrb[0].mxu0
  %v912 = vpop.f32.mrb[0].mxu0
  %v913 = vadd.f32 0.0, %v912
  %v914 = vpop.f32.mrb[0].mxu0
  %915 = vmatprep.mubr.bf16.mxu0 0
  %916 = vmatmul.mubr.bf16.gmra.mrb[0].mxu0 %v160
  %v917 = vpop.f32.mrb[0].mxu0
  %v918 = vadd.f32 0.0, %v917
  %v919 = vpop.f32.mrb[0].mxu0
  %v920 = vpop.f32.mrb[0].mxu0
  %v921 = vadd.f32 0.0, %v920
  %v922 = vpop.f32.mrb[0].mxu0
  %923 = vmatprep.mubr.bf16.mxu0 0
  %924 = vmatmul.mubr.bf16.gmra.mrb[0].mxu0 %v163
  %v925 = vpop.f32.mrb[0].mxu0
  %v926 = vadd.f32 0.0, %v925
  %v927 = vpop.f32.mrb[0].mxu0
  %v928 = vpop.f32.mrb[0].mxu0
  %v929 = vadd.f32 0.0, %v928
  %v930 = vpop.f32.mrb[0].mxu0
  %931 = vmatprep.mubr.bf16.mxu0 0
  %932 = vmatmul.mubr.bf16.gmra.mrb[0].mxu0 %v166
  %v933 = vpop.f32.mrb[0].mxu0
  %v934 = vadd.f32 0.0, %v933
  %v935 = vpop.f32.mrb[0].mxu0
  %v936 = vpop.f32.mrb[0].mxu0
  %v937 = vpop.f32.mrb[0].mxu0
  %938 = vdwg.mxu0
  %s939 = scalar_lea.vmem %s1, 336
  %v940 = vld [vmem:[%s939] sm:$0xf]
  %v941 = vld [vmem:[%s939 + $0x4] sm:$0xf]
  %v942 = vld [vmem:[%s939 + $0x8] sm:$0xf]
  %v943 = vld [vmem:[%s939 + $0xc] sm:$0xf]
  %v944 = vld [vmem:[%s939 + $0x10] sm:$0xf]
  %v945 = vld [vmem:[%s939 + $0x14] sm:$0xf]
  %v946 = vld [vmem:[%s939 + $0x18] sm:$0xf]
  %v947 = vld [vmem:[%s939 + $0x1c] sm:$0xf]
  %v948 = vld [vmem:[%s939 + $0x20] sm:$0xf]
  %v949 = vld [vmem:[%s939 + $0x24] sm:$0xf]
  %v950 = vld [vmem:[%s939 + $0x28] sm:$0xf]
  %v951 = vld [vmem:[%s939 + $0x2c] sm:$0xf]
  %s952 = scalar_lea.vmem %s1, 384
  %v953 = vld [vmem:[%s952] sm:$0xf]
  %v954 = vld [vmem:[%s952 + $0x4] sm:$0xf]
  %v955 = vld [vmem:[%s952 + $0x8] sm:$0xf]
  %v956 = vld [vmem:[%s952 + $0xc] sm:$0xf]
  %v957 = vld [vmem:[%s952 + $0x10] sm:$0xf]
  %v958 = vld [vmem:[%s952 + $0x14] sm:$0xf]
  %v959 = vld [vmem:[%s952 + $0x18] sm:$0xf]
  %v960 = vld [vmem:[%s952 + $0x1c] sm:$0xf]
  %v961 = vld [vmem:[%s952 + $0x20] sm:$0xf]
  %v962 = vld [vmem:[%s952 + $0x24] sm:$0xf]
  %v963 = vld [vmem:[%s952 + $0x28] sm:$0xf]
  %v964 = vld [vmem:[%s952 + $0x2c] sm:$0xf]
  %v977 = vunpack.c.l.b16 %v953
  %v978 = vunpack.c.l.b16 %v954
  %v979 = vunpack.c.l.b16 %v955
  %v980 = vunpack.c.l.b16 %v956
  %v981 = vunpack.c.l.b16 %v957
  %v982 = vunpack.c.l.b16 %v958
  %v983 = vunpack.c.l.b16 %v959
  %v984 = vunpack.c.l.b16 %v960
  %v985 = vunpack.c.l.b16 %v961
  %v986 = vunpack.c.l.b16 %v962
  %v987 = vunpack.c.l.b16 %v963
  %v988 = vunpack.c.l.b16 %v964
  %v989 = vpack.c.b16 %v978, %v977
  %v990 = vpack.c.b16 %v980, %v979
  %v991 = vpack.c.b16 %v982, %v981
  %v992 = vpack.c.b16 %v984, %v983
  %v993 = vpack.c.b16 %v986, %v985
  %v994 = vpack.c.b16 %v988, %v987
  %1001 = vmatprep.subr.bf16.mxu0 0
  %1002 = vmatpush1.bf16.msra.mxu0 %v989
  %1003 = vmatprep.subr.bf16.mxu0 0
  %1004 = vmatpush1.bf16.msra.mxu0 %v990
  %1005 = vmatprep.subr.bf16.mxu0 0
  %1006 = vmatpush1.bf16.msra.mxu0 %v991
  %1007 = vmatprep.subr.bf16.mxu0 0
  %1008 = vmatpush1.bf16.msra.mxu0 %v992
  %1009 = vmatprep.subr.bf16.mxu0 0
  %1010 = vmatpush1.bf16.msra.mxu0 %v993
  %1011 = vmatprep.subr.bf16.mxu0 0
  %1012 = vmatpush1.bf16.msra.mxu0 %v994
  %1013 = vmatprep.subr.bf16.mxu0 0
  %1014 = vmatpush1.bf16.msra.mxu0 0
  %1015 = vmatprep.subr.bf16.mxu0 0
  %1016 = vmatpush1.bf16.msra.mxu0 0
  %1017 = vmatprep.subr.bf16.mxu0 0
  %1018 = vmatpush1.bf16.msra.mxu0 0
  %1019 = vmatprep.subr.bf16.mxu0 0
  %1020 = vmatpush1.bf16.msra.mxu0 0
  %1021 = vmatprep.subr.bf16.mxu0 0
  %1022 = vmatpush1.bf16.msra.mxu0 0
  %1023 = vmatprep.subr.bf16.mxu0 0
  %1024 = vmatpush1.bf16.msra.mxu0 0
  %1025 = vmatprep.subr.bf16.mxu0 0
  %1026 = vmatpush1.bf16.msra.mxu0 0
  %1027 = vmatprep.subr.bf16.mxu0 0
  %1028 = vmatpush1.bf16.msra.mxu0 0
  %1029 = vmatprep.subr.bf16.mxu0 0
  %1030 = vmatpush1.bf16.msra.mxu0 0
  %1031 = vmatprep.subr.bf16.mxu0 0
  %1032 = vmatpush1.bf16.msra.mxu0 0
  %1033 = vmatprep.mubr.bf16.mxu0 0
  %1034 = vmatmul.mubr.bf16.gmra.mrb[0].mxu0 %v313
  %v1035 = vpop.f32.mrb[0].mxu0
  %v1036 = vadd.f32 0.0, %v1035
  %v1037 = vpop.f32.mrb[0].mxu0
  %v1038 = vpop.f32.mrb[0].mxu0
  %v1039 = vadd.f32 0.0, %v1038
  %v1040 = vpop.f32.mrb[0].mxu0
  %1041 = vmatprep.mubr.bf16.mxu0 0
  %1042 = vmatmul.mubr.bf16.gmra.mrb[0].mxu0 %v316
  %v1043 = vpop.f32.mrb[0].mxu0
  %v1044 = vadd.f32 0.0, %v1043
  %v1045 = vpop.f32.mrb[0].mxu0
  %v1046 = vpop.f32.mrb[0].mxu0
  %v1047 = vadd.f32 0.0, %v1046
  %v1048 = vpop.f32.mrb[0].mxu0
  %1049 = vmatprep.mubr.bf16.mxu0 0
  %1050 = vmatmul.mubr.bf16.gmra.mrb[0].mxu0 %v319
  %v1051 = vpop.f32.mrb[0].mxu0
  %v1052 = vadd.f32 0.0, %v1051
  %v1053 = vpop.f32.mrb[0].mxu0
  %v1054 = vpop.f32.mrb[0].mxu0
  %v1055 = vadd.f32 0.0, %v1054
  %v1056 = vpop.f32.mrb[0].mxu0
  %1057 = vmatprep.mubr.bf16.mxu0 0
  %1058 = vmatmul.mubr.bf16.gmra.mrb[0].mxu0 %v322
  %v1059 = vpop.f32.mrb[0].mxu0
  %v1060 = vadd.f32 0.0, %v1059
  %v1061 = vpop.f32.mrb[0].mxu0
  %v1062 = vpop.f32.mrb[0].mxu0
  %v1063 = vpop.f32.mrb[0].mxu0
  %1064 = vdwg.mxu0
  %s1065 = scalar_lea.vmem %s1, 432
  %v1066 = vld [vmem:[%s1065] sm:$0xf]
  %v1067 = vld [vmem:[%s1065 + $0x4] sm:$0xf]
  %v1068 = vld [vmem:[%s1065 + $0x8] sm:$0xf]
  %v1069 = vld [vmem:[%s1065 + $0xc] sm:$0xf]
  %v1070 = vld [vmem:[%s1065 + $0x10] sm:$0xf]
  %v1071 = vld [vmem:[%s1065 + $0x14] sm:$0xf]
  %v1072 = vld [vmem:[%s1065 + $0x18] sm:$0xf]
  %v1073 = vld [vmem:[%s1065 + $0x1c] sm:$0xf]
  %v1074 = vld [vmem:[%s1065 + $0x20] sm:$0xf]
  %v1075 = vld [vmem:[%s1065 + $0x24] sm:$0xf]
  %v1076 = vld [vmem:[%s1065 + $0x28] sm:$0xf]
  %v1077 = vld [vmem:[%s1065 + $0x2c] sm:$0xf]
  %v1090 = vunpack.c.l.b16 %v1066
  %v1091 = vunpack.c.l.b16 %v1067
  %v1092 = vunpack.c.l.b16 %v1068
  %v1093 = vunpack.c.l.b16 %v1069
  %v1094 = vunpack.c.l.b16 %v1070
  %v1095 = vunpack.c.l.b16 %v1071
  %v1096 = vunpack.c.l.b16 %v1072
  %v1097 = vunpack.c.l.b16 %v1073
  %v1098 = vunpack.c.l.b16 %v1074
  %v1099 = vunpack.c.l.b16 %v1075
  %v1100 = vunpack.c.l.b16 %v1076
  %v1101 = vunpack.c.l.b16 %v1077
  %v1102 = vpack.c.b16 %v1091, %v1090
  %v1103 = vpack.c.b16 %v1093, %v1092
  %v1104 = vpack.c.b16 %v1095, %v1094
  %v1105 = vpack.c.b16 %v1097, %v1096
  %v1106 = vpack.c.b16 %v1099, %v1098
  %v1107 = vpack.c.b16 %v1101, %v1100
  %1114 = vmatprep.subr.bf16.mxu0 0
  %1115 = vmatpush1.bf16.msra.mxu0 %v1102
  %1116 = vmatprep.subr.bf16.mxu0 0
  %1117 = vmatpush1.bf16.msra.mxu0 %v1103
  %1118 = vmatprep.subr.bf16.mxu0 0
  %1119 = vmatpush1.bf16.msra.mxu0 %v1104
  %1120 = vmatprep.subr.bf16.mxu0 0
  %1121 = vmatpush1.bf16.msra.mxu0 %v1105
  %1122 = vmatprep.subr.bf16.mxu0 0
  %1123 = vmatpush1.bf16.msra.mxu0 %v1106
  %1124 = vmatprep.subr.bf16.mxu0 0
  %1125 = vmatpush1.bf16.msra.mxu0 %v1107
  %1126 = vmatprep.subr.bf16.mxu0 0
  %1127 = vmatpush1.bf16.msra.mxu0 0
  %1128 = vmatprep.subr.bf16.mxu0 0
  %1129 = vmatpush1.bf16.msra.mxu0 0
  %1130 = vmatprep.subr.bf16.mxu0 0
  %1131 = vmatpush1.bf16.msra.mxu0 0
  %1132 = vmatprep.subr.bf16.mxu0 0
  %1133 = vmatpush1.bf16.msra.mxu0 0
  %1134 = vmatprep.subr.bf16.mxu0 0
  %1135 = vmatpush1.bf16.msra.mxu0 0
  %1136 = vmatprep.subr.bf16.mxu0 0
  %1137 = vmatpush1.bf16.msra.mxu0 0
  %1138 = vmatprep.subr.bf16.mxu0 0
  %1139 = vmatpush1.bf16.msra.mxu0 0
  %1140 = vmatprep.subr.bf16.mxu0 0
  %1141 = vmatpush1.bf16.msra.mxu0 0
  %1142 = vmatprep.subr.bf16.mxu0 0
  %1143 = vmatpush1.bf16.msra.mxu0 0
  %1144 = vmatprep.subr.bf16.mxu0 0
  %1145 = vmatpush1.bf16.msra.mxu0 0
  %1146 = vmatprep.mubr.bf16.mxu0 0
  %1147 = vmatmul.mubr.bf16.gmra.mrb[0].mxu0 %v456
  %v1148 = vpop.f32.mrb[0].mxu0
  %v1149 = vadd.f32 0.0, %v1148
  %v1150 = vpop.f32.mrb[0].mxu0
  %v1151 = vpop.f32.mrb[0].mxu0
  %v1152 = vadd.f32 0.0, %v1151
  %v1153 = vpop.f32.mrb[0].mxu0
  %1154 = vmatprep.mubr.bf16.mxu0 0
  %1155 = vmatmul.mubr.bf16.gmra.mrb[0].mxu0 %v459
  %v1156 = vpop.f32.mrb[0].mxu0
  %v1157 = vadd.f32 0.0, %v1156
  %v1158 = vpop.f32.mrb[0].mxu0
  %v1159 = vpop.f32.mrb[0].mxu0
  %v1160 = vadd.f32 0.0, %v1159
  %v1161 = vpop.f32.mrb[0].mxu0
  %1162 = vmatprep.mubr.bf16.mxu0 0
  %1163 = vmatmul.mubr.bf16.gmra.mrb[0].mxu0 %v462
  %v1164 = vpop.f32.mrb[0].mxu0
  %v1165 = vadd.f32 0.0, %v1164
  %v1166 = vpop.f32.mrb[0].mxu0
  %v1167 = vpop.f32.mrb[0].mxu0
  %v1168 = vadd.f32 0.0, %v1167
  %v1169 = vpop.f32.mrb[0].mxu0
  %1170 = vmatprep.mubr.bf16.mxu0 0
  %1171 = vmatmul.mubr.bf16.gmra.mrb[0].mxu0 %v465
  %v1172 = vpop.f32.mrb[0].mxu0
  %v1173 = vadd.f32 0.0, %v1172
  %v1174 = vpop.f32.mrb[0].mxu0
  %v1175 = vpop.f32.mrb[0].mxu0
  %v1176 = vpop.f32.mrb[0].mxu0
  %1177 = vdwg.mxu0
  %v1190 = vunpack.c.l.b16 %v814
  %v1191 = vunpack.c.l.b16 %v815
  %v1192 = vunpack.c.l.b16 %v816
  %v1193 = vunpack.c.l.b16 %v817
  %v1194 = vunpack.c.l.b16 %v818
  %v1195 = vunpack.c.l.b16 %v819
  %v1196 = vunpack.c.l.b16 %v820
  %v1197 = vunpack.c.l.b16 %v821
  %v1198 = vunpack.c.l.b16 %v822
  %v1199 = vunpack.c.l.b16 %v823
  %v1200 = vunpack.c.l.b16 %v824
  %v1201 = vunpack.c.l.b16 %v825
  %v1202 = vpack.c.b16 %v1191, %v1190
  %v1203 = vpack.c.b16 %v1193, %v1192
  %v1204 = vpack.c.b16 %v1195, %v1194
  %v1205 = vpack.c.b16 %v1197, %v1196
  %v1206 = vpack.c.b16 %v1199, %v1198
  %v1207 = vpack.c.b16 %v1201, %v1200
  %1214 = vmatprep.subr.bf16.mxu0 0
  %1215 = vmatpush1.bf16.msra.mxu0 %v1202
  %1216 = vmatprep.subr.bf16.mxu0 0
  %1217 = vmatpush1.bf16.msra.mxu0 %v1203
  %1218 = vmatprep.subr.bf16.mxu0 0
  %1219 = vmatpush1.bf16.msra.mxu0 %v1204
  %1220 = vmatprep.subr.bf16.mxu0 0
  %1221 = vmatpush1.bf16.msra.mxu0 %v1205
  %1222 = vmatprep.subr.bf16.mxu0 0
  %1223 = vmatpush1.bf16.msra.mxu0 %v1206
  %1224 = vmatprep.subr.bf16.mxu0 0
  %1225 = vmatpush1.bf16.msra.mxu0 %v1207
  %1226 = vmatprep.subr.bf16.mxu0 0
  %1227 = vmatpush1.bf16.msra.mxu0 0
  %1228 = vmatprep.subr.bf16.mxu0 0
  %1229 = vmatpush1.bf16.msra.mxu0 0
  %1230 = vmatprep.subr.bf16.mxu0 0
  %1231 = vmatpush1.bf16.msra.mxu0 0
  %1232 = vmatprep.subr.bf16.mxu0 0
  %1233 = vmatpush1.bf16.msra.mxu0 0
  %1234 = vmatprep.subr.bf16.mxu0 0
  %1235 = vmatpush1.bf16.msra.mxu0 0
  %1236 = vmatprep.subr.bf16.mxu0 0
  %1237 = vmatpush1.bf16.msra.mxu0 0
  %1238 = vmatprep.subr.bf16.mxu0 0
  %1239 = vmatpush1.bf16.msra.mxu0 0
  %1240 = vmatprep.subr.bf16.mxu0 0
  %1241 = vmatpush1.bf16.msra.mxu0 0
  %1242 = vmatprep.subr.bf16.mxu0 0
  %1243 = vmatpush1.bf16.msra.mxu0 0
  %1244 = vmatprep.subr.bf16.mxu0 0
  %1245 = vmatpush1.bf16.msra.mxu0 0
  %1246 = vmatprep.mubr.bf16.mxu0 0
  %1247 = vmatmul.mubr.bf16.gmra.mrb[0].mxu0 %v574
  %v1248 = vpop.f32.mrb[0].mxu0
  %v1249 = vadd.f32 %v910, %v1248
  %v1250 = vpop.f32.mrb[0].mxu0
  %v1251 = vpop.f32.mrb[0].mxu0
  %v1252 = vadd.f32 %v913, %v1251
  %v1253 = vpop.f32.mrb[0].mxu0
  %1254 = vmatprep.mubr.bf16.mxu0 0
  %1255 = vmatmul.mubr.bf16.gmra.mrb[0].mxu0 %v577
  %v1256 = vpop.f32.mrb[0].mxu0
  %v1257 = vadd.f32 %v918, %v1256
  %v1258 = vpop.f32.mrb[0].mxu0
  %v1259 = vpop.f32.mrb[0].mxu0
  %v1260 = vadd.f32 %v921, %v1259
  %v1261 = vpop.f32.mrb[0].mxu0
  %1262 = vmatprep.mubr.bf16.mxu0 0
  %1263 = vmatmul.mubr.bf16.gmra.mrb[0].mxu0 %v580
  %v1264 = vpop.f32.mrb[0].mxu0
  %v1265 = vadd.f32 %v926, %v1264
  %v1266 = vpop.f32.mrb[0].mxu0
  %v1267 = vpop.f32.mrb[0].mxu0
  %v1268 = vadd.f32 %v929, %v1267
  %v1269 = vpop.f32.mrb[0].mxu0
  %1270 = vmatprep.mubr.bf16.mxu0 0
  %1271 = vmatmul.mubr.bf16.gmra.mrb[0].mxu0 %v583
  %v1272 = vpop.f32.mrb[0].mxu0
  %v1273 = vadd.f32 %v934, %v1272
  %v1274 = vpop.f32.mrb[0].mxu0
  %v1275 = vpop.f32.mrb[0].mxu0
  %v1276 = vpop.f32.mrb[0].mxu0
  %1277 = vdwg.mxu0
  %v1290 = vunpack.c.l.b16 %v940
  %v1291 = vunpack.c.l.b16 %v941
  %v1292 = vunpack.c.l.b16 %v942
  %v1293 = vunpack.c.l.b16 %v943
  %v1294 = vunpack.c.l.b16 %v944
  %v1295 = vunpack.c.l.b16 %v945
  %v1296 = vunpack.c.l.b16 %v946
  %v1297 = vunpack.c.l.b16 %v947
  %v1298 = vunpack.c.l.b16 %v948
  %v1299 = vunpack.c.l.b16 %v949
  %v1300 = vunpack.c.l.b16 %v950
  %v1301 = vunpack.c.l.b16 %v951
  %v1302 = vpack.c.b16 %v1291, %v1290
  %v1303 = vpack.c.b16 %v1293, %v1292
  %v1304 = vpack.c.b16 %v1295, %v1294
  %v1305 = vpack.c.b16 %v1297, %v1296
  %v1306 = vpack.c.b16 %v1299, %v1298
  %v1307 = vpack.c.b16 %v1301, %v1300
  %1314 = vmatprep.subr.bf16.mxu0 0
  %1315 = vmatpush1.bf16.msra.mxu0 %v1302
  %1316 = vmatprep.subr.bf16.mxu0 0
  %1317 = vmatpush1.bf16.msra.mxu0 %v1303
  %1318 = vmatprep.subr.bf16.mxu0 0
  %1319 = vmatpush1.bf16.msra.mxu0 %v1304
  %1320 = vmatprep.subr.bf16.mxu0 0
  %1321 = vmatpush1.bf16.msra.mxu0 %v1305
  %1322 = vmatprep.subr.bf16.mxu0 0
  %1323 = vmatpush1.bf16.msra.mxu0 %v1306
  %1324 = vmatprep.subr.bf16.mxu0 0
  %1325 = vmatpush1.bf16.msra.mxu0 %v1307
  %1326 = vmatprep.subr.bf16.mxu0 0
  %1327 = vmatpush1.bf16.msra.mxu0 0
  %1328 = vmatprep.subr.bf16.mxu0 0
  %1329 = vmatpush1.bf16.msra.mxu0 0
  %1330 = vmatprep.subr.bf16.mxu0 0
  %1331 = vmatpush1.bf16.msra.mxu0 0
  %1332 = vmatprep.subr.bf16.mxu0 0
  %1333 = vmatpush1.bf16.msra.mxu0 0
  %1334 = vmatprep.subr.bf16.mxu0 0
  %1335 = vmatpush1.bf16.msra.mxu0 0
  %1336 = vmatprep.subr.bf16.mxu0 0
  %1337 = vmatpush1.bf16.msra.mxu0 0
  %1338 = vmatprep.subr.bf16.mxu0 0
  %1339 = vmatpush1.bf16.msra.mxu0 0
  %1340 = vmatprep.subr.bf16.mxu0 0
  %1341 = vmatpush1.bf16.msra.mxu0 0
  %1342 = vmatprep.subr.bf16.mxu0 0
  %1343 = vmatpush1.bf16.msra.mxu0 0
  %1344 = vmatprep.subr.bf16.mxu0 0
  %1345 = vmatpush1.bf16.msra.mxu0 0
  %1346 = vmatprep.mubr.bf16.mxu0 0
  %1347 = vmatmul.mubr.bf16.gmra.mrb[0].mxu0 %v704
  %v1348 = vpop.f32.mrb[0].mxu0
  %v1349 = vadd.f32 %v1036, %v1348
  %v1350 = vpop.f32.mrb[0].mxu0
  %v1351 = vpop.f32.mrb[0].mxu0
  %v1352 = vadd.f32 %v1039, %v1351
  %v1353 = vpop.f32.mrb[0].mxu0
  %1354 = vmatprep.mubr.bf16.mxu0 0
  %1355 = vmatmul.mubr.bf16.gmra.mrb[0].mxu0 %v707
  %v1356 = vpop.f32.mrb[0].mxu0
  %v1357 = vadd.f32 %v1044, %v1356
  %v1358 = vpop.f32.mrb[0].mxu0
  %v1359 = vpop.f32.mrb[0].mxu0
  %v1360 = vadd.f32 %v1047, %v1359
  %v1361 = vpop.f32.mrb[0].mxu0
  %1362 = vmatprep.mubr.bf16.mxu0 0
  %1363 = vmatmul.mubr.bf16.gmra.mrb[0].mxu0 %v710
  %v1364 = vpop.f32.mrb[0].mxu0
  %v1365 = vadd.f32 %v1052, %v1364
  %v1366 = vpop.f32.mrb[0].mxu0
  %v1367 = vpop.f32.mrb[0].mxu0
  %v1368 = vadd.f32 %v1055, %v1367
  %v1369 = vpop.f32.mrb[0].mxu0
  %1370 = vmatprep.mubr.bf16.mxu0 0
  %1371 = vmatmul.mubr.bf16.gmra.mrb[0].mxu0 %v713
  %v1372 = vpop.f32.mrb[0].mxu0
  %v1373 = vadd.f32 %v1060, %v1372
  %v1374 = vpop.f32.mrb[0].mxu0
  %v1375 = vpop.f32.mrb[0].mxu0
  %v1376 = vpop.f32.mrb[0].mxu0
  %1377 = vdwg.mxu0
  %v1378 = vadd.f32 %v1249, %v1349
  %v1379 = vadd.f32 %v1252, %v1352
  %v1380 = vadd.f32 %v1257, %v1357
  %v1381 = vadd.f32 %v1260, %v1360
  %v1382 = vadd.f32 %v1265, %v1365
  %v1383 = vadd.f32 %v1268, %v1368
  %v1384 = vadd.f32 %v1273, %v1373
  %v1385 = vadd.f32 %v1378, %v1149
  %v1386 = vadd.f32 %v1379, %v1152
  %v1387 = vadd.f32 %v1380, %v1157
  %v1388 = vadd.f32 %v1381, %v1160
  %v1389 = vadd.f32 %v1382, %v1165
  %v1390 = vadd.f32 %v1383, %v1168
  %v1391 = vadd.f32 %v1384, %v1173
  %v1392 = vadd.f32 %v1385, %v797
  %v1393 = vadd.f32 %v1386, %v797
  %v1394 = vadd.f32 %v1387, %v797
  %v1395 = vadd.f32 %v1388, %v797
  %v1396 = vadd.f32 %v1389, %v797
  %v1397 = vadd.f32 %v1390, %v797
  %v1398 = vadd.f32 %v1391, %v797
  %v1399 = vmax.f32 %v1392, 0.0
  %v1400 = vmax.f32 %v1393, 0.0
  %v1401 = vmax.f32 %v1394, 0.0
  %v1402 = vmax.f32 %v1395, 0.0
  %v1403 = vmax.f32 %v1396, 0.0
  %v1404 = vmax.f32 %v1397, 0.0
  %v1405 = vmax.f32 %v1398, 0.0
  %1406 = vmatprep.subr.bf16.mxu0 0
  %1407 = vmatpush1.bf16.msra.mxu0 %v143
  %1408 = vmatprep.subr.bf16.mxu0 0
  %1409 = vmatpush1.bf16.msra.mxu0 %v144
  %1410 = vmatprep.subr.bf16.mxu0 0
  %1411 = vmatpush1.bf16.msra.mxu0 %v145
  %1412 = vmatprep.subr.bf16.mxu0 0
  %1413 = vmatpush1.bf16.msra.mxu0 %v146
  %1414 = vmatprep.subr.bf16.mxu0 0
  %1415 = vmatpush1.bf16.msra.mxu0 %v147
  %1416 = vmatprep.subr.bf16.mxu0 0
  %1417 = vmatpush1.bf16.msra.mxu0 %v148
  %1418 = vmatprep.subr.bf16.mxu0 0
  %1419 = vmatpush1.bf16.msra.mxu0 0
  %1420 = vmatprep.subr.bf16.mxu0 0
  %1421 = vmatpush1.bf16.msra.mxu0 0
  %1422 = vmatprep.subr.bf16.mxu0 0
  %1423 = vmatpush1.bf16.msra.mxu0 0
  %1424 = vmatprep.subr.bf16.mxu0 0
  %1425 = vmatpush1.bf16.msra.mxu0 0
  %1426 = vmatprep.subr.bf16.mxu0 0
  %1427 = vmatpush1.bf16.msra.mxu0 0
  %1428 = vmatprep.subr.bf16.mxu0 0
  %1429 = vmatpush1.bf16.msra.mxu0 0
  %1430 = vmatprep.subr.bf16.mxu0 0
  %1431 = vmatpush1.bf16.msra.mxu0 0
  %1432 = vmatprep.subr.bf16.mxu0 0
  %1433 = vmatpush1.bf16.msra.mxu0 0
  %1434 = vmatprep.subr.bf16.mxu0 0
  %1435 = vmatpush1.bf16.msra.mxu0 0
  %1436 = vmatprep.subr.bf16.mxu0 0
  %1437 = vmatpush1.bf16.msra.mxu0 0
  %1438 = vmatprep.mubr.bf16.mxu0 0
  %1439 = vmatmul.mubr.bf16.gmra.mrb[0].mxu0 %v704
  %v1440 = vpop.f32.mrb[0].mxu0
  %v1441 = vadd.f32 0.0, %v1440
  %v1442 = vpop.f32.mrb[0].mxu0
  %v1443 = vpop.f32.mrb[0].mxu0
  %v1444 = vadd.f32 0.0, %v1443
  %v1445 = vpop.f32.mrb[0].mxu0
  %1446 = vmatprep.mubr.bf16.mxu0 0
  %1447 = vmatmul.mubr.bf16.gmra.mrb[0].mxu0 %v707
  %v1448 = vpop.f32.mrb[0].mxu0
  %v1449 = vadd.f32 0.0, %v1448
  %v1450 = vpop.f32.mrb[0].mxu0
  %v1451 = vpop.f32.mrb[0].mxu0
  %v1452 = vadd.f32 0.0, %v1451
  %v1453 = vpop.f32.mrb[0].mxu0
  %1454 = vmatprep.mubr.bf16.mxu0 0
  %1455 = vmatmul.mubr.bf16.gmra.mrb[0].mxu0 %v710
  %v1456 = vpop.f32.mrb[0].mxu0
  %v1457 = vadd.f32 0.0, %v1456
  %v1458 = vpop.f32.mrb[0].mxu0
  %v1459 = vpop.f32.mrb[0].mxu0
  %v1460 = vadd.f32 0.0, %v1459
  %v1461 = vpop.f32.mrb[0].mxu0
  %1462 = vmatprep.mubr.bf16.mxu0 0
  %1463 = vmatmul.mubr.bf16.gmra.mrb[0].mxu0 %v713
  %v1464 = vpop.f32.mrb[0].mxu0
  %v1465 = vadd.f32 0.0, %v1464
  %v1466 = vpop.f32.mrb[0].mxu0
  %v1467 = vpop.f32.mrb[0].mxu0
  %v1468 = vpop.f32.mrb[0].mxu0
  %1469 = vdwg.mxu0
  %1470 = vmatprep.subr.bf16.mxu0 0
  %1471 = vmatpush1.bf16.msra.mxu0 %v300
  %1472 = vmatprep.subr.bf16.mxu0 0
  %1473 = vmatpush1.bf16.msra.mxu0 %v301
  %1474 = vmatprep.subr.bf16.mxu0 0
  %1475 = vmatpush1.bf16.msra.mxu0 %v302
  %1476 = vmatprep.subr.bf16.mxu0 0
  %1477 = vmatpush1.bf16.msra.mxu0 %v303
  %1478 = vmatprep.subr.bf16.mxu0 0
  %1479 = vmatpush1.bf16.msra.mxu0 %v304
  %1480 = vmatprep.subr.bf16.mxu0 0
  %1481 = vmatpush1.bf16.msra.mxu0 %v305
  %1482 = vmatprep.subr.bf16.mxu0 0
  %1483 = vmatpush1.bf16.msra.mxu0 0
  %1484 = vmatprep.subr.bf16.mxu0 0
  %1485 = vmatpush1.bf16.msra.mxu0 0
  %1486 = vmatprep.subr.bf16.mxu0 0
  %1487 = vmatpush1.bf16.msra.mxu0 0
  %1488 = vmatprep.subr.bf16.mxu0 0
  %1489 = vmatpush1.bf16.msra.mxu0 0
  %1490 = vmatprep.subr.bf16.mxu0 0
  %1491 = vmatpush1.bf16.msra.mxu0 0
  %1492 = vmatprep.subr.bf16.mxu0 0
  %1493 = vmatpush1.bf16.msra.mxu0 0
  %1494 = vmatprep.subr.bf16.mxu0 0
  %1495 = vmatpush1.bf16.msra.mxu0 0
  %1496 = vmatprep.subr.bf16.mxu0 0
  %1497 = vmatpush1.bf16.msra.mxu0 0
  %1498 = vmatprep.subr.bf16.mxu0 0
  %1499 = vmatpush1.bf16.msra.mxu0 0
  %1500 = vmatprep.subr.bf16.mxu0 0
  %1501 = vmatpush1.bf16.msra.mxu0 0
  %1502 = vmatprep.mubr.bf16.mxu0 0
  %1503 = vmatmul.mubr.bf16.gmra.mrb[0].mxu0 %v456
  %v1504 = vpop.f32.mrb[0].mxu0
  %v1505 = vadd.f32 0.0, %v1504
  %v1506 = vpop.f32.mrb[0].mxu0
  %v1507 = vpop.f32.mrb[0].mxu0
  %v1508 = vadd.f32 0.0, %v1507
  %v1509 = vpop.f32.mrb[0].mxu0
  %1510 = vmatprep.mubr.bf16.mxu0 0
  %1511 = vmatmul.mubr.bf16.gmra.mrb[0].mxu0 %v459
  %v1512 = vpop.f32.mrb[0].mxu0
  %v1513 = vadd.f32 0.0, %v1512
  %v1514 = vpop.f32.mrb[0].mxu0
  %v1515 = vpop.f32.mrb[0].mxu0
  %v1516 = vadd.f32 0.0, %v1515
  %v1517 = vpop.f32.mrb[0].mxu0
  %1518 = vmatprep.mubr.bf16.mxu0 0
  %1519 = vmatmul.mubr.bf16.gmra.mrb[0].mxu0 %v462
  %v1520 = vpop.f32.mrb[0].mxu0
  %v1521 = vadd.f32 0.0, %v1520
  %v1522 = vpop.f32.mrb[0].mxu0
  %v1523 = vpop.f32.mrb[0].mxu0
  %v1524 = vadd.f32 0.0, %v1523
  %v1525 = vpop.f32.mrb[0].mxu0
  %1526 = vmatprep.mubr.bf16.mxu0 0
  %1527 = vmatmul.mubr.bf16.gmra.mrb[0].mxu0 %v465
  %v1528 = vpop.f32.mrb[0].mxu0
  %v1529 = vadd.f32 0.0, %v1528
  %v1530 = vpop.f32.mrb[0].mxu0
  %v1531 = vpop.f32.mrb[0].mxu0
  %v1532 = vpop.f32.mrb[0].mxu0
  %1533 = vdwg.mxu0
  %v1535 = vunpack.c.l.b16 %v57
  %v1536 = vpack.c.b16 %v110, %v109
  %v1537 = vpack.c.b16 %v112, %v111
  %v1538 = vpack.c.b16 %v114, %v113
  %v1539 = vpack.c.b16 %v1535, %v1535
  %v1541 = vsel %vm155, %v1536, 0
  %v1544 = vsel %vm155, %v1537, 0
  %v1547 = vsel %vm155, %v1538, 0
  %v1550 = vsel %vm155, %v1539, 0
  %1552 = vmatprep.subr.bf16.mxu0 0
  %1553 = vmatpush1.bf16.msra.mxu0 %v443
  %1554 = vmatprep.subr.bf16.mxu0 0
  %1555 = vmatpush1.bf16.msra.mxu0 %v444
  %1556 = vmatprep.subr.bf16.mxu0 0
  %1557 = vmatpush1.bf16.msra.mxu0 %v445
  %1558 = vmatprep.subr.bf16.mxu0 0
  %1559 = vmatpush1.bf16.msra.mxu0 %v446
  %1560 = vmatprep.subr.bf16.mxu0 0
  %1561 = vmatpush1.bf16.msra.mxu0 %v447
  %1562 = vmatprep.subr.bf16.mxu0 0
  %1563 = vmatpush1.bf16.msra.mxu0 %v448
  %1564 = vmatprep.subr.bf16.mxu0 0
  %1565 = vmatpush1.bf16.msra.mxu0 0
  %1566 = vmatprep.subr.bf16.mxu0 0
  %1567 = vmatpush1.bf16.msra.mxu0 0
  %1568 = vmatprep.subr.bf16.mxu0 0
  %1569 = vmatpush1.bf16.msra.mxu0 0
  %1570 = vmatprep.subr.bf16.mxu0 0
  %1571 = vmatpush1.bf16.msra.mxu0 0
  %1572 = vmatprep.subr.bf16.mxu0 0
  %1573 = vmatpush1.bf16.msra.mxu0 0
  %1574 = vmatprep.subr.bf16.mxu0 0
  %1575 = vmatpush1.bf16.msra.mxu0 0
  %1576 = vmatprep.subr.bf16.mxu0 0
  %1577 = vmatpush1.bf16.msra.mxu0 0
  %1578 = vmatprep.subr.bf16.mxu0 0
  %1579 = vmatpush1.bf16.msra.mxu0 0
  %1580 = vmatprep.subr.bf16.mxu0 0
  %1581 = vmatpush1.bf16.msra.mxu0 0
  %1582 = vmatprep.subr.bf16.mxu0 0
  %1583 = vmatpush1.bf16.msra.mxu0 0
  %1584 = vmatprep.mubr.bf16.mxu0 0
  %1585 = vmatmul.mubr.bf16.gmra.mrb[0].mxu0 %v1541
  %v1586 = vpop.f32.mrb[0].mxu0
  %v1587 = vadd.f32 0.0, %v1586
  %v1588 = vpop.f32.mrb[0].mxu0
  %v1589 = vpop.f32.mrb[0].mxu0
  %v1590 = vadd.f32 0.0, %v1589
  %v1591 = vpop.f32.mrb[0].mxu0
  %1592 = vmatprep.mubr.bf16.mxu0 0
  %1593 = vmatmul.mubr.bf16.gmra.mrb[0].mxu0 %v1544
  %v1594 = vpop.f32.mrb[0].mxu0
  %v1595 = vadd.f32 0.0, %v1594
  %v1596 = vpop.f32.mrb[0].mxu0
  %v1597 = vpop.f32.mrb[0].mxu0
  %v1598 = vadd.f32 0.0, %v1597
  %v1599 = vpop.f32.mrb[0].mxu0
  %1600 = vmatprep.mubr.bf16.mxu0 0
  %1601 = vmatmul.mubr.bf16.gmra.mrb[0].mxu0 %v1547
  %v1602 = vpop.f32.mrb[0].mxu0
  %v1603 = vadd.f32 0.0, %v1602
  %v1604 = vpop.f32.mrb[0].mxu0
  %v1605 = vpop.f32.mrb[0].mxu0
  %v1606 = vadd.f32 0.0, %v1605
  %v1607 = vpop.f32.mrb[0].mxu0
  %1608 = vmatprep.mubr.bf16.mxu0 0
  %1609 = vmatmul.mubr.bf16.gmra.mrb[0].mxu0 %v1550
  %v1610 = vpop.f32.mrb[0].mxu0
  %v1611 = vadd.f32 0.0, %v1610
  %v1612 = vpop.f32.mrb[0].mxu0
  %v1613 = vpop.f32.mrb[0].mxu0
  %v1614 = vpop.f32.mrb[0].mxu0
  %1615 = vdwg.mxu0
  %1616 = vmatprep.subr.bf16.mxu0 0
  %1617 = vmatpush1.bf16.msra.mxu0 %v561
  %1618 = vmatprep.subr.bf16.mxu0 0
  %1619 = vmatpush1.bf16.msra.mxu0 %v562
  %1620 = vmatprep.subr.bf16.mxu0 0
  %1621 = vmatpush1.bf16.msra.mxu0 %v563
  %1622 = vmatprep.subr.bf16.mxu0 0
  %1623 = vmatpush1.bf16.msra.mxu0 %v564
  %1624 = vmatprep.subr.bf16.mxu0 0
  %1625 = vmatpush1.bf16.msra.mxu0 %v565
  %1626 = vmatprep.subr.bf16.mxu0 0
  %1627 = vmatpush1.bf16.msra.mxu0 %v566
  %1628 = vmatprep.subr.bf16.mxu0 0
  %1629 = vmatpush1.bf16.msra.mxu0 0
  %1630 = vmatprep.subr.bf16.mxu0 0
  %1631 = vmatpush1.bf16.msra.mxu0 0
  %1632 = vmatprep.subr.bf16.mxu0 0
  %1633 = vmatpush1.bf16.msra.mxu0 0
  %1634 = vmatprep.subr.bf16.mxu0 0
  %1635 = vmatpush1.bf16.msra.mxu0 0
  %1636 = vmatprep.subr.bf16.mxu0 0
  %1637 = vmatpush1.bf16.msra.mxu0 0
  %1638 = vmatprep.subr.bf16.mxu0 0
  %1639 = vmatpush1.bf16.msra.mxu0 0
  %1640 = vmatprep.subr.bf16.mxu0 0
  %1641 = vmatpush1.bf16.msra.mxu0 0
  %1642 = vmatprep.subr.bf16.mxu0 0
  %1643 = vmatpush1.bf16.msra.mxu0 0
  %1644 = vmatprep.subr.bf16.mxu0 0
  %1645 = vmatpush1.bf16.msra.mxu0 0
  %1646 = vmatprep.subr.bf16.mxu0 0
  %1647 = vmatpush1.bf16.msra.mxu0 0
  %1648 = vmatprep.mubr.bf16.mxu0 0
  %1649 = vmatmul.mubr.bf16.gmra.mrb[0].mxu0 %v157
  %v1650 = vpop.f32.mrb[0].mxu0
  %v1651 = vadd.f32 %v1441, %v1650
  %v1652 = vpop.f32.mrb[0].mxu0
  %v1653 = vpop.f32.mrb[0].mxu0
  %v1654 = vadd.f32 %v1444, %v1653
  %v1655 = vpop.f32.mrb[0].mxu0
  %1656 = vmatprep.mubr.bf16.mxu0 0
  %1657 = vmatmul.mubr.bf16.gmra.mrb[0].mxu0 %v160
  %v1658 = vpop.f32.mrb[0].mxu0
  %v1659 = vadd.f32 %v1449, %v1658
  %v1660 = vpop.f32.mrb[0].mxu0
  %v1661 = vpop.f32.mrb[0].mxu0
  %v1662 = vadd.f32 %v1452, %v1661
  %v1663 = vpop.f32.mrb[0].mxu0
  %1664 = vmatprep.mubr.bf16.mxu0 0
  %1665 = vmatmul.mubr.bf16.gmra.mrb[0].mxu0 %v163
  %v1666 = vpop.f32.mrb[0].mxu0
  %v1667 = vadd.f32 %v1457, %v1666
  %v1668 = vpop.f32.mrb[0].mxu0
  %v1669 = vpop.f32.mrb[0].mxu0
  %v1670 = vadd.f32 %v1460, %v1669
  %v1671 = vpop.f32.mrb[0].mxu0
  %1672 = vmatprep.mubr.bf16.mxu0 0
  %1673 = vmatmul.mubr.bf16.gmra.mrb[0].mxu0 %v166
  %v1674 = vpop.f32.mrb[0].mxu0
  %v1675 = vadd.f32 %v1465, %v1674
  %v1676 = vpop.f32.mrb[0].mxu0
  %v1677 = vpop.f32.mrb[0].mxu0
  %v1678 = vpop.f32.mrb[0].mxu0
  %1679 = vdwg.mxu0
  %1680 = vmatprep.subr.bf16.mxu0 0
  %1681 = vmatpush1.bf16.msra.mxu0 %v691
  %1682 = vmatprep.subr.bf16.mxu0 0
  %1683 = vmatpush1.bf16.msra.mxu0 %v692
  %1684 = vmatprep.subr.bf16.mxu0 0
  %1685 = vmatpush1.bf16.msra.mxu0 %v693
  %1686 = vmatprep.subr.bf16.mxu0 0
  %1687 = vmatpush1.bf16.msra.mxu0 %v694
  %1688 = vmatprep.subr.bf16.mxu0 0
  %1689 = vmatpush1.bf16.msra.mxu0 %v695
  %1690 = vmatprep.subr.bf16.mxu0 0
  %1691 = vmatpush1.bf16.msra.mxu0 %v696
  %1692 = vmatprep.subr.bf16.mxu0 0
  %1693 = vmatpush1.bf16.msra.mxu0 0
  %1694 = vmatprep.subr.bf16.mxu0 0
  %1695 = vmatpush1.bf16.msra.mxu0 0
  %1696 = vmatprep.subr.bf16.mxu0 0
  %1697 = vmatpush1.bf16.msra.mxu0 0
  %1698 = vmatprep.subr.bf16.mxu0 0
  %1699 = vmatpush1.bf16.msra.mxu0 0
  %1700 = vmatprep.subr.bf16.mxu0 0
  %1701 = vmatpush1.bf16.msra.mxu0 0
  %1702 = vmatprep.subr.bf16.mxu0 0
  %1703 = vmatpush1.bf16.msra.mxu0 0
  %1704 = vmatprep.subr.bf16.mxu0 0
  %1705 = vmatpush1.bf16.msra.mxu0 0
  %1706 = vmatprep.subr.bf16.mxu0 0
  %1707 = vmatpush1.bf16.msra.mxu0 0
  %1708 = vmatprep.subr.bf16.mxu0 0
  %1709 = vmatpush1.bf16.msra.mxu0 0
  %1710 = vmatprep.subr.bf16.mxu0 0
  %1711 = vmatpush1.bf16.msra.mxu0 0
  %1712 = vmatprep.mubr.bf16.mxu0 0
  %1713 = vmatmul.mubr.bf16.gmra.mrb[0].mxu0 %v313
  %v1714 = vpop.f32.mrb[0].mxu0
  %v1715 = vadd.f32 %v1505, %v1714
  %v1716 = vpop.f32.mrb[0].mxu0
  %v1717 = vpop.f32.mrb[0].mxu0
  %v1718 = vadd.f32 %v1508, %v1717
  %v1719 = vpop.f32.mrb[0].mxu0
  %1720 = vmatprep.mubr.bf16.mxu0 0
  %1721 = vmatmul.mubr.bf16.gmra.mrb[0].mxu0 %v316
  %v1722 = vpop.f32.mrb[0].mxu0
  %v1723 = vadd.f32 %v1513, %v1722
  %v1724 = vpop.f32.mrb[0].mxu0
  %v1725 = vpop.f32.mrb[0].mxu0
  %v1726 = vadd.f32 %v1516, %v1725
  %v1727 = vpop.f32.mrb[0].mxu0
  %1728 = vmatprep.mubr.bf16.mxu0 0
  %1729 = vmatmul.mubr.bf16.gmra.mrb[0].mxu0 %v319
  %v1730 = vpop.f32.mrb[0].mxu0
  %v1731 = vadd.f32 %v1521, %v1730
  %v1732 = vpop.f32.mrb[0].mxu0
  %v1733 = vpop.f32.mrb[0].mxu0
  %v1734 = vadd.f32 %v1524, %v1733
  %v1735 = vpop.f32.mrb[0].mxu0
  %1736 = vmatprep.mubr.bf16.mxu0 0
  %1737 = vmatmul.mubr.bf16.gmra.mrb[0].mxu0 %v322
  %v1738 = vpop.f32.mrb[0].mxu0
  %v1739 = vadd.f32 %v1529, %v1738
  %v1740 = vpop.f32.mrb[0].mxu0
  %v1741 = vpop.f32.mrb[0].mxu0
  %v1742 = vpop.f32.mrb[0].mxu0
  %1743 = vdwg.mxu0
  %v1744 = vadd.f32 %v1651, %v1715
  %v1745 = vadd.f32 %v1654, %v1718
  %v1746 = vadd.f32 %v1659, %v1723
  %v1747 = vadd.f32 %v1662, %v1726
  %v1748 = vadd.f32 %v1667, %v1731
  %v1749 = vadd.f32 %v1670, %v1734
  %v1750 = vadd.f32 %v1675, %v1739
  %v1751 = vadd.f32 %v1744, %v1587
  %v1752 = vadd.f32 %v1745, %v1590
  %v1753 = vadd.f32 %v1746, %v1595
  %v1754 = vadd.f32 %v1747, %v1598
  %v1755 = vadd.f32 %v1748, %v1603
  %v1756 = vadd.f32 %v1749, %v1606
  %v1757 = vadd.f32 %v1750, %v1611
  %v1758 = vadd.f32 %v1751, %v797
  %v1759 = vadd.f32 %v1752, %v797
  %v1760 = vadd.f32 %v1753, %v797
  %v1761 = vadd.f32 %v1754, %v797
  %v1762 = vadd.f32 %v1755, %v797
  %v1763 = vadd.f32 %v1756, %v797
  %v1764 = vadd.f32 %v1757, %v797
  %v1765 = vmax.f32 %v1758, 0.0
  %v1766 = vmax.f32 %v1759, 0.0
  %v1767 = vmax.f32 %v1760, 0.0
  %v1768 = vmax.f32 %v1761, 0.0
  %v1769 = vmax.f32 %v1762, 0.0
  %v1770 = vmax.f32 %v1763, 0.0
  %v1771 = vmax.f32 %v1764, 0.0
  %1772 = vmatprep.subr.bf16.mxu0 0
  %1773 = vmatpush1.bf16.msra.mxu0 %v863
  %1774 = vmatprep.subr.bf16.mxu0 0
  %1775 = vmatpush1.bf16.msra.mxu0 %v864
  %1776 = vmatprep.subr.bf16.mxu0 0
  %1777 = vmatpush1.bf16.msra.mxu0 %v865
  %1778 = vmatprep.subr.bf16.mxu0 0
  %1779 = vmatpush1.bf16.msra.mxu0 %v866
  %1780 = vmatprep.subr.bf16.mxu0 0
  %1781 = vmatpush1.bf16.msra.mxu0 %v867
  %1782 = vmatprep.subr.bf16.mxu0 0
  %1783 = vmatpush1.bf16.msra.mxu0 %v868
  %1784 = vmatprep.subr.bf16.mxu0 0
  %1785 = vmatpush1.bf16.msra.mxu0 0
  %1786 = vmatprep.subr.bf16.mxu0 0
  %1787 = vmatpush1.bf16.msra.mxu0 0
  %1788 = vmatprep.subr.bf16.mxu0 0
  %1789 = vmatpush1.bf16.msra.mxu0 0
  %1790 = vmatprep.subr.bf16.mxu0 0
  %1791 = vmatpush1.bf16.msra.mxu0 0
  %1792 = vmatprep.subr.bf16.mxu0 0
  %1793 = vmatpush1.bf16.msra.mxu0 0
  %1794 = vmatprep.subr.bf16.mxu0 0
  %1795 = vmatpush1.bf16.msra.mxu0 0
  %1796 = vmatprep.subr.bf16.mxu0 0
  %1797 = vmatpush1.bf16.msra.mxu0 0
  %1798 = vmatprep.subr.bf16.mxu0 0
  %1799 = vmatpush1.bf16.msra.mxu0 0
  %1800 = vmatprep.subr.bf16.mxu0 0
  %1801 = vmatpush1.bf16.msra.mxu0 0
  %1802 = vmatprep.subr.bf16.mxu0 0
  %1803 = vmatpush1.bf16.msra.mxu0 0
  %1804 = vmatprep.mubr.bf16.mxu0 0
  %1805 = vmatmul.mubr.bf16.gmra.mrb[0].mxu0 %v704
  %v1806 = vpop.f32.mrb[0].mxu0
  %v1807 = vadd.f32 0.0, %v1806
  %v1808 = vpop.f32.mrb[0].mxu0
  %v1809 = vpop.f32.mrb[0].mxu0
  %v1810 = vadd.f32 0.0, %v1809
  %v1811 = vpop.f32.mrb[0].mxu0
  %1812 = vmatprep.mubr.bf16.mxu0 0
  %1813 = vmatmul.mubr.bf16.gmra.mrb[0].mxu0 %v707
  %v1814 = vpop.f32.mrb[0].mxu0
  %v1815 = vadd.f32 0.0, %v1814
  %v1816 = vpop.f32.mrb[0].mxu0
  %v1817 = vpop.f32.mrb[0].mxu0
  %v1818 = vadd.f32 0.0, %v1817
  %v1819 = vpop.f32.mrb[0].mxu0
  %1820 = vmatprep.mubr.bf16.mxu0 0
  %1821 = vmatmul.mubr.bf16.gmra.mrb[0].mxu0 %v710
  %v1822 = vpop.f32.mrb[0].mxu0
  %v1823 = vadd.f32 0.0, %v1822
  %v1824 = vpop.f32.mrb[0].mxu0
  %v1825 = vpop.f32.mrb[0].mxu0
  %v1826 = vadd.f32 0.0, %v1825
  %v1827 = vpop.f32.mrb[0].mxu0
  %1828 = vmatprep.mubr.bf16.mxu0 0
  %1829 = vmatmul.mubr.bf16.gmra.mrb[0].mxu0 %v713
  %v1830 = vpop.f32.mrb[0].mxu0
  %v1831 = vadd.f32 0.0, %v1830
  %v1832 = vpop.f32.mrb[0].mxu0
  %v1833 = vpop.f32.mrb[0].mxu0
  %v1834 = vpop.f32.mrb[0].mxu0
  %1835 = vdwg.mxu0
  %1836 = vmatprep.subr.bf16.mxu0 0
  %1837 = vmatpush1.bf16.msra.mxu0 %v989
  %1838 = vmatprep.subr.bf16.mxu0 0
  %1839 = vmatpush1.bf16.msra.mxu0 %v990
  %1840 = vmatprep.subr.bf16.mxu0 0
  %1841 = vmatpush1.bf16.msra.mxu0 %v991
  %1842 = vmatprep.subr.bf16.mxu0 0
  %1843 = vmatpush1.bf16.msra.mxu0 %v992
  %1844 = vmatprep.subr.bf16.mxu0 0
  %1845 = vmatpush1.bf16.msra.mxu0 %v993
  %1846 = vmatprep.subr.bf16.mxu0 0
  %1847 = vmatpush1.bf16.msra.mxu0 %v994
  %1848 = vmatprep.subr.bf16.mxu0 0
  %1849 = vmatpush1.bf16.msra.mxu0 0
  %1850 = vmatprep.subr.bf16.mxu0 0
  %1851 = vmatpush1.bf16.msra.mxu0 0
  %1852 = vmatprep.subr.bf16.mxu0 0
  %1853 = vmatpush1.bf16.msra.mxu0 0
  %1854 = vmatprep.subr.bf16.mxu0 0
  %1855 = vmatpush1.bf16.msra.mxu0 0
  %1856 = vmatprep.subr.bf16.mxu0 0
  %1857 = vmatpush1.bf16.msra.mxu0 0
  %1858 = vmatprep.subr.bf16.mxu0 0
  %1859 = vmatpush1.bf16.msra.mxu0 0
  %1860 = vmatprep.subr.bf16.mxu0 0
  %1861 = vmatpush1.bf16.msra.mxu0 0
  %1862 = vmatprep.subr.bf16.mxu0 0
  %1863 = vmatpush1.bf16.msra.mxu0 0
  %1864 = vmatprep.subr.bf16.mxu0 0
  %1865 = vmatpush1.bf16.msra.mxu0 0
  %1866 = vmatprep.subr.bf16.mxu0 0
  %1867 = vmatpush1.bf16.msra.mxu0 0
  %1868 = vmatprep.mubr.bf16.mxu0 0
  %1869 = vmatmul.mubr.bf16.gmra.mrb[0].mxu0 %v456
  %v1870 = vpop.f32.mrb[0].mxu0
  %v1871 = vadd.f32 0.0, %v1870
  %v1872 = vpop.f32.mrb[0].mxu0
  %v1873 = vpop.f32.mrb[0].mxu0
  %v1874 = vadd.f32 0.0, %v1873
  %v1875 = vpop.f32.mrb[0].mxu0
  %1876 = vmatprep.mubr.bf16.mxu0 0
  %1877 = vmatmul.mubr.bf16.gmra.mrb[0].mxu0 %v459
  %v1878 = vpop.f32.mrb[0].mxu0
  %v1879 = vadd.f32 0.0, %v1878
  %v1880 = vpop.f32.mrb[0].mxu0
  %v1881 = vpop.f32.mrb[0].mxu0
  %v1882 = vadd.f32 0.0, %v1881
  %v1883 = vpop.f32.mrb[0].mxu0
  %1884 = vmatprep.mubr.bf16.mxu0 0
  %1885 = vmatmul.mubr.bf16.gmra.mrb[0].mxu0 %v462
  %v1886 = vpop.f32.mrb[0].mxu0
  %v1887 = vadd.f32 0.0, %v1886
  %v1888 = vpop.f32.mrb[0].mxu0
  %v1889 = vpop.f32.mrb[0].mxu0
  %v1890 = vadd.f32 0.0, %v1889
  %v1891 = vpop.f32.mrb[0].mxu0
  %1892 = vmatprep.mubr.bf16.mxu0 0
  %1893 = vmatmul.mubr.bf16.gmra.mrb[0].mxu0 %v465
  %v1894 = vpop.f32.mrb[0].mxu0
  %v1895 = vadd.f32 0.0, %v1894
  %v1896 = vpop.f32.mrb[0].mxu0
  %v1897 = vpop.f32.mrb[0].mxu0
  %v1898 = vpop.f32.mrb[0].mxu0
  %1899 = vdwg.mxu0
  %1900 = vmatprep.subr.bf16.mxu0 0
  %1901 = vmatpush1.bf16.msra.mxu0 %v1102
  %1902 = vmatprep.subr.bf16.mxu0 0
  %1903 = vmatpush1.bf16.msra.mxu0 %v1103
  %1904 = vmatprep.subr.bf16.mxu0 0
  %1905 = vmatpush1.bf16.msra.mxu0 %v1104
  %1906 = vmatprep.subr.bf16.mxu0 0
  %1907 = vmatpush1.bf16.msra.mxu0 %v1105
  %1908 = vmatprep.subr.bf16.mxu0 0
  %1909 = vmatpush1.bf16.msra.mxu0 %v1106
  %1910 = vmatprep.subr.bf16.mxu0 0
  %1911 = vmatpush1.bf16.msra.mxu0 %v1107
  %1912 = vmatprep.subr.bf16.mxu0 0
  %1913 = vmatpush1.bf16.msra.mxu0 0
  %1914 = vmatprep.subr.bf16.mxu0 0
  %1915 = vmatpush1.bf16.msra.mxu0 0
  %1916 = vmatprep.subr.bf16.mxu0 0
  %1917 = vmatpush1.bf16.msra.mxu0 0
  %1918 = vmatprep.subr.bf16.mxu0 0
  %1919 = vmatpush1.bf16.msra.mxu0 0
  %1920 = vmatprep.subr.bf16.mxu0 0
  %1921 = vmatpush1.bf16.msra.mxu0 0
  %1922 = vmatprep.subr.bf16.mxu0 0
  %1923 = vmatpush1.bf16.msra.mxu0 0
  %1924 = vmatprep.subr.bf16.mxu0 0
  %1925 = vmatpush1.bf16.msra.mxu0 0
  %1926 = vmatprep.subr.bf16.mxu0 0
  %1927 = vmatpush1.bf16.msra.mxu0 0
  %1928 = vmatprep.subr.bf16.mxu0 0
  %1929 = vmatpush1.bf16.msra.mxu0 0
  %1930 = vmatprep.subr.bf16.mxu0 0
  %1931 = vmatpush1.bf16.msra.mxu0 0
  %1932 = vmatprep.mubr.bf16.mxu0 0
  %1933 = vmatmul.mubr.bf16.gmra.mrb[0].mxu0 %v1541
  %v1934 = vpop.f32.mrb[0].mxu0
  %v1935 = vadd.f32 0.0, %v1934
  %v1936 = vpop.f32.mrb[0].mxu0
  %v1937 = vpop.f32.mrb[0].mxu0
  %v1938 = vadd.f32 0.0, %v1937
  %v1939 = vpop.f32.mrb[0].mxu0
  %1940 = vmatprep.mubr.bf16.mxu0 0
  %1941 = vmatmul.mubr.bf16.gmra.mrb[0].mxu0 %v1544
  %v1942 = vpop.f32.mrb[0].mxu0
  %v1943 = vadd.f32 0.0, %v1942
  %v1944 = vpop.f32.mrb[0].mxu0
  %v1945 = vpop.f32.mrb[0].mxu0
  %v1946 = vadd.f32 0.0, %v1945
  %v1947 = vpop.f32.mrb[0].mxu0
  %1948 = vmatprep.mubr.bf16.mxu0 0
  %1949 = vmatmul.mubr.bf16.gmra.mrb[0].mxu0 %v1547
  %v1950 = vpop.f32.mrb[0].mxu0
  %v1951 = vadd.f32 0.0, %v1950
  %v1952 = vpop.f32.mrb[0].mxu0
  %v1953 = vpop.f32.mrb[0].mxu0
  %v1954 = vadd.f32 0.0, %v1953
  %v1955 = vpop.f32.mrb[0].mxu0
  %1956 = vmatprep.mubr.bf16.mxu0 0
  %1957 = vmatmul.mubr.bf16.gmra.mrb[0].mxu0 %v1550
  %v1958 = vpop.f32.mrb[0].mxu0
  %v1959 = vadd.f32 0.0, %v1958
  %v1960 = vpop.f32.mrb[0].mxu0
  %v1961 = vpop.f32.mrb[0].mxu0
  %v1962 = vpop.f32.mrb[0].mxu0
  %1963 = vdwg.mxu0
  %1964 = vmatprep.subr.bf16.mxu0 0
  %1965 = vmatpush1.bf16.msra.mxu0 %v1202
  %1966 = vmatprep.subr.bf16.mxu0 0
  %1967 = vmatpush1.bf16.msra.mxu0 %v1203
  %1968 = vmatprep.subr.bf16.mxu0 0
  %1969 = vmatpush1.bf16.msra.mxu0 %v1204
  %1970 = vmatprep.subr.bf16.mxu0 0
  %1971 = vmatpush1.bf16.msra.mxu0 %v1205
  %1972 = vmatprep.subr.bf16.mxu0 0
  %1973 = vmatpush1.bf16.msra.mxu0 %v1206
  %1974 = vmatprep.subr.bf16.mxu0 0
  %1975 = vmatpush1.bf16.msra.mxu0 %v1207
  %1976 = vmatprep.subr.bf16.mxu0 0
  %1977 = vmatpush1.bf16.msra.mxu0 0
  %1978 = vmatprep.subr.bf16.mxu0 0
  %1979 = vmatpush1.bf16.msra.mxu0 0
  %1980 = vmatprep.subr.bf16.mxu0 0
  %1981 = vmatpush1.bf16.msra.mxu0 0
  %1982 = vmatprep.subr.bf16.mxu0 0
  %1983 = vmatpush1.bf16.msra.mxu0 0
  %1984 = vmatprep.subr.bf16.mxu0 0
  %1985 = vmatpush1.bf16.msra.mxu0 0
  %1986 = vmatprep.subr.bf16.mxu0 0
  %1987 = vmatpush1.bf16.msra.mxu0 0
  %1988 = vmatprep.subr.bf16.mxu0 0
  %1989 = vmatpush1.bf16.msra.mxu0 0
  %1990 = vmatprep.subr.bf16.mxu0 0
  %1991 = vmatpush1.bf16.msra.mxu0 0
  %1992 = vmatprep.subr.bf16.mxu0 0
  %1993 = vmatpush1.bf16.msra.mxu0 0
  %1994 = vmatprep.subr.bf16.mxu0 0
  %1995 = vmatpush1.bf16.msra.mxu0 0
  %1996 = vmatprep.mubr.bf16.mxu0 0
  %1997 = vmatmul.mubr.bf16.gmra.mrb[0].mxu0 %v157
  %v1998 = vpop.f32.mrb[0].mxu0
  %v1999 = vadd.f32 %v1807, %v1998
  %v2000 = vpop.f32.mrb[0].mxu0
  %v2001 = vpop.f32.mrb[0].mxu0
  %v2002 = vadd.f32 %v1810, %v2001
  %v2003 = vpop.f32.mrb[0].mxu0
  %2004 = vmatprep.mubr.bf16.mxu0 0
  %2005 = vmatmul.mubr.bf16.gmra.mrb[0].mxu0 %v160
  %v2006 = vpop.f32.mrb[0].mxu0
  %v2007 = vadd.f32 %v1815, %v2006
  %v2008 = vpop.f32.mrb[0].mxu0
  %v2009 = vpop.f32.mrb[0].mxu0
  %v2010 = vadd.f32 %v1818, %v2009
  %v2011 = vpop.f32.mrb[0].mxu0
  %2012 = vmatprep.mubr.bf16.mxu0 0
  %2013 = vmatmul.mubr.bf16.gmra.mrb[0].mxu0 %v163
  %v2014 = vpop.f32.mrb[0].mxu0
  %v2015 = vadd.f32 %v1823, %v2014
  %v2016 = vpop.f32.mrb[0].mxu0
  %v2017 = vpop.f32.mrb[0].mxu0
  %v2018 = vadd.f32 %v1826, %v2017
  %v2019 = vpop.f32.mrb[0].mxu0
  %2020 = vmatprep.mubr.bf16.mxu0 0
  %2021 = vmatmul.mubr.bf16.gmra.mrb[0].mxu0 %v166
  %v2022 = vpop.f32.mrb[0].mxu0
  %v2023 = vadd.f32 %v1831, %v2022
  %v2024 = vpop.f32.mrb[0].mxu0
  %v2025 = vpop.f32.mrb[0].mxu0
  %v2026 = vpop.f32.mrb[0].mxu0
  %2027 = vdwg.mxu0
  %2028 = vmatprep.subr.bf16.mxu0 0
  %2029 = vmatpush1.bf16.msra.mxu0 %v1302
  %2030 = vmatprep.subr.bf16.mxu0 0
  %2031 = vmatpush1.bf16.msra.mxu0 %v1303
  %2032 = vmatprep.subr.bf16.mxu0 0
  %2033 = vmatpush1.bf16.msra.mxu0 %v1304
  %2034 = vmatprep.subr.bf16.mxu0 0
  %2035 = vmatpush1.bf16.msra.mxu0 %v1305
  %2036 = vmatprep.subr.bf16.mxu0 0
  %2037 = vmatpush1.bf16.msra.mxu0 %v1306
  %2038 = vmatprep.subr.bf16.mxu0 0
  %2039 = vmatpush1.bf16.msra.mxu0 %v1307
  %2040 = vmatprep.subr.bf16.mxu0 0
  %2041 = vmatpush1.bf16.msra.mxu0 0
  %2042 = vmatprep.subr.bf16.mxu0 0
  %2043 = vmatpush1.bf16.msra.mxu0 0
  %2044 = vmatprep.subr.bf16.mxu0 0
  %2045 = vmatpush1.bf16.msra.mxu0 0
  %2046 = vmatprep.subr.bf16.mxu0 0
  %2047 = vmatpush1.bf16.msra.mxu0 0
  %2048 = vmatprep.subr.bf16.mxu0 0
  %2049 = vmatpush1.bf16.msra.mxu0 0
  %2050 = vmatprep.subr.bf16.mxu0 0
  %2051 = vmatpush1.bf16.msra.mxu0 0
  %2052 = vmatprep.subr.bf16.mxu0 0
  %2053 = vmatpush1.bf16.msra.mxu0 0
  %2054 = vmatprep.subr.bf16.mxu0 0
  %2055 = vmatpush1.bf16.msra.mxu0 0
  %2056 = vmatprep.subr.bf16.mxu0 0
  %2057 = vmatpush1.bf16.msra.mxu0 0
  %2058 = vmatprep.subr.bf16.mxu0 0
  %2059 = vmatpush1.bf16.msra.mxu0 0
  %2060 = vmatprep.mubr.bf16.mxu0 0
  %2061 = vmatmul.mubr.bf16.gmra.mrb[0].mxu0 %v313
  %v2062 = vpop.f32.mrb[0].mxu0
  %v2063 = vadd.f32 %v1871, %v2062
  %v2064 = vpop.f32.mrb[0].mxu0
  %v2065 = vpop.f32.mrb[0].mxu0
  %v2066 = vadd.f32 %v1874, %v2065
  %v2067 = vpop.f32.mrb[0].mxu0
  %2068 = vmatprep.mubr.bf16.mxu0 0
  %2069 = vmatmul.mubr.bf16.gmra.mrb[0].mxu0 %v316
  %v2070 = vpop.f32.mrb[0].mxu0
  %v2071 = vadd.f32 %v1879, %v2070
  %v2072 = vpop.f32.mrb[0].mxu0
  %v2073 = vpop.f32.mrb[0].mxu0
  %v2074 = vadd.f32 %v1882, %v2073
  %v2075 = vpop.f32.mrb[0].mxu0
  %2076 = vmatprep.mubr.bf16.mxu0 0
  %2077 = vmatmul.mubr.bf16.gmra.mrb[0].mxu0 %v319
  %v2078 = vpop.f32.mrb[0].mxu0
  %v2079 = vadd.f32 %v1887, %v2078
  %v2080 = vpop.f32.mrb[0].mxu0
  %v2081 = vpop.f32.mrb[0].mxu0
  %v2082 = vadd.f32 %v1890, %v2081
  %v2083 = vpop.f32.mrb[0].mxu0
  %2084 = vmatprep.mubr.bf16.mxu0 0
  %2085 = vmatmul.mubr.bf16.gmra.mrb[0].mxu0 %v322
  %v2086 = vpop.f32.mrb[0].mxu0
  %v2087 = vadd.f32 %v1895, %v2086
  %v2088 = vpop.f32.mrb[0].mxu0
  %v2089 = vpop.f32.mrb[0].mxu0
  %v2090 = vpop.f32.mrb[0].mxu0
  %2091 = vdwg.mxu0
  %v2092 = vadd.f32 %v1999, %v2063
  %v2093 = vadd.f32 %v2002, %v2066
  %v2094 = vadd.f32 %v2007, %v2071
  %v2095 = vadd.f32 %v2010, %v2074
  %v2096 = vadd.f32 %v2015, %v2079
  %v2097 = vadd.f32 %v2018, %v2082
  %v2098 = vadd.f32 %v2023, %v2087
  %v2099 = vadd.f32 %v2092, %v1935
  %v2100 = vadd.f32 %v2093, %v1938
  %v2101 = vadd.f32 %v2094, %v1943
  %v2102 = vadd.f32 %v2095, %v1946
  %v2103 = vadd.f32 %v2096, %v1951
  %v2104 = vadd.f32 %v2097, %v1954
  %v2105 = vadd.f32 %v2098, %v1959
  %v2106 = vadd.f32 %v2099, %v797
  %v2107 = vadd.f32 %v2100, %v797
  %v2108 = vadd.f32 %v2101, %v797
  %v2109 = vadd.f32 %v2102, %v797
  %v2110 = vadd.f32 %v2103, %v797
  %v2111 = vadd.f32 %v2104, %v797
  %v2112 = vadd.f32 %v2105, %v797
  %v2113 = vmax.f32 %v2106, 0.0
  %v2114 = vmax.f32 %v2107, 0.0
  %v2115 = vmax.f32 %v2108, 0.0
  %v2116 = vmax.f32 %v2109, 0.0
  %v2117 = vmax.f32 %v2110, 0.0
  %v2118 = vmax.f32 %v2111, 0.0
  %v2119 = vmax.f32 %v2112, 0.0
  %v2120 = vmax.f32 %v806, %v1399
  %v2121 = vmax.f32 %v807, %v1400
  %v2122 = vmax.f32 %v808, %v1401
  %v2123 = vmax.f32 %v809, %v1402
  %v2124 = vmax.f32 %v810, %v1403
  %v2125 = vmax.f32 %v811, %v1404
  %v2126 = vmax.f32 %v812, %v1405
  %v2127 = vmax.f32 %v1765, %v2113
  %v2128 = vmax.f32 %v1766, %v2114
  %v2129 = vmax.f32 %v1767, %v2115
  %v2130 = vmax.f32 %v1768, %v2116
  %v2131 = vmax.f32 %v1769, %v2117
  %v2132 = vmax.f32 %v1770, %v2118
  %v2133 = vmax.f32 %v1771, %v2119
  %v2134 = vmax.f32 %v2120, %v2127
  %v2135 = vmax.f32 %v2121, %v2128
  %v2136 = vmax.f32 %v2122, %v2129
  %v2137 = vmax.f32 %v2123, %v2130
  %v2138 = vmax.f32 %v2124, %v2131
  %v2139 = vmax.f32 %v2125, %v2132
  %v2140 = vmax.f32 %v2126, %v2133
  %v2141 = vpack.c.bf16 %v2135, %v2134
  %v2142 = vpack.c.bf16 %v2137, %v2136
  %v2143 = vpack.c.bf16 %v2139, %v2138
  %v2144 = vpack.c.bf16 %v2140, %v2140
  %s2145 = scalar_lea.vmem %s1, 480
  %v2146 = vld [vmem:[%s2145] sm:$0xf]
  %v2147 = vld [vmem:[%s2145 + $0x4] sm:$0xf]
  %v2148 = vld [vmem:[%s2145 + $0x8] sm:$0xf]
  %v2149 = vld [vmem:[%s2145 + $0xc] sm:$0xf]
  %v2150 = vld [vmem:[%s2145 + $0x10] sm:$0xf]
  %v2151 = vld [vmem:[%s2145 + $0x14] sm:$0xf]
  %v2152 = vld [vmem:[%s2145 + $0x18] sm:$0xf]
  %v2153 = vld [vmem:[%s2145 + $0x1c] sm:$0xf]
  %v2154 = vld [vmem:[%s2145 + $0x20] sm:$0xf]
  %v2155 = vld [vmem:[%s2145 + $0x24] sm:$0xf]
  %v2156 = vld [vmem:[%s2145 + $0x28] sm:$0xf]
  %v2157 = vld [vmem:[%s2145 + $0x2c] sm:$0xf]
  %s2158 = scalar_lea.vmem %s1, 528
  %v2159 = vld [vmem:[%s2158] sm:$0xf]
  %v2160 = vld [vmem:[%s2158 + $0x4] sm:$0xf]
  %v2161 = vld [vmem:[%s2158 + $0x8] sm:$0xf]
  %v2162 = vld [vmem:[%s2158 + $0xc] sm:$0xf]
  %v2163 = vld [vmem:[%s2158 + $0x10] sm:$0xf]
  %v2164 = vld [vmem:[%s2158 + $0x14] sm:$0xf]
  %v2165 = vld [vmem:[%s2158 + $0x18] sm:$0xf]
  %v2166 = vld [vmem:[%s2158 + $0x1c] sm:$0xf]
  %v2167 = vld [vmem:[%s2158 + $0x20] sm:$0xf]
  %v2168 = vld [vmem:[%s2158 + $0x24] sm:$0xf]
  %v2169 = vld [vmem:[%s2158 + $0x28] sm:$0xf]
  %v2170 = vld [vmem:[%s2158 + $0x2c] sm:$0xf]
  %v2183 = vunpack.c.l.b16 %v2159
  %v2184 = vunpack.c.l.b16 %v2160
  %v2185 = vunpack.c.l.b16 %v2161
  %v2186 = vunpack.c.l.b16 %v2162
  %v2187 = vunpack.c.l.b16 %v2163
  %v2188 = vunpack.c.l.b16 %v2164
  %v2189 = vunpack.c.l.b16 %v2165
  %v2190 = vunpack.c.l.b16 %v2166
  %v2191 = vunpack.c.l.b16 %v2167
  %v2192 = vunpack.c.l.b16 %v2168
  %v2193 = vunpack.c.l.b16 %v2169
  %v2194 = vunpack.c.l.b16 %v2170
  %v2195 = vpack.c.b16 %v2184, %v2183
  %v2196 = vpack.c.b16 %v2186, %v2185
  %v2197 = vpack.c.b16 %v2188, %v2187
  %v2198 = vpack.c.b16 %v2190, %v2189
  %v2199 = vpack.c.b16 %v2192, %v2191
  %v2200 = vpack.c.b16 %v2194, %v2193
  %2207 = vmatprep.subr.bf16.mxu0 0
  %2208 = vmatpush1.bf16.msra.mxu0 %v2195
  %2209 = vmatprep.subr.bf16.mxu0 0
  %2210 = vmatpush1.bf16.msra.mxu0 %v2196
  %2211 = vmatprep.subr.bf16.mxu0 0
  %2212 = vmatpush1.bf16.msra.mxu0 %v2197
  %2213 = vmatprep.subr.bf16.mxu0 0
  %2214 = vmatpush1.bf16.msra.mxu0 %v2198
  %2215 = vmatprep.subr.bf16.mxu0 0
  %2216 = vmatpush1.bf16.msra.mxu0 %v2199
  %2217 = vmatprep.subr.bf16.mxu0 0
  %2218 = vmatpush1.bf16.msra.mxu0 %v2200
  %2219 = vmatprep.subr.bf16.mxu0 0
  %2220 = vmatpush1.bf16.msra.mxu0 0
  %2221 = vmatprep.subr.bf16.mxu0 0
  %2222 = vmatpush1.bf16.msra.mxu0 0
  %2223 = vmatprep.subr.bf16.mxu0 0
  %2224 = vmatpush1.bf16.msra.mxu0 0
  %2225 = vmatprep.subr.bf16.mxu0 0
  %2226 = vmatpush1.bf16.msra.mxu0 0
  %2227 = vmatprep.subr.bf16.mxu0 0
  %2228 = vmatpush1.bf16.msra.mxu0 0
  %2229 = vmatprep.subr.bf16.mxu0 0
  %2230 = vmatpush1.bf16.msra.mxu0 0
  %2231 = vmatprep.subr.bf16.mxu0 0
  %2232 = vmatpush1.bf16.msra.mxu0 0
  %2233 = vmatprep.subr.bf16.mxu0 0
  %2234 = vmatpush1.bf16.msra.mxu0 0
  %2235 = vmatprep.subr.bf16.mxu0 0
  %2236 = vmatpush1.bf16.msra.mxu0 0
  %2237 = vmatprep.subr.bf16.mxu0 0
  %2238 = vmatpush1.bf16.msra.mxu0 0
  %2239 = vmatprep.mubr.bf16.mxu0 0
  %2240 = vmatmul.mubr.bf16.gmra.mrb[0].mxu0 %v157
  %v2241 = vpop.f32.mrb[0].mxu0
  %v2242 = vadd.f32 0.0, %v2241
  %v2243 = vpop.f32.mrb[0].mxu0
  %v2244 = vpop.f32.mrb[0].mxu0
  %v2245 = vadd.f32 0.0, %v2244
  %v2246 = vpop.f32.mrb[0].mxu0
  %2247 = vmatprep.mubr.bf16.mxu0 0
  %2248 = vmatmul.mubr.bf16.gmra.mrb[0].mxu0 %v160
  %v2249 = vpop.f32.mrb[0].mxu0
  %v2250 = vadd.f32 0.0, %v2249
  %v2251 = vpop.f32.mrb[0].mxu0
  %v2252 = vpop.f32.mrb[0].mxu0
  %v2253 = vadd.f32 0.0, %v2252
  %v2254 = vpop.f32.mrb[0].mxu0
  %2255 = vmatprep.mubr.bf16.mxu0 0
  %2256 = vmatmul.mubr.bf16.gmra.mrb[0].mxu0 %v163
  %v2257 = vpop.f32.mrb[0].mxu0
  %v2258 = vadd.f32 0.0, %v2257
  %v2259 = vpop.f32.mrb[0].mxu0
  %v2260 = vpop.f32.mrb[0].mxu0
  %v2261 = vadd.f32 0.0, %v2260
  %v2262 = vpop.f32.mrb[0].mxu0
  %2263 = vmatprep.mubr.bf16.mxu0 0
  %2264 = vmatmul.mubr.bf16.gmra.mrb[0].mxu0 %v166
  %v2265 = vpop.f32.mrb[0].mxu0
  %v2266 = vadd.f32 0.0, %v2265
  %v2267 = vpop.f32.mrb[0].mxu0
  %v2268 = vpop.f32.mrb[0].mxu0
  %v2269 = vpop.f32.mrb[0].mxu0
  %2270 = vdwg.mxu0
  %s2271 = scalar_lea.vmem %s1, 576
  %v2272 = vld [vmem:[%s2271] sm:$0xf]
  %v2273 = vld [vmem:[%s2271 + $0x4] sm:$0xf]
  %v2274 = vld [vmem:[%s2271 + $0x8] sm:$0xf]
  %v2275 = vld [vmem:[%s2271 + $0xc] sm:$0xf]
  %v2276 = vld [vmem:[%s2271 + $0x10] sm:$0xf]
  %v2277 = vld [vmem:[%s2271 + $0x14] sm:$0xf]
  %v2278 = vld [vmem:[%s2271 + $0x18] sm:$0xf]
  %v2279 = vld [vmem:[%s2271 + $0x1c] sm:$0xf]
  %v2280 = vld [vmem:[%s2271 + $0x20] sm:$0xf]
  %v2281 = vld [vmem:[%s2271 + $0x24] sm:$0xf]
  %v2282 = vld [vmem:[%s2271 + $0x28] sm:$0xf]
  %v2283 = vld [vmem:[%s2271 + $0x2c] sm:$0xf]
  %s2284 = scalar_lea.vmem %s1, 624
  %v2285 = vld [vmem:[%s2284] sm:$0xf]
  %v2286 = vld [vmem:[%s2284 + $0x4] sm:$0xf]
  %v2287 = vld [vmem:[%s2284 + $0x8] sm:$0xf]
  %v2288 = vld [vmem:[%s2284 + $0xc] sm:$0xf]
  %v2289 = vld [vmem:[%s2284 + $0x10] sm:$0xf]
  %v2290 = vld [vmem:[%s2284 + $0x14] sm:$0xf]
  %v2291 = vld [vmem:[%s2284 + $0x18] sm:$0xf]
  %v2292 = vld [vmem:[%s2284 + $0x1c] sm:$0xf]
  %v2293 = vld [vmem:[%s2284 + $0x20] sm:$0xf]
  %v2294 = vld [vmem:[%s2284 + $0x24] sm:$0xf]
  %v2295 = vld [vmem:[%s2284 + $0x28] sm:$0xf]
  %v2296 = vld [vmem:[%s2284 + $0x2c] sm:$0xf]
  %v2309 = vunpack.c.l.b16 %v2285
  %v2310 = vunpack.c.l.b16 %v2286
  %v2311 = vunpack.c.l.b16 %v2287
  %v2312 = vunpack.c.l.b16 %v2288
  %v2313 = vunpack.c.l.b16 %v2289
  %v2314 = vunpack.c.l.b16 %v2290
  %v2315 = vunpack.c.l.b16 %v2291
  %v2316 = vunpack.c.l.b16 %v2292
  %v2317 = vunpack.c.l.b16 %v2293
  %v2318 = vunpack.c.l.b16 %v2294
  %v2319 = vunpack.c.l.b16 %v2295
  %v2320 = vunpack.c.l.b16 %v2296
  %v2321 = vpack.c.b16 %v2310, %v2309
  %v2322 = vpack.c.b16 %v2312, %v2311
  %v2323 = vpack.c.b16 %v2314, %v2313
  %v2324 = vpack.c.b16 %v2316, %v2315
  %v2325 = vpack.c.b16 %v2318, %v2317
  %v2326 = vpack.c.b16 %v2320, %v2319
  %2333 = vmatprep.subr.bf16.mxu0 0
  %2334 = vmatpush1.bf16.msra.mxu0 %v2321
  %2335 = vmatprep.subr.bf16.mxu0 0
  %2336 = vmatpush1.bf16.msra.mxu0 %v2322
  %2337 = vmatprep.subr.bf16.mxu0 0
  %2338 = vmatpush1.bf16.msra.mxu0 %v2323
  %2339 = vmatprep.subr.bf16.mxu0 0
  %2340 = vmatpush1.bf16.msra.mxu0 %v2324
  %2341 = vmatprep.subr.bf16.mxu0 0
  %2342 = vmatpush1.bf16.msra.mxu0 %v2325
  %2343 = vmatprep.subr.bf16.mxu0 0
  %2344 = vmatpush1.bf16.msra.mxu0 %v2326
  %2345 = vmatprep.subr.bf16.mxu0 0
  %2346 = vmatpush1.bf16.msra.mxu0 0
  %2347 = vmatprep.subr.bf16.mxu0 0
  %2348 = vmatpush1.bf16.msra.mxu0 0
  %2349 = vmatprep.subr.bf16.mxu0 0
  %2350 = vmatpush1.bf16.msra.mxu0 0
  %2351 = vmatprep.subr.bf16.mxu0 0
  %2352 = vmatpush1.bf16.msra.mxu0 0
  %2353 = vmatprep.subr.bf16.mxu0 0
  %2354 = vmatpush1.bf16.msra.mxu0 0
  %2355 = vmatprep.subr.bf16.mxu0 0
  %2356 = vmatpush1.bf16.msra.mxu0 0
  %2357 = vmatprep.subr.bf16.mxu0 0
  %2358 = vmatpush1.bf16.msra.mxu0 0
  %2359 = vmatprep.subr.bf16.mxu0 0
  %2360 = vmatpush1.bf16.msra.mxu0 0
  %2361 = vmatprep.subr.bf16.mxu0 0
  %2362 = vmatpush1.bf16.msra.mxu0 0
  %2363 = vmatprep.subr.bf16.mxu0 0
  %2364 = vmatpush1.bf16.msra.mxu0 0
  %2365 = vmatprep.mubr.bf16.mxu0 0
  %2366 = vmatmul.mubr.bf16.gmra.mrb[0].mxu0 %v313
  %v2367 = vpop.f32.mrb[0].mxu0
  %v2368 = vadd.f32 0.0, %v2367
  %v2369 = vpop.f32.mrb[0].mxu0
  %v2370 = vpop.f32.mrb[0].mxu0
  %v2371 = vadd.f32 0.0, %v2370
  %v2372 = vpop.f32.mrb[0].mxu0
  %2373 = vmatprep.mubr.bf16.mxu0 0
  %2374 = vmatmul.mubr.bf16.gmra.mrb[0].mxu0 %v316
  %v2375 = vpop.f32.mrb[0].mxu0
  %v2376 = vadd.f32 0.0, %v2375
  %v2377 = vpop.f32.mrb[0].mxu0
  %v2378 = vpop.f32.mrb[0].mxu0
  %v2379 = vadd.f32 0.0, %v2378
  %v2380 = vpop.f32.mrb[0].mxu0
  %2381 = vmatprep.mubr.bf16.mxu0 0
  %2382 = vmatmul.mubr.bf16.gmra.mrb[0].mxu0 %v319
  %v2383 = vpop.f32.mrb[0].mxu0
  %v2384 = vadd.f32 0.0, %v2383
  %v2385 = vpop.f32.mrb[0].mxu0
  %v2386 = vpop.f32.mrb[0].mxu0
  %v2387 = vadd.f32 0.0, %v2386
  %v2388 = vpop.f32.mrb[0].mxu0
  %2389 = vmatprep.mubr.bf16.mxu0 0
  %2390 = vmatmul.mubr.bf16.gmra.mrb[0].mxu0 %v322
  %v2391 = vpop.f32.mrb[0].mxu0
  %v2392 = vadd.f32 0.0, %v2391
  %v2393 = vpop.f32.mrb[0].mxu0
  %v2394 = vpop.f32.mrb[0].mxu0
  %v2395 = vpop.f32.mrb[0].mxu0
  %2396 = vdwg.mxu0
  %s2397 = scalar_lea.vmem %s1, 672
  %v2398 = vld [vmem:[%s2397] sm:$0xf]
  %v2399 = vld [vmem:[%s2397 + $0x4] sm:$0xf]
  %v2400 = vld [vmem:[%s2397 + $0x8] sm:$0xf]
  %v2401 = vld [vmem:[%s2397 + $0xc] sm:$0xf]
  %v2402 = vld [vmem:[%s2397 + $0x10] sm:$0xf]
  %v2403 = vld [vmem:[%s2397 + $0x14] sm:$0xf]
  %v2404 = vld [vmem:[%s2397 + $0x18] sm:$0xf]
  %v2405 = vld [vmem:[%s2397 + $0x1c] sm:$0xf]
  %v2406 = vld [vmem:[%s2397 + $0x20] sm:$0xf]
  %v2407 = vld [vmem:[%s2397 + $0x24] sm:$0xf]
  %v2408 = vld [vmem:[%s2397 + $0x28] sm:$0xf]
  %v2409 = vld [vmem:[%s2397 + $0x2c] sm:$0xf]
  %v2422 = vunpack.c.l.b16 %v2398
  %v2423 = vunpack.c.l.b16 %v2399
  %v2424 = vunpack.c.l.b16 %v2400
  %v2425 = vunpack.c.l.b16 %v2401
  %v2426 = vunpack.c.l.b16 %v2402
  %v2427 = vunpack.c.l.b16 %v2403
  %v2428 = vunpack.c.l.b16 %v2404
  %v2429 = vunpack.c.l.b16 %v2405
  %v2430 = vunpack.c.l.b16 %v2406
  %v2431 = vunpack.c.l.b16 %v2407
  %v2432 = vunpack.c.l.b16 %v2408
  %v2433 = vunpack.c.l.b16 %v2409
  %v2434 = vpack.c.b16 %v2423, %v2422
  %v2435 = vpack.c.b16 %v2425, %v2424
  %v2436 = vpack.c.b16 %v2427, %v2426
  %v2437 = vpack.c.b16 %v2429, %v2428
  %v2438 = vpack.c.b16 %v2431, %v2430
  %v2439 = vpack.c.b16 %v2433, %v2432
  %2446 = vmatprep.subr.bf16.mxu0 0
  %2447 = vmatpush1.bf16.msra.mxu0 %v2434
  %2448 = vmatprep.subr.bf16.mxu0 0
  %2449 = vmatpush1.bf16.msra.mxu0 %v2435
  %2450 = vmatprep.subr.bf16.mxu0 0
  %2451 = vmatpush1.bf16.msra.mxu0 %v2436
  %2452 = vmatprep.subr.bf16.mxu0 0
  %2453 = vmatpush1.bf16.msra.mxu0 %v2437
  %2454 = vmatprep.subr.bf16.mxu0 0
  %2455 = vmatpush1.bf16.msra.mxu0 %v2438
  %2456 = vmatprep.subr.bf16.mxu0 0
  %2457 = vmatpush1.bf16.msra.mxu0 %v2439
  %2458 = vmatprep.subr.bf16.mxu0 0
  %2459 = vmatpush1.bf16.msra.mxu0 0
  %2460 = vmatprep.subr.bf16.mxu0 0
  %2461 = vmatpush1.bf16.msra.mxu0 0
  %2462 = vmatprep.subr.bf16.mxu0 0
  %2463 = vmatpush1.bf16.msra.mxu0 0
  %2464 = vmatprep.subr.bf16.mxu0 0
  %2465 = vmatpush1.bf16.msra.mxu0 0
  %2466 = vmatprep.subr.bf16.mxu0 0
  %2467 = vmatpush1.bf16.msra.mxu0 0
  %2468 = vmatprep.subr.bf16.mxu0 0
  %2469 = vmatpush1.bf16.msra.mxu0 0
  %2470 = vmatprep.subr.bf16.mxu0 0
  %2471 = vmatpush1.bf16.msra.mxu0 0
  %2472 = vmatprep.subr.bf16.mxu0 0
  %2473 = vmatpush1.bf16.msra.mxu0 0
  %2474 = vmatprep.subr.bf16.mxu0 0
  %2475 = vmatpush1.bf16.msra.mxu0 0
  %2476 = vmatprep.subr.bf16.mxu0 0
  %2477 = vmatpush1.bf16.msra.mxu0 0
  %2478 = vmatprep.mubr.bf16.mxu0 0
  %2479 = vmatmul.mubr.bf16.gmra.mrb[0].mxu0 %v456
  %v2480 = vpop.f32.mrb[0].mxu0
  %v2481 = vadd.f32 0.0, %v2480
  %v2482 = vpop.f32.mrb[0].mxu0
  %v2483 = vpop.f32.mrb[0].mxu0
  %v2484 = vadd.f32 0.0, %v2483
  %v2485 = vpop.f32.mrb[0].mxu0
  %2486 = vmatprep.mubr.bf16.mxu0 0
  %2487 = vmatmul.mubr.bf16.gmra.mrb[0].mxu0 %v459
  %v2488 = vpop.f32.mrb[0].mxu0
  %v2489 = vadd.f32 0.0, %v2488
  %v2490 = vpop.f32.mrb[0].mxu0
  %v2491 = vpop.f32.mrb[0].mxu0
  %v2492 = vadd.f32 0.0, %v2491
  %v2493 = vpop.f32.mrb[0].mxu0
  %2494 = vmatprep.mubr.bf16.mxu0 0
  %2495 = vmatmul.mubr.bf16.gmra.mrb[0].mxu0 %v462
  %v2496 = vpop.f32.mrb[0].mxu0
  %v2497 = vadd.f32 0.0, %v2496
  %v2498 = vpop.f32.mrb[0].mxu0
  %v2499 = vpop.f32.mrb[0].mxu0
  %v2500 = vadd.f32 0.0, %v2499
  %v2501 = vpop.f32.mrb[0].mxu0
  %2502 = vmatprep.mubr.bf16.mxu0 0
  %2503 = vmatmul.mubr.bf16.gmra.mrb[0].mxu0 %v465
  %v2504 = vpop.f32.mrb[0].mxu0
  %v2505 = vadd.f32 0.0, %v2504
  %v2506 = vpop.f32.mrb[0].mxu0
  %v2507 = vpop.f32.mrb[0].mxu0
  %v2508 = vpop.f32.mrb[0].mxu0
  %2509 = vdwg.mxu0
  %v2522 = vunpack.c.l.b16 %v2146
  %v2523 = vunpack.c.l.b16 %v2147
  %v2524 = vunpack.c.l.b16 %v2148
  %v2525 = vunpack.c.l.b16 %v2149
  %v2526 = vunpack.c.l.b16 %v2150
  %v2527 = vunpack.c.l.b16 %v2151
  %v2528 = vunpack.c.l.b16 %v2152
  %v2529 = vunpack.c.l.b16 %v2153
  %v2530 = vunpack.c.l.b16 %v2154
  %v2531 = vunpack.c.l.b16 %v2155
  %v2532 = vunpack.c.l.b16 %v2156
  %v2533 = vunpack.c.l.b16 %v2157
  %v2534 = vpack.c.b16 %v2523, %v2522
  %v2535 = vpack.c.b16 %v2525, %v2524
  %v2536 = vpack.c.b16 %v2527, %v2526
  %v2537 = vpack.c.b16 %v2529, %v2528
  %v2538 = vpack.c.b16 %v2531, %v2530
  %v2539 = vpack.c.b16 %v2533, %v2532
  %2546 = vmatprep.subr.bf16.mxu0 0
  %2547 = vmatpush1.bf16.msra.mxu0 %v2534
  %2548 = vmatprep.subr.bf16.mxu0 0
  %2549 = vmatpush1.bf16.msra.mxu0 %v2535
  %2550 = vmatprep.subr.bf16.mxu0 0
  %2551 = vmatpush1.bf16.msra.mxu0 %v2536
  %2552 = vmatprep.subr.bf16.mxu0 0
  %2553 = vmatpush1.bf16.msra.mxu0 %v2537
  %2554 = vmatprep.subr.bf16.mxu0 0
  %2555 = vmatpush1.bf16.msra.mxu0 %v2538
  %2556 = vmatprep.subr.bf16.mxu0 0
  %2557 = vmatpush1.bf16.msra.mxu0 %v2539
  %2558 = vmatprep.subr.bf16.mxu0 0
  %2559 = vmatpush1.bf16.msra.mxu0 0
  %2560 = vmatprep.subr.bf16.mxu0 0
  %2561 = vmatpush1.bf16.msra.mxu0 0
  %2562 = vmatprep.subr.bf16.mxu0 0
  %2563 = vmatpush1.bf16.msra.mxu0 0
  %2564 = vmatprep.subr.bf16.mxu0 0
  %2565 = vmatpush1.bf16.msra.mxu0 0
  %2566 = vmatprep.subr.bf16.mxu0 0
  %2567 = vmatpush1.bf16.msra.mxu0 0
  %2568 = vmatprep.subr.bf16.mxu0 0
  %2569 = vmatpush1.bf16.msra.mxu0 0
  %2570 = vmatprep.subr.bf16.mxu0 0
  %2571 = vmatpush1.bf16.msra.mxu0 0
  %2572 = vmatprep.subr.bf16.mxu0 0
  %2573 = vmatpush1.bf16.msra.mxu0 0
  %2574 = vmatprep.subr.bf16.mxu0 0
  %2575 = vmatpush1.bf16.msra.mxu0 0
  %2576 = vmatprep.subr.bf16.mxu0 0
  %2577 = vmatpush1.bf16.msra.mxu0 0
  %2578 = vmatprep.mubr.bf16.mxu0 0
  %2579 = vmatmul.mubr.bf16.gmra.mrb[0].mxu0 %v574
  %v2580 = vpop.f32.mrb[0].mxu0
  %v2581 = vadd.f32 %v2242, %v2580
  %v2582 = vpop.f32.mrb[0].mxu0
  %v2583 = vpop.f32.mrb[0].mxu0
  %v2584 = vadd.f32 %v2245, %v2583
  %v2585 = vpop.f32.mrb[0].mxu0
  %2586 = vmatprep.mubr.bf16.mxu0 0
  %2587 = vmatmul.mubr.bf16.gmra.mrb[0].mxu0 %v577
  %v2588 = vpop.f32.mrb[0].mxu0
  %v2589 = vadd.f32 %v2250, %v2588
  %v2590 = vpop.f32.mrb[0].mxu0
  %v2591 = vpop.f32.mrb[0].mxu0
  %v2592 = vadd.f32 %v2253, %v2591
  %v2593 = vpop.f32.mrb[0].mxu0
  %2594 = vmatprep.mubr.bf16.mxu0 0
  %2595 = vmatmul.mubr.bf16.gmra.mrb[0].mxu0 %v580
  %v2596 = vpop.f32.mrb[0].mxu0
  %v2597 = vadd.f32 %v2258, %v2596
  %v2598 = vpop.f32.mrb[0].mxu0
  %v2599 = vpop.f32.mrb[0].mxu0
  %v2600 = vadd.f32 %v2261, %v2599
  %v2601 = vpop.f32.mrb[0].mxu0
  %2602 = vmatprep.mubr.bf16.mxu0 0
  %2603 = vmatmul.mubr.bf16.gmra.mrb[0].mxu0 %v583
  %v2604 = vpop.f32.mrb[0].mxu0
  %v2605 = vadd.f32 %v2266, %v2604
  %v2606 = vpop.f32.mrb[0].mxu0
  %v2607 = vpop.f32.mrb[0].mxu0
  %v2608 = vpop.f32.mrb[0].mxu0
  %2609 = vdwg.mxu0
  %v2622 = vunpack.c.l.b16 %v2272
  %v2623 = vunpack.c.l.b16 %v2273
  %v2624 = vunpack.c.l.b16 %v2274
  %v2625 = vunpack.c.l.b16 %v2275
  %v2626 = vunpack.c.l.b16 %v2276
  %v2627 = vunpack.c.l.b16 %v2277
  %v2628 = vunpack.c.l.b16 %v2278
  %v2629 = vunpack.c.l.b16 %v2279
  %v2630 = vunpack.c.l.b16 %v2280
  %v2631 = vunpack.c.l.b16 %v2281
  %v2632 = vunpack.c.l.b16 %v2282
  %v2633 = vunpack.c.l.b16 %v2283
  %v2634 = vpack.c.b16 %v2623, %v2622
  %v2635 = vpack.c.b16 %v2625, %v2624
  %v2636 = vpack.c.b16 %v2627, %v2626
  %v2637 = vpack.c.b16 %v2629, %v2628
  %v2638 = vpack.c.b16 %v2631, %v2630
  %v2639 = vpack.c.b16 %v2633, %v2632
  %2646 = vmatprep.subr.bf16.mxu0 0
  %2647 = vmatpush1.bf16.msra.mxu0 %v2634
  %2648 = vmatprep.subr.bf16.mxu0 0
  %2649 = vmatpush1.bf16.msra.mxu0 %v2635
  %2650 = vmatprep.subr.bf16.mxu0 0
  %2651 = vmatpush1.bf16.msra.mxu0 %v2636
  %2652 = vmatprep.subr.bf16.mxu0 0
  %2653 = vmatpush1.bf16.msra.mxu0 %v2637
  %2654 = vmatprep.subr.bf16.mxu0 0
  %2655 = vmatpush1.bf16.msra.mxu0 %v2638
  %2656 = vmatprep.subr.bf16.mxu0 0
  %2657 = vmatpush1.bf16.msra.mxu0 %v2639
  %2658 = vmatprep.subr.bf16.mxu0 0
  %2659 = vmatpush1.bf16.msra.mxu0 0
  %2660 = vmatprep.subr.bf16.mxu0 0
  %2661 = vmatpush1.bf16.msra.mxu0 0
  %2662 = vmatprep.subr.bf16.mxu0 0
  %2663 = vmatpush1.bf16.msra.mxu0 0
  %2664 = vmatprep.subr.bf16.mxu0 0
  %2665 = vmatpush1.bf16.msra.mxu0 0
  %2666 = vmatprep.subr.bf16.mxu0 0
  %2667 = vmatpush1.bf16.msra.mxu0 0
  %2668 = vmatprep.subr.bf16.mxu0 0
  %2669 = vmatpush1.bf16.msra.mxu0 0
  %2670 = vmatprep.subr.bf16.mxu0 0
  %2671 = vmatpush1.bf16.msra.mxu0 0
  %2672 = vmatprep.subr.bf16.mxu0 0
  %2673 = vmatpush1.bf16.msra.mxu0 0
  %2674 = vmatprep.subr.bf16.mxu0 0
  %2675 = vmatpush1.bf16.msra.mxu0 0
  %2676 = vmatprep.subr.bf16.mxu0 0
  %2677 = vmatpush1.bf16.msra.mxu0 0
  %2678 = vmatprep.mubr.bf16.mxu0 0
  %2679 = vmatmul.mubr.bf16.gmra.mrb[0].mxu0 %v704
  %v2680 = vpop.f32.mrb[0].mxu0
  %v2681 = vadd.f32 %v2368, %v2680
  %v2682 = vpop.f32.mrb[0].mxu0
  %v2683 = vpop.f32.mrb[0].mxu0
  %v2684 = vadd.f32 %v2371, %v2683
  %v2685 = vpop.f32.mrb[0].mxu0
  %2686 = vmatprep.mubr.bf16.mxu0 0
  %2687 = vmatmul.mubr.bf16.gmra.mrb[0].mxu0 %v707
  %v2688 = vpop.f32.mrb[0].mxu0
  %v2689 = vadd.f32 %v2376, %v2688
  %v2690 = vpop.f32.mrb[0].mxu0
  %v2691 = vpop.f32.mrb[0].mxu0
  %v2692 = vadd.f32 %v2379, %v2691
  %v2693 = vpop.f32.mrb[0].mxu0
  %2694 = vmatprep.mubr.bf16.mxu0 0
  %2695 = vmatmul.mubr.bf16.gmra.mrb[0].mxu0 %v710
  %v2696 = vpop.f32.mrb[0].mxu0
  %v2697 = vadd.f32 %v2384, %v2696
  %v2698 = vpop.f32.mrb[0].mxu0
  %v2699 = vpop.f32.mrb[0].mxu0
  %v2700 = vadd.f32 %v2387, %v2699
  %v2701 = vpop.f32.mrb[0].mxu0
  %2702 = vmatprep.mubr.bf16.mxu0 0
  %2703 = vmatmul.mubr.bf16.gmra.mrb[0].mxu0 %v713
  %v2704 = vpop.f32.mrb[0].mxu0
  %v2705 = vadd.f32 %v2392, %v2704
  %v2706 = vpop.f32.mrb[0].mxu0
  %v2707 = vpop.f32.mrb[0].mxu0
  %v2708 = vpop.f32.mrb[0].mxu0
  %2709 = vdwg.mxu0
  %v2710 = vadd.f32 %v2581, %v2681
  %v2711 = vadd.f32 %v2584, %v2684
  %v2712 = vadd.f32 %v2589, %v2689
  %v2713 = vadd.f32 %v2592, %v2692
  %v2714 = vadd.f32 %v2597, %v2697
  %v2715 = vadd.f32 %v2600, %v2700
  %v2716 = vadd.f32 %v2605, %v2705
  %v2717 = vadd.f32 %v2710, %v2481
  %v2718 = vadd.f32 %v2711, %v2484
  %v2719 = vadd.f32 %v2712, %v2489
  %v2720 = vadd.f32 %v2713, %v2492
  %v2721 = vadd.f32 %v2714, %v2497
  %v2722 = vadd.f32 %v2715, %v2500
  %v2723 = vadd.f32 %v2716, %v2505
  %v2724 = vadd.f32 %v2717, %v797
  %v2725 = vadd.f32 %v2718, %v797
  %v2726 = vadd.f32 %v2719, %v797
  %v2727 = vadd.f32 %v2720, %v797
  %v2728 = vadd.f32 %v2721, %v797
  %v2729 = vadd.f32 %v2722, %v797
  %v2730 = vadd.f32 %v2723, %v797
  %v2731 = vmax.f32 %v2724, 0.0
  %v2732 = vmax.f32 %v2725, 0.0
  %v2733 = vmax.f32 %v2726, 0.0
  %v2734 = vmax.f32 %v2727, 0.0
  %v2735 = vmax.f32 %v2728, 0.0
  %v2736 = vmax.f32 %v2729, 0.0
  %v2737 = vmax.f32 %v2730, 0.0
  %s2738 = scalar_lea.vmem %s1, 720
  %v2739 = vld [vmem:[%s2738] sm:$0xf]
  %v2740 = vld [vmem:[%s2738 + $0x4] sm:$0xf]
  %v2741 = vld [vmem:[%s2738 + $0x8] sm:$0xf]
  %v2742 = vld [vmem:[%s2738 + $0xc] sm:$0xf]
  %v2743 = vld [vmem:[%s2738 + $0x10] sm:$0xf]
  %v2744 = vld [vmem:[%s2738 + $0x14] sm:$0xf]
  %v2745 = vld [vmem:[%s2738 + $0x18] sm:$0xf]
  %v2746 = vld [vmem:[%s2738 + $0x1c] sm:$0xf]
  %v2747 = vld [vmem:[%s2738 + $0x20] sm:$0xf]
  %v2748 = vld [vmem:[%s2738 + $0x24] sm:$0xf]
  %v2749 = vld [vmem:[%s2738 + $0x28] sm:$0xf]
  %v2750 = vld [vmem:[%s2738 + $0x2c] sm:$0xf]
  %s2751 = scalar_lea.vmem %s1, 768
  %v2752 = vld [vmem:[%s2751] sm:$0xf]
  %v2753 = vld [vmem:[%s2751 + $0x4] sm:$0xf]
  %v2754 = vld [vmem:[%s2751 + $0x8] sm:$0xf]
  %v2755 = vld [vmem:[%s2751 + $0xc] sm:$0xf]
  %v2756 = vld [vmem:[%s2751 + $0x10] sm:$0xf]
  %v2757 = vld [vmem:[%s2751 + $0x14] sm:$0xf]
  %v2758 = vld [vmem:[%s2751 + $0x18] sm:$0xf]
  %v2759 = vld [vmem:[%s2751 + $0x1c] sm:$0xf]
  %v2760 = vld [vmem:[%s2751 + $0x20] sm:$0xf]
  %v2761 = vld [vmem:[%s2751 + $0x24] sm:$0xf]
  %v2762 = vld [vmem:[%s2751 + $0x28] sm:$0xf]
  %v2763 = vld [vmem:[%s2751 + $0x2c] sm:$0xf]
  %v2776 = vunpack.c.l.b16 %v2752
  %v2777 = vunpack.c.l.b16 %v2753
  %v2778 = vunpack.c.l.b16 %v2754
  %v2779 = vunpack.c.l.b16 %v2755
  %v2780 = vunpack.c.l.b16 %v2756
  %v2781 = vunpack.c.l.b16 %v2757
  %v2782 = vunpack.c.l.b16 %v2758
  %v2783 = vunpack.c.l.b16 %v2759
  %v2784 = vunpack.c.l.b16 %v2760
  %v2785 = vunpack.c.l.b16 %v2761
  %v2786 = vunpack.c.l.b16 %v2762
  %v2787 = vunpack.c.l.b16 %v2763
  %v2788 = vpack.c.b16 %v2777, %v2776
  %v2789 = vpack.c.b16 %v2779, %v2778
  %v2790 = vpack.c.b16 %v2781, %v2780
  %v2791 = vpack.c.b16 %v2783, %v2782
  %v2792 = vpack.c.b16 %v2785, %v2784
  %v2793 = vpack.c.b16 %v2787, %v2786
  %2800 = vmatprep.subr.bf16.mxu0 0
  %2801 = vmatpush1.bf16.msra.mxu0 %v2788
  %2802 = vmatprep.subr.bf16.mxu0 0
  %2803 = vmatpush1.bf16.msra.mxu0 %v2789
  %2804 = vmatprep.subr.bf16.mxu0 0
  %2805 = vmatpush1.bf16.msra.mxu0 %v2790
  %2806 = vmatprep.subr.bf16.mxu0 0
  %2807 = vmatpush1.bf16.msra.mxu0 %v2791
  %2808 = vmatprep.subr.bf16.mxu0 0
  %2809 = vmatpush1.bf16.msra.mxu0 %v2792
  %2810 = vmatprep.subr.bf16.mxu0 0
  %2811 = vmatpush1.bf16.msra.mxu0 %v2793
  %2812 = vmatprep.subr.bf16.mxu0 0
  %2813 = vmatpush1.bf16.msra.mxu0 0
  %2814 = vmatprep.subr.bf16.mxu0 0
  %2815 = vmatpush1.bf16.msra.mxu0 0
  %2816 = vmatprep.subr.bf16.mxu0 0
  %2817 = vmatpush1.bf16.msra.mxu0 0
  %2818 = vmatprep.subr.bf16.mxu0 0
  %2819 = vmatpush1.bf16.msra.mxu0 0
  %2820 = vmatprep.subr.bf16.mxu0 0
  %2821 = vmatpush1.bf16.msra.mxu0 0
  %2822 = vmatprep.subr.bf16.mxu0 0
  %2823 = vmatpush1.bf16.msra.mxu0 0
  %2824 = vmatprep.subr.bf16.mxu0 0
  %2825 = vmatpush1.bf16.msra.mxu0 0
  %2826 = vmatprep.subr.bf16.mxu0 0
  %2827 = vmatpush1.bf16.msra.mxu0 0
  %2828 = vmatprep.subr.bf16.mxu0 0
  %2829 = vmatpush1.bf16.msra.mxu0 0
  %2830 = vmatprep.subr.bf16.mxu0 0
  %2831 = vmatpush1.bf16.msra.mxu0 0
  %2832 = vmatprep.mubr.bf16.mxu0 0
  %2833 = vmatmul.mubr.bf16.gmra.mrb[0].mxu0 %v157
  %v2834 = vpop.f32.mrb[0].mxu0
  %v2835 = vadd.f32 0.0, %v2834
  %v2836 = vpop.f32.mrb[0].mxu0
  %v2837 = vpop.f32.mrb[0].mxu0
  %v2838 = vadd.f32 0.0, %v2837
  %v2839 = vpop.f32.mrb[0].mxu0
  %2840 = vmatprep.mubr.bf16.mxu0 0
  %2841 = vmatmul.mubr.bf16.gmra.mrb[0].mxu0 %v160
  %v2842 = vpop.f32.mrb[0].mxu0
  %v2843 = vadd.f32 0.0, %v2842
  %v2844 = vpop.f32.mrb[0].mxu0
  %v2845 = vpop.f32.mrb[0].mxu0
  %v2846 = vadd.f32 0.0, %v2845
  %v2847 = vpop.f32.mrb[0].mxu0
  %2848 = vmatprep.mubr.bf16.mxu0 0
  %2849 = vmatmul.mubr.bf16.gmra.mrb[0].mxu0 %v163
  %v2850 = vpop.f32.mrb[0].mxu0
  %v2851 = vadd.f32 0.0, %v2850
  %v2852 = vpop.f32.mrb[0].mxu0
  %v2853 = vpop.f32.mrb[0].mxu0
  %v2854 = vadd.f32 0.0, %v2853
  %v2855 = vpop.f32.mrb[0].mxu0
  %2856 = vmatprep.mubr.bf16.mxu0 0
  %2857 = vmatmul.mubr.bf16.gmra.mrb[0].mxu0 %v166
  %v2858 = vpop.f32.mrb[0].mxu0
  %v2859 = vadd.f32 0.0, %v2858
  %v2860 = vpop.f32.mrb[0].mxu0
  %v2861 = vpop.f32.mrb[0].mxu0
  %v2862 = vpop.f32.mrb[0].mxu0
  %2863 = vdwg.mxu0
  %s2864 = scalar_lea.vmem %s1, 816
  %v2865 = vld [vmem:[%s2864] sm:$0xf]
  %v2866 = vld [vmem:[%s2864 + $0x4] sm:$0xf]
  %v2867 = vld [vmem:[%s2864 + $0x8] sm:$0xf]
  %v2868 = vld [vmem:[%s2864 + $0xc] sm:$0xf]
  %v2869 = vld [vmem:[%s2864 + $0x10] sm:$0xf]
  %v2870 = vld [vmem:[%s2864 + $0x14] sm:$0xf]
  %v2871 = vld [vmem:[%s2864 + $0x18] sm:$0xf]
  %v2872 = vld [vmem:[%s2864 + $0x1c] sm:$0xf]
  %v2873 = vld [vmem:[%s2864 + $0x20] sm:$0xf]
  %v2874 = vld [vmem:[%s2864 + $0x24] sm:$0xf]
  %v2875 = vld [vmem:[%s2864 + $0x28] sm:$0xf]
  %v2876 = vld [vmem:[%s2864 + $0x2c] sm:$0xf]
  %s2877 = scalar_lea.vmem %s1, 864
  %v2878 = vld [vmem:[%s2877] sm:$0xf]
  %v2879 = vld [vmem:[%s2877 + $0x4] sm:$0xf]
  %v2880 = vld [vmem:[%s2877 + $0x8] sm:$0xf]
  %v2881 = vld [vmem:[%s2877 + $0xc] sm:$0xf]
  %v2882 = vld [vmem:[%s2877 + $0x10] sm:$0xf]
  %v2883 = vld [vmem:[%s2877 + $0x14] sm:$0xf]
  %v2884 = vld [vmem:[%s2877 + $0x18] sm:$0xf]
  %v2885 = vld [vmem:[%s2877 + $0x1c] sm:$0xf]
  %v2886 = vld [vmem:[%s2877 + $0x20] sm:$0xf]
  %v2887 = vld [vmem:[%s2877 + $0x24] sm:$0xf]
  %v2888 = vld [vmem:[%s2877 + $0x28] sm:$0xf]
  %v2889 = vld [vmem:[%s2877 + $0x2c] sm:$0xf]
  %v2902 = vunpack.c.l.b16 %v2878
  %v2903 = vunpack.c.l.b16 %v2879
  %v2904 = vunpack.c.l.b16 %v2880
  %v2905 = vunpack.c.l.b16 %v2881
  %v2906 = vunpack.c.l.b16 %v2882
  %v2907 = vunpack.c.l.b16 %v2883
  %v2908 = vunpack.c.l.b16 %v2884
  %v2909 = vunpack.c.l.b16 %v2885
  %v2910 = vunpack.c.l.b16 %v2886
  %v2911 = vunpack.c.l.b16 %v2887
  %v2912 = vunpack.c.l.b16 %v2888
  %v2913 = vunpack.c.l.b16 %v2889
  %v2914 = vpack.c.b16 %v2903, %v2902
  %v2915 = vpack.c.b16 %v2905, %v2904
  %v2916 = vpack.c.b16 %v2907, %v2906
  %v2917 = vpack.c.b16 %v2909, %v2908
  %v2918 = vpack.c.b16 %v2911, %v2910
  %v2919 = vpack.c.b16 %v2913, %v2912
  %2926 = vmatprep.subr.bf16.mxu0 0
  %2927 = vmatpush1.bf16.msra.mxu0 %v2914
  %2928 = vmatprep.subr.bf16.mxu0 0
  %2929 = vmatpush1.bf16.msra.mxu0 %v2915
  %2930 = vmatprep.subr.bf16.mxu0 0
  %2931 = vmatpush1.bf16.msra.mxu0 %v2916
  %2932 = vmatprep.subr.bf16.mxu0 0
  %2933 = vmatpush1.bf16.msra.mxu0 %v2917
  %2934 = vmatprep.subr.bf16.mxu0 0
  %2935 = vmatpush1.bf16.msra.mxu0 %v2918
  %2936 = vmatprep.subr.bf16.mxu0 0
  %2937 = vmatpush1.bf16.msra.mxu0 %v2919
  %2938 = vmatprep.subr.bf16.mxu0 0
  %2939 = vmatpush1.bf16.msra.mxu0 0
  %2940 = vmatprep.subr.bf16.mxu0 0
  %2941 = vmatpush1.bf16.msra.mxu0 0
  %2942 = vmatprep.subr.bf16.mxu0 0
  %2943 = vmatpush1.bf16.msra.mxu0 0
  %2944 = vmatprep.subr.bf16.mxu0 0
  %2945 = vmatpush1.bf16.msra.mxu0 0
  %2946 = vmatprep.subr.bf16.mxu0 0
  %2947 = vmatpush1.bf16.msra.mxu0 0
  %2948 = vmatprep.subr.bf16.mxu0 0
  %2949 = vmatpush1.bf16.msra.mxu0 0
  %2950 = vmatprep.subr.bf16.mxu0 0
  %2951 = vmatpush1.bf16.msra.mxu0 0
  %2952 = vmatprep.subr.bf16.mxu0 0
  %2953 = vmatpush1.bf16.msra.mxu0 0
  %2954 = vmatprep.subr.bf16.mxu0 0
  %2955 = vmatpush1.bf16.msra.mxu0 0
  %2956 = vmatprep.subr.bf16.mxu0 0
  %2957 = vmatpush1.bf16.msra.mxu0 0
  %2958 = vmatprep.mubr.bf16.mxu0 0
  %2959 = vmatmul.mubr.bf16.gmra.mrb[0].mxu0 %v313
  %v2960 = vpop.f32.mrb[0].mxu0
  %v2961 = vadd.f32 0.0, %v2960
  %v2962 = vpop.f32.mrb[0].mxu0
  %v2963 = vpop.f32.mrb[0].mxu0
  %v2964 = vadd.f32 0.0, %v2963
  %v2965 = vpop.f32.mrb[0].mxu0
  %2966 = vmatprep.mubr.bf16.mxu0 0
  %2967 = vmatmul.mubr.bf16.gmra.mrb[0].mxu0 %v316
  %v2968 = vpop.f32.mrb[0].mxu0
  %v2969 = vadd.f32 0.0, %v2968
  %v2970 = vpop.f32.mrb[0].mxu0
  %v2971 = vpop.f32.mrb[0].mxu0
  %v2972 = vadd.f32 0.0, %v2971
  %v2973 = vpop.f32.mrb[0].mxu0
  %2974 = vmatprep.mubr.bf16.mxu0 0
  %2975 = vmatmul.mubr.bf16.gmra.mrb[0].mxu0 %v319
  %v2976 = vpop.f32.mrb[0].mxu0
  %v2977 = vadd.f32 0.0, %v2976
  %v2978 = vpop.f32.mrb[0].mxu0
  %v2979 = vpop.f32.mrb[0].mxu0
  %v2980 = vadd.f32 0.0, %v2979
  %v2981 = vpop.f32.mrb[0].mxu0
  %2982 = vmatprep.mubr.bf16.mxu0 0
  %2983 = vmatmul.mubr.bf16.gmra.mrb[0].mxu0 %v322
  %v2984 = vpop.f32.mrb[0].mxu0
  %v2985 = vadd.f32 0.0, %v2984
  %v2986 = vpop.f32.mrb[0].mxu0
  %v2987 = vpop.f32.mrb[0].mxu0
  %v2988 = vpop.f32.mrb[0].mxu0
  %2989 = vdwg.mxu0
  %s2990 = scalar_lea.vmem %s1, 912
  %v2991 = vld [vmem:[%s2990] sm:$0xf]
  %v2992 = vld [vmem:[%s2990 + $0x4] sm:$0xf]
  %v2993 = vld [vmem:[%s2990 + $0x8] sm:$0xf]
  %v2994 = vld [vmem:[%s2990 + $0xc] sm:$0xf]
  %v2995 = vld [vmem:[%s2990 + $0x10] sm:$0xf]
  %v2996 = vld [vmem:[%s2990 + $0x14] sm:$0xf]
  %v2997 = vld [vmem:[%s2990 + $0x18] sm:$0xf]
  %v2998 = vld [vmem:[%s2990 + $0x1c] sm:$0xf]
  %v2999 = vld [vmem:[%s2990 + $0x20] sm:$0xf]
  %v3000 = vld [vmem:[%s2990 + $0x24] sm:$0xf]
  %v3001 = vld [vmem:[%s2990 + $0x28] sm:$0xf]
  %v3002 = vld [vmem:[%s2990 + $0x2c] sm:$0xf]
  %v3015 = vunpack.c.l.b16 %v2991
  %v3016 = vunpack.c.l.b16 %v2992
  %v3017 = vunpack.c.l.b16 %v2993
  %v3018 = vunpack.c.l.b16 %v2994
  %v3019 = vunpack.c.l.b16 %v2995
  %v3020 = vunpack.c.l.b16 %v2996
  %v3021 = vunpack.c.l.b16 %v2997
  %v3022 = vunpack.c.l.b16 %v2998
  %v3023 = vunpack.c.l.b16 %v2999
  %v3024 = vunpack.c.l.b16 %v3000
  %v3025 = vunpack.c.l.b16 %v3001
  %v3026 = vunpack.c.l.b16 %v3002
  %v3027 = vpack.c.b16 %v3016, %v3015
  %v3028 = vpack.c.b16 %v3018, %v3017
  %v3029 = vpack.c.b16 %v3020, %v3019
  %v3030 = vpack.c.b16 %v3022, %v3021
  %v3031 = vpack.c.b16 %v3024, %v3023
  %v3032 = vpack.c.b16 %v3026, %v3025
  %3039 = vmatprep.subr.bf16.mxu0 0
  %3040 = vmatpush1.bf16.msra.mxu0 %v3027
  %3041 = vmatprep.subr.bf16.mxu0 0
  %3042 = vmatpush1.bf16.msra.mxu0 %v3028
  %3043 = vmatprep.subr.bf16.mxu0 0
  %3044 = vmatpush1.bf16.msra.mxu0 %v3029
  %3045 = vmatprep.subr.bf16.mxu0 0
  %3046 = vmatpush1.bf16.msra.mxu0 %v3030
  %3047 = vmatprep.subr.bf16.mxu0 0
  %3048 = vmatpush1.bf16.msra.mxu0 %v3031
  %3049 = vmatprep.subr.bf16.mxu0 0
  %3050 = vmatpush1.bf16.msra.mxu0 %v3032
  %3051 = vmatprep.subr.bf16.mxu0 0
  %3052 = vmatpush1.bf16.msra.mxu0 0
  %3053 = vmatprep.subr.bf16.mxu0 0
  %3054 = vmatpush1.bf16.msra.mxu0 0
  %3055 = vmatprep.subr.bf16.mxu0 0
  %3056 = vmatpush1.bf16.msra.mxu0 0
  %3057 = vmatprep.subr.bf16.mxu0 0
  %3058 = vmatpush1.bf16.msra.mxu0 0
  %3059 = vmatprep.subr.bf16.mxu0 0
  %3060 = vmatpush1.bf16.msra.mxu0 0
  %3061 = vmatprep.subr.bf16.mxu0 0
  %3062 = vmatpush1.bf16.msra.mxu0 0
  %3063 = vmatprep.subr.bf16.mxu0 0
  %3064 = vmatpush1.bf16.msra.mxu0 0
  %3065 = vmatprep.subr.bf16.mxu0 0
  %3066 = vmatpush1.bf16.msra.mxu0 0
  %3067 = vmatprep.subr.bf16.mxu0 0
  %3068 = vmatpush1.bf16.msra.mxu0 0
  %3069 = vmatprep.subr.bf16.mxu0 0
  %3070 = vmatpush1.bf16.msra.mxu0 0
  %3071 = vmatprep.mubr.bf16.mxu0 0
  %3072 = vmatmul.mubr.bf16.gmra.mrb[0].mxu0 %v456
  %v3073 = vpop.f32.mrb[0].mxu0
  %v3074 = vadd.f32 0.0, %v3073
  %v3075 = vpop.f32.mrb[0].mxu0
  %v3076 = vpop.f32.mrb[0].mxu0
  %v3077 = vadd.f32 0.0, %v3076
  %v3078 = vpop.f32.mrb[0].mxu0
  %3079 = vmatprep.mubr.bf16.mxu0 0
  %3080 = vmatmul.mubr.bf16.gmra.mrb[0].mxu0 %v459
  %v3081 = vpop.f32.mrb[0].mxu0
  %v3082 = vadd.f32 0.0, %v3081
  %v3083 = vpop.f32.mrb[0].mxu0
  %v3084 = vpop.f32.mrb[0].mxu0
  %v3085 = vadd.f32 0.0, %v3084
  %v3086 = vpop.f32.mrb[0].mxu0
  %3087 = vmatprep.mubr.bf16.mxu0 0
  %3088 = vmatmul.mubr.bf16.gmra.mrb[0].mxu0 %v462
  %v3089 = vpop.f32.mrb[0].mxu0
  %v3090 = vadd.f32 0.0, %v3089
  %v3091 = vpop.f32.mrb[0].mxu0
  %v3092 = vpop.f32.mrb[0].mxu0
  %v3093 = vadd.f32 0.0, %v3092
  %v3094 = vpop.f32.mrb[0].mxu0
  %3095 = vmatprep.mubr.bf16.mxu0 0
  %3096 = vmatmul.mubr.bf16.gmra.mrb[0].mxu0 %v465
  %v3097 = vpop.f32.mrb[0].mxu0
  %v3098 = vadd.f32 0.0, %v3097
  %v3099 = vpop.f32.mrb[0].mxu0
  %v3100 = vpop.f32.mrb[0].mxu0
  %v3101 = vpop.f32.mrb[0].mxu0
  %3102 = vdwg.mxu0
  %v3115 = vunpack.c.l.b16 %v2739
  %v3116 = vunpack.c.l.b16 %v2740
  %v3117 = vunpack.c.l.b16 %v2741
  %v3118 = vunpack.c.l.b16 %v2742
  %v3119 = vunpack.c.l.b16 %v2743
  %v3120 = vunpack.c.l.b16 %v2744
  %v3121 = vunpack.c.l.b16 %v2745
  %v3122 = vunpack.c.l.b16 %v2746
  %v3123 = vunpack.c.l.b16 %v2747
  %v3124 = vunpack.c.l.b16 %v2748
  %v3125 = vunpack.c.l.b16 %v2749
  %v3126 = vunpack.c.l.b16 %v2750
  %v3127 = vpack.c.b16 %v3116, %v3115
  %v3128 = vpack.c.b16 %v3118, %v3117
  %v3129 = vpack.c.b16 %v3120, %v3119
  %v3130 = vpack.c.b16 %v3122, %v3121
  %v3131 = vpack.c.b16 %v3124, %v3123
  %v3132 = vpack.c.b16 %v3126, %v3125
  %3139 = vmatprep.subr.bf16.mxu0 0
  %3140 = vmatpush1.bf16.msra.mxu0 %v3127
  %3141 = vmatprep.subr.bf16.mxu0 0
  %3142 = vmatpush1.bf16.msra.mxu0 %v3128
  %3143 = vmatprep.subr.bf16.mxu0 0
  %3144 = vmatpush1.bf16.msra.mxu0 %v3129
  %3145 = vmatprep.subr.bf16.mxu0 0
  %3146 = vmatpush1.bf16.msra.mxu0 %v3130
  %3147 = vmatprep.subr.bf16.mxu0 0
  %3148 = vmatpush1.bf16.msra.mxu0 %v3131
  %3149 = vmatprep.subr.bf16.mxu0 0
  %3150 = vmatpush1.bf16.msra.mxu0 %v3132
  %3151 = vmatprep.subr.bf16.mxu0 0
  %3152 = vmatpush1.bf16.msra.mxu0 0
  %3153 = vmatprep.subr.bf16.mxu0 0
  %3154 = vmatpush1.bf16.msra.mxu0 0
  %3155 = vmatprep.subr.bf16.mxu0 0
  %3156 = vmatpush1.bf16.msra.mxu0 0
  %3157 = vmatprep.subr.bf16.mxu0 0
  %3158 = vmatpush1.bf16.msra.mxu0 0
  %3159 = vmatprep.subr.bf16.mxu0 0
  %3160 = vmatpush1.bf16.msra.mxu0 0
  %3161 = vmatprep.subr.bf16.mxu0 0
  %3162 = vmatpush1.bf16.msra.mxu0 0
  %3163 = vmatprep.subr.bf16.mxu0 0
  %3164 = vmatpush1.bf16.msra.mxu0 0
  %3165 = vmatprep.subr.bf16.mxu0 0
  %3166 = vmatpush1.bf16.msra.mxu0 0
  %3167 = vmatprep.subr.bf16.mxu0 0
  %3168 = vmatpush1.bf16.msra.mxu0 0
  %3169 = vmatprep.subr.bf16.mxu0 0
  %3170 = vmatpush1.bf16.msra.mxu0 0
  %3171 = vmatprep.mubr.bf16.mxu0 0
  %3172 = vmatmul.mubr.bf16.gmra.mrb[0].mxu0 %v574
  %v3173 = vpop.f32.mrb[0].mxu0
  %v3174 = vadd.f32 %v2835, %v3173
  %v3175 = vpop.f32.mrb[0].mxu0
  %v3176 = vpop.f32.mrb[0].mxu0
  %v3177 = vadd.f32 %v2838, %v3176
  %v3178 = vpop.f32.mrb[0].mxu0
  %3179 = vmatprep.mubr.bf16.mxu0 0
  %3180 = vmatmul.mubr.bf16.gmra.mrb[0].mxu0 %v577
  %v3181 = vpop.f32.mrb[0].mxu0
  %v3182 = vadd.f32 %v2843, %v3181
  %v3183 = vpop.f32.mrb[0].mxu0
  %v3184 = vpop.f32.mrb[0].mxu0
  %v3185 = vadd.f32 %v2846, %v3184
  %v3186 = vpop.f32.mrb[0].mxu0
  %3187 = vmatprep.mubr.bf16.mxu0 0
  %3188 = vmatmul.mubr.bf16.gmra.mrb[0].mxu0 %v580
  %v3189 = vpop.f32.mrb[0].mxu0
  %v3190 = vadd.f32 %v2851, %v3189
  %v3191 = vpop.f32.mrb[0].mxu0
  %v3192 = vpop.f32.mrb[0].mxu0
  %v3193 = vadd.f32 %v2854, %v3192
  %v3194 = vpop.f32.mrb[0].mxu0
  %3195 = vmatprep.mubr.bf16.mxu0 0
  %3196 = vmatmul.mubr.bf16.gmra.mrb[0].mxu0 %v583
  %v3197 = vpop.f32.mrb[0].mxu0
  %v3198 = vadd.f32 %v2859, %v3197
  %v3199 = vpop.f32.mrb[0].mxu0
  %v3200 = vpop.f32.mrb[0].mxu0
  %v3201 = vpop.f32.mrb[0].mxu0
  %3202 = vdwg.mxu0
  %v3215 = vunpack.c.l.b16 %v2865
  %v3216 = vunpack.c.l.b16 %v2866
  %v3217 = vunpack.c.l.b16 %v2867
  %v3218 = vunpack.c.l.b16 %v2868
  %v3219 = vunpack.c.l.b16 %v2869
  %v3220 = vunpack.c.l.b16 %v2870
  %v3221 = vunpack.c.l.b16 %v2871
  %v3222 = vunpack.c.l.b16 %v2872
  %v3223 = vunpack.c.l.b16 %v2873
  %v3224 = vunpack.c.l.b16 %v2874
  %v3225 = vunpack.c.l.b16 %v2875
  %v3226 = vunpack.c.l.b16 %v2876
  %v3227 = vpack.c.b16 %v3216, %v3215
  %v3228 = vpack.c.b16 %v3218, %v3217
  %v3229 = vpack.c.b16 %v3220, %v3219
  %v3230 = vpack.c.b16 %v3222, %v3221
  %v3231 = vpack.c.b16 %v3224, %v3223
  %v3232 = vpack.c.b16 %v3226, %v3225
  %3239 = vmatprep.subr.bf16.mxu0 0
  %3240 = vmatpush1.bf16.msra.mxu0 %v3227
  %3241 = vmatprep.subr.bf16.mxu0 0
  %3242 = vmatpush1.bf16.msra.mxu0 %v3228
  %3243 = vmatprep.subr.bf16.mxu0 0
  %3244 = vmatpush1.bf16.msra.mxu0 %v3229
  %3245 = vmatprep.subr.bf16.mxu0 0
  %3246 = vmatpush1.bf16.msra.mxu0 %v3230
  %3247 = vmatprep.subr.bf16.mxu0 0
  %3248 = vmatpush1.bf16.msra.mxu0 %v3231
  %3249 = vmatprep.subr.bf16.mxu0 0
  %3250 = vmatpush1.bf16.msra.mxu0 %v3232
  %3251 = vmatprep.subr.bf16.mxu0 0
  %3252 = vmatpush1.bf16.msra.mxu0 0
  %3253 = vmatprep.subr.bf16.mxu0 0
  %3254 = vmatpush1.bf16.msra.mxu0 0
  %3255 = vmatprep.subr.bf16.mxu0 0
  %3256 = vmatpush1.bf16.msra.mxu0 0
  %3257 = vmatprep.subr.bf16.mxu0 0
  %3258 = vmatpush1.bf16.msra.mxu0 0
  %3259 = vmatprep.subr.bf16.mxu0 0
  %3260 = vmatpush1.bf16.msra.mxu0 0
  %3261 = vmatprep.subr.bf16.mxu0 0
  %3262 = vmatpush1.bf16.msra.mxu0 0
  %3263 = vmatprep.subr.bf16.mxu0 0
  %3264 = vmatpush1.bf16.msra.mxu0 0
  %3265 = vmatprep.subr.bf16.mxu0 0
  %3266 = vmatpush1.bf16.msra.mxu0 0
  %3267 = vmatprep.subr.bf16.mxu0 0
  %3268 = vmatpush1.bf16.msra.mxu0 0
  %3269 = vmatprep.subr.bf16.mxu0 0
  %3270 = vmatpush1.bf16.msra.mxu0 0
  %3271 = vmatprep.mubr.bf16.mxu0 0
  %3272 = vmatmul.mubr.bf16.gmra.mrb[0].mxu0 %v704
  %v3273 = vpop.f32.mrb[0].mxu0
  %v3274 = vadd.f32 %v2961, %v3273
  %v3275 = vpop.f32.mrb[0].mxu0
  %v3276 = vpop.f32.mrb[0].mxu0
  %v3277 = vadd.f32 %v2964, %v3276
  %v3278 = vpop.f32.mrb[0].mxu0
  %3279 = vmatprep.mubr.bf16.mxu0 0
  %3280 = vmatmul.mubr.bf16.gmra.mrb[0].mxu0 %v707
  %v3281 = vpop.f32.mrb[0].mxu0
  %v3282 = vadd.f32 %v2969, %v3281
  %v3283 = vpop.f32.mrb[0].mxu0
  %v3284 = vpop.f32.mrb[0].mxu0
  %v3285 = vadd.f32 %v2972, %v3284
  %v3286 = vpop.f32.mrb[0].mxu0
  %3287 = vmatprep.mubr.bf16.mxu0 0
  %3288 = vmatmul.mubr.bf16.gmra.mrb[0].mxu0 %v710
  %v3289 = vpop.f32.mrb[0].mxu0
  %v3290 = vadd.f32 %v2977, %v3289
  %v3291 = vpop.f32.mrb[0].mxu0
  %v3292 = vpop.f32.mrb[0].mxu0
  %v3293 = vadd.f32 %v2980, %v3292
  %v3294 = vpop.f32.mrb[0].mxu0
  %3295 = vmatprep.mubr.bf16.mxu0 0
  %3296 = vmatmul.mubr.bf16.gmra.mrb[0].mxu0 %v713
  %v3297 = vpop.f32.mrb[0].mxu0
  %v3298 = vadd.f32 %v2985, %v3297
  %v3299 = vpop.f32.mrb[0].mxu0
  %v3300 = vpop.f32.mrb[0].mxu0
  %v3301 = vpop.f32.mrb[0].mxu0
  %3302 = vdwg.mxu0
  %v3303 = vadd.f32 %v3174, %v3274
  %v3304 = vadd.f32 %v3177, %v3277
  %v3305 = vadd.f32 %v3182, %v3282
  %v3306 = vadd.f32 %v3185, %v3285
  %v3307 = vadd.f32 %v3190, %v3290
  %v3308 = vadd.f32 %v3193, %v3293
  %v3309 = vadd.f32 %v3198, %v3298
  %v3310 = vadd.f32 %v3303, %v3074
  %v3311 = vadd.f32 %v3304, %v3077
  %v3312 = vadd.f32 %v3305, %v3082
  %v3313 = vadd.f32 %v3306, %v3085
  %v3314 = vadd.f32 %v3307, %v3090
  %v3315 = vadd.f32 %v3308, %v3093
  %v3316 = vadd.f32 %v3309, %v3098
  %v3317 = vadd.f32 %v3310, %v797
  %v3318 = vadd.f32 %v3311, %v797
  %v3319 = vadd.f32 %v3312, %v797
  %v3320 = vadd.f32 %v3313, %v797
  %v3321 = vadd.f32 %v3314, %v797
  %v3322 = vadd.f32 %v3315, %v797
  %v3323 = vadd.f32 %v3316, %v797
  %v3324 = vmax.f32 %v3317, 0.0
  %v3325 = vmax.f32 %v3318, 0.0
  %v3326 = vmax.f32 %v3319, 0.0
  %v3327 = vmax.f32 %v3320, 0.0
  %v3328 = vmax.f32 %v3321, 0.0
  %v3329 = vmax.f32 %v3322, 0.0
  %v3330 = vmax.f32 %v3323, 0.0
  %3331 = vmatprep.subr.bf16.mxu0 0
  %3332 = vmatpush1.bf16.msra.mxu0 %v2195
  %3333 = vmatprep.subr.bf16.mxu0 0
  %3334 = vmatpush1.bf16.msra.mxu0 %v2196
  %3335 = vmatprep.subr.bf16.mxu0 0
  %3336 = vmatpush1.bf16.msra.mxu0 %v2197
  %3337 = vmatprep.subr.bf16.mxu0 0
  %3338 = vmatpush1.bf16.msra.mxu0 %v2198
  %3339 = vmatprep.subr.bf16.mxu0 0
  %3340 = vmatpush1.bf16.msra.mxu0 %v2199
  %3341 = vmatprep.subr.bf16.mxu0 0
  %3342 = vmatpush1.bf16.msra.mxu0 %v2200
  %3343 = vmatprep.subr.bf16.mxu0 0
  %3344 = vmatpush1.bf16.msra.mxu0 0
  %3345 = vmatprep.subr.bf16.mxu0 0
  %3346 = vmatpush1.bf16.msra.mxu0 0
  %3347 = vmatprep.subr.bf16.mxu0 0
  %3348 = vmatpush1.bf16.msra.mxu0 0
  %3349 = vmatprep.subr.bf16.mxu0 0
  %3350 = vmatpush1.bf16.msra.mxu0 0
  %3351 = vmatprep.subr.bf16.mxu0 0
  %3352 = vmatpush1.bf16.msra.mxu0 0
  %3353 = vmatprep.subr.bf16.mxu0 0
  %3354 = vmatpush1.bf16.msra.mxu0 0
  %3355 = vmatprep.subr.bf16.mxu0 0
  %3356 = vmatpush1.bf16.msra.mxu0 0
  %3357 = vmatprep.subr.bf16.mxu0 0
  %3358 = vmatpush1.bf16.msra.mxu0 0
  %3359 = vmatprep.subr.bf16.mxu0 0
  %3360 = vmatpush1.bf16.msra.mxu0 0
  %3361 = vmatprep.subr.bf16.mxu0 0
  %3362 = vmatpush1.bf16.msra.mxu0 0
  %3363 = vmatprep.mubr.bf16.mxu0 0
  %3364 = vmatmul.mubr.bf16.gmra.mrb[0].mxu0 %v704
  %v3365 = vpop.f32.mrb[0].mxu0
  %v3366 = vadd.f32 0.0, %v3365
  %v3367 = vpop.f32.mrb[0].mxu0
  %v3368 = vpop.f32.mrb[0].mxu0
  %v3369 = vadd.f32 0.0, %v3368
  %v3370 = vpop.f32.mrb[0].mxu0
  %3371 = vmatprep.mubr.bf16.mxu0 0
  %3372 = vmatmul.mubr.bf16.gmra.mrb[0].mxu0 %v707
  %v3373 = vpop.f32.mrb[0].mxu0
  %v3374 = vadd.f32 0.0, %v3373
  %v3375 = vpop.f32.mrb[0].mxu0
  %v3376 = vpop.f32.mrb[0].mxu0
  %v3377 = vadd.f32 0.0, %v3376
  %v3378 = vpop.f32.mrb[0].mxu0
  %3379 = vmatprep.mubr.bf16.mxu0 0
  %3380 = vmatmul.mubr.bf16.gmra.mrb[0].mxu0 %v710
  %v3381 = vpop.f32.mrb[0].mxu0
  %v3382 = vadd.f32 0.0, %v3381
  %v3383 = vpop.f32.mrb[0].mxu0
  %v3384 = vpop.f32.mrb[0].mxu0
  %v3385 = vadd.f32 0.0, %v3384
  %v3386 = vpop.f32.mrb[0].mxu0
  %3387 = vmatprep.mubr.bf16.mxu0 0
  %3388 = vmatmul.mubr.bf16.gmra.mrb[0].mxu0 %v713
  %v3389 = vpop.f32.mrb[0].mxu0
  %v3390 = vadd.f32 0.0, %v3389
  %v3391 = vpop.f32.mrb[0].mxu0
  %v3392 = vpop.f32.mrb[0].mxu0
  %v3393 = vpop.f32.mrb[0].mxu0
  %3394 = vdwg.mxu0
  %3395 = vmatprep.subr.bf16.mxu0 0
  %3396 = vmatpush1.bf16.msra.mxu0 %v2321
  %3397 = vmatprep.subr.bf16.mxu0 0
  %3398 = vmatpush1.bf16.msra.mxu0 %v2322
  %3399 = vmatprep.subr.bf16.mxu0 0
  %3400 = vmatpush1.bf16.msra.mxu0 %v2323
  %3401 = vmatprep.subr.bf16.mxu0 0
  %3402 = vmatpush1.bf16.msra.mxu0 %v2324
  %3403 = vmatprep.subr.bf16.mxu0 0
  %3404 = vmatpush1.bf16.msra.mxu0 %v2325
  %3405 = vmatprep.subr.bf16.mxu0 0
  %3406 = vmatpush1.bf16.msra.mxu0 %v2326
  %3407 = vmatprep.subr.bf16.mxu0 0
  %3408 = vmatpush1.bf16.msra.mxu0 0
  %3409 = vmatprep.subr.bf16.mxu0 0
  %3410 = vmatpush1.bf16.msra.mxu0 0
  %3411 = vmatprep.subr.bf16.mxu0 0
  %3412 = vmatpush1.bf16.msra.mxu0 0
  %3413 = vmatprep.subr.bf16.mxu0 0
  %3414 = vmatpush1.bf16.msra.mxu0 0
  %3415 = vmatprep.subr.bf16.mxu0 0
  %3416 = vmatpush1.bf16.msra.mxu0 0
  %3417 = vmatprep.subr.bf16.mxu0 0
  %3418 = vmatpush1.bf16.msra.mxu0 0
  %3419 = vmatprep.subr.bf16.mxu0 0
  %3420 = vmatpush1.bf16.msra.mxu0 0
  %3421 = vmatprep.subr.bf16.mxu0 0
  %3422 = vmatpush1.bf16.msra.mxu0 0
  %3423 = vmatprep.subr.bf16.mxu0 0
  %3424 = vmatpush1.bf16.msra.mxu0 0
  %3425 = vmatprep.subr.bf16.mxu0 0
  %3426 = vmatpush1.bf16.msra.mxu0 0
  %3427 = vmatprep.mubr.bf16.mxu0 0
  %3428 = vmatmul.mubr.bf16.gmra.mrb[0].mxu0 %v456
  %v3429 = vpop.f32.mrb[0].mxu0
  %v3430 = vadd.f32 0.0, %v3429
  %v3431 = vpop.f32.mrb[0].mxu0
  %v3432 = vpop.f32.mrb[0].mxu0
  %v3433 = vadd.f32 0.0, %v3432
  %v3434 = vpop.f32.mrb[0].mxu0
  %3435 = vmatprep.mubr.bf16.mxu0 0
  %3436 = vmatmul.mubr.bf16.gmra.mrb[0].mxu0 %v459
  %v3437 = vpop.f32.mrb[0].mxu0
  %v3438 = vadd.f32 0.0, %v3437
  %v3439 = vpop.f32.mrb[0].mxu0
  %v3440 = vpop.f32.mrb[0].mxu0
  %v3441 = vadd.f32 0.0, %v3440
  %v3442 = vpop.f32.mrb[0].mxu0
  %3443 = vmatprep.mubr.bf16.mxu0 0
  %3444 = vmatmul.mubr.bf16.gmra.mrb[0].mxu0 %v462
  %v3445 = vpop.f32.mrb[0].mxu0
  %v3446 = vadd.f32 0.0, %v3445
  %v3447 = vpop.f32.mrb[0].mxu0
  %v3448 = vpop.f32.mrb[0].mxu0
  %v3449 = vadd.f32 0.0, %v3448
  %v3450 = vpop.f32.mrb[0].mxu0
  %3451 = vmatprep.mubr.bf16.mxu0 0
  %3452 = vmatmul.mubr.bf16.gmra.mrb[0].mxu0 %v465
  %v3453 = vpop.f32.mrb[0].mxu0
  %v3454 = vadd.f32 0.0, %v3453
  %v3455 = vpop.f32.mrb[0].mxu0
  %v3456 = vpop.f32.mrb[0].mxu0
  %v3457 = vpop.f32.mrb[0].mxu0
  %3458 = vdwg.mxu0
  %3459 = vmatprep.subr.bf16.mxu0 0
  %3460 = vmatpush1.bf16.msra.mxu0 %v2434
  %3461 = vmatprep.subr.bf16.mxu0 0
  %3462 = vmatpush1.bf16.msra.mxu0 %v2435
  %3463 = vmatprep.subr.bf16.mxu0 0
  %3464 = vmatpush1.bf16.msra.mxu0 %v2436
  %3465 = vmatprep.subr.bf16.mxu0 0
  %3466 = vmatpush1.bf16.msra.mxu0 %v2437
  %3467 = vmatprep.subr.bf16.mxu0 0
  %3468 = vmatpush1.bf16.msra.mxu0 %v2438
  %3469 = vmatprep.subr.bf16.mxu0 0
  %3470 = vmatpush1.bf16.msra.mxu0 %v2439
  %3471 = vmatprep.subr.bf16.mxu0 0
  %3472 = vmatpush1.bf16.msra.mxu0 0
  %3473 = vmatprep.subr.bf16.mxu0 0
  %3474 = vmatpush1.bf16.msra.mxu0 0
  %3475 = vmatprep.subr.bf16.mxu0 0
  %3476 = vmatpush1.bf16.msra.mxu0 0
  %3477 = vmatprep.subr.bf16.mxu0 0
  %3478 = vmatpush1.bf16.msra.mxu0 0
  %3479 = vmatprep.subr.bf16.mxu0 0
  %3480 = vmatpush1.bf16.msra.mxu0 0
  %3481 = vmatprep.subr.bf16.mxu0 0
  %3482 = vmatpush1.bf16.msra.mxu0 0
  %3483 = vmatprep.subr.bf16.mxu0 0
  %3484 = vmatpush1.bf16.msra.mxu0 0
  %3485 = vmatprep.subr.bf16.mxu0 0
  %3486 = vmatpush1.bf16.msra.mxu0 0
  %3487 = vmatprep.subr.bf16.mxu0 0
  %3488 = vmatpush1.bf16.msra.mxu0 0
  %3489 = vmatprep.subr.bf16.mxu0 0
  %3490 = vmatpush1.bf16.msra.mxu0 0
  %3491 = vmatprep.mubr.bf16.mxu0 0
  %3492 = vmatmul.mubr.bf16.gmra.mrb[0].mxu0 %v1541
  %v3493 = vpop.f32.mrb[0].mxu0
  %v3494 = vadd.f32 0.0, %v3493
  %v3495 = vpop.f32.mrb[0].mxu0
  %v3496 = vpop.f32.mrb[0].mxu0
  %v3497 = vadd.f32 0.0, %v3496
  %v3498 = vpop.f32.mrb[0].mxu0
  %3499 = vmatprep.mubr.bf16.mxu0 0
  %3500 = vmatmul.mubr.bf16.gmra.mrb[0].mxu0 %v1544
  %v3501 = vpop.f32.mrb[0].mxu0
  %v3502 = vadd.f32 0.0, %v3501
  %v3503 = vpop.f32.mrb[0].mxu0
  %v3504 = vpop.f32.mrb[0].mxu0
  %v3505 = vadd.f32 0.0, %v3504
  %v3506 = vpop.f32.mrb[0].mxu0
  %3507 = vmatprep.mubr.bf16.mxu0 0
  %3508 = vmatmul.mubr.bf16.gmra.mrb[0].mxu0 %v1547
  %v3509 = vpop.f32.mrb[0].mxu0
  %v3510 = vadd.f32 0.0, %v3509
  %v3511 = vpop.f32.mrb[0].mxu0
  %v3512 = vpop.f32.mrb[0].mxu0
  %v3513 = vadd.f32 0.0, %v3512
  %v3514 = vpop.f32.mrb[0].mxu0
  %3515 = vmatprep.mubr.bf16.mxu0 0
  %3516 = vmatmul.mubr.bf16.gmra.mrb[0].mxu0 %v1550
  %v3517 = vpop.f32.mrb[0].mxu0
  %v3518 = vadd.f32 0.0, %v3517
  %v3519 = vpop.f32.mrb[0].mxu0
  %v3520 = vpop.f32.mrb[0].mxu0
  %v3521 = vpop.f32.mrb[0].mxu0
  %3522 = vdwg.mxu0
  %3523 = vmatprep.subr.bf16.mxu0 0
  %3524 = vmatpush1.bf16.msra.mxu0 %v2534
  %3525 = vmatprep.subr.bf16.mxu0 0
  %3526 = vmatpush1.bf16.msra.mxu0 %v2535
  %3527 = vmatprep.subr.bf16.mxu0 0
  %3528 = vmatpush1.bf16.msra.mxu0 %v2536
  %3529 = vmatprep.subr.bf16.mxu0 0
  %3530 = vmatpush1.bf16.msra.mxu0 %v2537
  %3531 = vmatprep.subr.bf16.mxu0 0
  %3532 = vmatpush1.bf16.msra.mxu0 %v2538
  %3533 = vmatprep.subr.bf16.mxu0 0
  %3534 = vmatpush1.bf16.msra.mxu0 %v2539
  %3535 = vmatprep.subr.bf16.mxu0 0
  %3536 = vmatpush1.bf16.msra.mxu0 0
  %3537 = vmatprep.subr.bf16.mxu0 0
  %3538 = vmatpush1.bf16.msra.mxu0 0
  %3539 = vmatprep.subr.bf16.mxu0 0
  %3540 = vmatpush1.bf16.msra.mxu0 0
  %3541 = vmatprep.subr.bf16.mxu0 0
  %3542 = vmatpush1.bf16.msra.mxu0 0
  %3543 = vmatprep.subr.bf16.mxu0 0
  %3544 = vmatpush1.bf16.msra.mxu0 0
  %3545 = vmatprep.subr.bf16.mxu0 0
  %3546 = vmatpush1.bf16.msra.mxu0 0
  %3547 = vmatprep.subr.bf16.mxu0 0
  %3548 = vmatpush1.bf16.msra.mxu0 0
  %3549 = vmatprep.subr.bf16.mxu0 0
  %3550 = vmatpush1.bf16.msra.mxu0 0
  %3551 = vmatprep.subr.bf16.mxu0 0
  %3552 = vmatpush1.bf16.msra.mxu0 0
  %3553 = vmatprep.subr.bf16.mxu0 0
  %3554 = vmatpush1.bf16.msra.mxu0 0
  %3555 = vmatprep.mubr.bf16.mxu0 0
  %3556 = vmatmul.mubr.bf16.gmra.mrb[0].mxu0 %v157
  %v3557 = vpop.f32.mrb[0].mxu0
  %v3558 = vadd.f32 %v3366, %v3557
  %v3559 = vpop.f32.mrb[0].mxu0
  %v3560 = vpop.f32.mrb[0].mxu0
  %v3561 = vadd.f32 %v3369, %v3560
  %v3562 = vpop.f32.mrb[0].mxu0
  %3563 = vmatprep.mubr.bf16.mxu0 0
  %3564 = vmatmul.mubr.bf16.gmra.mrb[0].mxu0 %v160
  %v3565 = vpop.f32.mrb[0].mxu0
  %v3566 = vadd.f32 %v3374, %v3565
  %v3567 = vpop.f32.mrb[0].mxu0
  %v3568 = vpop.f32.mrb[0].mxu0
  %v3569 = vadd.f32 %v3377, %v3568
  %v3570 = vpop.f32.mrb[0].mxu0
  %3571 = vmatprep.mubr.bf16.mxu0 0
  %3572 = vmatmul.mubr.bf16.gmra.mrb[0].mxu0 %v163
  %v3573 = vpop.f32.mrb[0].mxu0
  %v3574 = vadd.f32 %v3382, %v3573
  %v3575 = vpop.f32.mrb[0].mxu0
  %v3576 = vpop.f32.mrb[0].mxu0
  %v3577 = vadd.f32 %v3385, %v3576
  %v3578 = vpop.f32.mrb[0].mxu0
  %3579 = vmatprep.mubr.bf16.mxu0 0
  %3580 = vmatmul.mubr.bf16.gmra.mrb[0].mxu0 %v166
  %v3581 = vpop.f32.mrb[0].mxu0
  %v3582 = vadd.f32 %v3390, %v3581
  %v3583 = vpop.f32.mrb[0].mxu0
  %v3584 = vpop.f32.mrb[0].mxu0
  %v3585 = vpop.f32.mrb[0].mxu0
  %3586 = vdwg.mxu0
  %3587 = vmatprep.subr.bf16.mxu0 0
  %3588 = vmatpush1.bf16.msra.mxu0 %v2634
  %3589 = vmatprep.subr.bf16.mxu0 0
  %3590 = vmatpush1.bf16.msra.mxu0 %v2635
  %3591 = vmatprep.subr.bf16.mxu0 0
  %3592 = vmatpush1.bf16.msra.mxu0 %v2636
  %3593 = vmatprep.subr.bf16.mxu0 0
  %3594 = vmatpush1.bf16.msra.mxu0 %v2637
  %3595 = vmatprep.subr.bf16.mxu0 0
  %3596 = vmatpush1.bf16.msra.mxu0 %v2638
  %3597 = vmatprep.subr.bf16.mxu0 0
  %3598 = vmatpush1.bf16.msra.mxu0 %v2639
  %3599 = vmatprep.subr.bf16.mxu0 0
  %3600 = vmatpush1.bf16.msra.mxu0 0
  %3601 = vmatprep.subr.bf16.mxu0 0
  %3602 = vmatpush1.bf16.msra.mxu0 0
  %3603 = vmatprep.subr.bf16.mxu0 0
  %3604 = vmatpush1.bf16.msra.mxu0 0
  %3605 = vmatprep.subr.bf16.mxu0 0
  %3606 = vmatpush1.bf16.msra.mxu0 0
  %3607 = vmatprep.subr.bf16.mxu0 0
  %3608 = vmatpush1.bf16.msra.mxu0 0
  %3609 = vmatprep.subr.bf16.mxu0 0
  %3610 = vmatpush1.bf16.msra.mxu0 0
  %3611 = vmatprep.subr.bf16.mxu0 0
  %3612 = vmatpush1.bf16.msra.mxu0 0
  %3613 = vmatprep.subr.bf16.mxu0 0
  %3614 = vmatpush1.bf16.msra.mxu0 0
  %3615 = vmatprep.subr.bf16.mxu0 0
  %3616 = vmatpush1.bf16.msra.mxu0 0
  %3617 = vmatprep.subr.bf16.mxu0 0
  %3618 = vmatpush1.bf16.msra.mxu0 0
  %3619 = vmatprep.mubr.bf16.mxu0 0
  %3620 = vmatmul.mubr.bf16.gmra.mrb[0].mxu0 %v313
  %v3621 = vpop.f32.mrb[0].mxu0
  %v3622 = vadd.f32 %v3430, %v3621
  %v3623 = vpop.f32.mrb[0].mxu0
  %v3624 = vpop.f32.mrb[0].mxu0
  %v3625 = vadd.f32 %v3433, %v3624
  %v3626 = vpop.f32.mrb[0].mxu0
  %3627 = vmatprep.mubr.bf16.mxu0 0
  %3628 = vmatmul.mubr.bf16.gmra.mrb[0].mxu0 %v316
  %v3629 = vpop.f32.mrb[0].mxu0
  %v3630 = vadd.f32 %v3438, %v3629
  %v3631 = vpop.f32.mrb[0].mxu0
  %v3632 = vpop.f32.mrb[0].mxu0
  %v3633 = vadd.f32 %v3441, %v3632
  %v3634 = vpop.f32.mrb[0].mxu0
  %3635 = vmatprep.mubr.bf16.mxu0 0
  %3636 = vmatmul.mubr.bf16.gmra.mrb[0].mxu0 %v319
  %v3637 = vpop.f32.mrb[0].mxu0
  %v3638 = vadd.f32 %v3446, %v3637
  %v3639 = vpop.f32.mrb[0].mxu0
  %v3640 = vpop.f32.mrb[0].mxu0
  %v3641 = vadd.f32 %v3449, %v3640
  %v3642 = vpop.f32.mrb[0].mxu0
  %3643 = vmatprep.mubr.bf16.mxu0 0
  %3644 = vmatmul.mubr.bf16.gmra.mrb[0].mxu0 %v322
  %v3645 = vpop.f32.mrb[0].mxu0
  %v3646 = vadd.f32 %v3454, %v3645
  %v3647 = vpop.f32.mrb[0].mxu0
  %v3648 = vpop.f32.mrb[0].mxu0
  %v3649 = vpop.f32.mrb[0].mxu0
  %3650 = vdwg.mxu0
  %v3651 = vadd.f32 %v3558, %v3622
  %v3652 = vadd.f32 %v3561, %v3625
  %v3653 = vadd.f32 %v3566, %v3630
  %v3654 = vadd.f32 %v3569, %v3633
  %v3655 = vadd.f32 %v3574, %v3638
  %v3656 = vadd.f32 %v3577, %v3641
  %v3657 = vadd.f32 %v3582, %v3646
  %v3658 = vadd.f32 %v3651, %v3494
  %v3659 = vadd.f32 %v3652, %v3497
  %v3660 = vadd.f32 %v3653, %v3502
  %v3661 = vadd.f32 %v3654, %v3505
  %v3662 = vadd.f32 %v3655, %v3510
  %v3663 = vadd.f32 %v3656, %v3513
  %v3664 = vadd.f32 %v3657, %v3518
  %v3665 = vadd.f32 %v3658, %v797
  %v3666 = vadd.f32 %v3659, %v797
  %v3667 = vadd.f32 %v3660, %v797
  %v3668 = vadd.f32 %v3661, %v797
  %v3669 = vadd.f32 %v3662, %v797
  %v3670 = vadd.f32 %v3663, %v797
  %v3671 = vadd.f32 %v3664, %v797
  %v3672 = vmax.f32 %v3665, 0.0
  %v3673 = vmax.f32 %v3666, 0.0
  %v3674 = vmax.f32 %v3667, 0.0
  %v3675 = vmax.f32 %v3668, 0.0
  %v3676 = vmax.f32 %v3669, 0.0
  %v3677 = vmax.f32 %v3670, 0.0
  %v3678 = vmax.f32 %v3671, 0.0
  %3679 = vmatprep.subr.bf16.mxu0 0
  %3680 = vmatpush1.bf16.msra.mxu0 %v2788
  %3681 = vmatprep.subr.bf16.mxu0 0
  %3682 = vmatpush1.bf16.msra.mxu0 %v2789
  %3683 = vmatprep.subr.bf16.mxu0 0
  %3684 = vmatpush1.bf16.msra.mxu0 %v2790
  %3685 = vmatprep.subr.bf16.mxu0 0
  %3686 = vmatpush1.bf16.msra.mxu0 %v2791
  %3687 = vmatprep.subr.bf16.mxu0 0
  %3688 = vmatpush1.bf16.msra.mxu0 %v2792
  %3689 = vmatprep.subr.bf16.mxu0 0
  %3690 = vmatpush1.bf16.msra.mxu0 %v2793
  %3691 = vmatprep.subr.bf16.mxu0 0
  %3692 = vmatpush1.bf16.msra.mxu0 0
  %3693 = vmatprep.subr.bf16.mxu0 0
  %3694 = vmatpush1.bf16.msra.mxu0 0
  %3695 = vmatprep.subr.bf16.mxu0 0
  %3696 = vmatpush1.bf16.msra.mxu0 0
  %3697 = vmatprep.subr.bf16.mxu0 0
  %3698 = vmatpush1.bf16.msra.mxu0 0
  %3699 = vmatprep.subr.bf16.mxu0 0
  %3700 = vmatpush1.bf16.msra.mxu0 0
  %3701 = vmatprep.subr.bf16.mxu0 0
  %3702 = vmatpush1.bf16.msra.mxu0 0
  %3703 = vmatprep.subr.bf16.mxu0 0
  %3704 = vmatpush1.bf16.msra.mxu0 0
  %3705 = vmatprep.subr.bf16.mxu0 0
  %3706 = vmatpush1.bf16.msra.mxu0 0
  %3707 = vmatprep.subr.bf16.mxu0 0
  %3708 = vmatpush1.bf16.msra.mxu0 0
  %3709 = vmatprep.subr.bf16.mxu0 0
  %3710 = vmatpush1.bf16.msra.mxu0 0
  %3711 = vmatprep.mubr.bf16.mxu0 0
  %3712 = vmatmul.mubr.bf16.gmra.mrb[0].mxu0 %v704
  %v3713 = vpop.f32.mrb[0].mxu0
  %v3714 = vadd.f32 0.0, %v3713
  %v3715 = vpop.f32.mrb[0].mxu0
  %v3716 = vpop.f32.mrb[0].mxu0
  %v3717 = vadd.f32 0.0, %v3716
  %v3718 = vpop.f32.mrb[0].mxu0
  %3719 = vmatprep.mubr.bf16.mxu0 0
  %3720 = vmatmul.mubr.bf16.gmra.mrb[0].mxu0 %v707
  %v3721 = vpop.f32.mrb[0].mxu0
  %v3722 = vadd.f32 0.0, %v3721
  %v3723 = vpop.f32.mrb[0].mxu0
  %v3724 = vpop.f32.mrb[0].mxu0
  %v3725 = vadd.f32 0.0, %v3724
  %v3726 = vpop.f32.mrb[0].mxu0
  %3727 = vmatprep.mubr.bf16.mxu0 0
  %3728 = vmatmul.mubr.bf16.gmra.mrb[0].mxu0 %v710
  %v3729 = vpop.f32.mrb[0].mxu0
  %v3730 = vadd.f32 0.0, %v3729
  %v3731 = vpop.f32.mrb[0].mxu0
  %v3732 = vpop.f32.mrb[0].mxu0
  %v3733 = vadd.f32 0.0, %v3732
  %v3734 = vpop.f32.mrb[0].mxu0
  %3735 = vmatprep.mubr.bf16.mxu0 0
  %3736 = vmatmul.mubr.bf16.gmra.mrb[0].mxu0 %v713
  %v3737 = vpop.f32.mrb[0].mxu0
  %v3738 = vadd.f32 0.0, %v3737
  %v3739 = vpop.f32.mrb[0].mxu0
  %v3740 = vpop.f32.mrb[0].mxu0
  %v3741 = vpop.f32.mrb[0].mxu0
  %3742 = vdwg.mxu0
  %3743 = vmatprep.subr.bf16.mxu0 0
  %3744 = vmatpush1.bf16.msra.mxu0 %v2914
  %3745 = vmatprep.subr.bf16.mxu0 0
  %3746 = vmatpush1.bf16.msra.mxu0 %v2915
  %3747 = vmatprep.subr.bf16.mxu0 0
  %3748 = vmatpush1.bf16.msra.mxu0 %v2916
  %3749 = vmatprep.subr.bf16.mxu0 0
  %3750 = vmatpush1.bf16.msra.mxu0 %v2917
  %3751 = vmatprep.subr.bf16.mxu0 0
  %3752 = vmatpush1.bf16.msra.mxu0 %v2918
  %3753 = vmatprep.subr.bf16.mxu0 0
  %3754 = vmatpush1.bf16.msra.mxu0 %v2919
  %3755 = vmatprep.subr.bf16.mxu0 0
  %3756 = vmatpush1.bf16.msra.mxu0 0
  %3757 = vmatprep.subr.bf16.mxu0 0
  %3758 = vmatpush1.bf16.msra.mxu0 0
  %3759 = vmatprep.subr.bf16.mxu0 0
  %3760 = vmatpush1.bf16.msra.mxu0 0
  %3761 = vmatprep.subr.bf16.mxu0 0
  %3762 = vmatpush1.bf16.msra.mxu0 0
  %3763 = vmatprep.subr.bf16.mxu0 0
  %3764 = vmatpush1.bf16.msra.mxu0 0
  %3765 = vmatprep.subr.bf16.mxu0 0
  %3766 = vmatpush1.bf16.msra.mxu0 0
  %3767 = vmatprep.subr.bf16.mxu0 0
  %3768 = vmatpush1.bf16.msra.mxu0 0
  %3769 = vmatprep.subr.bf16.mxu0 0
  %3770 = vmatpush1.bf16.msra.mxu0 0
  %3771 = vmatprep.subr.bf16.mxu0 0
  %3772 = vmatpush1.bf16.msra.mxu0 0
  %3773 = vmatprep.subr.bf16.mxu0 0
  %3774 = vmatpush1.bf16.msra.mxu0 0
  %3775 = vmatprep.mubr.bf16.mxu0 0
  %3776 = vmatmul.mubr.bf16.gmra.mrb[0].mxu0 %v456
  %v3777 = vpop.f32.mrb[0].mxu0
  %v3778 = vadd.f32 0.0, %v3777
  %v3779 = vpop.f32.mrb[0].mxu0
  %v3780 = vpop.f32.mrb[0].mxu0
  %v3781 = vadd.f32 0.0, %v3780
  %v3782 = vpop.f32.mrb[0].mxu0
  %3783 = vmatprep.mubr.bf16.mxu0 0
  %3784 = vmatmul.mubr.bf16.gmra.mrb[0].mxu0 %v459
  %v3785 = vpop.f32.mrb[0].mxu0
  %v3786 = vadd.f32 0.0, %v3785
  %v3787 = vpop.f32.mrb[0].mxu0
  %v3788 = vpop.f32.mrb[0].mxu0
  %v3789 = vadd.f32 0.0, %v3788
  %v3790 = vpop.f32.mrb[0].mxu0
  %3791 = vmatprep.mubr.bf16.mxu0 0
  %3792 = vmatmul.mubr.bf16.gmra.mrb[0].mxu0 %v462
  %v3793 = vpop.f32.mrb[0].mxu0
  %v3794 = vadd.f32 0.0, %v3793
  %v3795 = vpop.f32.mrb[0].mxu0
  %v3796 = vpop.f32.mrb[0].mxu0
  %v3797 = vadd.f32 0.0, %v3796
  %v3798 = vpop.f32.mrb[0].mxu0
  %3799 = vmatprep.mubr.bf16.mxu0 0
  %3800 = vmatmul.mubr.bf16.gmra.mrb[0].mxu0 %v465
  %v3801 = vpop.f32.mrb[0].mxu0
  %v3802 = vadd.f32 0.0, %v3801
  %v3803 = vpop.f32.mrb[0].mxu0
  %v3804 = vpop.f32.mrb[0].mxu0
  %v3805 = vpop.f32.mrb[0].mxu0
  %3806 = vdwg.mxu0
  %3807 = vmatprep.subr.bf16.mxu0 0
  %3808 = vmatpush1.bf16.msra.mxu0 %v3027
  %3809 = vmatprep.subr.bf16.mxu0 0
  %3810 = vmatpush1.bf16.msra.mxu0 %v3028
  %3811 = vmatprep.subr.bf16.mxu0 0
  %3812 = vmatpush1.bf16.msra.mxu0 %v3029
  %3813 = vmatprep.subr.bf16.mxu0 0
  %3814 = vmatpush1.bf16.msra.mxu0 %v3030
  %3815 = vmatprep.subr.bf16.mxu0 0
  %3816 = vmatpush1.bf16.msra.mxu0 %v3031
  %3817 = vmatprep.subr.bf16.mxu0 0
  %3818 = vmatpush1.bf16.msra.mxu0 %v3032
  %3819 = vmatprep.subr.bf16.mxu0 0
  %3820 = vmatpush1.bf16.msra.mxu0 0
  %3821 = vmatprep.subr.bf16.mxu0 0
  %3822 = vmatpush1.bf16.msra.mxu0 0
  %3823 = vmatprep.subr.bf16.mxu0 0
  %3824 = vmatpush1.bf16.msra.mxu0 0
  %3825 = vmatprep.subr.bf16.mxu0 0
  %3826 = vmatpush1.bf16.msra.mxu0 0
  %3827 = vmatprep.subr.bf16.mxu0 0
  %3828 = vmatpush1.bf16.msra.mxu0 0
  %3829 = vmatprep.subr.bf16.mxu0 0
  %3830 = vmatpush1.bf16.msra.mxu0 0
  %3831 = vmatprep.subr.bf16.mxu0 0
  %3832 = vmatpush1.bf16.msra.mxu0 0
  %3833 = vmatprep.subr.bf16.mxu0 0
  %3834 = vmatpush1.bf16.msra.mxu0 0
  %3835 = vmatprep.subr.bf16.mxu0 0
  %3836 = vmatpush1.bf16.msra.mxu0 0
  %3837 = vmatprep.subr.bf16.mxu0 0
  %3838 = vmatpush1.bf16.msra.mxu0 0
  %3839 = vmatprep.mubr.bf16.mxu0 0
  %3840 = vmatmul.mubr.bf16.gmra.mrb[0].mxu0 %v1541
  %v3841 = vpop.f32.mrb[0].mxu0
  %v3842 = vadd.f32 0.0, %v3841
  %v3843 = vpop.f32.mrb[0].mxu0
  %v3844 = vpop.f32.mrb[0].mxu0
  %v3845 = vadd.f32 0.0, %v3844
  %v3846 = vpop.f32.mrb[0].mxu0
  %3847 = vmatprep.mubr.bf16.mxu0 0
  %3848 = vmatmul.mubr.bf16.gmra.mrb[0].mxu0 %v1544
  %v3849 = vpop.f32.mrb[0].mxu0
  %v3850 = vadd.f32 0.0, %v3849
  %v3851 = vpop.f32.mrb[0].mxu0
  %v3852 = vpop.f32.mrb[0].mxu0
  %v3853 = vadd.f32 0.0, %v3852
  %v3854 = vpop.f32.mrb[0].mxu0
  %3855 = vmatprep.mubr.bf16.mxu0 0
  %3856 = vmatmul.mubr.bf16.gmra.mrb[0].mxu0 %v1547
  %v3857 = vpop.f32.mrb[0].mxu0
  %v3858 = vadd.f32 0.0, %v3857
  %v3859 = vpop.f32.mrb[0].mxu0
  %v3860 = vpop.f32.mrb[0].mxu0
  %v3861 = vadd.f32 0.0, %v3860
  %v3862 = vpop.f32.mrb[0].mxu0
  %3863 = vmatprep.mubr.bf16.mxu0 0
  %3864 = vmatmul.mubr.bf16.gmra.mrb[0].mxu0 %v1550
  %v3865 = vpop.f32.mrb[0].mxu0
  %v3866 = vadd.f32 0.0, %v3865
  %v3867 = vpop.f32.mrb[0].mxu0
  %v3868 = vpop.f32.mrb[0].mxu0
  %v3869 = vpop.f32.mrb[0].mxu0
  %3870 = vdwg.mxu0
  %3871 = vmatprep.subr.bf16.mxu0 0
  %3872 = vmatpush1.bf16.msra.mxu0 %v3127
  %3873 = vmatprep.subr.bf16.mxu0 0
  %3874 = vmatpush1.bf16.msra.mxu0 %v3128
  %3875 = vmatprep.subr.bf16.mxu0 0
  %3876 = vmatpush1.bf16.msra.mxu0 %v3129
  %3877 = vmatprep.subr.bf16.mxu0 0
  %3878 = vmatpush1.bf16.msra.mxu0 %v3130
  %3879 = vmatprep.subr.bf16.mxu0 0
  %3880 = vmatpush1.bf16.msra.mxu0 %v3131
  %3881 = vmatprep.subr.bf16.mxu0 0
  %3882 = vmatpush1.bf16.msra.mxu0 %v3132
  %3883 = vmatprep.subr.bf16.mxu0 0
  %3884 = vmatpush1.bf16.msra.mxu0 0
  %3885 = vmatprep.subr.bf16.mxu0 0
  %3886 = vmatpush1.bf16.msra.mxu0 0
  %3887 = vmatprep.subr.bf16.mxu0 0
  %3888 = vmatpush1.bf16.msra.mxu0 0
  %3889 = vmatprep.subr.bf16.mxu0 0
  %3890 = vmatpush1.bf16.msra.mxu0 0
  %3891 = vmatprep.subr.bf16.mxu0 0
  %3892 = vmatpush1.bf16.msra.mxu0 0
  %3893 = vmatprep.subr.bf16.mxu0 0
  %3894 = vmatpush1.bf16.msra.mxu0 0
  %3895 = vmatprep.subr.bf16.mxu0 0
  %3896 = vmatpush1.bf16.msra.mxu0 0
  %3897 = vmatprep.subr.bf16.mxu0 0
  %3898 = vmatpush1.bf16.msra.mxu0 0
  %3899 = vmatprep.subr.bf16.mxu0 0
  %3900 = vmatpush1.bf16.msra.mxu0 0
  %3901 = vmatprep.subr.bf16.mxu0 0
  %3902 = vmatpush1.bf16.msra.mxu0 0
  %3903 = vmatprep.mubr.bf16.mxu0 0
  %3904 = vmatmul.mubr.bf16.gmra.mrb[0].mxu0 %v157
  %v3905 = vpop.f32.mrb[0].mxu0
  %v3906 = vadd.f32 %v3714, %v3905
  %v3907 = vpop.f32.mrb[0].mxu0
  %v3908 = vpop.f32.mrb[0].mxu0
  %v3909 = vadd.f32 %v3717, %v3908
  %v3910 = vpop.f32.mrb[0].mxu0
  %3911 = vmatprep.mubr.bf16.mxu0 0
  %3912 = vmatmul.mubr.bf16.gmra.mrb[0].mxu0 %v160
  %v3913 = vpop.f32.mrb[0].mxu0
  %v3914 = vadd.f32 %v3722, %v3913
  %v3915 = vpop.f32.mrb[0].mxu0
  %v3916 = vpop.f32.mrb[0].mxu0
  %v3917 = vadd.f32 %v3725, %v3916
  %v3918 = vpop.f32.mrb[0].mxu0
  %3919 = vmatprep.mubr.bf16.mxu0 0
  %3920 = vmatmul.mubr.bf16.gmra.mrb[0].mxu0 %v163
  %v3921 = vpop.f32.mrb[0].mxu0
  %v3922 = vadd.f32 %v3730, %v3921
  %v3923 = vpop.f32.mrb[0].mxu0
  %v3924 = vpop.f32.mrb[0].mxu0
  %v3925 = vadd.f32 %v3733, %v3924
  %v3926 = vpop.f32.mrb[0].mxu0
  %3927 = vmatprep.mubr.bf16.mxu0 0
  %3928 = vmatmul.mubr.bf16.gmra.mrb[0].mxu0 %v166
  %v3929 = vpop.f32.mrb[0].mxu0
  %v3930 = vadd.f32 %v3738, %v3929
  %v3931 = vpop.f32.mrb[0].mxu0
  %v3932 = vpop.f32.mrb[0].mxu0
  %v3933 = vpop.f32.mrb[0].mxu0
  %3934 = vdwg.mxu0
  %3935 = vmatprep.subr.bf16.mxu0 0
  %3936 = vmatpush1.bf16.msra.mxu0 %v3227
  %3937 = vmatprep.subr.bf16.mxu0 0
  %3938 = vmatpush1.bf16.msra.mxu0 %v3228
  %3939 = vmatprep.subr.bf16.mxu0 0
  %3940 = vmatpush1.bf16.msra.mxu0 %v3229
  %3941 = vmatprep.subr.bf16.mxu0 0
  %3942 = vmatpush1.bf16.msra.mxu0 %v3230
  %3943 = vmatprep.subr.bf16.mxu0 0
  %3944 = vmatpush1.bf16.msra.mxu0 %v3231
  %3945 = vmatprep.subr.bf16.mxu0 0
  %3946 = vmatpush1.bf16.msra.mxu0 %v3232
  %3947 = vmatprep.subr.bf16.mxu0 0
  %3948 = vmatpush1.bf16.msra.mxu0 0
  %3949 = vmatprep.subr.bf16.mxu0 0
  %3950 = vmatpush1.bf16.msra.mxu0 0
  %3951 = vmatprep.subr.bf16.mxu0 0
  %3952 = vmatpush1.bf16.msra.mxu0 0
  %3953 = vmatprep.subr.bf16.mxu0 0
  %3954 = vmatpush1.bf16.msra.mxu0 0
  %3955 = vmatprep.subr.bf16.mxu0 0
  %3956 = vmatpush1.bf16.msra.mxu0 0
  %3957 = vmatprep.subr.bf16.mxu0 0
  %3958 = vmatpush1.bf16.msra.mxu0 0
  %3959 = vmatprep.subr.bf16.mxu0 0
  %3960 = vmatpush1.bf16.msra.mxu0 0
  %3961 = vmatprep.subr.bf16.mxu0 0
  %3962 = vmatpush1.bf16.msra.mxu0 0
  %3963 = vmatprep.subr.bf16.mxu0 0
  %3964 = vmatpush1.bf16.msra.mxu0 0
  %3965 = vmatprep.subr.bf16.mxu0 0
  %3966 = vmatpush1.bf16.msra.mxu0 0
  %3967 = vmatprep.mubr.bf16.mxu0 0
  %3968 = vmatmul.mubr.bf16.gmra.mrb[0].mxu0 %v313
  %v3969 = vpop.f32.mrb[0].mxu0
  %v3970 = vadd.f32 %v3778, %v3969
  %v3971 = vpop.f32.mrb[0].mxu0
  %v3972 = vpop.f32.mrb[0].mxu0
  %v3973 = vadd.f32 %v3781, %v3972
  %v3974 = vpop.f32.mrb[0].mxu0
  %3975 = vmatprep.mubr.bf16.mxu0 0
  %3976 = vmatmul.mubr.bf16.gmra.mrb[0].mxu0 %v316
  %v3977 = vpop.f32.mrb[0].mxu0
  %v3978 = vadd.f32 %v3786, %v3977
  %v3979 = vpop.f32.mrb[0].mxu0
  %v3980 = vpop.f32.mrb[0].mxu0
  %v3981 = vadd.f32 %v3789, %v3980
  %v3982 = vpop.f32.mrb[0].mxu0
  %3983 = vmatprep.mubr.bf16.mxu0 0
  %3984 = vmatmul.mubr.bf16.gmra.mrb[0].mxu0 %v319
  %v3985 = vpop.f32.mrb[0].mxu0
  %v3986 = vadd.f32 %v3794, %v3985
  %v3987 = vpop.f32.mrb[0].mxu0
  %v3988 = vpop.f32.mrb[0].mxu0
  %v3989 = vadd.f32 %v3797, %v3988
  %v3990 = vpop.f32.mrb[0].mxu0
  %3991 = vmatprep.mubr.bf16.mxu0 0
  %3992 = vmatmul.mubr.bf16.gmra.mrb[0].mxu0 %v322
  %v3993 = vpop.f32.mrb[0].mxu0
  %v3994 = vadd.f32 %v3802, %v3993
  %v3995 = vpop.f32.mrb[0].mxu0
  %v3996 = vpop.f32.mrb[0].mxu0
  %v3997 = vpop.f32.mrb[0].mxu0
  %3998 = vdwg.mxu0
  %v3999 = vadd.f32 %v3906, %v3970
  %v4000 = vadd.f32 %v3909, %v3973
  %v4001 = vadd.f32 %v3914, %v3978
  %v4002 = vadd.f32 %v3917, %v3981
  %v4003 = vadd.f32 %v3922, %v3986
  %v4004 = vadd.f32 %v3925, %v3989
  %v4005 = vadd.f32 %v3930, %v3994
  %v4006 = vadd.f32 %v3999, %v3842
  %v4007 = vadd.f32 %v4000, %v3845
  %v4008 = vadd.f32 %v4001, %v3850
  %v4009 = vadd.f32 %v4002, %v3853
  %v4010 = vadd.f32 %v4003, %v3858
  %v4011 = vadd.f32 %v4004, %v3861
  %v4012 = vadd.f32 %v4005, %v3866
  %v4013 = vadd.f32 %v4006, %v797
  %v4014 = vadd.f32 %v4007, %v797
  %v4015 = vadd.f32 %v4008, %v797
  %v4016 = vadd.f32 %v4009, %v797
  %v4017 = vadd.f32 %v4010, %v797
  %v4018 = vadd.f32 %v4011, %v797
  %v4019 = vadd.f32 %v4012, %v797
  %v4020 = vmax.f32 %v4013, 0.0
  %v4021 = vmax.f32 %v4014, 0.0
  %v4022 = vmax.f32 %v4015, 0.0
  %v4023 = vmax.f32 %v4016, 0.0
  %v4024 = vmax.f32 %v4017, 0.0
  %v4025 = vmax.f32 %v4018, 0.0
  %v4026 = vmax.f32 %v4019, 0.0
  %v4027 = vmax.f32 %v2731, %v3324
  %v4028 = vmax.f32 %v2732, %v3325
  %v4029 = vmax.f32 %v2733, %v3326
  %v4030 = vmax.f32 %v2734, %v3327
  %v4031 = vmax.f32 %v2735, %v3328
  %v4032 = vmax.f32 %v2736, %v3329
  %v4033 = vmax.f32 %v2737, %v3330
  %v4034 = vmax.f32 %v3672, %v4020
  %v4035 = vmax.f32 %v3673, %v4021
  %v4036 = vmax.f32 %v3674, %v4022
  %v4037 = vmax.f32 %v3675, %v4023
  %v4038 = vmax.f32 %v3676, %v4024
  %v4039 = vmax.f32 %v3677, %v4025
  %v4040 = vmax.f32 %v3678, %v4026
  %v4041 = vmax.f32 %v4027, %v4034
  %v4042 = vmax.f32 %v4028, %v4035
  %v4043 = vmax.f32 %v4029, %v4036
  %v4044 = vmax.f32 %v4030, %v4037
  %v4045 = vmax.f32 %v4031, %v4038
  %v4046 = vmax.f32 %v4032, %v4039
  %v4047 = vmax.f32 %v4033, %v4040
  %v4048 = vpack.c.bf16 %v4042, %v4041
  %v4049 = vpack.c.bf16 %v4044, %v4043
  %v4050 = vpack.c.bf16 %v4046, %v4045
  %v4051 = vpack.c.bf16 %v4047, %v4047
  %4052 = vmatprep.subr.bf16.mxu0 0
  %4053 = vmatpush1.bf16.msra.mxu0 %v143
  %4054 = vmatprep.subr.bf16.mxu0 0
  %4055 = vmatpush1.bf16.msra.mxu0 %v144
  %4056 = vmatprep.subr.bf16.mxu0 0
  %4057 = vmatpush1.bf16.msra.mxu0 %v145
  %4058 = vmatprep.subr.bf16.mxu0 0
  %4059 = vmatpush1.bf16.msra.mxu0 %v146
  %4060 = vmatprep.subr.bf16.mxu0 0
  %4061 = vmatpush1.bf16.msra.mxu0 %v147
  %4062 = vmatprep.subr.bf16.mxu0 0
  %4063 = vmatpush1.bf16.msra.mxu0 %v148
  %4064 = vmatprep.subr.bf16.mxu0 0
  %4065 = vmatpush1.bf16.msra.mxu0 0
  %4066 = vmatprep.subr.bf16.mxu0 0
  %4067 = vmatpush1.bf16.msra.mxu0 0
  %4068 = vmatprep.subr.bf16.mxu0 0
  %4069 = vmatpush1.bf16.msra.mxu0 0
  %4070 = vmatprep.subr.bf16.mxu0 0
  %4071 = vmatpush1.bf16.msra.mxu0 0
  %4072 = vmatprep.subr.bf16.mxu0 0
  %4073 = vmatpush1.bf16.msra.mxu0 0
  %4074 = vmatprep.subr.bf16.mxu0 0
  %4075 = vmatpush1.bf16.msra.mxu0 0
  %4076 = vmatprep.subr.bf16.mxu0 0
  %4077 = vmatpush1.bf16.msra.mxu0 0
  %4078 = vmatprep.subr.bf16.mxu0 0
  %4079 = vmatpush1.bf16.msra.mxu0 0
  %4080 = vmatprep.subr.bf16.mxu0 0
  %4081 = vmatpush1.bf16.msra.mxu0 0
  %4082 = vmatprep.subr.bf16.mxu0 0
  %4083 = vmatpush1.bf16.msra.mxu0 0
  %4084 = vmatprep.mubr.bf16.mxu0 0
  %4085 = vmatmul.mubr.bf16.gmra.mrb[0].mxu0 %v313
  %v4086 = vpop.f32.mrb[0].mxu0
  %v4087 = vadd.f32 0.0, %v4086
  %v4088 = vpop.f32.mrb[0].mxu0
  %v4089 = vpop.f32.mrb[0].mxu0
  %v4090 = vadd.f32 0.0, %v4089
  %v4091 = vpop.f32.mrb[0].mxu0
  %4092 = vmatprep.mubr.bf16.mxu0 0
  %4093 = vmatmul.mubr.bf16.gmra.mrb[0].mxu0 %v316
  %v4094 = vpop.f32.mrb[0].mxu0
  %v4095 = vadd.f32 0.0, %v4094
  %v4096 = vpop.f32.mrb[0].mxu0
  %v4097 = vpop.f32.mrb[0].mxu0
  %v4098 = vadd.f32 0.0, %v4097
  %v4099 = vpop.f32.mrb[0].mxu0
  %4100 = vmatprep.mubr.bf16.mxu0 0
  %4101 = vmatmul.mubr.bf16.gmra.mrb[0].mxu0 %v319
  %v4102 = vpop.f32.mrb[0].mxu0
  %v4103 = vadd.f32 0.0, %v4102
  %v4104 = vpop.f32.mrb[0].mxu0
  %v4105 = vpop.f32.mrb[0].mxu0
  %v4106 = vadd.f32 0.0, %v4105
  %v4107 = vpop.f32.mrb[0].mxu0
  %4108 = vmatprep.mubr.bf16.mxu0 0
  %4109 = vmatmul.mubr.bf16.gmra.mrb[0].mxu0 %v322
  %v4110 = vpop.f32.mrb[0].mxu0
  %v4111 = vadd.f32 0.0, %v4110
  %v4112 = vpop.f32.mrb[0].mxu0
  %v4113 = vpop.f32.mrb[0].mxu0
  %v4114 = vpop.f32.mrb[0].mxu0
  %4115 = vdwg.mxu0
  %4116 = vmatprep.subr.bf16.mxu0 0
  %4117 = vmatpush1.bf16.msra.mxu0 %v300
  %4118 = vmatprep.subr.bf16.mxu0 0
  %4119 = vmatpush1.bf16.msra.mxu0 %v301
  %4120 = vmatprep.subr.bf16.mxu0 0
  %4121 = vmatpush1.bf16.msra.mxu0 %v302
  %4122 = vmatprep.subr.bf16.mxu0 0
  %4123 = vmatpush1.bf16.msra.mxu0 %v303
  %4124 = vmatprep.subr.bf16.mxu0 0
  %4125 = vmatpush1.bf16.msra.mxu0 %v304
  %4126 = vmatprep.subr.bf16.mxu0 0
  %4127 = vmatpush1.bf16.msra.mxu0 %v305
  %4128 = vmatprep.subr.bf16.mxu0 0
  %4129 = vmatpush1.bf16.msra.mxu0 0
  %4130 = vmatprep.subr.bf16.mxu0 0
  %4131 = vmatpush1.bf16.msra.mxu0 0
  %4132 = vmatprep.subr.bf16.mxu0 0
  %4133 = vmatpush1.bf16.msra.mxu0 0
  %4134 = vmatprep.subr.bf16.mxu0 0
  %4135 = vmatpush1.bf16.msra.mxu0 0
  %4136 = vmatprep.subr.bf16.mxu0 0
  %4137 = vmatpush1.bf16.msra.mxu0 0
  %4138 = vmatprep.subr.bf16.mxu0 0
  %4139 = vmatpush1.bf16.msra.mxu0 0
  %4140 = vmatprep.subr.bf16.mxu0 0
  %4141 = vmatpush1.bf16.msra.mxu0 0
  %4142 = vmatprep.subr.bf16.mxu0 0
  %4143 = vmatpush1.bf16.msra.mxu0 0
  %4144 = vmatprep.subr.bf16.mxu0 0
  %4145 = vmatpush1.bf16.msra.mxu0 0
  %4146 = vmatprep.subr.bf16.mxu0 0
  %4147 = vmatpush1.bf16.msra.mxu0 0
  %4148 = vmatprep.mubr.bf16.mxu0 0
  %4149 = vmatmul.mubr.bf16.gmra.mrb[0].mxu0 %v1541
  %v4150 = vpop.f32.mrb[0].mxu0
  %v4151 = vadd.f32 0.0, %v4150
  %v4152 = vpop.f32.mrb[0].mxu0
  %v4153 = vpop.f32.mrb[0].mxu0
  %v4154 = vadd.f32 0.0, %v4153
  %v4155 = vpop.f32.mrb[0].mxu0
  %4156 = vmatprep.mubr.bf16.mxu0 0
  %4157 = vmatmul.mubr.bf16.gmra.mrb[0].mxu0 %v1544
  %v4158 = vpop.f32.mrb[0].mxu0
  %v4159 = vadd.f32 0.0, %v4158
  %v4160 = vpop.f32.mrb[0].mxu0
  %v4161 = vpop.f32.mrb[0].mxu0
  %v4162 = vadd.f32 0.0, %v4161
  %v4163 = vpop.f32.mrb[0].mxu0
  %4164 = vmatprep.mubr.bf16.mxu0 0
  %4165 = vmatmul.mubr.bf16.gmra.mrb[0].mxu0 %v1547
  %v4166 = vpop.f32.mrb[0].mxu0
  %v4167 = vadd.f32 0.0, %v4166
  %v4168 = vpop.f32.mrb[0].mxu0
  %v4169 = vpop.f32.mrb[0].mxu0
  %v4170 = vadd.f32 0.0, %v4169
  %v4171 = vpop.f32.mrb[0].mxu0
  %4172 = vmatprep.mubr.bf16.mxu0 0
  %4173 = vmatmul.mubr.bf16.gmra.mrb[0].mxu0 %v1550
  %v4174 = vpop.f32.mrb[0].mxu0
  %v4175 = vadd.f32 0.0, %v4174
  %v4176 = vpop.f32.mrb[0].mxu0
  %v4177 = vpop.f32.mrb[0].mxu0
  %v4178 = vpop.f32.mrb[0].mxu0
  %4179 = vdwg.mxu0
  %v4181 = vunpack.c.l.b16 %v66
  %v4182 = vpack.c.b16 %v658, %v657
  %v4183 = vpack.c.b16 %v660, %v659
  %v4184 = vpack.c.b16 %v662, %v661
  %v4185 = vpack.c.b16 %v4181, %v4181
  %v4187 = vsel %vm155, %v4182, 0
  %v4190 = vsel %vm155, %v4183, 0
  %v4193 = vsel %vm155, %v4184, 0
  %v4196 = vsel %vm155, %v4185, 0
  %4198 = vmatprep.subr.bf16.mxu0 0
  %4199 = vmatpush1.bf16.msra.mxu0 %v443
  %4200 = vmatprep.subr.bf16.mxu0 0
  %4201 = vmatpush1.bf16.msra.mxu0 %v444
  %4202 = vmatprep.subr.bf16.mxu0 0
  %4203 = vmatpush1.bf16.msra.mxu0 %v445
  %4204 = vmatprep.subr.bf16.mxu0 0
  %4205 = vmatpush1.bf16.msra.mxu0 %v446
  %4206 = vmatprep.subr.bf16.mxu0 0
  %4207 = vmatpush1.bf16.msra.mxu0 %v447
  %4208 = vmatprep.subr.bf16.mxu0 0
  %4209 = vmatpush1.bf16.msra.mxu0 %v448
  %4210 = vmatprep.subr.bf16.mxu0 0
  %4211 = vmatpush1.bf16.msra.mxu0 0
  %4212 = vmatprep.subr.bf16.mxu0 0
  %4213 = vmatpush1.bf16.msra.mxu0 0
  %4214 = vmatprep.subr.bf16.mxu0 0
  %4215 = vmatpush1.bf16.msra.mxu0 0
  %4216 = vmatprep.subr.bf16.mxu0 0
  %4217 = vmatpush1.bf16.msra.mxu0 0
  %4218 = vmatprep.subr.bf16.mxu0 0
  %4219 = vmatpush1.bf16.msra.mxu0 0
  %4220 = vmatprep.subr.bf16.mxu0 0
  %4221 = vmatpush1.bf16.msra.mxu0 0
  %4222 = vmatprep.subr.bf16.mxu0 0
  %4223 = vmatpush1.bf16.msra.mxu0 0
  %4224 = vmatprep.subr.bf16.mxu0 0
  %4225 = vmatpush1.bf16.msra.mxu0 0
  %4226 = vmatprep.subr.bf16.mxu0 0
  %4227 = vmatpush1.bf16.msra.mxu0 0
  %4228 = vmatprep.subr.bf16.mxu0 0
  %4229 = vmatpush1.bf16.msra.mxu0 0
  %4230 = vmatprep.mubr.bf16.mxu0 0
  %4231 = vmatmul.mubr.bf16.gmra.mrb[0].mxu0 %v4187
  %v4232 = vpop.f32.mrb[0].mxu0
  %v4233 = vadd.f32 0.0, %v4232
  %v4234 = vpop.f32.mrb[0].mxu0
  %v4235 = vpop.f32.mrb[0].mxu0
  %v4236 = vadd.f32 0.0, %v4235
  %v4237 = vpop.f32.mrb[0].mxu0
  %4238 = vmatprep.mubr.bf16.mxu0 0
  %4239 = vmatmul.mubr.bf16.gmra.mrb[0].mxu0 %v4190
  %v4240 = vpop.f32.mrb[0].mxu0
  %v4241 = vadd.f32 0.0, %v4240
  %v4242 = vpop.f32.mrb[0].mxu0
  %v4243 = vpop.f32.mrb[0].mxu0
  %v4244 = vadd.f32 0.0, %v4243
  %v4245 = vpop.f32.mrb[0].mxu0
  %4246 = vmatprep.mubr.bf16.mxu0 0
  %4247 = vmatmul.mubr.bf16.gmra.mrb[0].mxu0 %v4193
  %v4248 = vpop.f32.mrb[0].mxu0
  %v4249 = vadd.f32 0.0, %v4248
  %v4250 = vpop.f32.mrb[0].mxu0
  %v4251 = vpop.f32.mrb[0].mxu0
  %v4252 = vadd.f32 0.0, %v4251
  %v4253 = vpop.f32.mrb[0].mxu0
  %4254 = vmatprep.mubr.bf16.mxu0 0
  %4255 = vmatmul.mubr.bf16.gmra.mrb[0].mxu0 %v4196
  %v4256 = vpop.f32.mrb[0].mxu0
  %v4257 = vadd.f32 0.0, %v4256
  %v4258 = vpop.f32.mrb[0].mxu0
  %v4259 = vpop.f32.mrb[0].mxu0
  %v4260 = vpop.f32.mrb[0].mxu0
  %4261 = vdwg.mxu0
  %4262 = vmatprep.subr.bf16.mxu0 0
  %4263 = vmatpush1.bf16.msra.mxu0 %v561
  %4264 = vmatprep.subr.bf16.mxu0 0
  %4265 = vmatpush1.bf16.msra.mxu0 %v562
  %4266 = vmatprep.subr.bf16.mxu0 0
  %4267 = vmatpush1.bf16.msra.mxu0 %v563
  %4268 = vmatprep.subr.bf16.mxu0 0
  %4269 = vmatpush1.bf16.msra.mxu0 %v564
  %4270 = vmatprep.subr.bf16.mxu0 0
  %4271 = vmatpush1.bf16.msra.mxu0 %v565
  %4272 = vmatprep.subr.bf16.mxu0 0
  %4273 = vmatpush1.bf16.msra.mxu0 %v566
  %4274 = vmatprep.subr.bf16.mxu0 0
  %4275 = vmatpush1.bf16.msra.mxu0 0
  %4276 = vmatprep.subr.bf16.mxu0 0
  %4277 = vmatpush1.bf16.msra.mxu0 0
  %4278 = vmatprep.subr.bf16.mxu0 0
  %4279 = vmatpush1.bf16.msra.mxu0 0
  %4280 = vmatprep.subr.bf16.mxu0 0
  %4281 = vmatpush1.bf16.msra.mxu0 0
  %4282 = vmatprep.subr.bf16.mxu0 0
  %4283 = vmatpush1.bf16.msra.mxu0 0
  %4284 = vmatprep.subr.bf16.mxu0 0
  %4285 = vmatpush1.bf16.msra.mxu0 0
  %4286 = vmatprep.subr.bf16.mxu0 0
  %4287 = vmatpush1.bf16.msra.mxu0 0
  %4288 = vmatprep.subr.bf16.mxu0 0
  %4289 = vmatpush1.bf16.msra.mxu0 0
  %4290 = vmatprep.subr.bf16.mxu0 0
  %4291 = vmatpush1.bf16.msra.mxu0 0
  %4292 = vmatprep.subr.bf16.mxu0 0
  %4293 = vmatpush1.bf16.msra.mxu0 0
  %4294 = vmatprep.mubr.bf16.mxu0 0
  %4295 = vmatmul.mubr.bf16.gmra.mrb[0].mxu0 %v704
  %v4296 = vpop.f32.mrb[0].mxu0
  %v4297 = vadd.f32 %v4087, %v4296
  %v4298 = vpop.f32.mrb[0].mxu0
  %v4299 = vpop.f32.mrb[0].mxu0
  %v4300 = vadd.f32 %v4090, %v4299
  %v4301 = vpop.f32.mrb[0].mxu0
  %4302 = vmatprep.mubr.bf16.mxu0 0
  %4303 = vmatmul.mubr.bf16.gmra.mrb[0].mxu0 %v707
  %v4304 = vpop.f32.mrb[0].mxu0
  %v4305 = vadd.f32 %v4095, %v4304
  %v4306 = vpop.f32.mrb[0].mxu0
  %v4307 = vpop.f32.mrb[0].mxu0
  %v4308 = vadd.f32 %v4098, %v4307
  %v4309 = vpop.f32.mrb[0].mxu0
  %4310 = vmatprep.mubr.bf16.mxu0 0
  %4311 = vmatmul.mubr.bf16.gmra.mrb[0].mxu0 %v710
  %v4312 = vpop.f32.mrb[0].mxu0
  %v4313 = vadd.f32 %v4103, %v4312
  %v4314 = vpop.f32.mrb[0].mxu0
  %v4315 = vpop.f32.mrb[0].mxu0
  %v4316 = vadd.f32 %v4106, %v4315
  %v4317 = vpop.f32.mrb[0].mxu0
  %4318 = vmatprep.mubr.bf16.mxu0 0
  %4319 = vmatmul.mubr.bf16.gmra.mrb[0].mxu0 %v713
  %v4320 = vpop.f32.mrb[0].mxu0
  %v4321 = vadd.f32 %v4111, %v4320
  %v4322 = vpop.f32.mrb[0].mxu0
  %v4323 = vpop.f32.mrb[0].mxu0
  %v4324 = vpop.f32.mrb[0].mxu0
  %4325 = vdwg.mxu0
  %4326 = vmatprep.subr.bf16.mxu0 0
  %4327 = vmatpush1.bf16.msra.mxu0 %v691
  %4328 = vmatprep.subr.bf16.mxu0 0
  %4329 = vmatpush1.bf16.msra.mxu0 %v692
  %4330 = vmatprep.subr.bf16.mxu0 0
  %4331 = vmatpush1.bf16.msra.mxu0 %v693
  %4332 = vmatprep.subr.bf16.mxu0 0
  %4333 = vmatpush1.bf16.msra.mxu0 %v694
  %4334 = vmatprep.subr.bf16.mxu0 0
  %4335 = vmatpush1.bf16.msra.mxu0 %v695
  %4336 = vmatprep.subr.bf16.mxu0 0
  %4337 = vmatpush1.bf16.msra.mxu0 %v696
  %4338 = vmatprep.subr.bf16.mxu0 0
  %4339 = vmatpush1.bf16.msra.mxu0 0
  %4340 = vmatprep.subr.bf16.mxu0 0
  %4341 = vmatpush1.bf16.msra.mxu0 0
  %4342 = vmatprep.subr.bf16.mxu0 0
  %4343 = vmatpush1.bf16.msra.mxu0 0
  %4344 = vmatprep.subr.bf16.mxu0 0
  %4345 = vmatpush1.bf16.msra.mxu0 0
  %4346 = vmatprep.subr.bf16.mxu0 0
  %4347 = vmatpush1.bf16.msra.mxu0 0
  %4348 = vmatprep.subr.bf16.mxu0 0
  %4349 = vmatpush1.bf16.msra.mxu0 0
  %4350 = vmatprep.subr.bf16.mxu0 0
  %4351 = vmatpush1.bf16.msra.mxu0 0
  %4352 = vmatprep.subr.bf16.mxu0 0
  %4353 = vmatpush1.bf16.msra.mxu0 0
  %4354 = vmatprep.subr.bf16.mxu0 0
  %4355 = vmatpush1.bf16.msra.mxu0 0
  %4356 = vmatprep.subr.bf16.mxu0 0
  %4357 = vmatpush1.bf16.msra.mxu0 0
  %4358 = vmatprep.mubr.bf16.mxu0 0
  %4359 = vmatmul.mubr.bf16.gmra.mrb[0].mxu0 %v456
  %v4360 = vpop.f32.mrb[0].mxu0
  %v4361 = vadd.f32 %v4151, %v4360
  %v4362 = vpop.f32.mrb[0].mxu0
  %v4363 = vpop.f32.mrb[0].mxu0
  %v4364 = vadd.f32 %v4154, %v4363
  %v4365 = vpop.f32.mrb[0].mxu0
  %4366 = vmatprep.mubr.bf16.mxu0 0
  %4367 = vmatmul.mubr.bf16.gmra.mrb[0].mxu0 %v459
  %v4368 = vpop.f32.mrb[0].mxu0
  %v4369 = vadd.f32 %v4159, %v4368
  %v4370 = vpop.f32.mrb[0].mxu0
  %v4371 = vpop.f32.mrb[0].mxu0
  %v4372 = vadd.f32 %v4162, %v4371
  %v4373 = vpop.f32.mrb[0].mxu0
  %4374 = vmatprep.mubr.bf16.mxu0 0
  %4375 = vmatmul.mubr.bf16.gmra.mrb[0].mxu0 %v462
  %v4376 = vpop.f32.mrb[0].mxu0
  %v4377 = vadd.f32 %v4167, %v4376
  %v4378 = vpop.f32.mrb[0].mxu0
  %v4379 = vpop.f32.mrb[0].mxu0
  %v4380 = vadd.f32 %v4170, %v4379
  %v4381 = vpop.f32.mrb[0].mxu0
  %4382 = vmatprep.mubr.bf16.mxu0 0
  %4383 = vmatmul.mubr.bf16.gmra.mrb[0].mxu0 %v465
  %v4384 = vpop.f32.mrb[0].mxu0
  %v4385 = vadd.f32 %v4175, %v4384
  %v4386 = vpop.f32.mrb[0].mxu0
  %v4387 = vpop.f32.mrb[0].mxu0
  %v4388 = vpop.f32.mrb[0].mxu0
  %4389 = vdwg.mxu0
  %v4390 = vadd.f32 %v4297, %v4361
  %v4391 = vadd.f32 %v4300, %v4364
  %v4392 = vadd.f32 %v4305, %v4369
  %v4393 = vadd.f32 %v4308, %v4372
  %v4394 = vadd.f32 %v4313, %v4377
  %v4395 = vadd.f32 %v4316, %v4380
  %v4396 = vadd.f32 %v4321, %v4385
  %v4397 = vadd.f32 %v4390, %v4233
  %v4398 = vadd.f32 %v4391, %v4236
  %v4399 = vadd.f32 %v4392, %v4241
  %v4400 = vadd.f32 %v4393, %v4244
  %v4401 = vadd.f32 %v4394, %v4249
  %v4402 = vadd.f32 %v4395, %v4252
  %v4403 = vadd.f32 %v4396, %v4257
  %v4404 = vadd.f32 %v4397, %v797
  %v4405 = vadd.f32 %v4398, %v797
  %v4406 = vadd.f32 %v4399, %v797
  %v4407 = vadd.f32 %v4400, %v797
  %v4408 = vadd.f32 %v4401, %v797
  %v4409 = vadd.f32 %v4402, %v797
  %v4410 = vadd.f32 %v4403, %v797
  %v4411 = vmax.f32 %v4404, 0.0
  %v4412 = vmax.f32 %v4405, 0.0
  %v4413 = vmax.f32 %v4406, 0.0
  %v4414 = vmax.f32 %v4407, 0.0
  %v4415 = vmax.f32 %v4408, 0.0
  %v4416 = vmax.f32 %v4409, 0.0
  %v4417 = vmax.f32 %v4410, 0.0
  %4418 = vmatprep.subr.bf16.mxu0 0
  %4419 = vmatpush1.bf16.msra.mxu0 %v863
  %4420 = vmatprep.subr.bf16.mxu0 0
  %4421 = vmatpush1.bf16.msra.mxu0 %v864
  %4422 = vmatprep.subr.bf16.mxu0 0
  %4423 = vmatpush1.bf16.msra.mxu0 %v865
  %4424 = vmatprep.subr.bf16.mxu0 0
  %4425 = vmatpush1.bf16.msra.mxu0 %v866
  %4426 = vmatprep.subr.bf16.mxu0 0
  %4427 = vmatpush1.bf16.msra.mxu0 %v867
  %4428 = vmatprep.subr.bf16.mxu0 0
  %4429 = vmatpush1.bf16.msra.mxu0 %v868
  %4430 = vmatprep.subr.bf16.mxu0 0
  %4431 = vmatpush1.bf16.msra.mxu0 0
  %4432 = vmatprep.subr.bf16.mxu0 0
  %4433 = vmatpush1.bf16.msra.mxu0 0
  %4434 = vmatprep.subr.bf16.mxu0 0
  %4435 = vmatpush1.bf16.msra.mxu0 0
  %4436 = vmatprep.subr.bf16.mxu0 0
  %4437 = vmatpush1.bf16.msra.mxu0 0
  %4438 = vmatprep.subr.bf16.mxu0 0
  %4439 = vmatpush1.bf16.msra.mxu0 0
  %4440 = vmatprep.subr.bf16.mxu0 0
  %4441 = vmatpush1.bf16.msra.mxu0 0
  %4442 = vmatprep.subr.bf16.mxu0 0
  %4443 = vmatpush1.bf16.msra.mxu0 0
  %4444 = vmatprep.subr.bf16.mxu0 0
  %4445 = vmatpush1.bf16.msra.mxu0 0
  %4446 = vmatprep.subr.bf16.mxu0 0
  %4447 = vmatpush1.bf16.msra.mxu0 0
  %4448 = vmatprep.subr.bf16.mxu0 0
  %4449 = vmatpush1.bf16.msra.mxu0 0
  %4450 = vmatprep.mubr.bf16.mxu0 0
  %4451 = vmatmul.mubr.bf16.gmra.mrb[0].mxu0 %v313
  %v4452 = vpop.f32.mrb[0].mxu0
  %v4453 = vadd.f32 0.0, %v4452
  %v4454 = vpop.f32.mrb[0].mxu0
  %v4455 = vpop.f32.mrb[0].mxu0
  %v4456 = vadd.f32 0.0, %v4455
  %v4457 = vpop.f32.mrb[0].mxu0
  %4458 = vmatprep.mubr.bf16.mxu0 0
  %4459 = vmatmul.mubr.bf16.gmra.mrb[0].mxu0 %v316
  %v4460 = vpop.f32.mrb[0].mxu0
  %v4461 = vadd.f32 0.0, %v4460
  %v4462 = vpop.f32.mrb[0].mxu0
  %v4463 = vpop.f32.mrb[0].mxu0
  %v4464 = vadd.f32 0.0, %v4463
  %v4465 = vpop.f32.mrb[0].mxu0
  %4466 = vmatprep.mubr.bf16.mxu0 0
  %4467 = vmatmul.mubr.bf16.gmra.mrb[0].mxu0 %v319
  %v4468 = vpop.f32.mrb[0].mxu0
  %v4469 = vadd.f32 0.0, %v4468
  %v4470 = vpop.f32.mrb[0].mxu0
  %v4471 = vpop.f32.mrb[0].mxu0
  %v4472 = vadd.f32 0.0, %v4471
  %v4473 = vpop.f32.mrb[0].mxu0
  %4474 = vmatprep.mubr.bf16.mxu0 0
  %4475 = vmatmul.mubr.bf16.gmra.mrb[0].mxu0 %v322
  %v4476 = vpop.f32.mrb[0].mxu0
  %v4477 = vadd.f32 0.0, %v4476
  %v4478 = vpop.f32.mrb[0].mxu0
  %v4479 = vpop.f32.mrb[0].mxu0
  %v4480 = vpop.f32.mrb[0].mxu0
  %4481 = vdwg.mxu0
  %4482 = vmatprep.subr.bf16.mxu0 0
  %4483 = vmatpush1.bf16.msra.mxu0 %v989
  %4484 = vmatprep.subr.bf16.mxu0 0
  %4485 = vmatpush1.bf16.msra.mxu0 %v990
  %4486 = vmatprep.subr.bf16.mxu0 0
  %4487 = vmatpush1.bf16.msra.mxu0 %v991
  %4488 = vmatprep.subr.bf16.mxu0 0
  %4489 = vmatpush1.bf16.msra.mxu0 %v992
  %4490 = vmatprep.subr.bf16.mxu0 0
  %4491 = vmatpush1.bf16.msra.mxu0 %v993
  %4492 = vmatprep.subr.bf16.mxu0 0
  %4493 = vmatpush1.bf16.msra.mxu0 %v994
  %4494 = vmatprep.subr.bf16.mxu0 0
  %4495 = vmatpush1.bf16.msra.mxu0 0
  %4496 = vmatprep.subr.bf16.mxu0 0
  %4497 = vmatpush1.bf16.msra.mxu0 0
  %4498 = vmatprep.subr.bf16.mxu0 0
  %4499 = vmatpush1.bf16.msra.mxu0 0
  %4500 = vmatprep.subr.bf16.mxu0 0
  %4501 = vmatpush1.bf16.msra.mxu0 0
  %4502 = vmatprep.subr.bf16.mxu0 0
  %4503 = vmatpush1.bf16.msra.mxu0 0
  %4504 = vmatprep.subr.bf16.mxu0 0
  %4505 = vmatpush1.bf16.msra.mxu0 0
  %4506 = vmatprep.subr.bf16.mxu0 0
  %4507 = vmatpush1.bf16.msra.mxu0 0
  %4508 = vmatprep.subr.bf16.mxu0 0
  %4509 = vmatpush1.bf16.msra.mxu0 0
  %4510 = vmatprep.subr.bf16.mxu0 0
  %4511 = vmatpush1.bf16.msra.mxu0 0
  %4512 = vmatprep.subr.bf16.mxu0 0
  %4513 = vmatpush1.bf16.msra.mxu0 0
  %4514 = vmatprep.mubr.bf16.mxu0 0
  %4515 = vmatmul.mubr.bf16.gmra.mrb[0].mxu0 %v1541
  %v4516 = vpop.f32.mrb[0].mxu0
  %v4517 = vadd.f32 0.0, %v4516
  %v4518 = vpop.f32.mrb[0].mxu0
  %v4519 = vpop.f32.mrb[0].mxu0
  %v4520 = vadd.f32 0.0, %v4519
  %v4521 = vpop.f32.mrb[0].mxu0
  %4522 = vmatprep.mubr.bf16.mxu0 0
  %4523 = vmatmul.mubr.bf16.gmra.mrb[0].mxu0 %v1544
  %v4524 = vpop.f32.mrb[0].mxu0
  %v4525 = vadd.f32 0.0, %v4524
  %v4526 = vpop.f32.mrb[0].mxu0
  %v4527 = vpop.f32.mrb[0].mxu0
  %v4528 = vadd.f32 0.0, %v4527
  %v4529 = vpop.f32.mrb[0].mxu0
  %4530 = vmatprep.mubr.bf16.mxu0 0
  %4531 = vmatmul.mubr.bf16.gmra.mrb[0].mxu0 %v1547
  %v4532 = vpop.f32.mrb[0].mxu0
  %v4533 = vadd.f32 0.0, %v4532
  %v4534 = vpop.f32.mrb[0].mxu0
  %v4535 = vpop.f32.mrb[0].mxu0
  %v4536 = vadd.f32 0.0, %v4535
  %v4537 = vpop.f32.mrb[0].mxu0
  %4538 = vmatprep.mubr.bf16.mxu0 0
  %4539 = vmatmul.mubr.bf16.gmra.mrb[0].mxu0 %v1550
  %v4540 = vpop.f32.mrb[0].mxu0
  %v4541 = vadd.f32 0.0, %v4540
  %v4542 = vpop.f32.mrb[0].mxu0
  %v4543 = vpop.f32.mrb[0].mxu0
  %v4544 = vpop.f32.mrb[0].mxu0
  %4545 = vdwg.mxu0
  %4546 = vmatprep.subr.bf16.mxu0 0
  %4547 = vmatpush1.bf16.msra.mxu0 %v1102
  %4548 = vmatprep.subr.bf16.mxu0 0
  %4549 = vmatpush1.bf16.msra.mxu0 %v1103
  %4550 = vmatprep.subr.bf16.mxu0 0
  %4551 = vmatpush1.bf16.msra.mxu0 %v1104
  %4552 = vmatprep.subr.bf16.mxu0 0
  %4553 = vmatpush1.bf16.msra.mxu0 %v1105
  %4554 = vmatprep.subr.bf16.mxu0 0
  %4555 = vmatpush1.bf16.msra.mxu0 %v1106
  %4556 = vmatprep.subr.bf16.mxu0 0
  %4557 = vmatpush1.bf16.msra.mxu0 %v1107
  %4558 = vmatprep.subr.bf16.mxu0 0
  %4559 = vmatpush1.bf16.msra.mxu0 0
  %4560 = vmatprep.subr.bf16.mxu0 0
  %4561 = vmatpush1.bf16.msra.mxu0 0
  %4562 = vmatprep.subr.bf16.mxu0 0
  %4563 = vmatpush1.bf16.msra.mxu0 0
  %4564 = vmatprep.subr.bf16.mxu0 0
  %4565 = vmatpush1.bf16.msra.mxu0 0
  %4566 = vmatprep.subr.bf16.mxu0 0
  %4567 = vmatpush1.bf16.msra.mxu0 0
  %4568 = vmatprep.subr.bf16.mxu0 0
  %4569 = vmatpush1.bf16.msra.mxu0 0
  %4570 = vmatprep.subr.bf16.mxu0 0
  %4571 = vmatpush1.bf16.msra.mxu0 0
  %4572 = vmatprep.subr.bf16.mxu0 0
  %4573 = vmatpush1.bf16.msra.mxu0 0
  %4574 = vmatprep.subr.bf16.mxu0 0
  %4575 = vmatpush1.bf16.msra.mxu0 0
  %4576 = vmatprep.subr.bf16.mxu0 0
  %4577 = vmatpush1.bf16.msra.mxu0 0
  %4578 = vmatprep.mubr.bf16.mxu0 0
  %4579 = vmatmul.mubr.bf16.gmra.mrb[0].mxu0 %v4187
  %v4580 = vpop.f32.mrb[0].mxu0
  %v4581 = vadd.f32 0.0, %v4580
  %v4582 = vpop.f32.mrb[0].mxu0
  %v4583 = vpop.f32.mrb[0].mxu0
  %v4584 = vadd.f32 0.0, %v4583
  %v4585 = vpop.f32.mrb[0].mxu0
  %4586 = vmatprep.mubr.bf16.mxu0 0
  %4587 = vmatmul.mubr.bf16.gmra.mrb[0].mxu0 %v4190
  %v4588 = vpop.f32.mrb[0].mxu0
  %v4589 = vadd.f32 0.0, %v4588
  %v4590 = vpop.f32.mrb[0].mxu0
  %v4591 = vpop.f32.mrb[0].mxu0
  %v4592 = vadd.f32 0.0, %v4591
  %v4593 = vpop.f32.mrb[0].mxu0
  %4594 = vmatprep.mubr.bf16.mxu0 0
  %4595 = vmatmul.mubr.bf16.gmra.mrb[0].mxu0 %v4193
  %v4596 = vpop.f32.mrb[0].mxu0
  %v4597 = vadd.f32 0.0, %v4596
  %v4598 = vpop.f32.mrb[0].mxu0
  %v4599 = vpop.f32.mrb[0].mxu0
  %v4600 = vadd.f32 0.0, %v4599
  %v4601 = vpop.f32.mrb[0].mxu0
  %4602 = vmatprep.mubr.bf16.mxu0 0
  %4603 = vmatmul.mubr.bf16.gmra.mrb[0].mxu0 %v4196
  %v4604 = vpop.f32.mrb[0].mxu0
  %v4605 = vadd.f32 0.0, %v4604
  %v4606 = vpop.f32.mrb[0].mxu0
  %v4607 = vpop.f32.mrb[0].mxu0
  %v4608 = vpop.f32.mrb[0].mxu0
  %4609 = vdwg.mxu0
  %4610 = vmatprep.subr.bf16.mxu0 0
  %4611 = vmatpush1.bf16.msra.mxu0 %v1202
  %4612 = vmatprep.subr.bf16.mxu0 0
  %4613 = vmatpush1.bf16.msra.mxu0 %v1203
  %4614 = vmatprep.subr.bf16.mxu0 0
  %4615 = vmatpush1.bf16.msra.mxu0 %v1204
  %4616 = vmatprep.subr.bf16.mxu0 0
  %4617 = vmatpush1.bf16.msra.mxu0 %v1205
  %4618 = vmatprep.subr.bf16.mxu0 0
  %4619 = vmatpush1.bf16.msra.mxu0 %v1206
  %4620 = vmatprep.subr.bf16.mxu0 0
  %4621 = vmatpush1.bf16.msra.mxu0 %v1207
  %4622 = vmatprep.subr.bf16.mxu0 0
  %4623 = vmatpush1.bf16.msra.mxu0 0
  %4624 = vmatprep.subr.bf16.mxu0 0
  %4625 = vmatpush1.bf16.msra.mxu0 0
  %4626 = vmatprep.subr.bf16.mxu0 0
  %4627 = vmatpush1.bf16.msra.mxu0 0
  %4628 = vmatprep.subr.bf16.mxu0 0
  %4629 = vmatpush1.bf16.msra.mxu0 0
  %4630 = vmatprep.subr.bf16.mxu0 0
  %4631 = vmatpush1.bf16.msra.mxu0 0
  %4632 = vmatprep.subr.bf16.mxu0 0
  %4633 = vmatpush1.bf16.msra.mxu0 0
  %4634 = vmatprep.subr.bf16.mxu0 0
  %4635 = vmatpush1.bf16.msra.mxu0 0
  %4636 = vmatprep.subr.bf16.mxu0 0
  %4637 = vmatpush1.bf16.msra.mxu0 0
  %4638 = vmatprep.subr.bf16.mxu0 0
  %4639 = vmatpush1.bf16.msra.mxu0 0
  %4640 = vmatprep.subr.bf16.mxu0 0
  %4641 = vmatpush1.bf16.msra.mxu0 0
  %4642 = vmatprep.mubr.bf16.mxu0 0
  %4643 = vmatmul.mubr.bf16.gmra.mrb[0].mxu0 %v704
  %v4644 = vpop.f32.mrb[0].mxu0
  %v4645 = vadd.f32 %v4453, %v4644
  %v4646 = vpop.f32.mrb[0].mxu0
  %v4647 = vpop.f32.mrb[0].mxu0
  %v4648 = vadd.f32 %v4456, %v4647
  %v4649 = vpop.f32.mrb[0].mxu0
  %4650 = vmatprep.mubr.bf16.mxu0 0
  %4651 = vmatmul.mubr.bf16.gmra.mrb[0].mxu0 %v707
  %v4652 = vpop.f32.mrb[0].mxu0
  %v4653 = vadd.f32 %v4461, %v4652
  %v4654 = vpop.f32.mrb[0].mxu0
  %v4655 = vpop.f32.mrb[0].mxu0
  %v4656 = vadd.f32 %v4464, %v4655
  %v4657 = vpop.f32.mrb[0].mxu0
  %4658 = vmatprep.mubr.bf16.mxu0 0
  %4659 = vmatmul.mubr.bf16.gmra.mrb[0].mxu0 %v710
  %v4660 = vpop.f32.mrb[0].mxu0
  %v4661 = vadd.f32 %v4469, %v4660
  %v4662 = vpop.f32.mrb[0].mxu0
  %v4663 = vpop.f32.mrb[0].mxu0
  %v4664 = vadd.f32 %v4472, %v4663
  %v4665 = vpop.f32.mrb[0].mxu0
  %4666 = vmatprep.mubr.bf16.mxu0 0
  %4667 = vmatmul.mubr.bf16.gmra.mrb[0].mxu0 %v713
  %v4668 = vpop.f32.mrb[0].mxu0
  %v4669 = vadd.f32 %v4477, %v4668
  %v4670 = vpop.f32.mrb[0].mxu0
  %v4671 = vpop.f32.mrb[0].mxu0
  %v4672 = vpop.f32.mrb[0].mxu0
  %4673 = vdwg.mxu0
  %4674 = vmatprep.subr.bf16.mxu0 0
  %4675 = vmatpush1.bf16.msra.mxu0 %v1302
  %4676 = vmatprep.subr.bf16.mxu0 0
  %4677 = vmatpush1.bf16.msra.mxu0 %v1303
  %4678 = vmatprep.subr.bf16.mxu0 0
  %4679 = vmatpush1.bf16.msra.mxu0 %v1304
  %4680 = vmatprep.subr.bf16.mxu0 0
  %4681 = vmatpush1.bf16.msra.mxu0 %v1305
  %4682 = vmatprep.subr.bf16.mxu0 0
  %4683 = vmatpush1.bf16.msra.mxu0 %v1306
  %4684 = vmatprep.subr.bf16.mxu0 0
  %4685 = vmatpush1.bf16.msra.mxu0 %v1307
  %4686 = vmatprep.subr.bf16.mxu0 0
  %4687 = vmatpush1.bf16.msra.mxu0 0
  %4688 = vmatprep.subr.bf16.mxu0 0
  %4689 = vmatpush1.bf16.msra.mxu0 0
  %4690 = vmatprep.subr.bf16.mxu0 0
  %4691 = vmatpush1.bf16.msra.mxu0 0
  %4692 = vmatprep.subr.bf16.mxu0 0
  %4693 = vmatpush1.bf16.msra.mxu0 0
  %4694 = vmatprep.subr.bf16.mxu0 0
  %4695 = vmatpush1.bf16.msra.mxu0 0
  %4696 = vmatprep.subr.bf16.mxu0 0
  %4697 = vmatpush1.bf16.msra.mxu0 0
  %4698 = vmatprep.subr.bf16.mxu0 0
  %4699 = vmatpush1.bf16.msra.mxu0 0
  %4700 = vmatprep.subr.bf16.mxu0 0
  %4701 = vmatpush1.bf16.msra.mxu0 0
  %4702 = vmatprep.subr.bf16.mxu0 0
  %4703 = vmatpush1.bf16.msra.mxu0 0
  %4704 = vmatprep.subr.bf16.mxu0 0
  %4705 = vmatpush1.bf16.msra.mxu0 0
  %4706 = vmatprep.mubr.bf16.mxu0 0
  %4707 = vmatmul.mubr.bf16.gmra.mrb[0].mxu0 %v456
  %v4708 = vpop.f32.mrb[0].mxu0
  %v4709 = vadd.f32 %v4517, %v4708
  %v4710 = vpop.f32.mrb[0].mxu0
  %v4711 = vpop.f32.mrb[0].mxu0
  %v4712 = vadd.f32 %v4520, %v4711
  %v4713 = vpop.f32.mrb[0].mxu0
  %4714 = vmatprep.mubr.bf16.mxu0 0
  %4715 = vmatmul.mubr.bf16.gmra.mrb[0].mxu0 %v459
  %v4716 = vpop.f32.mrb[0].mxu0
  %v4717 = vadd.f32 %v4525, %v4716
  %v4718 = vpop.f32.mrb[0].mxu0
  %v4719 = vpop.f32.mrb[0].mxu0
  %v4720 = vadd.f32 %v4528, %v4719
  %v4721 = vpop.f32.mrb[0].mxu0
  %4722 = vmatprep.mubr.bf16.mxu0 0
  %4723 = vmatmul.mubr.bf16.gmra.mrb[0].mxu0 %v462
  %v4724 = vpop.f32.mrb[0].mxu0
  %v4725 = vadd.f32 %v4533, %v4724
  %v4726 = vpop.f32.mrb[0].mxu0
  %v4727 = vpop.f32.mrb[0].mxu0
  %v4728 = vadd.f32 %v4536, %v4727
  %v4729 = vpop.f32.mrb[0].mxu0
  %4730 = vmatprep.mubr.bf16.mxu0 0
  %4731 = vmatmul.mubr.bf16.gmra.mrb[0].mxu0 %v465
  %v4732 = vpop.f32.mrb[0].mxu0
  %v4733 = vadd.f32 %v4541, %v4732
  %v4734 = vpop.f32.mrb[0].mxu0
  %v4735 = vpop.f32.mrb[0].mxu0
  %v4736 = vpop.f32.mrb[0].mxu0
  %4737 = vdwg.mxu0
  %v4738 = vadd.f32 %v4645, %v4709
  %v4739 = vadd.f32 %v4648, %v4712
  %v4740 = vadd.f32 %v4653, %v4717
  %v4741 = vadd.f32 %v4656, %v4720
  %v4742 = vadd.f32 %v4661, %v4725
  %v4743 = vadd.f32 %v4664, %v4728
  %v4744 = vadd.f32 %v4669, %v4733
  %v4745 = vadd.f32 %v4738, %v4581
  %v4746 = vadd.f32 %v4739, %v4584
  %v4747 = vadd.f32 %v4740, %v4589
  %v4748 = vadd.f32 %v4741, %v4592
  %v4749 = vadd.f32 %v4742, %v4597
  %v4750 = vadd.f32 %v4743, %v4600
  %v4751 = vadd.f32 %v4744, %v4605
  %v4752 = vadd.f32 %v4745, %v797
  %v4753 = vadd.f32 %v4746, %v797
  %v4754 = vadd.f32 %v4747, %v797
  %v4755 = vadd.f32 %v4748, %v797
  %v4756 = vadd.f32 %v4749, %v797
  %v4757 = vadd.f32 %v4750, %v797
  %v4758 = vadd.f32 %v4751, %v797
  %v4759 = vmax.f32 %v4752, 0.0
  %v4760 = vmax.f32 %v4753, 0.0
  %v4761 = vmax.f32 %v4754, 0.0
  %v4762 = vmax.f32 %v4755, 0.0
  %v4763 = vmax.f32 %v4756, 0.0
  %v4764 = vmax.f32 %v4757, 0.0
  %v4765 = vmax.f32 %v4758, 0.0
  %4766 = vmatprep.subr.bf16.mxu0 0
  %4767 = vmatpush1.bf16.msra.mxu0 %v143
  %4768 = vmatprep.subr.bf16.mxu0 0
  %4769 = vmatpush1.bf16.msra.mxu0 %v144
  %4770 = vmatprep.subr.bf16.mxu0 0
  %4771 = vmatpush1.bf16.msra.mxu0 %v145
  %4772 = vmatprep.subr.bf16.mxu0 0
  %4773 = vmatpush1.bf16.msra.mxu0 %v146
  %4774 = vmatprep.subr.bf16.mxu0 0
  %4775 = vmatpush1.bf16.msra.mxu0 %v147
  %4776 = vmatprep.subr.bf16.mxu0 0
  %4777 = vmatpush1.bf16.msra.mxu0 %v148
  %4778 = vmatprep.subr.bf16.mxu0 0
  %4779 = vmatpush1.bf16.msra.mxu0 0
  %4780 = vmatprep.subr.bf16.mxu0 0
  %4781 = vmatpush1.bf16.msra.mxu0 0
  %4782 = vmatprep.subr.bf16.mxu0 0
  %4783 = vmatpush1.bf16.msra.mxu0 0
  %4784 = vmatprep.subr.bf16.mxu0 0
  %4785 = vmatpush1.bf16.msra.mxu0 0
  %4786 = vmatprep.subr.bf16.mxu0 0
  %4787 = vmatpush1.bf16.msra.mxu0 0
  %4788 = vmatprep.subr.bf16.mxu0 0
  %4789 = vmatpush1.bf16.msra.mxu0 0
  %4790 = vmatprep.subr.bf16.mxu0 0
  %4791 = vmatpush1.bf16.msra.mxu0 0
  %4792 = vmatprep.subr.bf16.mxu0 0
  %4793 = vmatpush1.bf16.msra.mxu0 0
  %4794 = vmatprep.subr.bf16.mxu0 0
  %4795 = vmatpush1.bf16.msra.mxu0 0
  %4796 = vmatprep.subr.bf16.mxu0 0
  %4797 = vmatpush1.bf16.msra.mxu0 0
  %4798 = vmatprep.mubr.bf16.mxu0 0
  %4799 = vmatmul.mubr.bf16.gmra.mrb[0].mxu0 %v456
  %v4800 = vpop.f32.mrb[0].mxu0
  %v4801 = vadd.f32 0.0, %v4800
  %v4802 = vpop.f32.mrb[0].mxu0
  %v4803 = vpop.f32.mrb[0].mxu0
  %v4804 = vadd.f32 0.0, %v4803
  %v4805 = vpop.f32.mrb[0].mxu0
  %4806 = vmatprep.mubr.bf16.mxu0 0
  %4807 = vmatmul.mubr.bf16.gmra.mrb[0].mxu0 %v459
  %v4808 = vpop.f32.mrb[0].mxu0
  %v4809 = vadd.f32 0.0, %v4808
  %v4810 = vpop.f32.mrb[0].mxu0
  %v4811 = vpop.f32.mrb[0].mxu0
  %v4812 = vadd.f32 0.0, %v4811
  %v4813 = vpop.f32.mrb[0].mxu0
  %4814 = vmatprep.mubr.bf16.mxu0 0
  %4815 = vmatmul.mubr.bf16.gmra.mrb[0].mxu0 %v462
  %v4816 = vpop.f32.mrb[0].mxu0
  %v4817 = vadd.f32 0.0, %v4816
  %v4818 = vpop.f32.mrb[0].mxu0
  %v4819 = vpop.f32.mrb[0].mxu0
  %v4820 = vadd.f32 0.0, %v4819
  %v4821 = vpop.f32.mrb[0].mxu0
  %4822 = vmatprep.mubr.bf16.mxu0 0
  %4823 = vmatmul.mubr.bf16.gmra.mrb[0].mxu0 %v465
  %v4824 = vpop.f32.mrb[0].mxu0
  %v4825 = vadd.f32 0.0, %v4824
  %v4826 = vpop.f32.mrb[0].mxu0
  %v4827 = vpop.f32.mrb[0].mxu0
  %v4828 = vpop.f32.mrb[0].mxu0
  %4829 = vdwg.mxu0
  %4830 = vmatprep.subr.bf16.mxu0 0
  %4831 = vmatpush1.bf16.msra.mxu0 %v300
  %4832 = vmatprep.subr.bf16.mxu0 0
  %4833 = vmatpush1.bf16.msra.mxu0 %v301
  %4834 = vmatprep.subr.bf16.mxu0 0
  %4835 = vmatpush1.bf16.msra.mxu0 %v302
  %4836 = vmatprep.subr.bf16.mxu0 0
  %4837 = vmatpush1.bf16.msra.mxu0 %v303
  %4838 = vmatprep.subr.bf16.mxu0 0
  %4839 = vmatpush1.bf16.msra.mxu0 %v304
  %4840 = vmatprep.subr.bf16.mxu0 0
  %4841 = vmatpush1.bf16.msra.mxu0 %v305
  %4842 = vmatprep.subr.bf16.mxu0 0
  %4843 = vmatpush1.bf16.msra.mxu0 0
  %4844 = vmatprep.subr.bf16.mxu0 0
  %4845 = vmatpush1.bf16.msra.mxu0 0
  %4846 = vmatprep.subr.bf16.mxu0 0
  %4847 = vmatpush1.bf16.msra.mxu0 0
  %4848 = vmatprep.subr.bf16.mxu0 0
  %4849 = vmatpush1.bf16.msra.mxu0 0
  %4850 = vmatprep.subr.bf16.mxu0 0
  %4851 = vmatpush1.bf16.msra.mxu0 0
  %4852 = vmatprep.subr.bf16.mxu0 0
  %4853 = vmatpush1.bf16.msra.mxu0 0
  %4854 = vmatprep.subr.bf16.mxu0 0
  %4855 = vmatpush1.bf16.msra.mxu0 0
  %4856 = vmatprep.subr.bf16.mxu0 0
  %4857 = vmatpush1.bf16.msra.mxu0 0
  %4858 = vmatprep.subr.bf16.mxu0 0
  %4859 = vmatpush1.bf16.msra.mxu0 0
  %4860 = vmatprep.subr.bf16.mxu0 0
  %4861 = vmatpush1.bf16.msra.mxu0 0
  %4862 = vmatprep.mubr.bf16.mxu0 0
  %4863 = vmatmul.mubr.bf16.gmra.mrb[0].mxu0 %v4187
  %v4864 = vpop.f32.mrb[0].mxu0
  %v4865 = vadd.f32 0.0, %v4864
  %v4866 = vpop.f32.mrb[0].mxu0
  %v4867 = vpop.f32.mrb[0].mxu0
  %v4868 = vadd.f32 0.0, %v4867
  %v4869 = vpop.f32.mrb[0].mxu0
  %4870 = vmatprep.mubr.bf16.mxu0 0
  %4871 = vmatmul.mubr.bf16.gmra.mrb[0].mxu0 %v4190
  %v4872 = vpop.f32.mrb[0].mxu0
  %v4873 = vadd.f32 0.0, %v4872
  %v4874 = vpop.f32.mrb[0].mxu0
  %v4875 = vpop.f32.mrb[0].mxu0
  %v4876 = vadd.f32 0.0, %v4875
  %v4877 = vpop.f32.mrb[0].mxu0
  %4878 = vmatprep.mubr.bf16.mxu0 0
  %4879 = vmatmul.mubr.bf16.gmra.mrb[0].mxu0 %v4193
  %v4880 = vpop.f32.mrb[0].mxu0
  %v4881 = vadd.f32 0.0, %v4880
  %v4882 = vpop.f32.mrb[0].mxu0
  %v4883 = vpop.f32.mrb[0].mxu0
  %v4884 = vadd.f32 0.0, %v4883
  %v4885 = vpop.f32.mrb[0].mxu0
  %4886 = vmatprep.mubr.bf16.mxu0 0
  %4887 = vmatmul.mubr.bf16.gmra.mrb[0].mxu0 %v4196
  %v4888 = vpop.f32.mrb[0].mxu0
  %v4889 = vadd.f32 0.0, %v4888
  %v4890 = vpop.f32.mrb[0].mxu0
  %v4891 = vpop.f32.mrb[0].mxu0
  %v4892 = vpop.f32.mrb[0].mxu0
  %4893 = vdwg.mxu0
  %v4895 = vunpack.c.l.b16 %v75
  %v4896 = vpack.c.b16 %v267, %v266
  %v4897 = vpack.c.b16 %v269, %v268
  %v4898 = vpack.c.b16 %v271, %v270
  %v4899 = vpack.c.b16 %v4895, %v4895
  %v4901 = vsel %vm155, %v4896, 0
  %v4904 = vsel %vm155, %v4897, 0
  %v4907 = vsel %vm155, %v4898, 0
  %v4910 = vsel %vm155, %v4899, 0
  %4912 = vmatprep.subr.bf16.mxu0 0
  %4913 = vmatpush1.bf16.msra.mxu0 %v443
  %4914 = vmatprep.subr.bf16.mxu0 0
  %4915 = vmatpush1.bf16.msra.mxu0 %v444
  %4916 = vmatprep.subr.bf16.mxu0 0
  %4917 = vmatpush1.bf16.msra.mxu0 %v445
  %4918 = vmatprep.subr.bf16.mxu0 0
  %4919 = vmatpush1.bf16.msra.mxu0 %v446
  %4920 = vmatprep.subr.bf16.mxu0 0
  %4921 = vmatpush1.bf16.msra.mxu0 %v447
  %4922 = vmatprep.subr.bf16.mxu0 0
  %4923 = vmatpush1.bf16.msra.mxu0 %v448
  %4924 = vmatprep.subr.bf16.mxu0 0
  %4925 = vmatpush1.bf16.msra.mxu0 0
  %4926 = vmatprep.subr.bf16.mxu0 0
  %4927 = vmatpush1.bf16.msra.mxu0 0
  %4928 = vmatprep.subr.bf16.mxu0 0
  %4929 = vmatpush1.bf16.msra.mxu0 0
  %4930 = vmatprep.subr.bf16.mxu0 0
  %4931 = vmatpush1.bf16.msra.mxu0 0
  %4932 = vmatprep.subr.bf16.mxu0 0
  %4933 = vmatpush1.bf16.msra.mxu0 0
  %4934 = vmatprep.subr.bf16.mxu0 0
  %4935 = vmatpush1.bf16.msra.mxu0 0
  %4936 = vmatprep.subr.bf16.mxu0 0
  %4937 = vmatpush1.bf16.msra.mxu0 0
  %4938 = vmatprep.subr.bf16.mxu0 0
  %4939 = vmatpush1.bf16.msra.mxu0 0
  %4940 = vmatprep.subr.bf16.mxu0 0
  %4941 = vmatpush1.bf16.msra.mxu0 0
  %4942 = vmatprep.subr.bf16.mxu0 0
  %4943 = vmatpush1.bf16.msra.mxu0 0
  %4944 = vmatprep.mubr.bf16.mxu0 0
  %4945 = vmatmul.mubr.bf16.gmra.mrb[0].mxu0 %v4901
  %v4946 = vpop.f32.mrb[0].mxu0
  %v4947 = vadd.f32 0.0, %v4946
  %v4948 = vpop.f32.mrb[0].mxu0
  %v4949 = vpop.f32.mrb[0].mxu0
  %v4950 = vadd.f32 0.0, %v4949
  %v4951 = vpop.f32.mrb[0].mxu0
  %4952 = vmatprep.mubr.bf16.mxu0 0
  %4953 = vmatmul.mubr.bf16.gmra.mrb[0].mxu0 %v4904
  %v4954 = vpop.f32.mrb[0].mxu0
  %v4955 = vadd.f32 0.0, %v4954
  %v4956 = vpop.f32.mrb[0].mxu0
  %v4957 = vpop.f32.mrb[0].mxu0
  %v4958 = vadd.f32 0.0, %v4957
  %v4959 = vpop.f32.mrb[0].mxu0
  %4960 = vmatprep.mubr.bf16.mxu0 0
  %4961 = vmatmul.mubr.bf16.gmra.mrb[0].mxu0 %v4907
  %v4962 = vpop.f32.mrb[0].mxu0
  %v4963 = vadd.f32 0.0, %v4962
  %v4964 = vpop.f32.mrb[0].mxu0
  %v4965 = vpop.f32.mrb[0].mxu0
  %v4966 = vadd.f32 0.0, %v4965
  %v4967 = vpop.f32.mrb[0].mxu0
  %4968 = vmatprep.mubr.bf16.mxu0 0
  %4969 = vmatmul.mubr.bf16.gmra.mrb[0].mxu0 %v4910
  %v4970 = vpop.f32.mrb[0].mxu0
  %v4971 = vadd.f32 0.0, %v4970
  %v4972 = vpop.f32.mrb[0].mxu0
  %v4973 = vpop.f32.mrb[0].mxu0
  %v4974 = vpop.f32.mrb[0].mxu0
  %4975 = vdwg.mxu0
  %4976 = vmatprep.subr.bf16.mxu0 0
  %4977 = vmatpush1.bf16.msra.mxu0 %v561
  %4978 = vmatprep.subr.bf16.mxu0 0
  %4979 = vmatpush1.bf16.msra.mxu0 %v562
  %4980 = vmatprep.subr.bf16.mxu0 0
  %4981 = vmatpush1.bf16.msra.mxu0 %v563
  %4982 = vmatprep.subr.bf16.mxu0 0
  %4983 = vmatpush1.bf16.msra.mxu0 %v564
  %4984 = vmatprep.subr.bf16.mxu0 0
  %4985 = vmatpush1.bf16.msra.mxu0 %v565
  %4986 = vmatprep.subr.bf16.mxu0 0
  %4987 = vmatpush1.bf16.msra.mxu0 %v566
  %4988 = vmatprep.subr.bf16.mxu0 0
  %4989 = vmatpush1.bf16.msra.mxu0 0
  %4990 = vmatprep.subr.bf16.mxu0 0
  %4991 = vmatpush1.bf16.msra.mxu0 0
  %4992 = vmatprep.subr.bf16.mxu0 0
  %4993 = vmatpush1.bf16.msra.mxu0 0
  %4994 = vmatprep.subr.bf16.mxu0 0
  %4995 = vmatpush1.bf16.msra.mxu0 0
  %4996 = vmatprep.subr.bf16.mxu0 0
  %4997 = vmatpush1.bf16.msra.mxu0 0
  %4998 = vmatprep.subr.bf16.mxu0 0
  %4999 = vmatpush1.bf16.msra.mxu0 0
  %5000 = vmatprep.subr.bf16.mxu0 0
  %5001 = vmatpush1.bf16.msra.mxu0 0
  %5002 = vmatprep.subr.bf16.mxu0 0
  %5003 = vmatpush1.bf16.msra.mxu0 0
  %5004 = vmatprep.subr.bf16.mxu0 0
  %5005 = vmatpush1.bf16.msra.mxu0 0
  %5006 = vmatprep.subr.bf16.mxu0 0
  %5007 = vmatpush1.bf16.msra.mxu0 0
  %5008 = vmatprep.mubr.bf16.mxu0 0
  %5009 = vmatmul.mubr.bf16.gmra.mrb[0].mxu0 %v313
  %v5010 = vpop.f32.mrb[0].mxu0
  %v5011 = vadd.f32 %v4801, %v5010
  %v5012 = vpop.f32.mrb[0].mxu0
  %v5013 = vpop.f32.mrb[0].mxu0
  %v5014 = vadd.f32 %v4804, %v5013
  %v5015 = vpop.f32.mrb[0].mxu0
  %5016 = vmatprep.mubr.bf16.mxu0 0
  %5017 = vmatmul.mubr.bf16.gmra.mrb[0].mxu0 %v316
  %v5018 = vpop.f32.mrb[0].mxu0
  %v5019 = vadd.f32 %v4809, %v5018
  %v5020 = vpop.f32.mrb[0].mxu0
  %v5021 = vpop.f32.mrb[0].mxu0
  %v5022 = vadd.f32 %v4812, %v5021
  %v5023 = vpop.f32.mrb[0].mxu0
  %5024 = vmatprep.mubr.bf16.mxu0 0
  %5025 = vmatmul.mubr.bf16.gmra.mrb[0].mxu0 %v319
  %v5026 = vpop.f32.mrb[0].mxu0
  %v5027 = vadd.f32 %v4817, %v5026
  %v5028 = vpop.f32.mrb[0].mxu0
  %v5029 = vpop.f32.mrb[0].mxu0
  %v5030 = vadd.f32 %v4820, %v5029
  %v5031 = vpop.f32.mrb[0].mxu0
  %5032 = vmatprep.mubr.bf16.mxu0 0
  %5033 = vmatmul.mubr.bf16.gmra.mrb[0].mxu0 %v322
  %v5034 = vpop.f32.mrb[0].mxu0
  %v5035 = vadd.f32 %v4825, %v5034
  %v5036 = vpop.f32.mrb[0].mxu0
  %v5037 = vpop.f32.mrb[0].mxu0
  %v5038 = vpop.f32.mrb[0].mxu0
  %5039 = vdwg.mxu0
  %5040 = vmatprep.subr.bf16.mxu0 0
  %5041 = vmatpush1.bf16.msra.mxu0 %v691
  %5042 = vmatprep.subr.bf16.mxu0 0
  %5043 = vmatpush1.bf16.msra.mxu0 %v692
  %5044 = vmatprep.subr.bf16.mxu0 0
  %5045 = vmatpush1.bf16.msra.mxu0 %v693
  %5046 = vmatprep.subr.bf16.mxu0 0
  %5047 = vmatpush1.bf16.msra.mxu0 %v694
  %5048 = vmatprep.subr.bf16.mxu0 0
  %5049 = vmatpush1.bf16.msra.mxu0 %v695
  %5050 = vmatprep.subr.bf16.mxu0 0
  %5051 = vmatpush1.bf16.msra.mxu0 %v696
  %5052 = vmatprep.subr.bf16.mxu0 0
  %5053 = vmatpush1.bf16.msra.mxu0 0
  %5054 = vmatprep.subr.bf16.mxu0 0
  %5055 = vmatpush1.bf16.msra.mxu0 0
  %5056 = vmatprep.subr.bf16.mxu0 0
  %5057 = vmatpush1.bf16.msra.mxu0 0
  %5058 = vmatprep.subr.bf16.mxu0 0
  %5059 = vmatpush1.bf16.msra.mxu0 0
  %5060 = vmatprep.subr.bf16.mxu0 0
  %5061 = vmatpush1.bf16.msra.mxu0 0
  %5062 = vmatprep.subr.bf16.mxu0 0
  %5063 = vmatpush1.bf16.msra.mxu0 0
  %5064 = vmatprep.subr.bf16.mxu0 0
  %5065 = vmatpush1.bf16.msra.mxu0 0
  %5066 = vmatprep.subr.bf16.mxu0 0
  %5067 = vmatpush1.bf16.msra.mxu0 0
  %5068 = vmatprep.subr.bf16.mxu0 0
  %5069 = vmatpush1.bf16.msra.mxu0 0
  %5070 = vmatprep.subr.bf16.mxu0 0
  %5071 = vmatpush1.bf16.msra.mxu0 0
  %5072 = vmatprep.mubr.bf16.mxu0 0
  %5073 = vmatmul.mubr.bf16.gmra.mrb[0].mxu0 %v1541
  %v5074 = vpop.f32.mrb[0].mxu0
  %v5075 = vadd.f32 %v4865, %v5074
  %v5076 = vpop.f32.mrb[0].mxu0
  %v5077 = vpop.f32.mrb[0].mxu0
  %v5078 = vadd.f32 %v4868, %v5077
  %v5079 = vpop.f32.mrb[0].mxu0
  %5080 = vmatprep.mubr.bf16.mxu0 0
  %5081 = vmatmul.mubr.bf16.gmra.mrb[0].mxu0 %v1544
  %v5082 = vpop.f32.mrb[0].mxu0
  %v5083 = vadd.f32 %v4873, %v5082
  %v5084 = vpop.f32.mrb[0].mxu0
  %v5085 = vpop.f32.mrb[0].mxu0
  %v5086 = vadd.f32 %v4876, %v5085
  %v5087 = vpop.f32.mrb[0].mxu0
  %5088 = vmatprep.mubr.bf16.mxu0 0
  %5089 = vmatmul.mubr.bf16.gmra.mrb[0].mxu0 %v1547
  %v5090 = vpop.f32.mrb[0].mxu0
  %v5091 = vadd.f32 %v4881, %v5090
  %v5092 = vpop.f32.mrb[0].mxu0
  %v5093 = vpop.f32.mrb[0].mxu0
  %v5094 = vadd.f32 %v4884, %v5093
  %v5095 = vpop.f32.mrb[0].mxu0
  %5096 = vmatprep.mubr.bf16.mxu0 0
  %5097 = vmatmul.mubr.bf16.gmra.mrb[0].mxu0 %v1550
  %v5098 = vpop.f32.mrb[0].mxu0
  %v5099 = vadd.f32 %v4889, %v5098
  %v5100 = vpop.f32.mrb[0].mxu0
  %v5101 = vpop.f32.mrb[0].mxu0
  %v5102 = vpop.f32.mrb[0].mxu0
  %5103 = vdwg.mxu0
  %v5104 = vadd.f32 %v5011, %v5075
  %v5105 = vadd.f32 %v5014, %v5078
  %v5106 = vadd.f32 %v5019, %v5083
  %v5107 = vadd.f32 %v5022, %v5086
  %v5108 = vadd.f32 %v5027, %v5091
  %v5109 = vadd.f32 %v5030, %v5094
  %v5110 = vadd.f32 %v5035, %v5099
  %v5111 = vadd.f32 %v5104, %v4947
  %v5112 = vadd.f32 %v5105, %v4950
  %v5113 = vadd.f32 %v5106, %v4955
  %v5114 = vadd.f32 %v5107, %v4958
  %v5115 = vadd.f32 %v5108, %v4963
  %v5116 = vadd.f32 %v5109, %v4966
  %v5117 = vadd.f32 %v5110, %v4971
  %v5118 = vadd.f32 %v5111, %v797
  %v5119 = vadd.f32 %v5112, %v797
  %v5120 = vadd.f32 %v5113, %v797
  %v5121 = vadd.f32 %v5114, %v797
  %v5122 = vadd.f32 %v5115, %v797
  %v5123 = vadd.f32 %v5116, %v797
  %v5124 = vadd.f32 %v5117, %v797
  %v5125 = vmax.f32 %v5118, 0.0
  %v5126 = vmax.f32 %v5119, 0.0
  %v5127 = vmax.f32 %v5120, 0.0
  %v5128 = vmax.f32 %v5121, 0.0
  %v5129 = vmax.f32 %v5122, 0.0
  %v5130 = vmax.f32 %v5123, 0.0
  %v5131 = vmax.f32 %v5124, 0.0
  %5132 = vmatprep.subr.bf16.mxu0 0
  %5133 = vmatpush1.bf16.msra.mxu0 %v863
  %5134 = vmatprep.subr.bf16.mxu0 0
  %5135 = vmatpush1.bf16.msra.mxu0 %v864
  %5136 = vmatprep.subr.bf16.mxu0 0
  %5137 = vmatpush1.bf16.msra.mxu0 %v865
  %5138 = vmatprep.subr.bf16.mxu0 0
  %5139 = vmatpush1.bf16.msra.mxu0 %v866
  %5140 = vmatprep.subr.bf16.mxu0 0
  %5141 = vmatpush1.bf16.msra.mxu0 %v867
  %5142 = vmatprep.subr.bf16.mxu0 0
  %5143 = vmatpush1.bf16.msra.mxu0 %v868
  %5144 = vmatprep.subr.bf16.mxu0 0
  %5145 = vmatpush1.bf16.msra.mxu0 0
  %5146 = vmatprep.subr.bf16.mxu0 0
  %5147 = vmatpush1.bf16.msra.mxu0 0
  %5148 = vmatprep.subr.bf16.mxu0 0
  %5149 = vmatpush1.bf16.msra.mxu0 0
  %5150 = vmatprep.subr.bf16.mxu0 0
  %5151 = vmatpush1.bf16.msra.mxu0 0
  %5152 = vmatprep.subr.bf16.mxu0 0
  %5153 = vmatpush1.bf16.msra.mxu0 0
  %5154 = vmatprep.subr.bf16.mxu0 0
  %5155 = vmatpush1.bf16.msra.mxu0 0
  %5156 = vmatprep.subr.bf16.mxu0 0
  %5157 = vmatpush1.bf16.msra.mxu0 0
  %5158 = vmatprep.subr.bf16.mxu0 0
  %5159 = vmatpush1.bf16.msra.mxu0 0
  %5160 = vmatprep.subr.bf16.mxu0 0
  %5161 = vmatpush1.bf16.msra.mxu0 0
  %5162 = vmatprep.subr.bf16.mxu0 0
  %5163 = vmatpush1.bf16.msra.mxu0 0
  %5164 = vmatprep.mubr.bf16.mxu0 0
  %5165 = vmatmul.mubr.bf16.gmra.mrb[0].mxu0 %v456
  %v5166 = vpop.f32.mrb[0].mxu0
  %v5167 = vadd.f32 0.0, %v5166
  %v5168 = vpop.f32.mrb[0].mxu0
  %v5169 = vpop.f32.mrb[0].mxu0
  %v5170 = vadd.f32 0.0, %v5169
  %v5171 = vpop.f32.mrb[0].mxu0
  %5172 = vmatprep.mubr.bf16.mxu0 0
  %5173 = vmatmul.mubr.bf16.gmra.mrb[0].mxu0 %v459
  %v5174 = vpop.f32.mrb[0].mxu0
  %v5175 = vadd.f32 0.0, %v5174
  %v5176 = vpop.f32.mrb[0].mxu0
  %v5177 = vpop.f32.mrb[0].mxu0
  %v5178 = vadd.f32 0.0, %v5177
  %v5179 = vpop.f32.mrb[0].mxu0
  %5180 = vmatprep.mubr.bf16.mxu0 0
  %5181 = vmatmul.mubr.bf16.gmra.mrb[0].mxu0 %v462
  %v5182 = vpop.f32.mrb[0].mxu0
  %v5183 = vadd.f32 0.0, %v5182
  %v5184 = vpop.f32.mrb[0].mxu0
  %v5185 = vpop.f32.mrb[0].mxu0
  %v5186 = vadd.f32 0.0, %v5185
  %v5187 = vpop.f32.mrb[0].mxu0
  %5188 = vmatprep.mubr.bf16.mxu0 0
  %5189 = vmatmul.mubr.bf16.gmra.mrb[0].mxu0 %v465
  %v5190 = vpop.f32.mrb[0].mxu0
  %v5191 = vadd.f32 0.0, %v5190
  %v5192 = vpop.f32.mrb[0].mxu0
  %v5193 = vpop.f32.mrb[0].mxu0
  %v5194 = vpop.f32.mrb[0].mxu0
  %5195 = vdwg.mxu0
  %5196 = vmatprep.subr.bf16.mxu0 0
  %5197 = vmatpush1.bf16.msra.mxu0 %v989
  %5198 = vmatprep.subr.bf16.mxu0 0
  %5199 = vmatpush1.bf16.msra.mxu0 %v990
  %5200 = vmatprep.subr.bf16.mxu0 0
  %5201 = vmatpush1.bf16.msra.mxu0 %v991
  %5202 = vmatprep.subr.bf16.mxu0 0
  %5203 = vmatpush1.bf16.msra.mxu0 %v992
  %5204 = vmatprep.subr.bf16.mxu0 0
  %5205 = vmatpush1.bf16.msra.mxu0 %v993
  %5206 = vmatprep.subr.bf16.mxu0 0
  %5207 = vmatpush1.bf16.msra.mxu0 %v994
  %5208 = vmatprep.subr.bf16.mxu0 0
  %5209 = vmatpush1.bf16.msra.mxu0 0
  %5210 = vmatprep.subr.bf16.mxu0 0
  %5211 = vmatpush1.bf16.msra.mxu0 0
  %5212 = vmatprep.subr.bf16.mxu0 0
  %5213 = vmatpush1.bf16.msra.mxu0 0
  %5214 = vmatprep.subr.bf16.mxu0 0
  %5215 = vmatpush1.bf16.msra.mxu0 0
  %5216 = vmatprep.subr.bf16.mxu0 0
  %5217 = vmatpush1.bf16.msra.mxu0 0
  %5218 = vmatprep.subr.bf16.mxu0 0
  %5219 = vmatpush1.bf16.msra.mxu0 0
  %5220 = vmatprep.subr.bf16.mxu0 0
  %5221 = vmatpush1.bf16.msra.mxu0 0
  %5222 = vmatprep.subr.bf16.mxu0 0
  %5223 = vmatpush1.bf16.msra.mxu0 0
  %5224 = vmatprep.subr.bf16.mxu0 0
  %5225 = vmatpush1.bf16.msra.mxu0 0
  %5226 = vmatprep.subr.bf16.mxu0 0
  %5227 = vmatpush1.bf16.msra.mxu0 0
  %5228 = vmatprep.mubr.bf16.mxu0 0
  %5229 = vmatmul.mubr.bf16.gmra.mrb[0].mxu0 %v4187
  %v5230 = vpop.f32.mrb[0].mxu0
  %v5231 = vadd.f32 0.0, %v5230
  %v5232 = vpop.f32.mrb[0].mxu0
  %v5233 = vpop.f32.mrb[0].mxu0
  %v5234 = vadd.f32 0.0, %v5233
  %v5235 = vpop.f32.mrb[0].mxu0
  %5236 = vmatprep.mubr.bf16.mxu0 0
  %5237 = vmatmul.mubr.bf16.gmra.mrb[0].mxu0 %v4190
  %v5238 = vpop.f32.mrb[0].mxu0
  %v5239 = vadd.f32 0.0, %v5238
  %v5240 = vpop.f32.mrb[0].mxu0
  %v5241 = vpop.f32.mrb[0].mxu0
  %v5242 = vadd.f32 0.0, %v5241
  %v5243 = vpop.f32.mrb[0].mxu0
  %5244 = vmatprep.mubr.bf16.mxu0 0
  %5245 = vmatmul.mubr.bf16.gmra.mrb[0].mxu0 %v4193
  %v5246 = vpop.f32.mrb[0].mxu0
  %v5247 = vadd.f32 0.0, %v5246
  %v5248 = vpop.f32.mrb[0].mxu0
  %v5249 = vpop.f32.mrb[0].mxu0
  %v5250 = vadd.f32 0.0, %v5249
  %v5251 = vpop.f32.mrb[0].mxu0
  %5252 = vmatprep.mubr.bf16.mxu0 0
  %5253 = vmatmul.mubr.bf16.gmra.mrb[0].mxu0 %v4196
  %v5254 = vpop.f32.mrb[0].mxu0
  %v5255 = vadd.f32 0.0, %v5254
  %v5256 = vpop.f32.mrb[0].mxu0
  %v5257 = vpop.f32.mrb[0].mxu0
  %v5258 = vpop.f32.mrb[0].mxu0
  %5259 = vdwg.mxu0
  %5260 = vmatprep.subr.bf16.mxu0 0
  %5261 = vmatpush1.bf16.msra.mxu0 %v1102
  %5262 = vmatprep.subr.bf16.mxu0 0
  %5263 = vmatpush1.bf16.msra.mxu0 %v1103
  %5264 = vmatprep.subr.bf16.mxu0 0
  %5265 = vmatpush1.bf16.msra.mxu0 %v1104
  %5266 = vmatprep.subr.bf16.mxu0 0
  %5267 = vmatpush1.bf16.msra.mxu0 %v1105
  %5268 = vmatprep.subr.bf16.mxu0 0
  %5269 = vmatpush1.bf16.msra.mxu0 %v1106
  %5270 = vmatprep.subr.bf16.mxu0 0
  %5271 = vmatpush1.bf16.msra.mxu0 %v1107
  %5272 = vmatprep.subr.bf16.mxu0 0
  %5273 = vmatpush1.bf16.msra.mxu0 0
  %5274 = vmatprep.subr.bf16.mxu0 0
  %5275 = vmatpush1.bf16.msra.mxu0 0
  %5276 = vmatprep.subr.bf16.mxu0 0
  %5277 = vmatpush1.bf16.msra.mxu0 0
  %5278 = vmatprep.subr.bf16.mxu0 0
  %5279 = vmatpush1.bf16.msra.mxu0 0
  %5280 = vmatprep.subr.bf16.mxu0 0
  %5281 = vmatpush1.bf16.msra.mxu0 0
  %5282 = vmatprep.subr.bf16.mxu0 0
  %5283 = vmatpush1.bf16.msra.mxu0 0
  %5284 = vmatprep.subr.bf16.mxu0 0
  %5285 = vmatpush1.bf16.msra.mxu0 0
  %5286 = vmatprep.subr.bf16.mxu0 0
  %5287 = vmatpush1.bf16.msra.mxu0 0
  %5288 = vmatprep.subr.bf16.mxu0 0
  %5289 = vmatpush1.bf16.msra.mxu0 0
  %5290 = vmatprep.subr.bf16.mxu0 0
  %5291 = vmatpush1.bf16.msra.mxu0 0
  %5292 = vmatprep.mubr.bf16.mxu0 0
  %5293 = vmatmul.mubr.bf16.gmra.mrb[0].mxu0 %v4901
  %v5294 = vpop.f32.mrb[0].mxu0
  %v5295 = vadd.f32 0.0, %v5294
  %v5296 = vpop.f32.mrb[0].mxu0
  %v5297 = vpop.f32.mrb[0].mxu0
  %v5298 = vadd.f32 0.0, %v5297
  %v5299 = vpop.f32.mrb[0].mxu0
  %5300 = vmatprep.mubr.bf16.mxu0 0
  %5301 = vmatmul.mubr.bf16.gmra.mrb[0].mxu0 %v4904
  %v5302 = vpop.f32.mrb[0].mxu0
  %v5303 = vadd.f32 0.0, %v5302
  %v5304 = vpop.f32.mrb[0].mxu0
  %v5305 = vpop.f32.mrb[0].mxu0
  %v5306 = vadd.f32 0.0, %v5305
  %v5307 = vpop.f32.mrb[0].mxu0
  %5308 = vmatprep.mubr.bf16.mxu0 0
  %5309 = vmatmul.mubr.bf16.gmra.mrb[0].mxu0 %v4907
  %v5310 = vpop.f32.mrb[0].mxu0
  %v5311 = vadd.f32 0.0, %v5310
  %v5312 = vpop.f32.mrb[0].mxu0
  %v5313 = vpop.f32.mrb[0].mxu0
  %v5314 = vadd.f32 0.0, %v5313
  %v5315 = vpop.f32.mrb[0].mxu0
  %5316 = vmatprep.mubr.bf16.mxu0 0
  %5317 = vmatmul.mubr.bf16.gmra.mrb[0].mxu0 %v4910
  %v5318 = vpop.f32.mrb[0].mxu0
  %v5319 = vadd.f32 0.0, %v5318
  %v5320 = vpop.f32.mrb[0].mxu0
  %v5321 = vpop.f32.mrb[0].mxu0
  %v5322 = vpop.f32.mrb[0].mxu0
  %5323 = vdwg.mxu0
  %5324 = vmatprep.subr.bf16.mxu0 0
  %5325 = vmatpush1.bf16.msra.mxu0 %v1202
  %5326 = vmatprep.subr.bf16.mxu0 0
  %5327 = vmatpush1.bf16.msra.mxu0 %v1203
  %5328 = vmatprep.subr.bf16.mxu0 0
  %5329 = vmatpush1.bf16.msra.mxu0 %v1204
  %5330 = vmatprep.subr.bf16.mxu0 0
  %5331 = vmatpush1.bf16.msra.mxu0 %v1205
  %5332 = vmatprep.subr.bf16.mxu0 0
  %5333 = vmatpush1.bf16.msra.mxu0 %v1206
  %5334 = vmatprep.subr.bf16.mxu0 0
  %5335 = vmatpush1.bf16.msra.mxu0 %v1207
  %5336 = vmatprep.subr.bf16.mxu0 0
  %5337 = vmatpush1.bf16.msra.mxu0 0
  %5338 = vmatprep.subr.bf16.mxu0 0
  %5339 = vmatpush1.bf16.msra.mxu0 0
  %5340 = vmatprep.subr.bf16.mxu0 0
  %5341 = vmatpush1.bf16.msra.mxu0 0
  %5342 = vmatprep.subr.bf16.mxu0 0
  %5343 = vmatpush1.bf16.msra.mxu0 0
  %5344 = vmatprep.subr.bf16.mxu0 0
  %5345 = vmatpush1.bf16.msra.mxu0 0
  %5346 = vmatprep.subr.bf16.mxu0 0
  %5347 = vmatpush1.bf16.msra.mxu0 0
  %5348 = vmatprep.subr.bf16.mxu0 0
  %5349 = vmatpush1.bf16.msra.mxu0 0
  %5350 = vmatprep.subr.bf16.mxu0 0
  %5351 = vmatpush1.bf16.msra.mxu0 0
  %5352 = vmatprep.subr.bf16.mxu0 0
  %5353 = vmatpush1.bf16.msra.mxu0 0
  %5354 = vmatprep.subr.bf16.mxu0 0
  %5355 = vmatpush1.bf16.msra.mxu0 0
  %5356 = vmatprep.mubr.bf16.mxu0 0
  %5357 = vmatmul.mubr.bf16.gmra.mrb[0].mxu0 %v313
  %v5358 = vpop.f32.mrb[0].mxu0
  %v5359 = vadd.f32 %v5167, %v5358
  %v5360 = vpop.f32.mrb[0].mxu0
  %v5361 = vpop.f32.mrb[0].mxu0
  %v5362 = vadd.f32 %v5170, %v5361
  %v5363 = vpop.f32.mrb[0].mxu0
  %5364 = vmatprep.mubr.bf16.mxu0 0
  %5365 = vmatmul.mubr.bf16.gmra.mrb[0].mxu0 %v316
  %v5366 = vpop.f32.mrb[0].mxu0
  %v5367 = vadd.f32 %v5175, %v5366
  %v5368 = vpop.f32.mrb[0].mxu0
  %v5369 = vpop.f32.mrb[0].mxu0
  %v5370 = vadd.f32 %v5178, %v5369
  %v5371 = vpop.f32.mrb[0].mxu0
  %5372 = vmatprep.mubr.bf16.mxu0 0
  %5373 = vmatmul.mubr.bf16.gmra.mrb[0].mxu0 %v319
  %v5374 = vpop.f32.mrb[0].mxu0
  %v5375 = vadd.f32 %v5183, %v5374
  %v5376 = vpop.f32.mrb[0].mxu0
  %v5377 = vpop.f32.mrb[0].mxu0
  %v5378 = vadd.f32 %v5186, %v5377
  %v5379 = vpop.f32.mrb[0].mxu0
  %5380 = vmatprep.mubr.bf16.mxu0 0
  %5381 = vmatmul.mubr.bf16.gmra.mrb[0].mxu0 %v322
  %v5382 = vpop.f32.mrb[0].mxu0
  %v5383 = vadd.f32 %v5191, %v5382
  %v5384 = vpop.f32.mrb[0].mxu0
  %v5385 = vpop.f32.mrb[0].mxu0
  %v5386 = vpop.f32.mrb[0].mxu0
  %5387 = vdwg.mxu0
  %5388 = vmatprep.subr.bf16.mxu0 0
  %5389 = vmatpush1.bf16.msra.mxu0 %v1302
  %5390 = vmatprep.subr.bf16.mxu0 0
  %5391 = vmatpush1.bf16.msra.mxu0 %v1303
  %5392 = vmatprep.subr.bf16.mxu0 0
  %5393 = vmatpush1.bf16.msra.mxu0 %v1304
  %5394 = vmatprep.subr.bf16.mxu0 0
  %5395 = vmatpush1.bf16.msra.mxu0 %v1305
  %5396 = vmatprep.subr.bf16.mxu0 0
  %5397 = vmatpush1.bf16.msra.mxu0 %v1306
  %5398 = vmatprep.subr.bf16.mxu0 0
  %5399 = vmatpush1.bf16.msra.mxu0 %v1307
  %5400 = vmatprep.subr.bf16.mxu0 0
  %5401 = vmatpush1.bf16.msra.mxu0 0
  %5402 = vmatprep.subr.bf16.mxu0 0
  %5403 = vmatpush1.bf16.msra.mxu0 0
  %5404 = vmatprep.subr.bf16.mxu0 0
  %5405 = vmatpush1.bf16.msra.mxu0 0
  %5406 = vmatprep.subr.bf16.mxu0 0
  %5407 = vmatpush1.bf16.msra.mxu0 0
  %5408 = vmatprep.subr.bf16.mxu0 0
  %5409 = vmatpush1.bf16.msra.mxu0 0
  %5410 = vmatprep.subr.bf16.mxu0 0
  %5411 = vmatpush1.bf16.msra.mxu0 0
  %5412 = vmatprep.subr.bf16.mxu0 0
  %5413 = vmatpush1.bf16.msra.mxu0 0
  %5414 = vmatprep.subr.bf16.mxu0 0
  %5415 = vmatpush1.bf16.msra.mxu0 0
  %5416 = vmatprep.subr.bf16.mxu0 0
  %5417 = vmatpush1.bf16.msra.mxu0 0
  %5418 = vmatprep.subr.bf16.mxu0 0
  %5419 = vmatpush1.bf16.msra.mxu0 0
  %5420 = vmatprep.mubr.bf16.mxu0 0
  %5421 = vmatmul.mubr.bf16.gmra.mrb[0].mxu0 %v1541
  %v5422 = vpop.f32.mrb[0].mxu0
  %v5423 = vadd.f32 %v5231, %v5422
  %v5424 = vpop.f32.mrb[0].mxu0
  %v5425 = vpop.f32.mrb[0].mxu0
  %v5426 = vadd.f32 %v5234, %v5425
  %v5427 = vpop.f32.mrb[0].mxu0
  %5428 = vmatprep.mubr.bf16.mxu0 0
  %5429 = vmatmul.mubr.bf16.gmra.mrb[0].mxu0 %v1544
  %v5430 = vpop.f32.mrb[0].mxu0
  %v5431 = vadd.f32 %v5239, %v5430
  %v5432 = vpop.f32.mrb[0].mxu0
  %v5433 = vpop.f32.mrb[0].mxu0
  %v5434 = vadd.f32 %v5242, %v5433
  %v5435 = vpop.f32.mrb[0].mxu0
  %5436 = vmatprep.mubr.bf16.mxu0 0
  %5437 = vmatmul.mubr.bf16.gmra.mrb[0].mxu0 %v1547
  %v5438 = vpop.f32.mrb[0].mxu0
  %v5439 = vadd.f32 %v5247, %v5438
  %v5440 = vpop.f32.mrb[0].mxu0
  %v5441 = vpop.f32.mrb[0].mxu0
  %v5442 = vadd.f32 %v5250, %v5441
  %v5443 = vpop.f32.mrb[0].mxu0
  %5444 = vmatprep.mubr.bf16.mxu0 0
  %5445 = vmatmul.mubr.bf16.gmra.mrb[0].mxu0 %v1550
  %v5446 = vpop.f32.mrb[0].mxu0
  %v5447 = vadd.f32 %v5255, %v5446
  %v5448 = vpop.f32.mrb[0].mxu0
  %v5449 = vpop.f32.mrb[0].mxu0
  %v5450 = vpop.f32.mrb[0].mxu0
  %5451 = vdwg.mxu0
  %v5452 = vadd.f32 %v5359, %v5423
  %v5453 = vadd.f32 %v5362, %v5426
  %v5454 = vadd.f32 %v5367, %v5431
  %v5455 = vadd.f32 %v5370, %v5434
  %v5456 = vadd.f32 %v5375, %v5439
  %v5457 = vadd.f32 %v5378, %v5442
  %v5458 = vadd.f32 %v5383, %v5447
  %v5459 = vadd.f32 %v5452, %v5295
  %v5460 = vadd.f32 %v5453, %v5298
  %v5461 = vadd.f32 %v5454, %v5303
  %v5462 = vadd.f32 %v5455, %v5306
  %v5463 = vadd.f32 %v5456, %v5311
  %v5464 = vadd.f32 %v5457, %v5314
  %v5465 = vadd.f32 %v5458, %v5319
  %v5466 = vadd.f32 %v5459, %v797
  %v5467 = vadd.f32 %v5460, %v797
  %v5468 = vadd.f32 %v5461, %v797
  %v5469 = vadd.f32 %v5462, %v797
  %v5470 = vadd.f32 %v5463, %v797
  %v5471 = vadd.f32 %v5464, %v797
  %v5472 = vadd.f32 %v5465, %v797
  %v5473 = vmax.f32 %v5466, 0.0
  %v5474 = vmax.f32 %v5467, 0.0
  %v5475 = vmax.f32 %v5468, 0.0
  %v5476 = vmax.f32 %v5469, 0.0
  %v5477 = vmax.f32 %v5470, 0.0
  %v5478 = vmax.f32 %v5471, 0.0
  %v5479 = vmax.f32 %v5472, 0.0
  %v5480 = vmax.f32 %v4411, %v4759
  %v5481 = vmax.f32 %v4412, %v4760
  %v5482 = vmax.f32 %v4413, %v4761
  %v5483 = vmax.f32 %v4414, %v4762
  %v5484 = vmax.f32 %v4415, %v4763
  %v5485 = vmax.f32 %v4416, %v4764
  %v5486 = vmax.f32 %v4417, %v4765
  %v5487 = vmax.f32 %v5125, %v5473
  %v5488 = vmax.f32 %v5126, %v5474
  %v5489 = vmax.f32 %v5127, %v5475
  %v5490 = vmax.f32 %v5128, %v5476
  %v5491 = vmax.f32 %v5129, %v5477
  %v5492 = vmax.f32 %v5130, %v5478
  %v5493 = vmax.f32 %v5131, %v5479
  %v5494 = vmax.f32 %v5480, %v5487
  %v5495 = vmax.f32 %v5481, %v5488
  %v5496 = vmax.f32 %v5482, %v5489
  %v5497 = vmax.f32 %v5483, %v5490
  %v5498 = vmax.f32 %v5484, %v5491
  %v5499 = vmax.f32 %v5485, %v5492
  %v5500 = vmax.f32 %v5486, %v5493
  %v5501 = vpack.c.bf16 %v5495, %v5494
  %v5502 = vpack.c.bf16 %v5497, %v5496
  %v5503 = vpack.c.bf16 %v5499, %v5498
  %v5504 = vpack.c.bf16 %v5500, %v5500
  %5505 = vmatprep.subr.bf16.mxu0 0
  %5506 = vmatpush1.bf16.msra.mxu0 %v2195
  %5507 = vmatprep.subr.bf16.mxu0 0
  %5508 = vmatpush1.bf16.msra.mxu0 %v2196
  %5509 = vmatprep.subr.bf16.mxu0 0
  %5510 = vmatpush1.bf16.msra.mxu0 %v2197
  %5511 = vmatprep.subr.bf16.mxu0 0
  %5512 = vmatpush1.bf16.msra.mxu0 %v2198
  %5513 = vmatprep.subr.bf16.mxu0 0
  %5514 = vmatpush1.bf16.msra.mxu0 %v2199
  %5515 = vmatprep.subr.bf16.mxu0 0
  %5516 = vmatpush1.bf16.msra.mxu0 %v2200
  %5517 = vmatprep.subr.bf16.mxu0 0
  %5518 = vmatpush1.bf16.msra.mxu0 0
  %5519 = vmatprep.subr.bf16.mxu0 0
  %5520 = vmatpush1.bf16.msra.mxu0 0
  %5521 = vmatprep.subr.bf16.mxu0 0
  %5522 = vmatpush1.bf16.msra.mxu0 0
  %5523 = vmatprep.subr.bf16.mxu0 0
  %5524 = vmatpush1.bf16.msra.mxu0 0
  %5525 = vmatprep.subr.bf16.mxu0 0
  %5526 = vmatpush1.bf16.msra.mxu0 0
  %5527 = vmatprep.subr.bf16.mxu0 0
  %5528 = vmatpush1.bf16.msra.mxu0 0
  %5529 = vmatprep.subr.bf16.mxu0 0
  %5530 = vmatpush1.bf16.msra.mxu0 0
  %5531 = vmatprep.subr.bf16.mxu0 0
  %5532 = vmatpush1.bf16.msra.mxu0 0
  %5533 = vmatprep.subr.bf16.mxu0 0
  %5534 = vmatpush1.bf16.msra.mxu0 0
  %5535 = vmatprep.subr.bf16.mxu0 0
  %5536 = vmatpush1.bf16.msra.mxu0 0
  %5537 = vmatprep.mubr.bf16.mxu0 0
  %5538 = vmatmul.mubr.bf16.gmra.mrb[0].mxu0 %v313
  %v5539 = vpop.f32.mrb[0].mxu0
  %v5540 = vadd.f32 0.0, %v5539
  %v5541 = vpop.f32.mrb[0].mxu0
  %v5542 = vpop.f32.mrb[0].mxu0
  %v5543 = vadd.f32 0.0, %v5542
  %v5544 = vpop.f32.mrb[0].mxu0
  %5545 = vmatprep.mubr.bf16.mxu0 0
  %5546 = vmatmul.mubr.bf16.gmra.mrb[0].mxu0 %v316
  %v5547 = vpop.f32.mrb[0].mxu0
  %v5548 = vadd.f32 0.0, %v5547
  %v5549 = vpop.f32.mrb[0].mxu0
  %v5550 = vpop.f32.mrb[0].mxu0
  %v5551 = vadd.f32 0.0, %v5550
  %v5552 = vpop.f32.mrb[0].mxu0
  %5553 = vmatprep.mubr.bf16.mxu0 0
  %5554 = vmatmul.mubr.bf16.gmra.mrb[0].mxu0 %v319
  %v5555 = vpop.f32.mrb[0].mxu0
  %v5556 = vadd.f32 0.0, %v5555
  %v5557 = vpop.f32.mrb[0].mxu0
  %v5558 = vpop.f32.mrb[0].mxu0
  %v5559 = vadd.f32 0.0, %v5558
  %v5560 = vpop.f32.mrb[0].mxu0
  %5561 = vmatprep.mubr.bf16.mxu0 0
  %5562 = vmatmul.mubr.bf16.gmra.mrb[0].mxu0 %v322
  %v5563 = vpop.f32.mrb[0].mxu0
  %v5564 = vadd.f32 0.0, %v5563
  %v5565 = vpop.f32.mrb[0].mxu0
  %v5566 = vpop.f32.mrb[0].mxu0
  %v5567 = vpop.f32.mrb[0].mxu0
  %5568 = vdwg.mxu0
  %5569 = vmatprep.subr.bf16.mxu0 0
  %5570 = vmatpush1.bf16.msra.mxu0 %v2321
  %5571 = vmatprep.subr.bf16.mxu0 0
  %5572 = vmatpush1.bf16.msra.mxu0 %v2322
  %5573 = vmatprep.subr.bf16.mxu0 0
  %5574 = vmatpush1.bf16.msra.mxu0 %v2323
  %5575 = vmatprep.subr.bf16.mxu0 0
  %5576 = vmatpush1.bf16.msra.mxu0 %v2324
  %5577 = vmatprep.subr.bf16.mxu0 0
  %5578 = vmatpush1.bf16.msra.mxu0 %v2325
  %5579 = vmatprep.subr.bf16.mxu0 0
  %5580 = vmatpush1.bf16.msra.mxu0 %v2326
  %5581 = vmatprep.subr.bf16.mxu0 0
  %5582 = vmatpush1.bf16.msra.mxu0 0
  %5583 = vmatprep.subr.bf16.mxu0 0
  %5584 = vmatpush1.bf16.msra.mxu0 0
  %5585 = vmatprep.subr.bf16.mxu0 0
  %5586 = vmatpush1.bf16.msra.mxu0 0
  %5587 = vmatprep.subr.bf16.mxu0 0
  %5588 = vmatpush1.bf16.msra.mxu0 0
  %5589 = vmatprep.subr.bf16.mxu0 0
  %5590 = vmatpush1.bf16.msra.mxu0 0
  %5591 = vmatprep.subr.bf16.mxu0 0
  %5592 = vmatpush1.bf16.msra.mxu0 0
  %5593 = vmatprep.subr.bf16.mxu0 0
  %5594 = vmatpush1.bf16.msra.mxu0 0
  %5595 = vmatprep.subr.bf16.mxu0 0
  %5596 = vmatpush1.bf16.msra.mxu0 0
  %5597 = vmatprep.subr.bf16.mxu0 0
  %5598 = vmatpush1.bf16.msra.mxu0 0
  %5599 = vmatprep.subr.bf16.mxu0 0
  %5600 = vmatpush1.bf16.msra.mxu0 0
  %5601 = vmatprep.mubr.bf16.mxu0 0
  %5602 = vmatmul.mubr.bf16.gmra.mrb[0].mxu0 %v1541
  %v5603 = vpop.f32.mrb[0].mxu0
  %v5604 = vadd.f32 0.0, %v5603
  %v5605 = vpop.f32.mrb[0].mxu0
  %v5606 = vpop.f32.mrb[0].mxu0
  %v5607 = vadd.f32 0.0, %v5606
  %v5608 = vpop.f32.mrb[0].mxu0
  %5609 = vmatprep.mubr.bf16.mxu0 0
  %5610 = vmatmul.mubr.bf16.gmra.mrb[0].mxu0 %v1544
  %v5611 = vpop.f32.mrb[0].mxu0
  %v5612 = vadd.f32 0.0, %v5611
  %v5613 = vpop.f32.mrb[0].mxu0
  %v5614 = vpop.f32.mrb[0].mxu0
  %v5615 = vadd.f32 0.0, %v5614
  %v5616 = vpop.f32.mrb[0].mxu0
  %5617 = vmatprep.mubr.bf16.mxu0 0
  %5618 = vmatmul.mubr.bf16.gmra.mrb[0].mxu0 %v1547
  %v5619 = vpop.f32.mrb[0].mxu0
  %v5620 = vadd.f32 0.0, %v5619
  %v5621 = vpop.f32.mrb[0].mxu0
  %v5622 = vpop.f32.mrb[0].mxu0
  %v5623 = vadd.f32 0.0, %v5622
  %v5624 = vpop.f32.mrb[0].mxu0
  %5625 = vmatprep.mubr.bf16.mxu0 0
  %5626 = vmatmul.mubr.bf16.gmra.mrb[0].mxu0 %v1550
  %v5627 = vpop.f32.mrb[0].mxu0
  %v5628 = vadd.f32 0.0, %v5627
  %v5629 = vpop.f32.mrb[0].mxu0
  %v5630 = vpop.f32.mrb[0].mxu0
  %v5631 = vpop.f32.mrb[0].mxu0
  %5632 = vdwg.mxu0
  %5633 = vmatprep.subr.bf16.mxu0 0
  %5634 = vmatpush1.bf16.msra.mxu0 %v2434
  %5635 = vmatprep.subr.bf16.mxu0 0
  %5636 = vmatpush1.bf16.msra.mxu0 %v2435
  %5637 = vmatprep.subr.bf16.mxu0 0
  %5638 = vmatpush1.bf16.msra.mxu0 %v2436
  %5639 = vmatprep.subr.bf16.mxu0 0
  %5640 = vmatpush1.bf16.msra.mxu0 %v2437
  %5641 = vmatprep.subr.bf16.mxu0 0
  %5642 = vmatpush1.bf16.msra.mxu0 %v2438
  %5643 = vmatprep.subr.bf16.mxu0 0
  %5644 = vmatpush1.bf16.msra.mxu0 %v2439
  %5645 = vmatprep.subr.bf16.mxu0 0
  %5646 = vmatpush1.bf16.msra.mxu0 0
  %5647 = vmatprep.subr.bf16.mxu0 0
  %5648 = vmatpush1.bf16.msra.mxu0 0
  %5649 = vmatprep.subr.bf16.mxu0 0
  %5650 = vmatpush1.bf16.msra.mxu0 0
  %5651 = vmatprep.subr.bf16.mxu0 0
  %5652 = vmatpush1.bf16.msra.mxu0 0
  %5653 = vmatprep.subr.bf16.mxu0 0
  %5654 = vmatpush1.bf16.msra.mxu0 0
  %5655 = vmatprep.subr.bf16.mxu0 0
  %5656 = vmatpush1.bf16.msra.mxu0 0
  %5657 = vmatprep.subr.bf16.mxu0 0
  %5658 = vmatpush1.bf16.msra.mxu0 0
  %5659 = vmatprep.subr.bf16.mxu0 0
  %5660 = vmatpush1.bf16.msra.mxu0 0
  %5661 = vmatprep.subr.bf16.mxu0 0
  %5662 = vmatpush1.bf16.msra.mxu0 0
  %5663 = vmatprep.subr.bf16.mxu0 0
  %5664 = vmatpush1.bf16.msra.mxu0 0
  %5665 = vmatprep.mubr.bf16.mxu0 0
  %5666 = vmatmul.mubr.bf16.gmra.mrb[0].mxu0 %v4187
  %v5667 = vpop.f32.mrb[0].mxu0
  %v5668 = vadd.f32 0.0, %v5667
  %v5669 = vpop.f32.mrb[0].mxu0
  %v5670 = vpop.f32.mrb[0].mxu0
  %v5671 = vadd.f32 0.0, %v5670
  %v5672 = vpop.f32.mrb[0].mxu0
  %5673 = vmatprep.mubr.bf16.mxu0 0
  %5674 = vmatmul.mubr.bf16.gmra.mrb[0].mxu0 %v4190
  %v5675 = vpop.f32.mrb[0].mxu0
  %v5676 = vadd.f32 0.0, %v5675
  %v5677 = vpop.f32.mrb[0].mxu0
  %v5678 = vpop.f32.mrb[0].mxu0
  %v5679 = vadd.f32 0.0, %v5678
  %v5680 = vpop.f32.mrb[0].mxu0
  %5681 = vmatprep.mubr.bf16.mxu0 0
  %5682 = vmatmul.mubr.bf16.gmra.mrb[0].mxu0 %v4193
  %v5683 = vpop.f32.mrb[0].mxu0
  %v5684 = vadd.f32 0.0, %v5683
  %v5685 = vpop.f32.mrb[0].mxu0
  %v5686 = vpop.f32.mrb[0].mxu0
  %v5687 = vadd.f32 0.0, %v5686
  %v5688 = vpop.f32.mrb[0].mxu0
  %5689 = vmatprep.mubr.bf16.mxu0 0
  %5690 = vmatmul.mubr.bf16.gmra.mrb[0].mxu0 %v4196
  %v5691 = vpop.f32.mrb[0].mxu0
  %v5692 = vadd.f32 0.0, %v5691
  %v5693 = vpop.f32.mrb[0].mxu0
  %v5694 = vpop.f32.mrb[0].mxu0
  %v5695 = vpop.f32.mrb[0].mxu0
  %5696 = vdwg.mxu0
  %5697 = vmatprep.subr.bf16.mxu0 0
  %5698 = vmatpush1.bf16.msra.mxu0 %v2534
  %5699 = vmatprep.subr.bf16.mxu0 0
  %5700 = vmatpush1.bf16.msra.mxu0 %v2535
  %5701 = vmatprep.subr.bf16.mxu0 0
  %5702 = vmatpush1.bf16.msra.mxu0 %v2536
  %5703 = vmatprep.subr.bf16.mxu0 0
  %5704 = vmatpush1.bf16.msra.mxu0 %v2537
  %5705 = vmatprep.subr.bf16.mxu0 0
  %5706 = vmatpush1.bf16.msra.mxu0 %v2538
  %5707 = vmatprep.subr.bf16.mxu0 0
  %5708 = vmatpush1.bf16.msra.mxu0 %v2539
  %5709 = vmatprep.subr.bf16.mxu0 0
  %5710 = vmatpush1.bf16.msra.mxu0 0
  %5711 = vmatprep.subr.bf16.mxu0 0
  %5712 = vmatpush1.bf16.msra.mxu0 0
  %5713 = vmatprep.subr.bf16.mxu0 0
  %5714 = vmatpush1.bf16.msra.mxu0 0
  %5715 = vmatprep.subr.bf16.mxu0 0
  %5716 = vmatpush1.bf16.msra.mxu0 0
  %5717 = vmatprep.subr.bf16.mxu0 0
  %5718 = vmatpush1.bf16.msra.mxu0 0
  %5719 = vmatprep.subr.bf16.mxu0 0
  %5720 = vmatpush1.bf16.msra.mxu0 0
  %5721 = vmatprep.subr.bf16.mxu0 0
  %5722 = vmatpush1.bf16.msra.mxu0 0
  %5723 = vmatprep.subr.bf16.mxu0 0
  %5724 = vmatpush1.bf16.msra.mxu0 0
  %5725 = vmatprep.subr.bf16.mxu0 0
  %5726 = vmatpush1.bf16.msra.mxu0 0
  %5727 = vmatprep.subr.bf16.mxu0 0
  %5728 = vmatpush1.bf16.msra.mxu0 0
  %5729 = vmatprep.mubr.bf16.mxu0 0
  %5730 = vmatmul.mubr.bf16.gmra.mrb[0].mxu0 %v704
  %v5731 = vpop.f32.mrb[0].mxu0
  %v5732 = vadd.f32 %v5540, %v5731
  %v5733 = vpop.f32.mrb[0].mxu0
  %v5734 = vpop.f32.mrb[0].mxu0
  %v5735 = vadd.f32 %v5543, %v5734
  %v5736 = vpop.f32.mrb[0].mxu0
  %5737 = vmatprep.mubr.bf16.mxu0 0
  %5738 = vmatmul.mubr.bf16.gmra.mrb[0].mxu0 %v707
  %v5739 = vpop.f32.mrb[0].mxu0
  %v5740 = vadd.f32 %v5548, %v5739
  %v5741 = vpop.f32.mrb[0].mxu0
  %v5742 = vpop.f32.mrb[0].mxu0
  %v5743 = vadd.f32 %v5551, %v5742
  %v5744 = vpop.f32.mrb[0].mxu0
  %5745 = vmatprep.mubr.bf16.mxu0 0
  %5746 = vmatmul.mubr.bf16.gmra.mrb[0].mxu0 %v710
  %v5747 = vpop.f32.mrb[0].mxu0
  %v5748 = vadd.f32 %v5556, %v5747
  %v5749 = vpop.f32.mrb[0].mxu0
  %v5750 = vpop.f32.mrb[0].mxu0
  %v5751 = vadd.f32 %v5559, %v5750
  %v5752 = vpop.f32.mrb[0].mxu0
  %5753 = vmatprep.mubr.bf16.mxu0 0
  %5754 = vmatmul.mubr.bf16.gmra.mrb[0].mxu0 %v713
  %v5755 = vpop.f32.mrb[0].mxu0
  %v5756 = vadd.f32 %v5564, %v5755
  %v5757 = vpop.f32.mrb[0].mxu0
  %v5758 = vpop.f32.mrb[0].mxu0
  %v5759 = vpop.f32.mrb[0].mxu0
  %5760 = vdwg.mxu0
  %5761 = vmatprep.subr.bf16.mxu0 0
  %5762 = vmatpush1.bf16.msra.mxu0 %v2634
  %5763 = vmatprep.subr.bf16.mxu0 0
  %5764 = vmatpush1.bf16.msra.mxu0 %v2635
  %5765 = vmatprep.subr.bf16.mxu0 0
  %5766 = vmatpush1.bf16.msra.mxu0 %v2636
  %5767 = vmatprep.subr.bf16.mxu0 0
  %5768 = vmatpush1.bf16.msra.mxu0 %v2637
  %5769 = vmatprep.subr.bf16.mxu0 0
  %5770 = vmatpush1.bf16.msra.mxu0 %v2638
  %5771 = vmatprep.subr.bf16.mxu0 0
  %5772 = vmatpush1.bf16.msra.mxu0 %v2639
  %5773 = vmatprep.subr.bf16.mxu0 0
  %5774 = vmatpush1.bf16.msra.mxu0 0
  %5775 = vmatprep.subr.bf16.mxu0 0
  %5776 = vmatpush1.bf16.msra.mxu0 0
  %5777 = vmatprep.subr.bf16.mxu0 0
  %5778 = vmatpush1.bf16.msra.mxu0 0
  %5779 = vmatprep.subr.bf16.mxu0 0
  %5780 = vmatpush1.bf16.msra.mxu0 0
  %5781 = vmatprep.subr.bf16.mxu0 0
  %5782 = vmatpush1.bf16.msra.mxu0 0
  %5783 = vmatprep.subr.bf16.mxu0 0
  %5784 = vmatpush1.bf16.msra.mxu0 0
  %5785 = vmatprep.subr.bf16.mxu0 0
  %5786 = vmatpush1.bf16.msra.mxu0 0
  %5787 = vmatprep.subr.bf16.mxu0 0
  %5788 = vmatpush1.bf16.msra.mxu0 0
  %5789 = vmatprep.subr.bf16.mxu0 0
  %5790 = vmatpush1.bf16.msra.mxu0 0
  %5791 = vmatprep.subr.bf16.mxu0 0
  %5792 = vmatpush1.bf16.msra.mxu0 0
  %5793 = vmatprep.mubr.bf16.mxu0 0
  %5794 = vmatmul.mubr.bf16.gmra.mrb[0].mxu0 %v456
  %v5795 = vpop.f32.mrb[0].mxu0
  %v5796 = vadd.f32 %v5604, %v5795
  %v5797 = vpop.f32.mrb[0].mxu0
  %v5798 = vpop.f32.mrb[0].mxu0
  %v5799 = vadd.f32 %v5607, %v5798
  %v5800 = vpop.f32.mrb[0].mxu0
  %5801 = vmatprep.mubr.bf16.mxu0 0
  %5802 = vmatmul.mubr.bf16.gmra.mrb[0].mxu0 %v459
  %v5803 = vpop.f32.mrb[0].mxu0
  %v5804 = vadd.f32 %v5612, %v5803
  %v5805 = vpop.f32.mrb[0].mxu0
  %v5806 = vpop.f32.mrb[0].mxu0
  %v5807 = vadd.f32 %v5615, %v5806
  %v5808 = vpop.f32.mrb[0].mxu0
  %5809 = vmatprep.mubr.bf16.mxu0 0
  %5810 = vmatmul.mubr.bf16.gmra.mrb[0].mxu0 %v462
  %v5811 = vpop.f32.mrb[0].mxu0
  %v5812 = vadd.f32 %v5620, %v5811
  %v5813 = vpop.f32.mrb[0].mxu0
  %v5814 = vpop.f32.mrb[0].mxu0
  %v5815 = vadd.f32 %v5623, %v5814
  %v5816 = vpop.f32.mrb[0].mxu0
  %5817 = vmatprep.mubr.bf16.mxu0 0
  %5818 = vmatmul.mubr.bf16.gmra.mrb[0].mxu0 %v465
  %v5819 = vpop.f32.mrb[0].mxu0
  %v5820 = vadd.f32 %v5628, %v5819
  %v5821 = vpop.f32.mrb[0].mxu0
  %v5822 = vpop.f32.mrb[0].mxu0
  %v5823 = vpop.f32.mrb[0].mxu0
  %5824 = vdwg.mxu0
  %v5825 = vadd.f32 %v5732, %v5796
  %v5826 = vadd.f32 %v5735, %v5799
  %v5827 = vadd.f32 %v5740, %v5804
  %v5828 = vadd.f32 %v5743, %v5807
  %v5829 = vadd.f32 %v5748, %v5812
  %v5830 = vadd.f32 %v5751, %v5815
  %v5831 = vadd.f32 %v5756, %v5820
  %v5832 = vadd.f32 %v5825, %v5668
  %v5833 = vadd.f32 %v5826, %v5671
  %v5834 = vadd.f32 %v5827, %v5676
  %v5835 = vadd.f32 %v5828, %v5679
  %v5836 = vadd.f32 %v5829, %v5684
  %v5837 = vadd.f32 %v5830, %v5687
  %v5838 = vadd.f32 %v5831, %v5692
  %v5839 = vadd.f32 %v5832, %v797
  %v5840 = vadd.f32 %v5833, %v797
  %v5841 = vadd.f32 %v5834, %v797
  %v5842 = vadd.f32 %v5835, %v797
  %v5843 = vadd.f32 %v5836, %v797
  %v5844 = vadd.f32 %v5837, %v797
  %v5845 = vadd.f32 %v5838, %v797
  %v5846 = vmax.f32 %v5839, 0.0
  %v5847 = vmax.f32 %v5840, 0.0
  %v5848 = vmax.f32 %v5841, 0.0
  %v5849 = vmax.f32 %v5842, 0.0
  %v5850 = vmax.f32 %v5843, 0.0
  %v5851 = vmax.f32 %v5844, 0.0
  %v5852 = vmax.f32 %v5845, 0.0
  %5853 = vmatprep.subr.bf16.mxu0 0
  %5854 = vmatpush1.bf16.msra.mxu0 %v2788
  %5855 = vmatprep.subr.bf16.mxu0 0
  %5856 = vmatpush1.bf16.msra.mxu0 %v2789
  %5857 = vmatprep.subr.bf16.mxu0 0
  %5858 = vmatpush1.bf16.msra.mxu0 %v2790
  %5859 = vmatprep.subr.bf16.mxu0 0
  %5860 = vmatpush1.bf16.msra.mxu0 %v2791
  %5861 = vmatprep.subr.bf16.mxu0 0
  %5862 = vmatpush1.bf16.msra.mxu0 %v2792
  %5863 = vmatprep.subr.bf16.mxu0 0
  %5864 = vmatpush1.bf16.msra.mxu0 %v2793
  %5865 = vmatprep.subr.bf16.mxu0 0
  %5866 = vmatpush1.bf16.msra.mxu0 0
  %5867 = vmatprep.subr.bf16.mxu0 0
  %5868 = vmatpush1.bf16.msra.mxu0 0
  %5869 = vmatprep.subr.bf16.mxu0 0
  %5870 = vmatpush1.bf16.msra.mxu0 0
  %5871 = vmatprep.subr.bf16.mxu0 0
  %5872 = vmatpush1.bf16.msra.mxu0 0
  %5873 = vmatprep.subr.bf16.mxu0 0
  %5874 = vmatpush1.bf16.msra.mxu0 0
  %5875 = vmatprep.subr.bf16.mxu0 0
  %5876 = vmatpush1.bf16.msra.mxu0 0
  %5877 = vmatprep.subr.bf16.mxu0 0
  %5878 = vmatpush1.bf16.msra.mxu0 0
  %5879 = vmatprep.subr.bf16.mxu0 0
  %5880 = vmatpush1.bf16.msra.mxu0 0
  %5881 = vmatprep.subr.bf16.mxu0 0
  %5882 = vmatpush1.bf16.msra.mxu0 0
  %5883 = vmatprep.subr.bf16.mxu0 0
  %5884 = vmatpush1.bf16.msra.mxu0 0
  %5885 = vmatprep.mubr.bf16.mxu0 0
  %5886 = vmatmul.mubr.bf16.gmra.mrb[0].mxu0 %v313
  %v5887 = vpop.f32.mrb[0].mxu0
  %v5888 = vadd.f32 0.0, %v5887
  %v5889 = vpop.f32.mrb[0].mxu0
  %v5890 = vpop.f32.mrb[0].mxu0
  %v5891 = vadd.f32 0.0, %v5890
  %v5892 = vpop.f32.mrb[0].mxu0
  %5893 = vmatprep.mubr.bf16.mxu0 0
  %5894 = vmatmul.mubr.bf16.gmra.mrb[0].mxu0 %v316
  %v5895 = vpop.f32.mrb[0].mxu0
  %v5896 = vadd.f32 0.0, %v5895
  %v5897 = vpop.f32.mrb[0].mxu0
  %v5898 = vpop.f32.mrb[0].mxu0
  %v5899 = vadd.f32 0.0, %v5898
  %v5900 = vpop.f32.mrb[0].mxu0
  %5901 = vmatprep.mubr.bf16.mxu0 0
  %5902 = vmatmul.mubr.bf16.gmra.mrb[0].mxu0 %v319
  %v5903 = vpop.f32.mrb[0].mxu0
  %v5904 = vadd.f32 0.0, %v5903
  %v5905 = vpop.f32.mrb[0].mxu0
  %v5906 = vpop.f32.mrb[0].mxu0
  %v5907 = vadd.f32 0.0, %v5906
  %v5908 = vpop.f32.mrb[0].mxu0
  %5909 = vmatprep.mubr.bf16.mxu0 0
  %5910 = vmatmul.mubr.bf16.gmra.mrb[0].mxu0 %v322
  %v5911 = vpop.f32.mrb[0].mxu0
  %v5912 = vadd.f32 0.0, %v5911
  %v5913 = vpop.f32.mrb[0].mxu0
  %v5914 = vpop.f32.mrb[0].mxu0
  %v5915 = vpop.f32.mrb[0].mxu0
  %5916 = vdwg.mxu0
  %5917 = vmatprep.subr.bf16.mxu0 0
  %5918 = vmatpush1.bf16.msra.mxu0 %v2914
  %5919 = vmatprep.subr.bf16.mxu0 0
  %5920 = vmatpush1.bf16.msra.mxu0 %v2915
  %5921 = vmatprep.subr.bf16.mxu0 0
  %5922 = vmatpush1.bf16.msra.mxu0 %v2916
  %5923 = vmatprep.subr.bf16.mxu0 0
  %5924 = vmatpush1.bf16.msra.mxu0 %v2917
  %5925 = vmatprep.subr.bf16.mxu0 0
  %5926 = vmatpush1.bf16.msra.mxu0 %v2918
  %5927 = vmatprep.subr.bf16.mxu0 0
  %5928 = vmatpush1.bf16.msra.mxu0 %v2919
  %5929 = vmatprep.subr.bf16.mxu0 0
  %5930 = vmatpush1.bf16.msra.mxu0 0
  %5931 = vmatprep.subr.bf16.mxu0 0
  %5932 = vmatpush1.bf16.msra.mxu0 0
  %5933 = vmatprep.subr.bf16.mxu0 0
  %5934 = vmatpush1.bf16.msra.mxu0 0
  %5935 = vmatprep.subr.bf16.mxu0 0
  %5936 = vmatpush1.bf16.msra.mxu0 0
  %5937 = vmatprep.subr.bf16.mxu0 0
  %5938 = vmatpush1.bf16.msra.mxu0 0
  %5939 = vmatprep.subr.bf16.mxu0 0
  %5940 = vmatpush1.bf16.msra.mxu0 0
  %5941 = vmatprep.subr.bf16.mxu0 0
  %5942 = vmatpush1.bf16.msra.mxu0 0
  %5943 = vmatprep.subr.bf16.mxu0 0
  %5944 = vmatpush1.bf16.msra.mxu0 0
  %5945 = vmatprep.subr.bf16.mxu0 0
  %5946 = vmatpush1.bf16.msra.mxu0 0
  %5947 = vmatprep.subr.bf16.mxu0 0
  %5948 = vmatpush1.bf16.msra.mxu0 0
  %5949 = vmatprep.mubr.bf16.mxu0 0
  %5950 = vmatmul.mubr.bf16.gmra.mrb[0].mxu0 %v1541
  %v5951 = vpop.f32.mrb[0].mxu0
  %v5952 = vadd.f32 0.0, %v5951
  %v5953 = vpop.f32.mrb[0].mxu0
  %v5954 = vpop.f32.mrb[0].mxu0
  %v5955 = vadd.f32 0.0, %v5954
  %v5956 = vpop.f32.mrb[0].mxu0
  %5957 = vmatprep.mubr.bf16.mxu0 0
  %5958 = vmatmul.mubr.bf16.gmra.mrb[0].mxu0 %v1544
  %v5959 = vpop.f32.mrb[0].mxu0
  %v5960 = vadd.f32 0.0, %v5959
  %v5961 = vpop.f32.mrb[0].mxu0
  %v5962 = vpop.f32.mrb[0].mxu0
  %v5963 = vadd.f32 0.0, %v5962
  %v5964 = vpop.f32.mrb[0].mxu0
  %5965 = vmatprep.mubr.bf16.mxu0 0
  %5966 = vmatmul.mubr.bf16.gmra.mrb[0].mxu0 %v1547
  %v5967 = vpop.f32.mrb[0].mxu0
  %v5968 = vadd.f32 0.0, %v5967
  %v5969 = vpop.f32.mrb[0].mxu0
  %v5970 = vpop.f32.mrb[0].mxu0
  %v5971 = vadd.f32 0.0, %v5970
  %v5972 = vpop.f32.mrb[0].mxu0
  %5973 = vmatprep.mubr.bf16.mxu0 0
  %5974 = vmatmul.mubr.bf16.gmra.mrb[0].mxu0 %v1550
  %v5975 = vpop.f32.mrb[0].mxu0
  %v5976 = vadd.f32 0.0, %v5975
  %v5977 = vpop.f32.mrb[0].mxu0
  %v5978 = vpop.f32.mrb[0].mxu0
  %v5979 = vpop.f32.mrb[0].mxu0
  %5980 = vdwg.mxu0
  %5981 = vmatprep.subr.bf16.mxu0 0
  %5982 = vmatpush1.bf16.msra.mxu0 %v3027
  %5983 = vmatprep.subr.bf16.mxu0 0
  %5984 = vmatpush1.bf16.msra.mxu0 %v3028
  %5985 = vmatprep.subr.bf16.mxu0 0
  %5986 = vmatpush1.bf16.msra.mxu0 %v3029
  %5987 = vmatprep.subr.bf16.mxu0 0
  %5988 = vmatpush1.bf16.msra.mxu0 %v3030
  %5989 = vmatprep.subr.bf16.mxu0 0
  %5990 = vmatpush1.bf16.msra.mxu0 %v3031
  %5991 = vmatprep.subr.bf16.mxu0 0
  %5992 = vmatpush1.bf16.msra.mxu0 %v3032
  %5993 = vmatprep.subr.bf16.mxu0 0
  %5994 = vmatpush1.bf16.msra.mxu0 0
  %5995 = vmatprep.subr.bf16.mxu0 0
  %5996 = vmatpush1.bf16.msra.mxu0 0
  %5997 = vmatprep.subr.bf16.mxu0 0
  %5998 = vmatpush1.bf16.msra.mxu0 0
  %5999 = vmatprep.subr.bf16.mxu0 0
  %6000 = vmatpush1.bf16.msra.mxu0 0
  %6001 = vmatprep.subr.bf16.mxu0 0
  %6002 = vmatpush1.bf16.msra.mxu0 0
  %6003 = vmatprep.subr.bf16.mxu0 0
  %6004 = vmatpush1.bf16.msra.mxu0 0
  %6005 = vmatprep.subr.bf16.mxu0 0
  %6006 = vmatpush1.bf16.msra.mxu0 0
  %6007 = vmatprep.subr.bf16.mxu0 0
  %6008 = vmatpush1.bf16.msra.mxu0 0
  %6009 = vmatprep.subr.bf16.mxu0 0
  %6010 = vmatpush1.bf16.msra.mxu0 0
  %6011 = vmatprep.subr.bf16.mxu0 0
  %6012 = vmatpush1.bf16.msra.mxu0 0
  %6013 = vmatprep.mubr.bf16.mxu0 0
  %6014 = vmatmul.mubr.bf16.gmra.mrb[0].mxu0 %v4187
  %v6015 = vpop.f32.mrb[0].mxu0
  %v6016 = vadd.f32 0.0, %v6015
  %v6017 = vpop.f32.mrb[0].mxu0
  %v6018 = vpop.f32.mrb[0].mxu0
  %v6019 = vadd.f32 0.0, %v6018
  %v6020 = vpop.f32.mrb[0].mxu0
  %6021 = vmatprep.mubr.bf16.mxu0 0
  %6022 = vmatmul.mubr.bf16.gmra.mrb[0].mxu0 %v4190
  %v6023 = vpop.f32.mrb[0].mxu0
  %v6024 = vadd.f32 0.0, %v6023
  %v6025 = vpop.f32.mrb[0].mxu0
  %v6026 = vpop.f32.mrb[0].mxu0
  %v6027 = vadd.f32 0.0, %v6026
  %v6028 = vpop.f32.mrb[0].mxu0
  %6029 = vmatprep.mubr.bf16.mxu0 0
  %6030 = vmatmul.mubr.bf16.gmra.mrb[0].mxu0 %v4193
  %v6031 = vpop.f32.mrb[0].mxu0
  %v6032 = vadd.f32 0.0, %v6031
  %v6033 = vpop.f32.mrb[0].mxu0
  %v6034 = vpop.f32.mrb[0].mxu0
  %v6035 = vadd.f32 0.0, %v6034
  %v6036 = vpop.f32.mrb[0].mxu0
  %6037 = vmatprep.mubr.bf16.mxu0 0
  %6038 = vmatmul.mubr.bf16.gmra.mrb[0].mxu0 %v4196
  %v6039 = vpop.f32.mrb[0].mxu0
  %v6040 = vadd.f32 0.0, %v6039
  %v6041 = vpop.f32.mrb[0].mxu0
  %v6042 = vpop.f32.mrb[0].mxu0
  %v6043 = vpop.f32.mrb[0].mxu0
  %6044 = vdwg.mxu0
  %6045 = vmatprep.subr.bf16.mxu0 0
  %6046 = vmatpush1.bf16.msra.mxu0 %v3127
  %6047 = vmatprep.subr.bf16.mxu0 0
  %6048 = vmatpush1.bf16.msra.mxu0 %v3128
  %6049 = vmatprep.subr.bf16.mxu0 0
  %6050 = vmatpush1.bf16.msra.mxu0 %v3129
  %6051 = vmatprep.subr.bf16.mxu0 0
  %6052 = vmatpush1.bf16.msra.mxu0 %v3130
  %6053 = vmatprep.subr.bf16.mxu0 0
  %6054 = vmatpush1.bf16.msra.mxu0 %v3131
  %6055 = vmatprep.subr.bf16.mxu0 0
  %6056 = vmatpush1.bf16.msra.mxu0 %v3132
  %6057 = vmatprep.subr.bf16.mxu0 0
  %6058 = vmatpush1.bf16.msra.mxu0 0
  %6059 = vmatprep.subr.bf16.mxu0 0
  %6060 = vmatpush1.bf16.msra.mxu0 0
  %6061 = vmatprep.subr.bf16.mxu0 0
  %6062 = vmatpush1.bf16.msra.mxu0 0
  %6063 = vmatprep.subr.bf16.mxu0 0
  %6064 = vmatpush1.bf16.msra.mxu0 0
  %6065 = vmatprep.subr.bf16.mxu0 0
  %6066 = vmatpush1.bf16.msra.mxu0 0
  %6067 = vmatprep.subr.bf16.mxu0 0
  %6068 = vmatpush1.bf16.msra.mxu0 0
  %6069 = vmatprep.subr.bf16.mxu0 0
  %6070 = vmatpush1.bf16.msra.mxu0 0
  %6071 = vmatprep.subr.bf16.mxu0 0
  %6072 = vmatpush1.bf16.msra.mxu0 0
  %6073 = vmatprep.subr.bf16.mxu0 0
  %6074 = vmatpush1.bf16.msra.mxu0 0
  %6075 = vmatprep.subr.bf16.mxu0 0
  %6076 = vmatpush1.bf16.msra.mxu0 0
  %6077 = vmatprep.mubr.bf16.mxu0 0
  %6078 = vmatmul.mubr.bf16.gmra.mrb[0].mxu0 %v704
  %v6079 = vpop.f32.mrb[0].mxu0
  %v6080 = vadd.f32 %v5888, %v6079
  %v6081 = vpop.f32.mrb[0].mxu0
  %v6082 = vpop.f32.mrb[0].mxu0
  %v6083 = vadd.f32 %v5891, %v6082
  %v6084 = vpop.f32.mrb[0].mxu0
  %6085 = vmatprep.mubr.bf16.mxu0 0
  %6086 = vmatmul.mubr.bf16.gmra.mrb[0].mxu0 %v707
  %v6087 = vpop.f32.mrb[0].mxu0
  %v6088 = vadd.f32 %v5896, %v6087
  %v6089 = vpop.f32.mrb[0].mxu0
  %v6090 = vpop.f32.mrb[0].mxu0
  %v6091 = vadd.f32 %v5899, %v6090
  %v6092 = vpop.f32.mrb[0].mxu0
  %6093 = vmatprep.mubr.bf16.mxu0 0
  %6094 = vmatmul.mubr.bf16.gmra.mrb[0].mxu0 %v710
  %v6095 = vpop.f32.mrb[0].mxu0
  %v6096 = vadd.f32 %v5904, %v6095
  %v6097 = vpop.f32.mrb[0].mxu0
  %v6098 = vpop.f32.mrb[0].mxu0
  %v6099 = vadd.f32 %v5907, %v6098
  %v6100 = vpop.f32.mrb[0].mxu0
  %6101 = vmatprep.mubr.bf16.mxu0 0
  %6102 = vmatmul.mubr.bf16.gmra.mrb[0].mxu0 %v713
  %v6103 = vpop.f32.mrb[0].mxu0
  %v6104 = vadd.f32 %v5912, %v6103
  %v6105 = vpop.f32.mrb[0].mxu0
  %v6106 = vpop.f32.mrb[0].mxu0
  %v6107 = vpop.f32.mrb[0].mxu0
  %6108 = vdwg.mxu0
  %6109 = vmatprep.subr.bf16.mxu0 0
  %6110 = vmatpush1.bf16.msra.mxu0 %v3227
  %6111 = vmatprep.subr.bf16.mxu0 0
  %6112 = vmatpush1.bf16.msra.mxu0 %v3228
  %6113 = vmatprep.subr.bf16.mxu0 0
  %6114 = vmatpush1.bf16.msra.mxu0 %v3229
  %6115 = vmatprep.subr.bf16.mxu0 0
  %6116 = vmatpush1.bf16.msra.mxu0 %v3230
  %6117 = vmatprep.subr.bf16.mxu0 0
  %6118 = vmatpush1.bf16.msra.mxu0 %v3231
  %6119 = vmatprep.subr.bf16.mxu0 0
  %6120 = vmatpush1.bf16.msra.mxu0 %v3232
  %6121 = vmatprep.subr.bf16.mxu0 0
  %6122 = vmatpush1.bf16.msra.mxu0 0
  %6123 = vmatprep.subr.bf16.mxu0 0
  %6124 = vmatpush1.bf16.msra.mxu0 0
  %6125 = vmatprep.subr.bf16.mxu0 0
  %6126 = vmatpush1.bf16.msra.mxu0 0
  %6127 = vmatprep.subr.bf16.mxu0 0
  %6128 = vmatpush1.bf16.msra.mxu0 0
  %6129 = vmatprep.subr.bf16.mxu0 0
  %6130 = vmatpush1.bf16.msra.mxu0 0
  %6131 = vmatprep.subr.bf16.mxu0 0
  %6132 = vmatpush1.bf16.msra.mxu0 0
  %6133 = vmatprep.subr.bf16.mxu0 0
  %6134 = vmatpush1.bf16.msra.mxu0 0
  %6135 = vmatprep.subr.bf16.mxu0 0
  %6136 = vmatpush1.bf16.msra.mxu0 0
  %6137 = vmatprep.subr.bf16.mxu0 0
  %6138 = vmatpush1.bf16.msra.mxu0 0
  %6139 = vmatprep.subr.bf16.mxu0 0
  %6140 = vmatpush1.bf16.msra.mxu0 0
  %6141 = vmatprep.mubr.bf16.mxu0 0
  %6142 = vmatmul.mubr.bf16.gmra.mrb[0].mxu0 %v456
  %v6143 = vpop.f32.mrb[0].mxu0
  %v6144 = vadd.f32 %v5952, %v6143
  %v6145 = vpop.f32.mrb[0].mxu0
  %v6146 = vpop.f32.mrb[0].mxu0
  %v6147 = vadd.f32 %v5955, %v6146
  %v6148 = vpop.f32.mrb[0].mxu0
  %6149 = vmatprep.mubr.bf16.mxu0 0
  %6150 = vmatmul.mubr.bf16.gmra.mrb[0].mxu0 %v459
  %v6151 = vpop.f32.mrb[0].mxu0
  %v6152 = vadd.f32 %v5960, %v6151
  %v6153 = vpop.f32.mrb[0].mxu0
  %v6154 = vpop.f32.mrb[0].mxu0
  %v6155 = vadd.f32 %v5963, %v6154
  %v6156 = vpop.f32.mrb[0].mxu0
  %6157 = vmatprep.mubr.bf16.mxu0 0
  %6158 = vmatmul.mubr.bf16.gmra.mrb[0].mxu0 %v462
  %v6159 = vpop.f32.mrb[0].mxu0
  %v6160 = vadd.f32 %v5968, %v6159
  %v6161 = vpop.f32.mrb[0].mxu0
  %v6162 = vpop.f32.mrb[0].mxu0
  %v6163 = vadd.f32 %v5971, %v6162
  %v6164 = vpop.f32.mrb[0].mxu0
  %6165 = vmatprep.mubr.bf16.mxu0 0
  %6166 = vmatmul.mubr.bf16.gmra.mrb[0].mxu0 %v465
  %v6167 = vpop.f32.mrb[0].mxu0
  %v6168 = vadd.f32 %v5976, %v6167
  %v6169 = vpop.f32.mrb[0].mxu0
  %v6170 = vpop.f32.mrb[0].mxu0
  %v6171 = vpop.f32.mrb[0].mxu0
  %6172 = vdwg.mxu0
  %v6173 = vadd.f32 %v6080, %v6144
  %v6174 = vadd.f32 %v6083, %v6147
  %v6175 = vadd.f32 %v6088, %v6152
  %v6176 = vadd.f32 %v6091, %v6155
  %v6177 = vadd.f32 %v6096, %v6160
  %v6178 = vadd.f32 %v6099, %v6163
  %v6179 = vadd.f32 %v6104, %v6168
  %v6180 = vadd.f32 %v6173, %v6016
  %v6181 = vadd.f32 %v6174, %v6019
  %v6182 = vadd.f32 %v6175, %v6024
  %v6183 = vadd.f32 %v6176, %v6027
  %v6184 = vadd.f32 %v6177, %v6032
  %v6185 = vadd.f32 %v6178, %v6035
  %v6186 = vadd.f32 %v6179, %v6040
  %v6187 = vadd.f32 %v6180, %v797
  %v6188 = vadd.f32 %v6181, %v797
  %v6189 = vadd.f32 %v6182, %v797
  %v6190 = vadd.f32 %v6183, %v797
  %v6191 = vadd.f32 %v6184, %v797
  %v6192 = vadd.f32 %v6185, %v797
  %v6193 = vadd.f32 %v6186, %v797
  %v6194 = vmax.f32 %v6187, 0.0
  %v6195 = vmax.f32 %v6188, 0.0
  %v6196 = vmax.f32 %v6189, 0.0
  %v6197 = vmax.f32 %v6190, 0.0
  %v6198 = vmax.f32 %v6191, 0.0
  %v6199 = vmax.f32 %v6192, 0.0
  %v6200 = vmax.f32 %v6193, 0.0
  %6201 = vmatprep.subr.bf16.mxu0 0
  %6202 = vmatpush1.bf16.msra.mxu0 %v2195
  %6203 = vmatprep.subr.bf16.mxu0 0
  %6204 = vmatpush1.bf16.msra.mxu0 %v2196
  %6205 = vmatprep.subr.bf16.mxu0 0
  %6206 = vmatpush1.bf16.msra.mxu0 %v2197
  %6207 = vmatprep.subr.bf16.mxu0 0
  %6208 = vmatpush1.bf16.msra.mxu0 %v2198
  %6209 = vmatprep.subr.bf16.mxu0 0
  %6210 = vmatpush1.bf16.msra.mxu0 %v2199
  %6211 = vmatprep.subr.bf16.mxu0 0
  %6212 = vmatpush1.bf16.msra.mxu0 %v2200
  %6213 = vmatprep.subr.bf16.mxu0 0
  %6214 = vmatpush1.bf16.msra.mxu0 0
  %6215 = vmatprep.subr.bf16.mxu0 0
  %6216 = vmatpush1.bf16.msra.mxu0 0
  %6217 = vmatprep.subr.bf16.mxu0 0
  %6218 = vmatpush1.bf16.msra.mxu0 0
  %6219 = vmatprep.subr.bf16.mxu0 0
  %6220 = vmatpush1.bf16.msra.mxu0 0
  %6221 = vmatprep.subr.bf16.mxu0 0
  %6222 = vmatpush1.bf16.msra.mxu0 0
  %6223 = vmatprep.subr.bf16.mxu0 0
  %6224 = vmatpush1.bf16.msra.mxu0 0
  %6225 = vmatprep.subr.bf16.mxu0 0
  %6226 = vmatpush1.bf16.msra.mxu0 0
  %6227 = vmatprep.subr.bf16.mxu0 0
  %6228 = vmatpush1.bf16.msra.mxu0 0
  %6229 = vmatprep.subr.bf16.mxu0 0
  %6230 = vmatpush1.bf16.msra.mxu0 0
  %6231 = vmatprep.subr.bf16.mxu0 0
  %6232 = vmatpush1.bf16.msra.mxu0 0
  %6233 = vmatprep.mubr.bf16.mxu0 0
  %6234 = vmatmul.mubr.bf16.gmra.mrb[0].mxu0 %v456
  %v6235 = vpop.f32.mrb[0].mxu0
  %v6236 = vadd.f32 0.0, %v6235
  %v6237 = vpop.f32.mrb[0].mxu0
  %v6238 = vpop.f32.mrb[0].mxu0
  %v6239 = vadd.f32 0.0, %v6238
  %v6240 = vpop.f32.mrb[0].mxu0
  %6241 = vmatprep.mubr.bf16.mxu0 0
  %6242 = vmatmul.mubr.bf16.gmra.mrb[0].mxu0 %v459
  %v6243 = vpop.f32.mrb[0].mxu0
  %v6244 = vadd.f32 0.0, %v6243
  %v6245 = vpop.f32.mrb[0].mxu0
  %v6246 = vpop.f32.mrb[0].mxu0
  %v6247 = vadd.f32 0.0, %v6246
  %v6248 = vpop.f32.mrb[0].mxu0
  %6249 = vmatprep.mubr.bf16.mxu0 0
  %6250 = vmatmul.mubr.bf16.gmra.mrb[0].mxu0 %v462
  %v6251 = vpop.f32.mrb[0].mxu0
  %v6252 = vadd.f32 0.0, %v6251
  %v6253 = vpop.f32.mrb[0].mxu0
  %v6254 = vpop.f32.mrb[0].mxu0
  %v6255 = vadd.f32 0.0, %v6254
  %v6256 = vpop.f32.mrb[0].mxu0
  %6257 = vmatprep.mubr.bf16.mxu0 0
  %6258 = vmatmul.mubr.bf16.gmra.mrb[0].mxu0 %v465
  %v6259 = vpop.f32.mrb[0].mxu0
  %v6260 = vadd.f32 0.0, %v6259
  %v6261 = vpop.f32.mrb[0].mxu0
  %v6262 = vpop.f32.mrb[0].mxu0
  %v6263 = vpop.f32.mrb[0].mxu0
  %6264 = vdwg.mxu0
  %6265 = vmatprep.subr.bf16.mxu0 0
  %6266 = vmatpush1.bf16.msra.mxu0 %v2321
  %6267 = vmatprep.subr.bf16.mxu0 0
  %6268 = vmatpush1.bf16.msra.mxu0 %v2322
  %6269 = vmatprep.subr.bf16.mxu0 0
  %6270 = vmatpush1.bf16.msra.mxu0 %v2323
  %6271 = vmatprep.subr.bf16.mxu0 0
  %6272 = vmatpush1.bf16.msra.mxu0 %v2324
  %6273 = vmatprep.subr.bf16.mxu0 0
  %6274 = vmatpush1.bf16.msra.mxu0 %v2325
  %6275 = vmatprep.subr.bf16.mxu0 0
  %6276 = vmatpush1.bf16.msra.mxu0 %v2326
  %6277 = vmatprep.subr.bf16.mxu0 0
  %6278 = vmatpush1.bf16.msra.mxu0 0
  %6279 = vmatprep.subr.bf16.mxu0 0
  %6280 = vmatpush1.bf16.msra.mxu0 0
  %6281 = vmatprep.subr.bf16.mxu0 0
  %6282 = vmatpush1.bf16.msra.mxu0 0
  %6283 = vmatprep.subr.bf16.mxu0 0
  %6284 = vmatpush1.bf16.msra.mxu0 0
  %6285 = vmatprep.subr.bf16.mxu0 0
  %6286 = vmatpush1.bf16.msra.mxu0 0
  %6287 = vmatprep.subr.bf16.mxu0 0
  %6288 = vmatpush1.bf16.msra.mxu0 0
  %6289 = vmatprep.subr.bf16.mxu0 0
  %6290 = vmatpush1.bf16.msra.mxu0 0
  %6291 = vmatprep.subr.bf16.mxu0 0
  %6292 = vmatpush1.bf16.msra.mxu0 0
  %6293 = vmatprep.subr.bf16.mxu0 0
  %6294 = vmatpush1.bf16.msra.mxu0 0
  %6295 = vmatprep.subr.bf16.mxu0 0
  %6296 = vmatpush1.bf16.msra.mxu0 0
  %6297 = vmatprep.mubr.bf16.mxu0 0
  %6298 = vmatmul.mubr.bf16.gmra.mrb[0].mxu0 %v4187
  %v6299 = vpop.f32.mrb[0].mxu0
  %v6300 = vadd.f32 0.0, %v6299
  %v6301 = vpop.f32.mrb[0].mxu0
  %v6302 = vpop.f32.mrb[0].mxu0
  %v6303 = vadd.f32 0.0, %v6302
  %v6304 = vpop.f32.mrb[0].mxu0
  %6305 = vmatprep.mubr.bf16.mxu0 0
  %6306 = vmatmul.mubr.bf16.gmra.mrb[0].mxu0 %v4190
  %v6307 = vpop.f32.mrb[0].mxu0
  %v6308 = vadd.f32 0.0, %v6307
  %v6309 = vpop.f32.mrb[0].mxu0
  %v6310 = vpop.f32.mrb[0].mxu0
  %v6311 = vadd.f32 0.0, %v6310
  %v6312 = vpop.f32.mrb[0].mxu0
  %6313 = vmatprep.mubr.bf16.mxu0 0
  %6314 = vmatmul.mubr.bf16.gmra.mrb[0].mxu0 %v4193
  %v6315 = vpop.f32.mrb[0].mxu0
  %v6316 = vadd.f32 0.0, %v6315
  %v6317 = vpop.f32.mrb[0].mxu0
  %v6318 = vpop.f32.mrb[0].mxu0
  %v6319 = vadd.f32 0.0, %v6318
  %v6320 = vpop.f32.mrb[0].mxu0
  %6321 = vmatprep.mubr.bf16.mxu0 0
  %6322 = vmatmul.mubr.bf16.gmra.mrb[0].mxu0 %v4196
  %v6323 = vpop.f32.mrb[0].mxu0
  %v6324 = vadd.f32 0.0, %v6323
  %v6325 = vpop.f32.mrb[0].mxu0
  %v6326 = vpop.f32.mrb[0].mxu0
  %v6327 = vpop.f32.mrb[0].mxu0
  %6328 = vdwg.mxu0
  %6329 = vmatprep.subr.bf16.mxu0 0
  %6330 = vmatpush1.bf16.msra.mxu0 %v2434
  %6331 = vmatprep.subr.bf16.mxu0 0
  %6332 = vmatpush1.bf16.msra.mxu0 %v2435
  %6333 = vmatprep.subr.bf16.mxu0 0
  %6334 = vmatpush1.bf16.msra.mxu0 %v2436
  %6335 = vmatprep.subr.bf16.mxu0 0
  %6336 = vmatpush1.bf16.msra.mxu0 %v2437
  %6337 = vmatprep.subr.bf16.mxu0 0
  %6338 = vmatpush1.bf16.msra.mxu0 %v2438
  %6339 = vmatprep.subr.bf16.mxu0 0
  %6340 = vmatpush1.bf16.msra.mxu0 %v2439
  %6341 = vmatprep.subr.bf16.mxu0 0
  %6342 = vmatpush1.bf16.msra.mxu0 0
  %6343 = vmatprep.subr.bf16.mxu0 0
  %6344 = vmatpush1.bf16.msra.mxu0 0
  %6345 = vmatprep.subr.bf16.mxu0 0
  %6346 = vmatpush1.bf16.msra.mxu0 0
  %6347 = vmatprep.subr.bf16.mxu0 0
  %6348 = vmatpush1.bf16.msra.mxu0 0
  %6349 = vmatprep.subr.bf16.mxu0 0
  %6350 = vmatpush1.bf16.msra.mxu0 0
  %6351 = vmatprep.subr.bf16.mxu0 0
  %6352 = vmatpush1.bf16.msra.mxu0 0
  %6353 = vmatprep.subr.bf16.mxu0 0
  %6354 = vmatpush1.bf16.msra.mxu0 0
  %6355 = vmatprep.subr.bf16.mxu0 0
  %6356 = vmatpush1.bf16.msra.mxu0 0
  %6357 = vmatprep.subr.bf16.mxu0 0
  %6358 = vmatpush1.bf16.msra.mxu0 0
  %6359 = vmatprep.subr.bf16.mxu0 0
  %6360 = vmatpush1.bf16.msra.mxu0 0
  %6361 = vmatprep.mubr.bf16.mxu0 0
  %6362 = vmatmul.mubr.bf16.gmra.mrb[0].mxu0 %v4901
  %v6363 = vpop.f32.mrb[0].mxu0
  %v6364 = vadd.f32 0.0, %v6363
  %v6365 = vpop.f32.mrb[0].mxu0
  %v6366 = vpop.f32.mrb[0].mxu0
  %v6367 = vadd.f32 0.0, %v6366
  %v6368 = vpop.f32.mrb[0].mxu0
  %6369 = vmatprep.mubr.bf16.mxu0 0
  %6370 = vmatmul.mubr.bf16.gmra.mrb[0].mxu0 %v4904
  %v6371 = vpop.f32.mrb[0].mxu0
  %v6372 = vadd.f32 0.0, %v6371
  %v6373 = vpop.f32.mrb[0].mxu0
  %v6374 = vpop.f32.mrb[0].mxu0
  %v6375 = vadd.f32 0.0, %v6374
  %v6376 = vpop.f32.mrb[0].mxu0
  %6377 = vmatprep.mubr.bf16.mxu0 0
  %6378 = vmatmul.mubr.bf16.gmra.mrb[0].mxu0 %v4907
  %v6379 = vpop.f32.mrb[0].mxu0
  %v6380 = vadd.f32 0.0, %v6379
  %v6381 = vpop.f32.mrb[0].mxu0
  %v6382 = vpop.f32.mrb[0].mxu0
  %v6383 = vadd.f32 0.0, %v6382
  %v6384 = vpop.f32.mrb[0].mxu0
  %6385 = vmatprep.mubr.bf16.mxu0 0
  %6386 = vmatmul.mubr.bf16.gmra.mrb[0].mxu0 %v4910
  %v6387 = vpop.f32.mrb[0].mxu0
  %v6388 = vadd.f32 0.0, %v6387
  %v6389 = vpop.f32.mrb[0].mxu0
  %v6390 = vpop.f32.mrb[0].mxu0
  %v6391 = vpop.f32.mrb[0].mxu0
  %6392 = vdwg.mxu0
  %6393 = vmatprep.subr.bf16.mxu0 0
  %6394 = vmatpush1.bf16.msra.mxu0 %v2534
  %6395 = vmatprep.subr.bf16.mxu0 0
  %6396 = vmatpush1.bf16.msra.mxu0 %v2535
  %6397 = vmatprep.subr.bf16.mxu0 0
  %6398 = vmatpush1.bf16.msra.mxu0 %v2536
  %6399 = vmatprep.subr.bf16.mxu0 0
  %6400 = vmatpush1.bf16.msra.mxu0 %v2537
  %6401 = vmatprep.subr.bf16.mxu0 0
  %6402 = vmatpush1.bf16.msra.mxu0 %v2538
  %6403 = vmatprep.subr.bf16.mxu0 0
  %6404 = vmatpush1.bf16.msra.mxu0 %v2539
  %6405 = vmatprep.subr.bf16.mxu0 0
  %6406 = vmatpush1.bf16.msra.mxu0 0
  %6407 = vmatprep.subr.bf16.mxu0 0
  %6408 = vmatpush1.bf16.msra.mxu0 0
  %6409 = vmatprep.subr.bf16.mxu0 0
  %6410 = vmatpush1.bf16.msra.mxu0 0
  %6411 = vmatprep.subr.bf16.mxu0 0
  %6412 = vmatpush1.bf16.msra.mxu0 0
  %6413 = vmatprep.subr.bf16.mxu0 0
  %6414 = vmatpush1.bf16.msra.mxu0 0
  %6415 = vmatprep.subr.bf16.mxu0 0
  %6416 = vmatpush1.bf16.msra.mxu0 0
  %6417 = vmatprep.subr.bf16.mxu0 0
  %6418 = vmatpush1.bf16.msra.mxu0 0
  %6419 = vmatprep.subr.bf16.mxu0 0
  %6420 = vmatpush1.bf16.msra.mxu0 0
  %6421 = vmatprep.subr.bf16.mxu0 0
  %6422 = vmatpush1.bf16.msra.mxu0 0
  %6423 = vmatprep.subr.bf16.mxu0 0
  %6424 = vmatpush1.bf16.msra.mxu0 0
  %6425 = vmatprep.mubr.bf16.mxu0 0
  %6426 = vmatmul.mubr.bf16.gmra.mrb[0].mxu0 %v313
  %v6427 = vpop.f32.mrb[0].mxu0
  %v6428 = vadd.f32 %v6236, %v6427
  %v6429 = vpop.f32.mrb[0].mxu0
  %v6430 = vpop.f32.mrb[0].mxu0
  %v6431 = vadd.f32 %v6239, %v6430
  %v6432 = vpop.f32.mrb[0].mxu0
  %6433 = vmatprep.mubr.bf16.mxu0 0
  %6434 = vmatmul.mubr.bf16.gmra.mrb[0].mxu0 %v316
  %v6435 = vpop.f32.mrb[0].mxu0
  %v6436 = vadd.f32 %v6244, %v6435
  %v6437 = vpop.f32.mrb[0].mxu0
  %v6438 = vpop.f32.mrb[0].mxu0
  %v6439 = vadd.f32 %v6247, %v6438
  %v6440 = vpop.f32.mrb[0].mxu0
  %6441 = vmatprep.mubr.bf16.mxu0 0
  %6442 = vmatmul.mubr.bf16.gmra.mrb[0].mxu0 %v319
  %v6443 = vpop.f32.mrb[0].mxu0
  %v6444 = vadd.f32 %v6252, %v6443
  %v6445 = vpop.f32.mrb[0].mxu0
  %v6446 = vpop.f32.mrb[0].mxu0
  %v6447 = vadd.f32 %v6255, %v6446
  %v6448 = vpop.f32.mrb[0].mxu0
  %6449 = vmatprep.mubr.bf16.mxu0 0
  %6450 = vmatmul.mubr.bf16.gmra.mrb[0].mxu0 %v322
  %v6451 = vpop.f32.mrb[0].mxu0
  %v6452 = vadd.f32 %v6260, %v6451
  %v6453 = vpop.f32.mrb[0].mxu0
  %v6454 = vpop.f32.mrb[0].mxu0
  %v6455 = vpop.f32.mrb[0].mxu0
  %6456 = vdwg.mxu0
  %6457 = vmatprep.subr.bf16.mxu0 0
  %6458 = vmatpush1.bf16.msra.mxu0 %v2634
  %6459 = vmatprep.subr.bf16.mxu0 0
  %6460 = vmatpush1.bf16.msra.mxu0 %v2635
  %6461 = vmatprep.subr.bf16.mxu0 0
  %6462 = vmatpush1.bf16.msra.mxu0 %v2636
  %6463 = vmatprep.subr.bf16.mxu0 0
  %6464 = vmatpush1.bf16.msra.mxu0 %v2637
  %6465 = vmatprep.subr.bf16.mxu0 0
  %6466 = vmatpush1.bf16.msra.mxu0 %v2638
  %6467 = vmatprep.subr.bf16.mxu0 0
  %6468 = vmatpush1.bf16.msra.mxu0 %v2639
  %6469 = vmatprep.subr.bf16.mxu0 0
  %6470 = vmatpush1.bf16.msra.mxu0 0
  %6471 = vmatprep.subr.bf16.mxu0 0
  %6472 = vmatpush1.bf16.msra.mxu0 0
  %6473 = vmatprep.subr.bf16.mxu0 0
  %6474 = vmatpush1.bf16.msra.mxu0 0
  %6475 = vmatprep.subr.bf16.mxu0 0
  %6476 = vmatpush1.bf16.msra.mxu0 0
  %6477 = vmatprep.subr.bf16.mxu0 0
  %6478 = vmatpush1.bf16.msra.mxu0 0
  %6479 = vmatprep.subr.bf16.mxu0 0
  %6480 = vmatpush1.bf16.msra.mxu0 0
  %6481 = vmatprep.subr.bf16.mxu0 0
  %6482 = vmatpush1.bf16.msra.mxu0 0
  %6483 = vmatprep.subr.bf16.mxu0 0
  %6484 = vmatpush1.bf16.msra.mxu0 0
  %6485 = vmatprep.subr.bf16.mxu0 0
  %6486 = vmatpush1.bf16.msra.mxu0 0
  %6487 = vmatprep.subr.bf16.mxu0 0
  %6488 = vmatpush1.bf16.msra.mxu0 0
  %6489 = vmatprep.mubr.bf16.mxu0 0
  %6490 = vmatmul.mubr.bf16.gmra.mrb[0].mxu0 %v1541
  %v6491 = vpop.f32.mrb[0].mxu0
  %v6492 = vadd.f32 %v6300, %v6491
  %v6493 = vpop.f32.mrb[0].mxu0
  %v6494 = vpop.f32.mrb[0].mxu0
  %v6495 = vadd.f32 %v6303, %v6494
  %v6496 = vpop.f32.mrb[0].mxu0
  %6497 = vmatprep.mubr.bf16.mxu0 0
  %6498 = vmatmul.mubr.bf16.gmra.mrb[0].mxu0 %v1544
  %v6499 = vpop.f32.mrb[0].mxu0
  %v6500 = vadd.f32 %v6308, %v6499
  %v6501 = vpop.f32.mrb[0].mxu0
  %v6502 = vpop.f32.mrb[0].mxu0
  %v6503 = vadd.f32 %v6311, %v6502
  %v6504 = vpop.f32.mrb[0].mxu0
  %6505 = vmatprep.mubr.bf16.mxu0 0
  %6506 = vmatmul.mubr.bf16.gmra.mrb[0].mxu0 %v1547
  %v6507 = vpop.f32.mrb[0].mxu0
  %v6508 = vadd.f32 %v6316, %v6507
  %v6509 = vpop.f32.mrb[0].mxu0
  %v6510 = vpop.f32.mrb[0].mxu0
  %v6511 = vadd.f32 %v6319, %v6510
  %v6512 = vpop.f32.mrb[0].mxu0
  %6513 = vmatprep.mubr.bf16.mxu0 0
  %6514 = vmatmul.mubr.bf16.gmra.mrb[0].mxu0 %v1550
  %v6515 = vpop.f32.mrb[0].mxu0
  %v6516 = vadd.f32 %v6324, %v6515
  %v6517 = vpop.f32.mrb[0].mxu0
  %v6518 = vpop.f32.mrb[0].mxu0
  %v6519 = vpop.f32.mrb[0].mxu0
  %6520 = vdwg.mxu0
  %v6521 = vadd.f32 %v6428, %v6492
  %v6522 = vadd.f32 %v6431, %v6495
  %v6523 = vadd.f32 %v6436, %v6500
  %v6524 = vadd.f32 %v6439, %v6503
  %v6525 = vadd.f32 %v6444, %v6508
  %v6526 = vadd.f32 %v6447, %v6511
  %v6527 = vadd.f32 %v6452, %v6516
  %v6528 = vadd.f32 %v6521, %v6364
  %v6529 = vadd.f32 %v6522, %v6367
  %v6530 = vadd.f32 %v6523, %v6372
  %v6531 = vadd.f32 %v6524, %v6375
  %v6532 = vadd.f32 %v6525, %v6380
  %v6533 = vadd.f32 %v6526, %v6383
  %v6534 = vadd.f32 %v6527, %v6388
  %v6535 = vadd.f32 %v6528, %v797
  %v6536 = vadd.f32 %v6529, %v797
  %v6537 = vadd.f32 %v6530, %v797
  %v6538 = vadd.f32 %v6531, %v797
  %v6539 = vadd.f32 %v6532, %v797
  %v6540 = vadd.f32 %v6533, %v797
  %v6541 = vadd.f32 %v6534, %v797
  %v6542 = vmax.f32 %v6535, 0.0
  %v6543 = vmax.f32 %v6536, 0.0
  %v6544 = vmax.f32 %v6537, 0.0
  %v6545 = vmax.f32 %v6538, 0.0
  %v6546 = vmax.f32 %v6539, 0.0
  %v6547 = vmax.f32 %v6540, 0.0
  %v6548 = vmax.f32 %v6541, 0.0
  %6549 = vmatprep.subr.bf16.mxu0 0
  %6550 = vmatpush1.bf16.msra.mxu0 %v2788
  %6551 = vmatprep.subr.bf16.mxu0 0
  %6552 = vmatpush1.bf16.msra.mxu0 %v2789
  %6553 = vmatprep.subr.bf16.mxu0 0
  %6554 = vmatpush1.bf16.msra.mxu0 %v2790
  %6555 = vmatprep.subr.bf16.mxu0 0
  %6556 = vmatpush1.bf16.msra.mxu0 %v2791
  %6557 = vmatprep.subr.bf16.mxu0 0
  %6558 = vmatpush1.bf16.msra.mxu0 %v2792
  %6559 = vmatprep.subr.bf16.mxu0 0
  %6560 = vmatpush1.bf16.msra.mxu0 %v2793
  %6561 = vmatprep.subr.bf16.mxu0 0
  %6562 = vmatpush1.bf16.msra.mxu0 0
  %6563 = vmatprep.subr.bf16.mxu0 0
  %6564 = vmatpush1.bf16.msra.mxu0 0
  %6565 = vmatprep.subr.bf16.mxu0 0
  %6566 = vmatpush1.bf16.msra.mxu0 0
  %6567 = vmatprep.subr.bf16.mxu0 0
  %6568 = vmatpush1.bf16.msra.mxu0 0
  %6569 = vmatprep.subr.bf16.mxu0 0
  %6570 = vmatpush1.bf16.msra.mxu0 0
  %6571 = vmatprep.subr.bf16.mxu0 0
  %6572 = vmatpush1.bf16.msra.mxu0 0
  %6573 = vmatprep.subr.bf16.mxu0 0
  %6574 = vmatpush1.bf16.msra.mxu0 0
  %6575 = vmatprep.subr.bf16.mxu0 0
  %6576 = vmatpush1.bf16.msra.mxu0 0
  %6577 = vmatprep.subr.bf16.mxu0 0
  %6578 = vmatpush1.bf16.msra.mxu0 0
  %6579 = vmatprep.subr.bf16.mxu0 0
  %6580 = vmatpush1.bf16.msra.mxu0 0
  %6581 = vmatprep.mubr.bf16.mxu0 0
  %6582 = vmatmul.mubr.bf16.gmra.mrb[0].mxu0 %v456
  %v6583 = vpop.f32.mrb[0].mxu0
  %v6584 = vadd.f32 0.0, %v6583
  %v6585 = vpop.f32.mrb[0].mxu0
  %v6586 = vpop.f32.mrb[0].mxu0
  %v6587 = vadd.f32 0.0, %v6586
  %v6588 = vpop.f32.mrb[0].mxu0
  %6589 = vmatprep.mubr.bf16.mxu0 0
  %6590 = vmatmul.mubr.bf16.gmra.mrb[0].mxu0 %v459
  %v6591 = vpop.f32.mrb[0].mxu0
  %v6592 = vadd.f32 0.0, %v6591
  %v6593 = vpop.f32.mrb[0].mxu0
  %v6594 = vpop.f32.mrb[0].mxu0
  %v6595 = vadd.f32 0.0, %v6594
  %v6596 = vpop.f32.mrb[0].mxu0
  %6597 = vmatprep.mubr.bf16.mxu0 0
  %6598 = vmatmul.mubr.bf16.gmra.mrb[0].mxu0 %v462
  %v6599 = vpop.f32.mrb[0].mxu0
  %v6600 = vadd.f32 0.0, %v6599
  %v6601 = vpop.f32.mrb[0].mxu0
  %v6602 = vpop.f32.mrb[0].mxu0
  %v6603 = vadd.f32 0.0, %v6602
  %v6604 = vpop.f32.mrb[0].mxu0
  %6605 = vmatprep.mubr.bf16.mxu0 0
  %6606 = vmatmul.mubr.bf16.gmra.mrb[0].mxu0 %v465
  %v6607 = vpop.f32.mrb[0].mxu0
  %v6608 = vadd.f32 0.0, %v6607
  %v6609 = vpop.f32.mrb[0].mxu0
  %v6610 = vpop.f32.mrb[0].mxu0
  %v6611 = vpop.f32.mrb[0].mxu0
  %6612 = vdwg.mxu0
  %6613 = vmatprep.subr.bf16.mxu0 0
  %6614 = vmatpush1.bf16.msra.mxu0 %v2914
  %6615 = vmatprep.subr.bf16.mxu0 0
  %6616 = vmatpush1.bf16.msra.mxu0 %v2915
  %6617 = vmatprep.subr.bf16.mxu0 0
  %6618 = vmatpush1.bf16.msra.mxu0 %v2916
  %6619 = vmatprep.subr.bf16.mxu0 0
  %6620 = vmatpush1.bf16.msra.mxu0 %v2917
  %6621 = vmatprep.subr.bf16.mxu0 0
  %6622 = vmatpush1.bf16.msra.mxu0 %v2918
  %6623 = vmatprep.subr.bf16.mxu0 0
  %6624 = vmatpush1.bf16.msra.mxu0 %v2919
  %6625 = vmatprep.subr.bf16.mxu0 0
  %6626 = vmatpush1.bf16.msra.mxu0 0
  %6627 = vmatprep.subr.bf16.mxu0 0
  %6628 = vmatpush1.bf16.msra.mxu0 0
  %6629 = vmatprep.subr.bf16.mxu0 0
  %6630 = vmatpush1.bf16.msra.mxu0 0
  %6631 = vmatprep.subr.bf16.mxu0 0
  %6632 = vmatpush1.bf16.msra.mxu0 0
  %6633 = vmatprep.subr.bf16.mxu0 0
  %6634 = vmatpush1.bf16.msra.mxu0 0
  %6635 = vmatprep.subr.bf16.mxu0 0
  %6636 = vmatpush1.bf16.msra.mxu0 0
  %6637 = vmatprep.subr.bf16.mxu0 0
  %6638 = vmatpush1.bf16.msra.mxu0 0
  %6639 = vmatprep.subr.bf16.mxu0 0
  %6640 = vmatpush1.bf16.msra.mxu0 0
  %6641 = vmatprep.subr.bf16.mxu0 0
  %6642 = vmatpush1.bf16.msra.mxu0 0
  %6643 = vmatprep.subr.bf16.mxu0 0
  %6644 = vmatpush1.bf16.msra.mxu0 0
  %6645 = vmatprep.mubr.bf16.mxu0 0
  %6646 = vmatmul.mubr.bf16.gmra.mrb[0].mxu0 %v4187
  %v6647 = vpop.f32.mrb[0].mxu0
  %v6648 = vadd.f32 0.0, %v6647
  %v6649 = vpop.f32.mrb[0].mxu0
  %v6650 = vpop.f32.mrb[0].mxu0
  %v6651 = vadd.f32 0.0, %v6650
  %v6652 = vpop.f32.mrb[0].mxu0
  %6653 = vmatprep.mubr.bf16.mxu0 0
  %6654 = vmatmul.mubr.bf16.gmra.mrb[0].mxu0 %v4190
  %v6655 = vpop.f32.mrb[0].mxu0
  %v6656 = vadd.f32 0.0, %v6655
  %v6657 = vpop.f32.mrb[0].mxu0
  %v6658 = vpop.f32.mrb[0].mxu0
  %v6659 = vadd.f32 0.0, %v6658
  %v6660 = vpop.f32.mrb[0].mxu0
  %6661 = vmatprep.mubr.bf16.mxu0 0
  %6662 = vmatmul.mubr.bf16.gmra.mrb[0].mxu0 %v4193
  %v6663 = vpop.f32.mrb[0].mxu0
  %v6664 = vadd.f32 0.0, %v6663
  %v6665 = vpop.f32.mrb[0].mxu0
  %v6666 = vpop.f32.mrb[0].mxu0
  %v6667 = vadd.f32 0.0, %v6666
  %v6668 = vpop.f32.mrb[0].mxu0
  %6669 = vmatprep.mubr.bf16.mxu0 0
  %6670 = vmatmul.mubr.bf16.gmra.mrb[0].mxu0 %v4196
  %v6671 = vpop.f32.mrb[0].mxu0
  %v6672 = vadd.f32 0.0, %v6671
  %v6673 = vpop.f32.mrb[0].mxu0
  %v6674 = vpop.f32.mrb[0].mxu0
  %v6675 = vpop.f32.mrb[0].mxu0
  %6676 = vdwg.mxu0
  %6677 = vmatprep.subr.bf16.mxu0 0
  %6678 = vmatpush1.bf16.msra.mxu0 %v3027
  %6679 = vmatprep.subr.bf16.mxu0 0
  %6680 = vmatpush1.bf16.msra.mxu0 %v3028
  %6681 = vmatprep.subr.bf16.mxu0 0
  %6682 = vmatpush1.bf16.msra.mxu0 %v3029
  %6683 = vmatprep.subr.bf16.mxu0 0
  %6684 = vmatpush1.bf16.msra.mxu0 %v3030
  %6685 = vmatprep.subr.bf16.mxu0 0
  %6686 = vmatpush1.bf16.msra.mxu0 %v3031
  %6687 = vmatprep.subr.bf16.mxu0 0
  %6688 = vmatpush1.bf16.msra.mxu0 %v3032
  %6689 = vmatprep.subr.bf16.mxu0 0
  %6690 = vmatpush1.bf16.msra.mxu0 0
  %6691 = vmatprep.subr.bf16.mxu0 0
  %6692 = vmatpush1.bf16.msra.mxu0 0
  %6693 = vmatprep.subr.bf16.mxu0 0
  %6694 = vmatpush1.bf16.msra.mxu0 0
  %6695 = vmatprep.subr.bf16.mxu0 0
  %6696 = vmatpush1.bf16.msra.mxu0 0
  %6697 = vmatprep.subr.bf16.mxu0 0
  %6698 = vmatpush1.bf16.msra.mxu0 0
  %6699 = vmatprep.subr.bf16.mxu0 0
  %6700 = vmatpush1.bf16.msra.mxu0 0
  %6701 = vmatprep.subr.bf16.mxu0 0
  %6702 = vmatpush1.bf16.msra.mxu0 0
  %6703 = vmatprep.subr.bf16.mxu0 0
  %6704 = vmatpush1.bf16.msra.mxu0 0
  %6705 = vmatprep.subr.bf16.mxu0 0
  %6706 = vmatpush1.bf16.msra.mxu0 0
  %6707 = vmatprep.subr.bf16.mxu0 0
  %6708 = vmatpush1.bf16.msra.mxu0 0
  %6709 = vmatprep.mubr.bf16.mxu0 0
  %6710 = vmatmul.mubr.bf16.gmra.mrb[0].mxu0 %v4901
  %v6711 = vpop.f32.mrb[0].mxu0
  %v6712 = vadd.f32 0.0, %v6711
  %v6713 = vpop.f32.mrb[0].mxu0
  %v6714 = vpop.f32.mrb[0].mxu0
  %v6715 = vadd.f32 0.0, %v6714
  %v6716 = vpop.f32.mrb[0].mxu0
  %6717 = vmatprep.mubr.bf16.mxu0 0
  %6718 = vmatmul.mubr.bf16.gmra.mrb[0].mxu0 %v4904
  %v6719 = vpop.f32.mrb[0].mxu0
  %v6720 = vadd.f32 0.0, %v6719
  %v6721 = vpop.f32.mrb[0].mxu0
  %v6722 = vpop.f32.mrb[0].mxu0
  %v6723 = vadd.f32 0.0, %v6722
  %v6724 = vpop.f32.mrb[0].mxu0
  %6725 = vmatprep.mubr.bf16.mxu0 0
  %6726 = vmatmul.mubr.bf16.gmra.mrb[0].mxu0 %v4907
  %v6727 = vpop.f32.mrb[0].mxu0
  %v6728 = vadd.f32 0.0, %v6727
  %v6729 = vpop.f32.mrb[0].mxu0
  %v6730 = vpop.f32.mrb[0].mxu0
  %v6731 = vadd.f32 0.0, %v6730
  %v6732 = vpop.f32.mrb[0].mxu0
  %6733 = vmatprep.mubr.bf16.mxu0 0
  %6734 = vmatmul.mubr.bf16.gmra.mrb[0].mxu0 %v4910
  %v6735 = vpop.f32.mrb[0].mxu0
  %v6736 = vadd.f32 0.0, %v6735
  %v6737 = vpop.f32.mrb[0].mxu0
  %v6738 = vpop.f32.mrb[0].mxu0
  %v6739 = vpop.f32.mrb[0].mxu0
  %6740 = vdwg.mxu0
  %6741 = vmatprep.subr.bf16.mxu0 0
  %6742 = vmatpush1.bf16.msra.mxu0 %v3127
  %6743 = vmatprep.subr.bf16.mxu0 0
  %6744 = vmatpush1.bf16.msra.mxu0 %v3128
  %6745 = vmatprep.subr.bf16.mxu0 0
  %6746 = vmatpush1.bf16.msra.mxu0 %v3129
  %6747 = vmatprep.subr.bf16.mxu0 0
  %6748 = vmatpush1.bf16.msra.mxu0 %v3130
  %6749 = vmatprep.subr.bf16.mxu0 0
  %6750 = vmatpush1.bf16.msra.mxu0 %v3131
  %6751 = vmatprep.subr.bf16.mxu0 0
  %6752 = vmatpush1.bf16.msra.mxu0 %v3132
  %6753 = vmatprep.subr.bf16.mxu0 0
  %6754 = vmatpush1.bf16.msra.mxu0 0
  %6755 = vmatprep.subr.bf16.mxu0 0
  %6756 = vmatpush1.bf16.msra.mxu0 0
  %6757 = vmatprep.subr.bf16.mxu0 0
  %6758 = vmatpush1.bf16.msra.mxu0 0
  %6759 = vmatprep.subr.bf16.mxu0 0
  %6760 = vmatpush1.bf16.msra.mxu0 0
  %6761 = vmatprep.subr.bf16.mxu0 0
  %6762 = vmatpush1.bf16.msra.mxu0 0
  %6763 = vmatprep.subr.bf16.mxu0 0
  %6764 = vmatpush1.bf16.msra.mxu0 0
  %6765 = vmatprep.subr.bf16.mxu0 0
  %6766 = vmatpush1.bf16.msra.mxu0 0
  %6767 = vmatprep.subr.bf16.mxu0 0
  %6768 = vmatpush1.bf16.msra.mxu0 0
  %6769 = vmatprep.subr.bf16.mxu0 0
  %6770 = vmatpush1.bf16.msra.mxu0 0
  %6771 = vmatprep.subr.bf16.mxu0 0
  %6772 = vmatpush1.bf16.msra.mxu0 0
  %6773 = vmatprep.mubr.bf16.mxu0 0
  %6774 = vmatmul.mubr.bf16.gmra.mrb[0].mxu0 %v313
  %v6775 = vpop.f32.mrb[0].mxu0
  %v6776 = vadd.f32 %v6584, %v6775
  %v6777 = vpop.f32.mrb[0].mxu0
  %v6778 = vpop.f32.mrb[0].mxu0
  %v6779 = vadd.f32 %v6587, %v6778
  %v6780 = vpop.f32.mrb[0].mxu0
  %6781 = vmatprep.mubr.bf16.mxu0 0
  %6782 = vmatmul.mubr.bf16.gmra.mrb[0].mxu0 %v316
  %v6783 = vpop.f32.mrb[0].mxu0
  %v6784 = vadd.f32 %v6592, %v6783
  %v6785 = vpop.f32.mrb[0].mxu0
  %v6786 = vpop.f32.mrb[0].mxu0
  %v6787 = vadd.f32 %v6595, %v6786
  %v6788 = vpop.f32.mrb[0].mxu0
  %6789 = vmatprep.mubr.bf16.mxu0 0
  %6790 = vmatmul.mubr.bf16.gmra.mrb[0].mxu0 %v319
  %v6791 = vpop.f32.mrb[0].mxu0
  %v6792 = vadd.f32 %v6600, %v6791
  %v6793 = vpop.f32.mrb[0].mxu0
  %v6794 = vpop.f32.mrb[0].mxu0
  %v6795 = vadd.f32 %v6603, %v6794
  %v6796 = vpop.f32.mrb[0].mxu0
  %6797 = vmatprep.mubr.bf16.mxu0 0
  %6798 = vmatmul.mubr.bf16.gmra.mrb[0].mxu0 %v322
  %v6799 = vpop.f32.mrb[0].mxu0
  %v6800 = vadd.f32 %v6608, %v6799
  %v6801 = vpop.f32.mrb[0].mxu0
  %v6802 = vpop.f32.mrb[0].mxu0
  %v6803 = vpop.f32.mrb[0].mxu0
  %6804 = vdwg.mxu0
  %6805 = vmatprep.subr.bf16.mxu0 0
  %6806 = vmatpush1.bf16.msra.mxu0 %v3227
  %6807 = vmatprep.subr.bf16.mxu0 0
  %6808 = vmatpush1.bf16.msra.mxu0 %v3228
  %6809 = vmatprep.subr.bf16.mxu0 0
  %6810 = vmatpush1.bf16.msra.mxu0 %v3229
  %6811 = vmatprep.subr.bf16.mxu0 0
  %6812 = vmatpush1.bf16.msra.mxu0 %v3230
  %6813 = vmatprep.subr.bf16.mxu0 0
  %6814 = vmatpush1.bf16.msra.mxu0 %v3231
  %6815 = vmatprep.subr.bf16.mxu0 0
  %6816 = vmatpush1.bf16.msra.mxu0 %v3232
  %6817 = vmatprep.subr.bf16.mxu0 0
  %6818 = vmatpush1.bf16.msra.mxu0 0
  %6819 = vmatprep.subr.bf16.mxu0 0
  %6820 = vmatpush1.bf16.msra.mxu0 0
  %6821 = vmatprep.subr.bf16.mxu0 0
  %6822 = vmatpush1.bf16.msra.mxu0 0
  %6823 = vmatprep.subr.bf16.mxu0 0
  %6824 = vmatpush1.bf16.msra.mxu0 0
  %6825 = vmatprep.subr.bf16.mxu0 0
  %6826 = vmatpush1.bf16.msra.mxu0 0
  %6827 = vmatprep.subr.bf16.mxu0 0
  %6828 = vmatpush1.bf16.msra.mxu0 0
  %6829 = vmatprep.subr.bf16.mxu0 0
  %6830 = vmatpush1.bf16.msra.mxu0 0
  %6831 = vmatprep.subr.bf16.mxu0 0
  %6832 = vmatpush1.bf16.msra.mxu0 0
  %6833 = vmatprep.subr.bf16.mxu0 0
  %6834 = vmatpush1.bf16.msra.mxu0 0
  %6835 = vmatprep.subr.bf16.mxu0 0
  %6836 = vmatpush1.bf16.msra.mxu0 0
  %6837 = vmatprep.mubr.bf16.mxu0 0
  %6838 = vmatmul.mubr.bf16.gmra.mrb[0].mxu0 %v1541
  %v6839 = vpop.f32.mrb[0].mxu0
  %v6840 = vadd.f32 %v6648, %v6839
  %v6841 = vpop.f32.mrb[0].mxu0
  %v6842 = vpop.f32.mrb[0].mxu0
  %v6843 = vadd.f32 %v6651, %v6842
  %v6844 = vpop.f32.mrb[0].mxu0
  %6845 = vmatprep.mubr.bf16.mxu0 0
  %6846 = vmatmul.mubr.bf16.gmra.mrb[0].mxu0 %v1544
  %v6847 = vpop.f32.mrb[0].mxu0
  %v6848 = vadd.f32 %v6656, %v6847
  %v6849 = vpop.f32.mrb[0].mxu0
  %v6850 = vpop.f32.mrb[0].mxu0
  %v6851 = vadd.f32 %v6659, %v6850
  %v6852 = vpop.f32.mrb[0].mxu0
  %6853 = vmatprep.mubr.bf16.mxu0 0
  %6854 = vmatmul.mubr.bf16.gmra.mrb[0].mxu0 %v1547
  %v6855 = vpop.f32.mrb[0].mxu0
  %v6856 = vadd.f32 %v6664, %v6855
  %v6857 = vpop.f32.mrb[0].mxu0
  %v6858 = vpop.f32.mrb[0].mxu0
  %v6859 = vadd.f32 %v6667, %v6858
  %v6860 = vpop.f32.mrb[0].mxu0
  %6861 = vmatprep.mubr.bf16.mxu0 0
  %6862 = vmatmul.mubr.bf16.gmra.mrb[0].mxu0 %v1550
  %v6863 = vpop.f32.mrb[0].mxu0
  %v6864 = vadd.f32 %v6672, %v6863
  %v6865 = vpop.f32.mrb[0].mxu0
  %v6866 = vpop.f32.mrb[0].mxu0
  %v6867 = vpop.f32.mrb[0].mxu0
  %6868 = vdwg.mxu0
  %v6869 = vadd.f32 %v6776, %v6840
  %v6870 = vadd.f32 %v6779, %v6843
  %v6871 = vadd.f32 %v6784, %v6848
  %v6872 = vadd.f32 %v6787, %v6851
  %v6873 = vadd.f32 %v6792, %v6856
  %v6874 = vadd.f32 %v6795, %v6859
  %v6875 = vadd.f32 %v6800, %v6864
  %v6876 = vadd.f32 %v6869, %v6712
  %v6877 = vadd.f32 %v6870, %v6715
  %v6878 = vadd.f32 %v6871, %v6720
  %v6879 = vadd.f32 %v6872, %v6723
  %v6880 = vadd.f32 %v6873, %v6728
  %v6881 = vadd.f32 %v6874, %v6731
  %v6882 = vadd.f32 %v6875, %v6736
  %v6883 = vadd.f32 %v6876, %v797
  %v6884 = vadd.f32 %v6877, %v797
  %v6885 = vadd.f32 %v6878, %v797
  %v6886 = vadd.f32 %v6879, %v797
  %v6887 = vadd.f32 %v6880, %v797
  %v6888 = vadd.f32 %v6881, %v797
  %v6889 = vadd.f32 %v6882, %v797
  %v6890 = vmax.f32 %v6883, 0.0
  %v6891 = vmax.f32 %v6884, 0.0
  %v6892 = vmax.f32 %v6885, 0.0
  %v6893 = vmax.f32 %v6886, 0.0
  %v6894 = vmax.f32 %v6887, 0.0
  %v6895 = vmax.f32 %v6888, 0.0
  %v6896 = vmax.f32 %v6889, 0.0
  %v6897 = vmax.f32 %v5846, %v6194
  %v6898 = vmax.f32 %v5847, %v6195
  %v6899 = vmax.f32 %v5848, %v6196
  %v6900 = vmax.f32 %v5849, %v6197
  %v6901 = vmax.f32 %v5850, %v6198
  %v6902 = vmax.f32 %v5851, %v6199
  %v6903 = vmax.f32 %v5852, %v6200
  %v6904 = vmax.f32 %v6542, %v6890
  %v6905 = vmax.f32 %v6543, %v6891
  %v6906 = vmax.f32 %v6544, %v6892
  %v6907 = vmax.f32 %v6545, %v6893
  %v6908 = vmax.f32 %v6546, %v6894
  %v6909 = vmax.f32 %v6547, %v6895
  %v6910 = vmax.f32 %v6548, %v6896
  %v6911 = vmax.f32 %v6897, %v6904
  %v6912 = vmax.f32 %v6898, %v6905
  %v6913 = vmax.f32 %v6899, %v6906
  %v6914 = vmax.f32 %v6900, %v6907
  %v6915 = vmax.f32 %v6901, %v6908
  %v6916 = vmax.f32 %v6902, %v6909
  %v6917 = vmax.f32 %v6903, %v6910
  %v6918 = vpack.c.bf16 %v6912, %v6911
  %v6919 = vpack.c.bf16 %v6914, %v6913
  %v6920 = vpack.c.bf16 %v6916, %v6915
  %v6921 = vpack.c.bf16 %v6917, %v6917
  %v6922 = vld [vmem:[%s3] sm:$0xf]
  %v6923 = vld [vmem:[%s3 + $0x4] sm:$0xf]
  %v6924 = vld [vmem:[%s3 + $0x8] sm:$0xf]
  %v6925 = vld [vmem:[%s3 + $0xc] sm:$0xf]
  %v6926 = vld [vmem:[%s3 + $0x10] sm:$0xf]
  %v6927 = vld [vmem:[%s3 + $0x14] sm:$0x1]
  %s6928 = scalar_lea.vmem %s3, 120
  %v6929 = vld [vmem:[%s6928] sm:$0xf]
  %v6930 = vld [vmem:[%s6928 + $0x4] sm:$0xf]
  %v6931 = vld [vmem:[%s6928 + $0x8] sm:$0xf]
  %v6932 = vld [vmem:[%s6928 + $0xc] sm:$0xf]
  %v6933 = vld [vmem:[%s6928 + $0x10] sm:$0xf]
  %v6934 = vld [vmem:[%s6928 + $0x14] sm:$0x1]
  %v6941 = vunpack.c.l.b16 %v6929
  %v6942 = vunpack.c.l.b16 %v6930
  %v6943 = vunpack.c.l.b16 %v6931
  %v6944 = vunpack.c.l.b16 %v6932
  %v6945 = vunpack.c.l.b16 %v6933
  %v6946 = vunpack.c.l.b16 %v6934
  %v6947 = vpack.c.b16 %v6942, %v6941
  %v6948 = vpack.c.b16 %v6944, %v6943
  %v6949 = vpack.c.b16 %v6946, %v6945
  %vm6952 = vcmask 343040
  %v6954 = vsel %vm6952, %v4048, 0
  %v6957 = vsel %vm6952, %v4049, 0
  %v6960 = vsel %vm6952, %v4050, 0
  %vm6962 = vcmask 1044480
  %v6964 = vsel %vm6962, %v6949, 0
  %6966 = vmatprep.subr.bf16.mxu0 0
  %6967 = vmatpush1.bf16.msra.mxu0 %v6947
  %6968 = vmatprep.subr.bf16.mxu0 0
  %6969 = vmatpush1.bf16.msra.mxu0 %v6948
  %6970 = vmatprep.subr.bf16.mxu0 0
  %6971 = vmatpush1.bf16.msra.mxu0 %v6964
  %6972 = vmatprep.subr.bf16.mxu0 0
  %6973 = vmatpush1.bf16.msra.mxu0 0
  %6974 = vmatprep.subr.bf16.mxu0 0
  %6975 = vmatpush1.bf16.msra.mxu0 0
  %6976 = vmatprep.subr.bf16.mxu0 0
  %6977 = vmatpush1.bf16.msra.mxu0 0
  %6978 = vmatprep.subr.bf16.mxu0 0
  %6979 = vmatpush1.bf16.msra.mxu0 0
  %6980 = vmatprep.subr.bf16.mxu0 0
  %6981 = vmatpush1.bf16.msra.mxu0 0
  %6982 = vmatprep.subr.bf16.mxu0 0
  %6983 = vmatpush1.bf16.msra.mxu0 0
  %6984 = vmatprep.subr.bf16.mxu0 0
  %6985 = vmatpush1.bf16.msra.mxu0 0
  %6986 = vmatprep.subr.bf16.mxu0 0
  %6987 = vmatpush1.bf16.msra.mxu0 0
  %6988 = vmatprep.subr.bf16.mxu0 0
  %6989 = vmatpush1.bf16.msra.mxu0 0
  %6990 = vmatprep.subr.bf16.mxu0 0
  %6991 = vmatpush1.bf16.msra.mxu0 0
  %6992 = vmatprep.subr.bf16.mxu0 0
  %6993 = vmatpush1.bf16.msra.mxu0 0
  %6994 = vmatprep.subr.bf16.mxu0 0
  %6995 = vmatpush1.bf16.msra.mxu0 0
  %6996 = vmatprep.subr.bf16.mxu0 0
  %6997 = vmatpush1.bf16.msra.mxu0 0
  %6998 = vmatprep.mubr.bf16.mxu0 0
  %6999 = vmatmul.mubr.bf16.gmra.mrb[0].mxu0 %v6954
  %v7000 = vpop.f32.mrb[0].mxu0
  %v7001 = vadd.f32 0.0, %v7000
  %v7002 = vpop.f32.mrb[0].mxu0
  %v7003 = vpop.f32.mrb[0].mxu0
  %v7004 = vadd.f32 0.0, %v7003
  %v7005 = vpop.f32.mrb[0].mxu0
  %7006 = vmatprep.mubr.bf16.mxu0 0
  %7007 = vmatmul.mubr.bf16.gmra.mrb[0].mxu0 %v6957
  %v7008 = vpop.f32.mrb[0].mxu0
  %v7009 = vadd.f32 0.0, %v7008
  %v7010 = vpop.f32.mrb[0].mxu0
  %v7011 = vpop.f32.mrb[0].mxu0
  %v7012 = vadd.f32 0.0, %v7011
  %v7013 = vpop.f32.mrb[0].mxu0
  %7014 = vmatprep.mubr.bf16.mxu0 0
  %7015 = vmatmul.mubr.bf16.gmra.mrb[0].mxu0 %v6960
  %v7016 = vpop.f32.mrb[0].mxu0
  %v7017 = vadd.f32 0.0, %v7016
  %v7018 = vpop.f32.mrb[0].mxu0
  %v7019 = vpop.f32.mrb[0].mxu0
  %v7020 = vpop.f32.mrb[0].mxu0
  %7021 = vdwg.mxu0
  %s7022 = scalar_lea.vmem %s3, 24
  %v7023 = vld [vmem:[%s7022] sm:$0xf]
  %v7024 = vld [vmem:[%s7022 + $0x4] sm:$0xf]
  %v7025 = vld [vmem:[%s7022 + $0x8] sm:$0xf]
  %v7026 = vld [vmem:[%s7022 + $0xc] sm:$0xf]
  %v7027 = vld [vmem:[%s7022 + $0x10] sm:$0xf]
  %v7028 = vld [vmem:[%s7022 + $0x14] sm:$0x1]
  %s7029 = scalar_lea.vmem %s3, 144
  %v7030 = vld [vmem:[%s7029] sm:$0xf]
  %v7031 = vld [vmem:[%s7029 + $0x4] sm:$0xf]
  %v7032 = vld [vmem:[%s7029 + $0x8] sm:$0xf]
  %v7033 = vld [vmem:[%s7029 + $0xc] sm:$0xf]
  %v7034 = vld [vmem:[%s7029 + $0x10] sm:$0xf]
  %v7035 = vld [vmem:[%s7029 + $0x14] sm:$0x1]
  %v7042 = vunpack.c.l.b16 %v7030
  %v7043 = vunpack.c.l.b16 %v7031
  %v7044 = vunpack.c.l.b16 %v7032
  %v7045 = vunpack.c.l.b16 %v7033
  %v7046 = vunpack.c.l.b16 %v7034
  %v7047 = vunpack.c.l.b16 %v7035
  %v7048 = vpack.c.b16 %v7043, %v7042
  %v7049 = vpack.c.b16 %v7045, %v7044
  %v7050 = vpack.c.b16 %v7047, %v7046
  %v7054 = vsel %vm6952, %v6918, 0
  %v7057 = vsel %vm6952, %v6919, 0
  %v7060 = vsel %vm6952, %v6920, 0
  %v7063 = vsel %vm6962, %v7050, 0
  %7065 = vmatprep.subr.bf16.mxu0 0
  %7066 = vmatpush1.bf16.msra.mxu0 %v7048
  %7067 = vmatprep.subr.bf16.mxu0 0
  %7068 = vmatpush1.bf16.msra.mxu0 %v7049
  %7069 = vmatprep.subr.bf16.mxu0 0
  %7070 = vmatpush1.bf16.msra.mxu0 %v7063
  %7071 = vmatprep.subr.bf16.mxu0 0
  %7072 = vmatpush1.bf16.msra.mxu0 0
  %7073 = vmatprep.subr.bf16.mxu0 0
  %7074 = vmatpush1.bf16.msra.mxu0 0
  %7075 = vmatprep.subr.bf16.mxu0 0
  %7076 = vmatpush1.bf16.msra.mxu0 0
  %7077 = vmatprep.subr.bf16.mxu0 0
  %7078 = vmatpush1.bf16.msra.mxu0 0
  %7079 = vmatprep.subr.bf16.mxu0 0
  %7080 = vmatpush1.bf16.msra.mxu0 0
  %7081 = vmatprep.subr.bf16.mxu0 0
  %7082 = vmatpush1.bf16.msra.mxu0 0
  %7083 = vmatprep.subr.bf16.mxu0 0
  %7084 = vmatpush1.bf16.msra.mxu0 0
  %7085 = vmatprep.subr.bf16.mxu0 0
  %7086 = vmatpush1.bf16.msra.mxu0 0
  %7087 = vmatprep.subr.bf16.mxu0 0
  %7088 = vmatpush1.bf16.msra.mxu0 0
  %7089 = vmatprep.subr.bf16.mxu0 0
  %7090 = vmatpush1.bf16.msra.mxu0 0
  %7091 = vmatprep.subr.bf16.mxu0 0
  %7092 = vmatpush1.bf16.msra.mxu0 0
  %7093 = vmatprep.subr.bf16.mxu0 0
  %7094 = vmatpush1.bf16.msra.mxu0 0
  %7095 = vmatprep.subr.bf16.mxu0 0
  %7096 = vmatpush1.bf16.msra.mxu0 0
  %7097 = vmatprep.mubr.bf16.mxu0 0
  %7098 = vmatmul.mubr.bf16.gmra.mrb[0].mxu0 %v7054
  %v7099 = vpop.f32.mrb[0].mxu0
  %v7100 = vadd.f32 0.0, %v7099
  %v7101 = vpop.f32.mrb[0].mxu0
  %v7102 = vpop.f32.mrb[0].mxu0
  %v7103 = vadd.f32 0.0, %v7102
  %v7104 = vpop.f32.mrb[0].mxu0
  %7105 = vmatprep.mubr.bf16.mxu0 0
  %7106 = vmatmul.mubr.bf16.gmra.mrb[0].mxu0 %v7057
  %v7107 = vpop.f32.mrb[0].mxu0
  %v7108 = vadd.f32 0.0, %v7107
  %v7109 = vpop.f32.mrb[0].mxu0
  %v7110 = vpop.f32.mrb[0].mxu0
  %v7111 = vadd.f32 0.0, %v7110
  %v7112 = vpop.f32.mrb[0].mxu0
  %7113 = vmatprep.mubr.bf16.mxu0 0
  %7114 = vmatmul.mubr.bf16.gmra.mrb[0].mxu0 %v7060
  %v7115 = vpop.f32.mrb[0].mxu0
  %v7116 = vadd.f32 0.0, %v7115
  %v7117 = vpop.f32.mrb[0].mxu0
  %v7118 = vpop.f32.mrb[0].mxu0
  %v7119 = vpop.f32.mrb[0].mxu0
  %7120 = vdwg.mxu0
  %s7121 = scalar_lea.vmem %s3, 48
  %v7122 = vld [vmem:[%s7121] sm:$0xf]
  %v7123 = vld [vmem:[%s7121 + $0x4] sm:$0xf]
  %v7124 = vld [vmem:[%s7121 + $0x8] sm:$0xf]
  %v7125 = vld [vmem:[%s7121 + $0xc] sm:$0xf]
  %v7126 = vld [vmem:[%s7121 + $0x10] sm:$0xf]
  %v7127 = vld [vmem:[%s7121 + $0x14] sm:$0x1]
  %s7128 = scalar_lea.vmem %s3, 168
  %v7129 = vld [vmem:[%s7128] sm:$0xf]
  %v7130 = vld [vmem:[%s7128 + $0x4] sm:$0xf]
  %v7131 = vld [vmem:[%s7128 + $0x8] sm:$0xf]
  %v7132 = vld [vmem:[%s7128 + $0xc] sm:$0xf]
  %v7133 = vld [vmem:[%s7128 + $0x10] sm:$0xf]
  %v7134 = vld [vmem:[%s7128 + $0x14] sm:$0x1]
  %vm7138 = vcmask 1043456
  %v7139 = vrot.slane %v4048, 4
  %v7140 = vrot.slane %v4049, 4
  %v7141 = vsel %vm7138, %v7139, %v7140
  %v7142 = vrot.slane %v4050, 4
  %v7143 = vsel %vm7138, %v7140, %v7142
  %v7150 = vunpack.c.l.b16 %v7129
  %v7151 = vunpack.c.l.b16 %v7130
  %v7152 = vunpack.c.l.b16 %v7131
  %v7153 = vunpack.c.l.b16 %v7132
  %v7154 = vunpack.c.l.b16 %v7133
  %v7155 = vunpack.c.l.b16 %v7134
  %v7156 = vpack.c.b16 %v7151, %v7150
  %v7157 = vpack.c.b16 %v7153, %v7152
  %v7158 = vpack.c.b16 %v7155, %v7154
  %v7162 = vsel %vm6952, %v7141, 0
  %v7165 = vsel %vm6952, %v7143, 0
  %v7168 = vsel %vm6952, %v7142, 0
  %v7171 = vsel %vm6962, %v7158, 0
  %7173 = vmatprep.subr.bf16.mxu0 0
  %7174 = vmatpush1.bf16.msra.mxu0 %v7156
  %7175 = vmatprep.subr.bf16.mxu0 0
  %7176 = vmatpush1.bf16.msra.mxu0 %v7157
  %7177 = vmatprep.subr.bf16.mxu0 0
  %7178 = vmatpush1.bf16.msra.mxu0 %v7171
  %7179 = vmatprep.subr.bf16.mxu0 0
  %7180 = vmatpush1.bf16.msra.mxu0 0
  %7181 = vmatprep.subr.bf16.mxu0 0
  %7182 = vmatpush1.bf16.msra.mxu0 0
  %7183 = vmatprep.subr.bf16.mxu0 0
  %7184 = vmatpush1.bf16.msra.mxu0 0
  %7185 = vmatprep.subr.bf16.mxu0 0
  %7186 = vmatpush1.bf16.msra.mxu0 0
  %7187 = vmatprep.subr.bf16.mxu0 0
  %7188 = vmatpush1.bf16.msra.mxu0 0
  %7189 = vmatprep.subr.bf16.mxu0 0
  %7190 = vmatpush1.bf16.msra.mxu0 0
  %7191 = vmatprep.subr.bf16.mxu0 0
  %7192 = vmatpush1.bf16.msra.mxu0 0
  %7193 = vmatprep.subr.bf16.mxu0 0
  %7194 = vmatpush1.bf16.msra.mxu0 0
  %7195 = vmatprep.subr.bf16.mxu0 0
  %7196 = vmatpush1.bf16.msra.mxu0 0
  %7197 = vmatprep.subr.bf16.mxu0 0
  %7198 = vmatpush1.bf16.msra.mxu0 0
  %7199 = vmatprep.subr.bf16.mxu0 0
  %7200 = vmatpush1.bf16.msra.mxu0 0
  %7201 = vmatprep.subr.bf16.mxu0 0
  %7202 = vmatpush1.bf16.msra.mxu0 0
  %7203 = vmatprep.subr.bf16.mxu0 0
  %7204 = vmatpush1.bf16.msra.mxu0 0
  %7205 = vmatprep.mubr.bf16.mxu0 0
  %7206 = vmatmul.mubr.bf16.gmra.mrb[0].mxu0 %v7162
  %v7207 = vpop.f32.mrb[0].mxu0
  %v7208 = vadd.f32 0.0, %v7207
  %v7209 = vpop.f32.mrb[0].mxu0
  %v7210 = vpop.f32.mrb[0].mxu0
  %v7211 = vadd.f32 0.0, %v7210
  %v7212 = vpop.f32.mrb[0].mxu0
  %7213 = vmatprep.mubr.bf16.mxu0 0
  %7214 = vmatmul.mubr.bf16.gmra.mrb[0].mxu0 %v7165
  %v7215 = vpop.f32.mrb[0].mxu0
  %v7216 = vadd.f32 0.0, %v7215
  %v7217 = vpop.f32.mrb[0].mxu0
  %v7218 = vpop.f32.mrb[0].mxu0
  %v7219 = vadd.f32 0.0, %v7218
  %v7220 = vpop.f32.mrb[0].mxu0
  %7221 = vmatprep.mubr.bf16.mxu0 0
  %7222 = vmatmul.mubr.bf16.gmra.mrb[0].mxu0 %v7168
  %v7223 = vpop.f32.mrb[0].mxu0
  %v7224 = vadd.f32 0.0, %v7223
  %v7225 = vpop.f32.mrb[0].mxu0
  %v7226 = vpop.f32.mrb[0].mxu0
  %v7227 = vpop.f32.mrb[0].mxu0
  %7228 = vdwg.mxu0
  %s7229 = scalar_lea.vmem %s3, 72
  %v7230 = vld [vmem:[%s7229] sm:$0xf]
  %v7231 = vld [vmem:[%s7229 + $0x4] sm:$0xf]
  %v7232 = vld [vmem:[%s7229 + $0x8] sm:$0xf]
  %v7233 = vld [vmem:[%s7229 + $0xc] sm:$0xf]
  %v7234 = vld [vmem:[%s7229 + $0x10] sm:$0xf]
  %v7235 = vld [vmem:[%s7229 + $0x14] sm:$0x1]
  %s7236 = scalar_lea.vmem %s3, 192
  %v7237 = vld [vmem:[%s7236] sm:$0xf]
  %v7238 = vld [vmem:[%s7236 + $0x4] sm:$0xf]
  %v7239 = vld [vmem:[%s7236 + $0x8] sm:$0xf]
  %v7240 = vld [vmem:[%s7236 + $0xc] sm:$0xf]
  %v7241 = vld [vmem:[%s7236 + $0x10] sm:$0xf]
  %v7242 = vld [vmem:[%s7236 + $0x14] sm:$0x1]
  %v7246 = vrot.slane %v6918, 4
  %v7247 = vrot.slane %v6919, 4
  %v7248 = vsel %vm7138, %v7246, %v7247
  %v7249 = vrot.slane %v6920, 4
  %v7250 = vsel %vm7138, %v7247, %v7249
  %v7257 = vunpack.c.l.b16 %v7237
  %v7258 = vunpack.c.l.b16 %v7238
  %v7259 = vunpack.c.l.b16 %v7239
  %v7260 = vunpack.c.l.b16 %v7240
  %v7261 = vunpack.c.l.b16 %v7241
  %v7262 = vunpack.c.l.b16 %v7242
  %v7263 = vpack.c.b16 %v7258, %v7257
  %v7264 = vpack.c.b16 %v7260, %v7259
  %v7265 = vpack.c.b16 %v7262, %v7261
  %v7269 = vsel %vm6952, %v7248, 0
  %v7272 = vsel %vm6952, %v7250, 0
  %v7275 = vsel %vm6952, %v7249, 0
  %v7278 = vsel %vm6962, %v7265, 0
  %7280 = vmatprep.subr.bf16.mxu0 0
  %7281 = vmatpush1.bf16.msra.mxu0 %v7263
  %7282 = vmatprep.subr.bf16.mxu0 0
  %7283 = vmatpush1.bf16.msra.mxu0 %v7264
  %7284 = vmatprep.subr.bf16.mxu0 0
  %7285 = vmatpush1.bf16.msra.mxu0 %v7278
  %7286 = vmatprep.subr.bf16.mxu0 0
  %7287 = vmatpush1.bf16.msra.mxu0 0
  %7288 = vmatprep.subr.bf16.mxu0 0
  %7289 = vmatpush1.bf16.msra.mxu0 0
  %7290 = vmatprep.subr.bf16.mxu0 0
  %7291 = vmatpush1.bf16.msra.mxu0 0
  %7292 = vmatprep.subr.bf16.mxu0 0
  %7293 = vmatpush1.bf16.msra.mxu0 0
  %7294 = vmatprep.subr.bf16.mxu0 0
  %7295 = vmatpush1.bf16.msra.mxu0 0
  %7296 = vmatprep.subr.bf16.mxu0 0
  %7297 = vmatpush1.bf16.msra.mxu0 0
  %7298 = vmatprep.subr.bf16.mxu0 0
  %7299 = vmatpush1.bf16.msra.mxu0 0
  %7300 = vmatprep.subr.bf16.mxu0 0
  %7301 = vmatpush1.bf16.msra.mxu0 0
  %7302 = vmatprep.subr.bf16.mxu0 0
  %7303 = vmatpush1.bf16.msra.mxu0 0
  %7304 = vmatprep.subr.bf16.mxu0 0
  %7305 = vmatpush1.bf16.msra.mxu0 0
  %7306 = vmatprep.subr.bf16.mxu0 0
  %7307 = vmatpush1.bf16.msra.mxu0 0
  %7308 = vmatprep.subr.bf16.mxu0 0
  %7309 = vmatpush1.bf16.msra.mxu0 0
  %7310 = vmatprep.subr.bf16.mxu0 0
  %7311 = vmatpush1.bf16.msra.mxu0 0
  %7312 = vmatprep.mubr.bf16.mxu0 0
  %7313 = vmatmul.mubr.bf16.gmra.mrb[0].mxu0 %v7269
  %v7314 = vpop.f32.mrb[0].mxu0
  %v7315 = vadd.f32 0.0, %v7314
  %v7316 = vpop.f32.mrb[0].mxu0
  %v7317 = vpop.f32.mrb[0].mxu0
  %v7318 = vadd.f32 0.0, %v7317
  %v7319 = vpop.f32.mrb[0].mxu0
  %7320 = vmatprep.mubr.bf16.mxu0 0
  %7321 = vmatmul.mubr.bf16.gmra.mrb[0].mxu0 %v7272
  %v7322 = vpop.f32.mrb[0].mxu0
  %v7323 = vadd.f32 0.0, %v7322
  %v7324 = vpop.f32.mrb[0].mxu0
  %v7325 = vpop.f32.mrb[0].mxu0
  %v7326 = vadd.f32 0.0, %v7325
  %v7327 = vpop.f32.mrb[0].mxu0
  %7328 = vmatprep.mubr.bf16.mxu0 0
  %7329 = vmatmul.mubr.bf16.gmra.mrb[0].mxu0 %v7275
  %v7330 = vpop.f32.mrb[0].mxu0
  %v7331 = vadd.f32 0.0, %v7330
  %v7332 = vpop.f32.mrb[0].mxu0
  %v7333 = vpop.f32.mrb[0].mxu0
  %v7334 = vpop.f32.mrb[0].mxu0
  %7335 = vdwg.mxu0
  %s7336 = scalar_lea.vmem %s3, 96
  %v7337 = vld [vmem:[%s7336] sm:$0xf]
  %v7338 = vld [vmem:[%s7336 + $0x4] sm:$0xf]
  %v7339 = vld [vmem:[%s7336 + $0x8] sm:$0xf]
  %v7340 = vld [vmem:[%s7336 + $0xc] sm:$0xf]
  %v7341 = vld [vmem:[%s7336 + $0x10] sm:$0xf]
  %v7342 = vld [vmem:[%s7336 + $0x14] sm:$0x1]
  %s7343 = scalar_lea.vmem %s3, 216
  %v7344 = vld [vmem:[%s7343] sm:$0xf]
  %v7345 = vld [vmem:[%s7343 + $0x4] sm:$0xf]
  %v7346 = vld [vmem:[%s7343 + $0x8] sm:$0xf]
  %v7347 = vld [vmem:[%s7343 + $0xc] sm:$0xf]
  %v7348 = vld [vmem:[%s7343 + $0x10] sm:$0xf]
  %v7349 = vld [vmem:[%s7343 + $0x14] sm:$0x1]
  %v7356 = vunpack.c.l.b16 %v7344
  %v7357 = vunpack.c.l.b16 %v7345
  %v7358 = vunpack.c.l.b16 %v7346
  %v7359 = vunpack.c.l.b16 %v7347
  %v7360 = vunpack.c.l.b16 %v7348
  %v7361 = vunpack.c.l.b16 %v7349
  %v7362 = vpack.c.b16 %v7357, %v7356
  %v7363 = vpack.c.b16 %v7359, %v7358
  %v7364 = vpack.c.b16 %v7361, %v7360
  %v7368 = vsel %vm6952, %v4051, 0
  %v7371 = vsel %vm6962, %v7364, 0
  %7373 = vmatprep.subr.bf16.mxu0 0
  %7374 = vmatpush1.bf16.msra.mxu0 %v7362
  %7375 = vmatprep.subr.bf16.mxu0 0
  %7376 = vmatpush1.bf16.msra.mxu0 %v7363
  %7377 = vmatprep.subr.bf16.mxu0 0
  %7378 = vmatpush1.bf16.msra.mxu0 %v7371
  %7379 = vmatprep.subr.bf16.mxu0 0
  %7380 = vmatpush1.bf16.msra.mxu0 0
  %7381 = vmatprep.subr.bf16.mxu0 0
  %7382 = vmatpush1.bf16.msra.mxu0 0
  %7383 = vmatprep.subr.bf16.mxu0 0
  %7384 = vmatpush1.bf16.msra.mxu0 0
  %7385 = vmatprep.subr.bf16.mxu0 0
  %7386 = vmatpush1.bf16.msra.mxu0 0
  %7387 = vmatprep.subr.bf16.mxu0 0
  %7388 = vmatpush1.bf16.msra.mxu0 0
  %7389 = vmatprep.subr.bf16.mxu0 0
  %7390 = vmatpush1.bf16.msra.mxu0 0
  %7391 = vmatprep.subr.bf16.mxu0 0
  %7392 = vmatpush1.bf16.msra.mxu0 0
  %7393 = vmatprep.subr.bf16.mxu0 0
  %7394 = vmatpush1.bf16.msra.mxu0 0
  %7395 = vmatprep.subr.bf16.mxu0 0
  %7396 = vmatpush1.bf16.msra.mxu0 0
  %7397 = vmatprep.subr.bf16.mxu0 0
  %7398 = vmatpush1.bf16.msra.mxu0 0
  %7399 = vmatprep.subr.bf16.mxu0 0
  %7400 = vmatpush1.bf16.msra.mxu0 0
  %7401 = vmatprep.subr.bf16.mxu0 0
  %7402 = vmatpush1.bf16.msra.mxu0 0
  %7403 = vmatprep.subr.bf16.mxu0 0
  %7404 = vmatpush1.bf16.msra.mxu0 0
  %7405 = vmatprep.mubr.bf16.mxu0 0
  %7406 = vmatmul.mubr.bf16.gmra.mrb[0].mxu0 %v6957
  %v7407 = vpop.f32.mrb[0].mxu0
  %v7408 = vadd.f32 0.0, %v7407
  %v7409 = vpop.f32.mrb[0].mxu0
  %v7410 = vpop.f32.mrb[0].mxu0
  %v7411 = vadd.f32 0.0, %v7410
  %v7412 = vpop.f32.mrb[0].mxu0
  %7413 = vmatprep.mubr.bf16.mxu0 0
  %7414 = vmatmul.mubr.bf16.gmra.mrb[0].mxu0 %v6960
  %v7415 = vpop.f32.mrb[0].mxu0
  %v7416 = vadd.f32 0.0, %v7415
  %v7417 = vpop.f32.mrb[0].mxu0
  %v7418 = vpop.f32.mrb[0].mxu0
  %v7419 = vadd.f32 0.0, %v7418
  %v7420 = vpop.f32.mrb[0].mxu0
  %7421 = vmatprep.mubr.bf16.mxu0 0
  %7422 = vmatmul.mubr.bf16.gmra.mrb[0].mxu0 %v7368
  %v7423 = vpop.f32.mrb[0].mxu0
  %v7424 = vadd.f32 0.0, %v7423
  %v7425 = vpop.f32.mrb[0].mxu0
  %v7426 = vpop.f32.mrb[0].mxu0
  %v7427 = vpop.f32.mrb[0].mxu0
  %7428 = vdwg.mxu0
  %v7435 = vunpack.c.l.b16 %v6922
  %v7436 = vunpack.c.l.b16 %v6923
  %v7437 = vunpack.c.l.b16 %v6924
  %v7438 = vunpack.c.l.b16 %v6925
  %v7439 = vunpack.c.l.b16 %v6926
  %v7440 = vunpack.c.l.b16 %v6927
  %v7441 = vpack.c.b16 %v7436, %v7435
  %v7442 = vpack.c.b16 %v7438, %v7437
  %v7443 = vpack.c.b16 %v7440, %v7439
  %v7447 = vsel %vm6952, %v2141, 0
  %v7450 = vsel %vm6952, %v2142, 0
  %v7453 = vsel %vm6952, %v2143, 0
  %v7456 = vsel %vm6962, %v7443, 0
  %7458 = vmatprep.subr.bf16.mxu0 0
  %7459 = vmatpush1.bf16.msra.mxu0 %v7441
  %7460 = vmatprep.subr.bf16.mxu0 0
  %7461 = vmatpush1.bf16.msra.mxu0 %v7442
  %7462 = vmatprep.subr.bf16.mxu0 0
  %7463 = vmatpush1.bf16.msra.mxu0 %v7456
  %7464 = vmatprep.subr.bf16.mxu0 0
  %7465 = vmatpush1.bf16.msra.mxu0 0
  %7466 = vmatprep.subr.bf16.mxu0 0
  %7467 = vmatpush1.bf16.msra.mxu0 0
  %7468 = vmatprep.subr.bf16.mxu0 0
  %7469 = vmatpush1.bf16.msra.mxu0 0
  %7470 = vmatprep.subr.bf16.mxu0 0
  %7471 = vmatpush1.bf16.msra.mxu0 0
  %7472 = vmatprep.subr.bf16.mxu0 0
  %7473 = vmatpush1.bf16.msra.mxu0 0
  %7474 = vmatprep.subr.bf16.mxu0 0
  %7475 = vmatpush1.bf16.msra.mxu0 0
  %7476 = vmatprep.subr.bf16.mxu0 0
  %7477 = vmatpush1.bf16.msra.mxu0 0
  %7478 = vmatprep.subr.bf16.mxu0 0
  %7479 = vmatpush1.bf16.msra.mxu0 0
  %7480 = vmatprep.subr.bf16.mxu0 0
  %7481 = vmatpush1.bf16.msra.mxu0 0
  %7482 = vmatprep.subr.bf16.mxu0 0
  %7483 = vmatpush1.bf16.msra.mxu0 0
  %7484 = vmatprep.subr.bf16.mxu0 0
  %7485 = vmatpush1.bf16.msra.mxu0 0
  %7486 = vmatprep.subr.bf16.mxu0 0
  %7487 = vmatpush1.bf16.msra.mxu0 0
  %7488 = vmatprep.subr.bf16.mxu0 0
  %7489 = vmatpush1.bf16.msra.mxu0 0
  %7490 = vmatprep.mubr.bf16.mxu0 0
  %7491 = vmatmul.mubr.bf16.gmra.mrb[0].mxu0 %v7447
  %v7492 = vpop.f32.mrb[0].mxu0
  %v7493 = vadd.f32 %v7001, %v7492
  %v7494 = vpop.f32.mrb[0].mxu0
  %v7495 = vpop.f32.mrb[0].mxu0
  %v7496 = vadd.f32 %v7004, %v7495
  %v7497 = vpop.f32.mrb[0].mxu0
  %7498 = vmatprep.mubr.bf16.mxu0 0
  %7499 = vmatmul.mubr.bf16.gmra.mrb[0].mxu0 %v7450
  %v7500 = vpop.f32.mrb[0].mxu0
  %v7501 = vadd.f32 %v7009, %v7500
  %v7502 = vpop.f32.mrb[0].mxu0
  %v7503 = vpop.f32.mrb[0].mxu0
  %v7504 = vadd.f32 %v7012, %v7503
  %v7505 = vpop.f32.mrb[0].mxu0
  %7506 = vmatprep.mubr.bf16.mxu0 0
  %7507 = vmatmul.mubr.bf16.gmra.mrb[0].mxu0 %v7453
  %v7508 = vpop.f32.mrb[0].mxu0
  %v7509 = vadd.f32 %v7017, %v7508
  %v7510 = vpop.f32.mrb[0].mxu0
  %v7511 = vpop.f32.mrb[0].mxu0
  %v7512 = vpop.f32.mrb[0].mxu0
  %7513 = vdwg.mxu0
  %v7520 = vunpack.c.l.b16 %v7023
  %v7521 = vunpack.c.l.b16 %v7024
  %v7522 = vunpack.c.l.b16 %v7025
  %v7523 = vunpack.c.l.b16 %v7026
  %v7524 = vunpack.c.l.b16 %v7027
  %v7525 = vunpack.c.l.b16 %v7028
  %v7526 = vpack.c.b16 %v7521, %v7520
  %v7527 = vpack.c.b16 %v7523, %v7522
  %v7528 = vpack.c.b16 %v7525, %v7524
  %v7532 = vsel %vm6952, %v5501, 0
  %v7535 = vsel %vm6952, %v5502, 0
  %v7538 = vsel %vm6952, %v5503, 0
  %v7541 = vsel %vm6962, %v7528, 0
  %7543 = vmatprep.subr.bf16.mxu0 0
  %7544 = vmatpush1.bf16.msra.mxu0 %v7526
  %7545 = vmatprep.subr.bf16.mxu0 0
  %7546 = vmatpush1.bf16.msra.mxu0 %v7527
  %7547 = vmatprep.subr.bf16.mxu0 0
  %7548 = vmatpush1.bf16.msra.mxu0 %v7541
  %7549 = vmatprep.subr.bf16.mxu0 0
  %7550 = vmatpush1.bf16.msra.mxu0 0
  %7551 = vmatprep.subr.bf16.mxu0 0
  %7552 = vmatpush1.bf16.msra.mxu0 0
  %7553 = vmatprep.subr.bf16.mxu0 0
  %7554 = vmatpush1.bf16.msra.mxu0 0
  %7555 = vmatprep.subr.bf16.mxu0 0
  %7556 = vmatpush1.bf16.msra.mxu0 0
  %7557 = vmatprep.subr.bf16.mxu0 0
  %7558 = vmatpush1.bf16.msra.mxu0 0
  %7559 = vmatprep.subr.bf16.mxu0 0
  %7560 = vmatpush1.bf16.msra.mxu0 0
  %7561 = vmatprep.subr.bf16.mxu0 0
  %7562 = vmatpush1.bf16.msra.mxu0 0
  %7563 = vmatprep.subr.bf16.mxu0 0
  %7564 = vmatpush1.bf16.msra.mxu0 0
  %7565 = vmatprep.subr.bf16.mxu0 0
  %7566 = vmatpush1.bf16.msra.mxu0 0
  %7567 = vmatprep.subr.bf16.mxu0 0
  %7568 = vmatpush1.bf16.msra.mxu0 0
  %7569 = vmatprep.subr.bf16.mxu0 0
  %7570 = vmatpush1.bf16.msra.mxu0 0
  %7571 = vmatprep.subr.bf16.mxu0 0
  %7572 = vmatpush1.bf16.msra.mxu0 0
  %7573 = vmatprep.subr.bf16.mxu0 0
  %7574 = vmatpush1.bf16.msra.mxu0 0
  %7575 = vmatprep.mubr.bf16.mxu0 0
  %7576 = vmatmul.mubr.bf16.gmra.mrb[0].mxu0 %v7532
  %v7577 = vpop.f32.mrb[0].mxu0
  %v7578 = vadd.f32 %v7100, %v7577
  %v7579 = vpop.f32.mrb[0].mxu0
  %v7580 = vpop.f32.mrb[0].mxu0
  %v7581 = vadd.f32 %v7103, %v7580
  %v7582 = vpop.f32.mrb[0].mxu0
  %7583 = vmatprep.mubr.bf16.mxu0 0
  %7584 = vmatmul.mubr.bf16.gmra.mrb[0].mxu0 %v7535
  %v7585 = vpop.f32.mrb[0].mxu0
  %v7586 = vadd.f32 %v7108, %v7585
  %v7587 = vpop.f32.mrb[0].mxu0
  %v7588 = vpop.f32.mrb[0].mxu0
  %v7589 = vadd.f32 %v7111, %v7588
  %v7590 = vpop.f32.mrb[0].mxu0
  %7591 = vmatprep.mubr.bf16.mxu0 0
  %7592 = vmatmul.mubr.bf16.gmra.mrb[0].mxu0 %v7538
  %v7593 = vpop.f32.mrb[0].mxu0
  %v7594 = vadd.f32 %v7116, %v7593
  %v7595 = vpop.f32.mrb[0].mxu0
  %v7596 = vpop.f32.mrb[0].mxu0
  %v7597 = vpop.f32.mrb[0].mxu0
  %7598 = vdwg.mxu0
  %v7602 = vrot.slane %v2141, 4
  %v7603 = vrot.slane %v2142, 4
  %v7604 = vsel %vm7138, %v7602, %v7603
  %v7605 = vrot.slane %v2143, 4
  %v7606 = vsel %vm7138, %v7603, %v7605
  %v7613 = vunpack.c.l.b16 %v7122
  %v7614 = vunpack.c.l.b16 %v7123
  %v7615 = vunpack.c.l.b16 %v7124
  %v7616 = vunpack.c.l.b16 %v7125
  %v7617 = vunpack.c.l.b16 %v7126
  %v7618 = vunpack.c.l.b16 %v7127
  %v7619 = vpack.c.b16 %v7614, %v7613
  %v7620 = vpack.c.b16 %v7616, %v7615
  %v7621 = vpack.c.b16 %v7618, %v7617
  %v7625 = vsel %vm6952, %v7604, 0
  %v7628 = vsel %vm6952, %v7606, 0
  %v7631 = vsel %vm6952, %v7605, 0
  %v7634 = vsel %vm6962, %v7621, 0
  %7636 = vmatprep.subr.bf16.mxu0 0
  %7637 = vmatpush1.bf16.msra.mxu0 %v7619
  %7638 = vmatprep.subr.bf16.mxu0 0
  %7639 = vmatpush1.bf16.msra.mxu0 %v7620
  %7640 = vmatprep.subr.bf16.mxu0 0
  %7641 = vmatpush1.bf16.msra.mxu0 %v7634
  %7642 = vmatprep.subr.bf16.mxu0 0
  %7643 = vmatpush1.bf16.msra.mxu0 0
  %7644 = vmatprep.subr.bf16.mxu0 0
  %7645 = vmatpush1.bf16.msra.mxu0 0
  %7646 = vmatprep.subr.bf16.mxu0 0
  %7647 = vmatpush1.bf16.msra.mxu0 0
  %7648 = vmatprep.subr.bf16.mxu0 0
  %7649 = vmatpush1.bf16.msra.mxu0 0
  %7650 = vmatprep.subr.bf16.mxu0 0
  %7651 = vmatpush1.bf16.msra.mxu0 0
  %7652 = vmatprep.subr.bf16.mxu0 0
  %7653 = vmatpush1.bf16.msra.mxu0 0
  %7654 = vmatprep.subr.bf16.mxu0 0
  %7655 = vmatpush1.bf16.msra.mxu0 0
  %7656 = vmatprep.subr.bf16.mxu0 0
  %7657 = vmatpush1.bf16.msra.mxu0 0
  %7658 = vmatprep.subr.bf16.mxu0 0
  %7659 = vmatpush1.bf16.msra.mxu0 0
  %7660 = vmatprep.subr.bf16.mxu0 0
  %7661 = vmatpush1.bf16.msra.mxu0 0
  %7662 = vmatprep.subr.bf16.mxu0 0
  %7663 = vmatpush1.bf16.msra.mxu0 0
  %7664 = vmatprep.subr.bf16.mxu0 0
  %7665 = vmatpush1.bf16.msra.mxu0 0
  %7666 = vmatprep.subr.bf16.mxu0 0
  %7667 = vmatpush1.bf16.msra.mxu0 0
  %7668 = vmatprep.mubr.bf16.mxu0 0
  %7669 = vmatmul.mubr.bf16.gmra.mrb[0].mxu0 %v7625
  %v7670 = vpop.f32.mrb[0].mxu0
  %v7671 = vadd.f32 %v7208, %v7670
  %v7672 = vpop.f32.mrb[0].mxu0
  %v7673 = vpop.f32.mrb[0].mxu0
  %v7674 = vadd.f32 %v7211, %v7673
  %v7675 = vpop.f32.mrb[0].mxu0
  %7676 = vmatprep.mubr.bf16.mxu0 0
  %7677 = vmatmul.mubr.bf16.gmra.mrb[0].mxu0 %v7628
  %v7678 = vpop.f32.mrb[0].mxu0
  %v7679 = vadd.f32 %v7216, %v7678
  %v7680 = vpop.f32.mrb[0].mxu0
  %v7681 = vpop.f32.mrb[0].mxu0
  %v7682 = vadd.f32 %v7219, %v7681
  %v7683 = vpop.f32.mrb[0].mxu0
  %7684 = vmatprep.mubr.bf16.mxu0 0
  %7685 = vmatmul.mubr.bf16.gmra.mrb[0].mxu0 %v7631
  %v7686 = vpop.f32.mrb[0].mxu0
  %v7687 = vadd.f32 %v7224, %v7686
  %v7688 = vpop.f32.mrb[0].mxu0
  %v7689 = vpop.f32.mrb[0].mxu0
  %v7690 = vpop.f32.mrb[0].mxu0
  %7691 = vdwg.mxu0
  %v7695 = vrot.slane %v5501, 4
  %v7696 = vrot.slane %v5502, 4
  %v7697 = vsel %vm7138, %v7695, %v7696
  %v7698 = vrot.slane %v5503, 4
  %v7699 = vsel %vm7138, %v7696, %v7698
  %v7706 = vunpack.c.l.b16 %v7230
  %v7707 = vunpack.c.l.b16 %v7231
  %v7708 = vunpack.c.l.b16 %v7232
  %v7709 = vunpack.c.l.b16 %v7233
  %v7710 = vunpack.c.l.b16 %v7234
  %v7711 = vunpack.c.l.b16 %v7235
  %v7712 = vpack.c.b16 %v7707, %v7706
  %v7713 = vpack.c.b16 %v7709, %v7708
  %v7714 = vpack.c.b16 %v7711, %v7710
  %v7718 = vsel %vm6952, %v7697, 0
  %v7721 = vsel %vm6952, %v7699, 0
  %v7724 = vsel %vm6952, %v7698, 0
  %v7727 = vsel %vm6962, %v7714, 0
  %7729 = vmatprep.subr.bf16.mxu0 0
  %7730 = vmatpush1.bf16.msra.mxu0 %v7712
  %7731 = vmatprep.subr.bf16.mxu0 0
  %7732 = vmatpush1.bf16.msra.mxu0 %v7713
  %7733 = vmatprep.subr.bf16.mxu0 0
  %7734 = vmatpush1.bf16.msra.mxu0 %v7727
  %7735 = vmatprep.subr.bf16.mxu0 0
  %7736 = vmatpush1.bf16.msra.mxu0 0
  %7737 = vmatprep.subr.bf16.mxu0 0
  %7738 = vmatpush1.bf16.msra.mxu0 0
  %7739 = vmatprep.subr.bf16.mxu0 0
  %7740 = vmatpush1.bf16.msra.mxu0 0
  %7741 = vmatprep.subr.bf16.mxu0 0
  %7742 = vmatpush1.bf16.msra.mxu0 0
  %7743 = vmatprep.subr.bf16.mxu0 0
  %7744 = vmatpush1.bf16.msra.mxu0 0
  %7745 = vmatprep.subr.bf16.mxu0 0
  %7746 = vmatpush1.bf16.msra.mxu0 0
  %7747 = vmatprep.subr.bf16.mxu0 0
  %7748 = vmatpush1.bf16.msra.mxu0 0
  %7749 = vmatprep.subr.bf16.mxu0 0
  %7750 = vmatpush1.bf16.msra.mxu0 0
  %7751 = vmatprep.subr.bf16.mxu0 0
  %7752 = vmatpush1.bf16.msra.mxu0 0
  %7753 = vmatprep.subr.bf16.mxu0 0
  %7754 = vmatpush1.bf16.msra.mxu0 0
  %7755 = vmatprep.subr.bf16.mxu0 0
  %7756 = vmatpush1.bf16.msra.mxu0 0
  %7757 = vmatprep.subr.bf16.mxu0 0
  %7758 = vmatpush1.bf16.msra.mxu0 0
  %7759 = vmatprep.subr.bf16.mxu0 0
  %7760 = vmatpush1.bf16.msra.mxu0 0
  %7761 = vmatprep.mubr.bf16.mxu0 0
  %7762 = vmatmul.mubr.bf16.gmra.mrb[0].mxu0 %v7718
  %v7763 = vpop.f32.mrb[0].mxu0
  %v7764 = vadd.f32 %v7315, %v7763
  %v7765 = vpop.f32.mrb[0].mxu0
  %v7766 = vpop.f32.mrb[0].mxu0
  %v7767 = vadd.f32 %v7318, %v7766
  %v7768 = vpop.f32.mrb[0].mxu0
  %7769 = vmatprep.mubr.bf16.mxu0 0
  %7770 = vmatmul.mubr.bf16.gmra.mrb[0].mxu0 %v7721
  %v7771 = vpop.f32.mrb[0].mxu0
  %v7772 = vadd.f32 %v7323, %v7771
  %v7773 = vpop.f32.mrb[0].mxu0
  %v7774 = vpop.f32.mrb[0].mxu0
  %v7775 = vadd.f32 %v7326, %v7774
  %v7776 = vpop.f32.mrb[0].mxu0
  %7777 = vmatprep.mubr.bf16.mxu0 0
  %7778 = vmatmul.mubr.bf16.gmra.mrb[0].mxu0 %v7724
  %v7779 = vpop.f32.mrb[0].mxu0
  %v7780 = vadd.f32 %v7331, %v7779
  %v7781 = vpop.f32.mrb[0].mxu0
  %v7782 = vpop.f32.mrb[0].mxu0
  %v7783 = vpop.f32.mrb[0].mxu0
  %7784 = vdwg.mxu0
  %v7791 = vunpack.c.l.b16 %v7337
  %v7792 = vunpack.c.l.b16 %v7338
  %v7793 = vunpack.c.l.b16 %v7339
  %v7794 = vunpack.c.l.b16 %v7340
  %v7795 = vunpack.c.l.b16 %v7341
  %v7796 = vunpack.c.l.b16 %v7342
  %v7797 = vpack.c.b16 %v7792, %v7791
  %v7798 = vpack.c.b16 %v7794, %v7793
  %v7799 = vpack.c.b16 %v7796, %v7795
  %v7803 = vsel %vm6952, %v2144, 0
  %v7806 = vsel %vm6962, %v7799, 0
  %7808 = vmatprep.subr.bf16.mxu0 0
  %7809 = vmatpush1.bf16.msra.mxu0 %v7797
  %7810 = vmatprep.subr.bf16.mxu0 0
  %7811 = vmatpush1.bf16.msra.mxu0 %v7798
  %7812 = vmatprep.subr.bf16.mxu0 0
  %7813 = vmatpush1.bf16.msra.mxu0 %v7806
  %7814 = vmatprep.subr.bf16.mxu0 0
  %7815 = vmatpush1.bf16.msra.mxu0 0
  %7816 = vmatprep.subr.bf16.mxu0 0
  %7817 = vmatpush1.bf16.msra.mxu0 0
  %7818 = vmatprep.subr.bf16.mxu0 0
  %7819 = vmatpush1.bf16.msra.mxu0 0
  %7820 = vmatprep.subr.bf16.mxu0 0
  %7821 = vmatpush1.bf16.msra.mxu0 0
  %7822 = vmatprep.subr.bf16.mxu0 0
  %7823 = vmatpush1.bf16.msra.mxu0 0
  %7824 = vmatprep.subr.bf16.mxu0 0
  %7825 = vmatpush1.bf16.msra.mxu0 0
  %7826 = vmatprep.subr.bf16.mxu0 0
  %7827 = vmatpush1.bf16.msra.mxu0 0
  %7828 = vmatprep.subr.bf16.mxu0 0
  %7829 = vmatpush1.bf16.msra.mxu0 0
  %7830 = vmatprep.subr.bf16.mxu0 0
  %7831 = vmatpush1.bf16.msra.mxu0 0
  %7832 = vmatprep.subr.bf16.mxu0 0
  %7833 = vmatpush1.bf16.msra.mxu0 0
  %7834 = vmatprep.subr.bf16.mxu0 0
  %7835 = vmatpush1.bf16.msra.mxu0 0
  %7836 = vmatprep.subr.bf16.mxu0 0
  %7837 = vmatpush1.bf16.msra.mxu0 0
  %7838 = vmatprep.subr.bf16.mxu0 0
  %7839 = vmatpush1.bf16.msra.mxu0 0
  %7840 = vmatprep.mubr.bf16.mxu0 0
  %7841 = vmatmul.mubr.bf16.gmra.mrb[0].mxu0 %v7450
  %v7842 = vpop.f32.mrb[0].mxu0
  %v7843 = vadd.f32 %v7408, %v7842
  %v7844 = vpop.f32.mrb[0].mxu0
  %v7845 = vpop.f32.mrb[0].mxu0
  %v7846 = vadd.f32 %v7411, %v7845
  %v7847 = vpop.f32.mrb[0].mxu0
  %7848 = vmatprep.mubr.bf16.mxu0 0
  %7849 = vmatmul.mubr.bf16.gmra.mrb[0].mxu0 %v7453
  %v7850 = vpop.f32.mrb[0].mxu0
  %v7851 = vadd.f32 %v7416, %v7850
  %v7852 = vpop.f32.mrb[0].mxu0
  %v7853 = vpop.f32.mrb[0].mxu0
  %v7854 = vadd.f32 %v7419, %v7853
  %v7855 = vpop.f32.mrb[0].mxu0
  %7856 = vmatprep.mubr.bf16.mxu0 0
  %7857 = vmatmul.mubr.bf16.gmra.mrb[0].mxu0 %v7803
  %v7858 = vpop.f32.mrb[0].mxu0
  %v7859 = vadd.f32 %v7424, %v7858
  %v7860 = vpop.f32.mrb[0].mxu0
  %v7861 = vpop.f32.mrb[0].mxu0
  %v7862 = vpop.f32.mrb[0].mxu0
  %7863 = vdwg.mxu0
  %v7864 = vadd.f32 %v7493, %v7578
  %v7865 = vadd.f32 %v7496, %v7581
  %v7866 = vadd.f32 %v7501, %v7586
  %v7867 = vadd.f32 %v7504, %v7589
  %v7868 = vadd.f32 %v7509, %v7594
  %v7869 = vadd.f32 %v7671, %v7764
  %v7870 = vadd.f32 %v7674, %v7767
  %v7871 = vadd.f32 %v7679, %v7772
  %v7872 = vadd.f32 %v7682, %v7775
  %v7873 = vadd.f32 %v7687, %v7780
  %v7874 = vadd.f32 %v7864, %v7869
  %v7875 = vadd.f32 %v7865, %v7870
  %v7876 = vadd.f32 %v7866, %v7871
  %v7877 = vadd.f32 %v7867, %v7872
  %v7878 = vadd.f32 %v7868, %v7873
  %v7879 = vadd.f32 %v7874, %v7843
  %v7880 = vadd.f32 %v7875, %v7846
  %v7881 = vadd.f32 %v7876, %v7851
  %v7882 = vadd.f32 %v7877, %v7854
  %v7883 = vadd.f32 %v7878, %v7859
  %v7885 = vlaneseq
  %v7886 = vshrl.u32 %v7885, 7
  %v7887 = vsub.s32 0, %v7886
  %v7888 = vrot.slane %v40, %v7887
  %v7890 = vadd.f32 %v7879, %v7888
  %v7891 = vadd.f32 %v7880, %v7888
  %v7892 = vadd.f32 %v7881, %v7888
  %v7893 = vadd.f32 %v7882, %v7888
  %v7894 = vadd.f32 %v7883, %v7888
  %v7895 = vmax.f32 %v7890, 0.0
  %v7896 = vmax.f32 %v7891, 0.0
  %v7897 = vmax.f32 %v7892, 0.0
  %v7898 = vmax.f32 %v7893, 0.0
  %v7899 = vmax.f32 %v7894, 0.0
  %s7900 = scalar_lea.vmem %s3, 240
  %v7901 = vld [vmem:[%s7900] sm:$0xf]
  %v7902 = vld [vmem:[%s7900 + $0x4] sm:$0xf]
  %v7903 = vld [vmem:[%s7900 + $0x8] sm:$0xf]
  %v7904 = vld [vmem:[%s7900 + $0xc] sm:$0xf]
  %v7905 = vld [vmem:[%s7900 + $0x10] sm:$0xf]
  %v7906 = vld [vmem:[%s7900 + $0x14] sm:$0x1]
  %s7907 = scalar_lea.vmem %s3, 360
  %v7908 = vld [vmem:[%s7907] sm:$0xf]
  %v7909 = vld [vmem:[%s7907 + $0x4] sm:$0xf]
  %v7910 = vld [vmem:[%s7907 + $0x8] sm:$0xf]
  %v7911 = vld [vmem:[%s7907 + $0xc] sm:$0xf]
  %v7912 = vld [vmem:[%s7907 + $0x10] sm:$0xf]
  %v7913 = vld [vmem:[%s7907 + $0x14] sm:$0x1]
  %v7920 = vunpack.c.l.b16 %v7908
  %v7921 = vunpack.c.l.b16 %v7909
  %v7922 = vunpack.c.l.b16 %v7910
  %v7923 = vunpack.c.l.b16 %v7911
  %v7924 = vunpack.c.l.b16 %v7912
  %v7925 = vunpack.c.l.b16 %v7913
  %v7926 = vpack.c.b16 %v7921, %v7920
  %v7927 = vpack.c.b16 %v7923, %v7922
  %v7928 = vpack.c.b16 %v7925, %v7924
  %v7932 = vsel %vm6962, %v7928, 0
  %7934 = vmatprep.subr.bf16.mxu0 0
  %7935 = vmatpush1.bf16.msra.mxu0 %v7926
  %7936 = vmatprep.subr.bf16.mxu0 0
  %7937 = vmatpush1.bf16.msra.mxu0 %v7927
  %7938 = vmatprep.subr.bf16.mxu0 0
  %7939 = vmatpush1.bf16.msra.mxu0 %v7932
  %7940 = vmatprep.subr.bf16.mxu0 0
  %7941 = vmatpush1.bf16.msra.mxu0 0
  %7942 = vmatprep.subr.bf16.mxu0 0
  %7943 = vmatpush1.bf16.msra.mxu0 0
  %7944 = vmatprep.subr.bf16.mxu0 0
  %7945 = vmatpush1.bf16.msra.mxu0 0
  %7946 = vmatprep.subr.bf16.mxu0 0
  %7947 = vmatpush1.bf16.msra.mxu0 0
  %7948 = vmatprep.subr.bf16.mxu0 0
  %7949 = vmatpush1.bf16.msra.mxu0 0
  %7950 = vmatprep.subr.bf16.mxu0 0
  %7951 = vmatpush1.bf16.msra.mxu0 0
  %7952 = vmatprep.subr.bf16.mxu0 0
  %7953 = vmatpush1.bf16.msra.mxu0 0
  %7954 = vmatprep.subr.bf16.mxu0 0
  %7955 = vmatpush1.bf16.msra.mxu0 0
  %7956 = vmatprep.subr.bf16.mxu0 0
  %7957 = vmatpush1.bf16.msra.mxu0 0
  %7958 = vmatprep.subr.bf16.mxu0 0
  %7959 = vmatpush1.bf16.msra.mxu0 0
  %7960 = vmatprep.subr.bf16.mxu0 0
  %7961 = vmatpush1.bf16.msra.mxu0 0
  %7962 = vmatprep.subr.bf16.mxu0 0
  %7963 = vmatpush1.bf16.msra.mxu0 0
  %7964 = vmatprep.subr.bf16.mxu0 0
  %7965 = vmatpush1.bf16.msra.mxu0 0
  %7966 = vmatprep.mubr.bf16.mxu0 0
  %7967 = vmatmul.mubr.bf16.gmra.mrb[0].mxu0 %v6954
  %v7968 = vpop.f32.mrb[0].mxu0
  %v7969 = vadd.f32 0.0, %v7968
  %v7970 = vpop.f32.mrb[0].mxu0
  %v7971 = vpop.f32.mrb[0].mxu0
  %v7972 = vadd.f32 0.0, %v7971
  %v7973 = vpop.f32.mrb[0].mxu0
  %7974 = vmatprep.mubr.bf16.mxu0 0
  %7975 = vmatmul.mubr.bf16.gmra.mrb[0].mxu0 %v6957
  %v7976 = vpop.f32.mrb[0].mxu0
  %v7977 = vadd.f32 0.0, %v7976
  %v7978 = vpop.f32.mrb[0].mxu0
  %v7979 = vpop.f32.mrb[0].mxu0
  %v7980 = vadd.f32 0.0, %v7979
  %v7981 = vpop.f32.mrb[0].mxu0
  %7982 = vmatprep.mubr.bf16.mxu0 0
  %7983 = vmatmul.mubr.bf16.gmra.mrb[0].mxu0 %v6960
  %v7984 = vpop.f32.mrb[0].mxu0
  %v7985 = vadd.f32 0.0, %v7984
  %v7986 = vpop.f32.mrb[0].mxu0
  %v7987 = vpop.f32.mrb[0].mxu0
  %v7988 = vpop.f32.mrb[0].mxu0
  %7989 = vdwg.mxu0
  %s7990 = scalar_lea.vmem %s3, 264
  %v7991 = vld [vmem:[%s7990] sm:$0xf]
  %v7992 = vld [vmem:[%s7990 + $0x4] sm:$0xf]
  %v7993 = vld [vmem:[%s7990 + $0x8] sm:$0xf]
  %v7994 = vld [vmem:[%s7990 + $0xc] sm:$0xf]
  %v7995 = vld [vmem:[%s7990 + $0x10] sm:$0xf]
  %v7996 = vld [vmem:[%s7990 + $0x14] sm:$0x1]
  %s7997 = scalar_lea.vmem %s3, 384
  %v7998 = vld [vmem:[%s7997] sm:$0xf]
  %v7999 = vld [vmem:[%s7997 + $0x4] sm:$0xf]
  %v8000 = vld [vmem:[%s7997 + $0x8] sm:$0xf]
  %v8001 = vld [vmem:[%s7997 + $0xc] sm:$0xf]
  %v8002 = vld [vmem:[%s7997 + $0x10] sm:$0xf]
  %v8003 = vld [vmem:[%s7997 + $0x14] sm:$0x1]
  %v8010 = vunpack.c.l.b16 %v7998
  %v8011 = vunpack.c.l.b16 %v7999
  %v8012 = vunpack.c.l.b16 %v8000
  %v8013 = vunpack.c.l.b16 %v8001
  %v8014 = vunpack.c.l.b16 %v8002
  %v8015 = vunpack.c.l.b16 %v8003
  %v8016 = vpack.c.b16 %v8011, %v8010
  %v8017 = vpack.c.b16 %v8013, %v8012
  %v8018 = vpack.c.b16 %v8015, %v8014
  %v8022 = vsel %vm6962, %v8018, 0
  %8024 = vmatprep.subr.bf16.mxu0 0
  %8025 = vmatpush1.bf16.msra.mxu0 %v8016
  %8026 = vmatprep.subr.bf16.mxu0 0
  %8027 = vmatpush1.bf16.msra.mxu0 %v8017
  %8028 = vmatprep.subr.bf16.mxu0 0
  %8029 = vmatpush1.bf16.msra.mxu0 %v8022
  %8030 = vmatprep.subr.bf16.mxu0 0
  %8031 = vmatpush1.bf16.msra.mxu0 0
  %8032 = vmatprep.subr.bf16.mxu0 0
  %8033 = vmatpush1.bf16.msra.mxu0 0
  %8034 = vmatprep.subr.bf16.mxu0 0
  %8035 = vmatpush1.bf16.msra.mxu0 0
  %8036 = vmatprep.subr.bf16.mxu0 0
  %8037 = vmatpush1.bf16.msra.mxu0 0
  %8038 = vmatprep.subr.bf16.mxu0 0
  %8039 = vmatpush1.bf16.msra.mxu0 0
  %8040 = vmatprep.subr.bf16.mxu0 0
  %8041 = vmatpush1.bf16.msra.mxu0 0
  %8042 = vmatprep.subr.bf16.mxu0 0
  %8043 = vmatpush1.bf16.msra.mxu0 0
  %8044 = vmatprep.subr.bf16.mxu0 0
  %8045 = vmatpush1.bf16.msra.mxu0 0
  %8046 = vmatprep.subr.bf16.mxu0 0
  %8047 = vmatpush1.bf16.msra.mxu0 0
  %8048 = vmatprep.subr.bf16.mxu0 0
  %8049 = vmatpush1.bf16.msra.mxu0 0
  %8050 = vmatprep.subr.bf16.mxu0 0
  %8051 = vmatpush1.bf16.msra.mxu0 0
  %8052 = vmatprep.subr.bf16.mxu0 0
  %8053 = vmatpush1.bf16.msra.mxu0 0
  %8054 = vmatprep.subr.bf16.mxu0 0
  %8055 = vmatpush1.bf16.msra.mxu0 0
  %8056 = vmatprep.mubr.bf16.mxu0 0
  %8057 = vmatmul.mubr.bf16.gmra.mrb[0].mxu0 %v7054
  %v8058 = vpop.f32.mrb[0].mxu0
  %v8059 = vadd.f32 0.0, %v8058
  %v8060 = vpop.f32.mrb[0].mxu0
  %v8061 = vpop.f32.mrb[0].mxu0
  %v8062 = vadd.f32 0.0, %v8061
  %v8063 = vpop.f32.mrb[0].mxu0
  %8064 = vmatprep.mubr.bf16.mxu0 0
  %8065 = vmatmul.mubr.bf16.gmra.mrb[0].mxu0 %v7057
  %v8066 = vpop.f32.mrb[0].mxu0
  %v8067 = vadd.f32 0.0, %v8066
  %v8068 = vpop.f32.mrb[0].mxu0
  %v8069 = vpop.f32.mrb[0].mxu0
  %v8070 = vadd.f32 0.0, %v8069
  %v8071 = vpop.f32.mrb[0].mxu0
  %8072 = vmatprep.mubr.bf16.mxu0 0
  %8073 = vmatmul.mubr.bf16.gmra.mrb[0].mxu0 %v7060
  %v8074 = vpop.f32.mrb[0].mxu0
  %v8075 = vadd.f32 0.0, %v8074
  %v8076 = vpop.f32.mrb[0].mxu0
  %v8077 = vpop.f32.mrb[0].mxu0
  %v8078 = vpop.f32.mrb[0].mxu0
  %8079 = vdwg.mxu0
  %s8080 = scalar_lea.vmem %s3, 288
  %v8081 = vld [vmem:[%s8080] sm:$0xf]
  %v8082 = vld [vmem:[%s8080 + $0x4] sm:$0xf]
  %v8083 = vld [vmem:[%s8080 + $0x8] sm:$0xf]
  %v8084 = vld [vmem:[%s8080 + $0xc] sm:$0xf]
  %v8085 = vld [vmem:[%s8080 + $0x10] sm:$0xf]
  %v8086 = vld [vmem:[%s8080 + $0x14] sm:$0x1]
  %s8087 = scalar_lea.vmem %s3, 408
  %v8088 = vld [vmem:[%s8087] sm:$0xf]
  %v8089 = vld [vmem:[%s8087 + $0x4] sm:$0xf]
  %v8090 = vld [vmem:[%s8087 + $0x8] sm:$0xf]
  %v8091 = vld [vmem:[%s8087 + $0xc] sm:$0xf]
  %v8092 = vld [vmem:[%s8087 + $0x10] sm:$0xf]
  %v8093 = vld [vmem:[%s8087 + $0x14] sm:$0x1]
  %v8100 = vunpack.c.l.b16 %v8088
  %v8101 = vunpack.c.l.b16 %v8089
  %v8102 = vunpack.c.l.b16 %v8090
  %v8103 = vunpack.c.l.b16 %v8091
  %v8104 = vunpack.c.l.b16 %v8092
  %v8105 = vunpack.c.l.b16 %v8093
  %v8106 = vpack.c.b16 %v8101, %v8100
  %v8107 = vpack.c.b16 %v8103, %v8102
  %v8108 = vpack.c.b16 %v8105, %v8104
  %v8112 = vsel %vm6962, %v8108, 0
  %8114 = vmatprep.subr.bf16.mxu0 0
  %8115 = vmatpush1.bf16.msra.mxu0 %v8106
  %8116 = vmatprep.subr.bf16.mxu0 0
  %8117 = vmatpush1.bf16.msra.mxu0 %v8107
  %8118 = vmatprep.subr.bf16.mxu0 0
  %8119 = vmatpush1.bf16.msra.mxu0 %v8112
  %8120 = vmatprep.subr.bf16.mxu0 0
  %8121 = vmatpush1.bf16.msra.mxu0 0
  %8122 = vmatprep.subr.bf16.mxu0 0
  %8123 = vmatpush1.bf16.msra.mxu0 0
  %8124 = vmatprep.subr.bf16.mxu0 0
  %8125 = vmatpush1.bf16.msra.mxu0 0
  %8126 = vmatprep.subr.bf16.mxu0 0
  %8127 = vmatpush1.bf16.msra.mxu0 0
  %8128 = vmatprep.subr.bf16.mxu0 0
  %8129 = vmatpush1.bf16.msra.mxu0 0
  %8130 = vmatprep.subr.bf16.mxu0 0
  %8131 = vmatpush1.bf16.msra.mxu0 0
  %8132 = vmatprep.subr.bf16.mxu0 0
  %8133 = vmatpush1.bf16.msra.mxu0 0
  %8134 = vmatprep.subr.bf16.mxu0 0
  %8135 = vmatpush1.bf16.msra.mxu0 0
  %8136 = vmatprep.subr.bf16.mxu0 0
  %8137 = vmatpush1.bf16.msra.mxu0 0
  %8138 = vmatprep.subr.bf16.mxu0 0
  %8139 = vmatpush1.bf16.msra.mxu0 0
  %8140 = vmatprep.subr.bf16.mxu0 0
  %8141 = vmatpush1.bf16.msra.mxu0 0
  %8142 = vmatprep.subr.bf16.mxu0 0
  %8143 = vmatpush1.bf16.msra.mxu0 0
  %8144 = vmatprep.subr.bf16.mxu0 0
  %8145 = vmatpush1.bf16.msra.mxu0 0
  %8146 = vmatprep.mubr.bf16.mxu0 0
  %8147 = vmatmul.mubr.bf16.gmra.mrb[0].mxu0 %v7162
  %v8148 = vpop.f32.mrb[0].mxu0
  %v8149 = vadd.f32 0.0, %v8148
  %v8150 = vpop.f32.mrb[0].mxu0
  %v8151 = vpop.f32.mrb[0].mxu0
  %v8152 = vadd.f32 0.0, %v8151
  %v8153 = vpop.f32.mrb[0].mxu0
  %8154 = vmatprep.mubr.bf16.mxu0 0
  %8155 = vmatmul.mubr.bf16.gmra.mrb[0].mxu0 %v7165
  %v8156 = vpop.f32.mrb[0].mxu0
  %v8157 = vadd.f32 0.0, %v8156
  %v8158 = vpop.f32.mrb[0].mxu0
  %v8159 = vpop.f32.mrb[0].mxu0
  %v8160 = vadd.f32 0.0, %v8159
  %v8161 = vpop.f32.mrb[0].mxu0
  %8162 = vmatprep.mubr.bf16.mxu0 0
  %8163 = vmatmul.mubr.bf16.gmra.mrb[0].mxu0 %v7168
  %v8164 = vpop.f32.mrb[0].mxu0
  %v8165 = vadd.f32 0.0, %v8164
  %v8166 = vpop.f32.mrb[0].mxu0
  %v8167 = vpop.f32.mrb[0].mxu0
  %v8168 = vpop.f32.mrb[0].mxu0
  %8169 = vdwg.mxu0
  %s8170 = scalar_lea.vmem %s3, 312
  %v8171 = vld [vmem:[%s8170] sm:$0xf]
  %v8172 = vld [vmem:[%s8170 + $0x4] sm:$0xf]
  %v8173 = vld [vmem:[%s8170 + $0x8] sm:$0xf]
  %v8174 = vld [vmem:[%s8170 + $0xc] sm:$0xf]
  %v8175 = vld [vmem:[%s8170 + $0x10] sm:$0xf]
  %v8176 = vld [vmem:[%s8170 + $0x14] sm:$0x1]
  %s8177 = scalar_lea.vmem %s3, 432
  %v8178 = vld [vmem:[%s8177] sm:$0xf]
  %v8179 = vld [vmem:[%s8177 + $0x4] sm:$0xf]
  %v8180 = vld [vmem:[%s8177 + $0x8] sm:$0xf]
  %v8181 = vld [vmem:[%s8177 + $0xc] sm:$0xf]
  %v8182 = vld [vmem:[%s8177 + $0x10] sm:$0xf]
  %v8183 = vld [vmem:[%s8177 + $0x14] sm:$0x1]
  %v8190 = vunpack.c.l.b16 %v8178
  %v8191 = vunpack.c.l.b16 %v8179
  %v8192 = vunpack.c.l.b16 %v8180
  %v8193 = vunpack.c.l.b16 %v8181
  %v8194 = vunpack.c.l.b16 %v8182
  %v8195 = vunpack.c.l.b16 %v8183
  %v8196 = vpack.c.b16 %v8191, %v8190
  %v8197 = vpack.c.b16 %v8193, %v8192
  %v8198 = vpack.c.b16 %v8195, %v8194
  %v8202 = vsel %vm6962, %v8198, 0
  %8204 = vmatprep.subr.bf16.mxu0 0
  %8205 = vmatpush1.bf16.msra.mxu0 %v8196
  %8206 = vmatprep.subr.bf16.mxu0 0
  %8207 = vmatpush1.bf16.msra.mxu0 %v8197
  %8208 = vmatprep.subr.bf16.mxu0 0
  %8209 = vmatpush1.bf16.msra.mxu0 %v8202
  %8210 = vmatprep.subr.bf16.mxu0 0
  %8211 = vmatpush1.bf16.msra.mxu0 0
  %8212 = vmatprep.subr.bf16.mxu0 0
  %8213 = vmatpush1.bf16.msra.mxu0 0
  %8214 = vmatprep.subr.bf16.mxu0 0
  %8215 = vmatpush1.bf16.msra.mxu0 0
  %8216 = vmatprep.subr.bf16.mxu0 0
  %8217 = vmatpush1.bf16.msra.mxu0 0
  %8218 = vmatprep.subr.bf16.mxu0 0
  %8219 = vmatpush1.bf16.msra.mxu0 0
  %8220 = vmatprep.subr.bf16.mxu0 0
  %8221 = vmatpush1.bf16.msra.mxu0 0
  %8222 = vmatprep.subr.bf16.mxu0 0
  %8223 = vmatpush1.bf16.msra.mxu0 0
  %8224 = vmatprep.subr.bf16.mxu0 0
  %8225 = vmatpush1.bf16.msra.mxu0 0
  %8226 = vmatprep.subr.bf16.mxu0 0
  %8227 = vmatpush1.bf16.msra.mxu0 0
  %8228 = vmatprep.subr.bf16.mxu0 0
  %8229 = vmatpush1.bf16.msra.mxu0 0
  %8230 = vmatprep.subr.bf16.mxu0 0
  %8231 = vmatpush1.bf16.msra.mxu0 0
  %8232 = vmatprep.subr.bf16.mxu0 0
  %8233 = vmatpush1.bf16.msra.mxu0 0
  %8234 = vmatprep.subr.bf16.mxu0 0
  %8235 = vmatpush1.bf16.msra.mxu0 0
  %8236 = vmatprep.mubr.bf16.mxu0 0
  %8237 = vmatmul.mubr.bf16.gmra.mrb[0].mxu0 %v7269
  %v8238 = vpop.f32.mrb[0].mxu0
  %v8239 = vadd.f32 0.0, %v8238
  %v8240 = vpop.f32.mrb[0].mxu0
  %v8241 = vpop.f32.mrb[0].mxu0
  %v8242 = vadd.f32 0.0, %v8241
  %v8243 = vpop.f32.mrb[0].mxu0
  %8244 = vmatprep.mubr.bf16.mxu0 0
  %8245 = vmatmul.mubr.bf16.gmra.mrb[0].mxu0 %v7272
  %v8246 = vpop.f32.mrb[0].mxu0
  %v8247 = vadd.f32 0.0, %v8246
  %v8248 = vpop.f32.mrb[0].mxu0
  %v8249 = vpop.f32.mrb[0].mxu0
  %v8250 = vadd.f32 0.0, %v8249
  %v8251 = vpop.f32.mrb[0].mxu0
  %8252 = vmatprep.mubr.bf16.mxu0 0
  %8253 = vmatmul.mubr.bf16.gmra.mrb[0].mxu0 %v7275
  %v8254 = vpop.f32.mrb[0].mxu0
  %v8255 = vadd.f32 0.0, %v8254
  %v8256 = vpop.f32.mrb[0].mxu0
  %v8257 = vpop.f32.mrb[0].mxu0
  %v8258 = vpop.f32.mrb[0].mxu0
  %8259 = vdwg.mxu0
  %s8260 = scalar_lea.vmem %s3, 336
  %v8261 = vld [vmem:[%s8260] sm:$0xf]
  %v8262 = vld [vmem:[%s8260 + $0x4] sm:$0xf]
  %v8263 = vld [vmem:[%s8260 + $0x8] sm:$0xf]
  %v8264 = vld [vmem:[%s8260 + $0xc] sm:$0xf]
  %v8265 = vld [vmem:[%s8260 + $0x10] sm:$0xf]
  %v8266 = vld [vmem:[%s8260 + $0x14] sm:$0x1]
  %s8267 = scalar_lea.vmem %s3, 456
  %v8268 = vld [vmem:[%s8267] sm:$0xf]
  %v8269 = vld [vmem:[%s8267 + $0x4] sm:$0xf]
  %v8270 = vld [vmem:[%s8267 + $0x8] sm:$0xf]
  %v8271 = vld [vmem:[%s8267 + $0xc] sm:$0xf]
  %v8272 = vld [vmem:[%s8267 + $0x10] sm:$0xf]
  %v8273 = vld [vmem:[%s8267 + $0x14] sm:$0x1]
  %v8280 = vunpack.c.l.b16 %v8268
  %v8281 = vunpack.c.l.b16 %v8269
  %v8282 = vunpack.c.l.b16 %v8270
  %v8283 = vunpack.c.l.b16 %v8271
  %v8284 = vunpack.c.l.b16 %v8272
  %v8285 = vunpack.c.l.b16 %v8273
  %v8286 = vpack.c.b16 %v8281, %v8280
  %v8287 = vpack.c.b16 %v8283, %v8282
  %v8288 = vpack.c.b16 %v8285, %v8284
  %v8292 = vsel %vm6962, %v8288, 0
  %8294 = vmatprep.subr.bf16.mxu0 0
  %8295 = vmatpush1.bf16.msra.mxu0 %v8286
  %8296 = vmatprep.subr.bf16.mxu0 0
  %8297 = vmatpush1.bf16.msra.mxu0 %v8287
  %8298 = vmatprep.subr.bf16.mxu0 0
  %8299 = vmatpush1.bf16.msra.mxu0 %v8292
  %8300 = vmatprep.subr.bf16.mxu0 0
  %8301 = vmatpush1.bf16.msra.mxu0 0
  %8302 = vmatprep.subr.bf16.mxu0 0
  %8303 = vmatpush1.bf16.msra.mxu0 0
  %8304 = vmatprep.subr.bf16.mxu0 0
  %8305 = vmatpush1.bf16.msra.mxu0 0
  %8306 = vmatprep.subr.bf16.mxu0 0
  %8307 = vmatpush1.bf16.msra.mxu0 0
  %8308 = vmatprep.subr.bf16.mxu0 0
  %8309 = vmatpush1.bf16.msra.mxu0 0
  %8310 = vmatprep.subr.bf16.mxu0 0
  %8311 = vmatpush1.bf16.msra.mxu0 0
  %8312 = vmatprep.subr.bf16.mxu0 0
  %8313 = vmatpush1.bf16.msra.mxu0 0
  %8314 = vmatprep.subr.bf16.mxu0 0
  %8315 = vmatpush1.bf16.msra.mxu0 0
  %8316 = vmatprep.subr.bf16.mxu0 0
  %8317 = vmatpush1.bf16.msra.mxu0 0
  %8318 = vmatprep.subr.bf16.mxu0 0
  %8319 = vmatpush1.bf16.msra.mxu0 0
  %8320 = vmatprep.subr.bf16.mxu0 0
  %8321 = vmatpush1.bf16.msra.mxu0 0
  %8322 = vmatprep.subr.bf16.mxu0 0
  %8323 = vmatpush1.bf16.msra.mxu0 0
  %8324 = vmatprep.subr.bf16.mxu0 0
  %8325 = vmatpush1.bf16.msra.mxu0 0
  %8326 = vmatprep.mubr.bf16.mxu0 0
  %8327 = vmatmul.mubr.bf16.gmra.mrb[0].mxu0 %v6957
  %v8328 = vpop.f32.mrb[0].mxu0
  %v8329 = vadd.f32 0.0, %v8328
  %v8330 = vpop.f32.mrb[0].mxu0
  %v8331 = vpop.f32.mrb[0].mxu0
  %v8332 = vadd.f32 0.0, %v8331
  %v8333 = vpop.f32.mrb[0].mxu0
  %8334 = vmatprep.mubr.bf16.mxu0 0
  %8335 = vmatmul.mubr.bf16.gmra.mrb[0].mxu0 %v6960
  %v8336 = vpop.f32.mrb[0].mxu0
  %v8337 = vadd.f32 0.0, %v8336
  %v8338 = vpop.f32.mrb[0].mxu0
  %v8339 = vpop.f32.mrb[0].mxu0
  %v8340 = vadd.f32 0.0, %v8339
  %v8341 = vpop.f32.mrb[0].mxu0
  %8342 = vmatprep.mubr.bf16.mxu0 0
  %8343 = vmatmul.mubr.bf16.gmra.mrb[0].mxu0 %v7368
  %v8344 = vpop.f32.mrb[0].mxu0
  %v8345 = vadd.f32 0.0, %v8344
  %v8346 = vpop.f32.mrb[0].mxu0
  %v8347 = vpop.f32.mrb[0].mxu0
  %v8348 = vpop.f32.mrb[0].mxu0
  %8349 = vdwg.mxu0
  %v8356 = vunpack.c.l.b16 %v7901
  %v8357 = vunpack.c.l.b16 %v7902
  %v8358 = vunpack.c.l.b16 %v7903
  %v8359 = vunpack.c.l.b16 %v7904
  %v8360 = vunpack.c.l.b16 %v7905
  %v8361 = vunpack.c.l.b16 %v7906
  %v8362 = vpack.c.b16 %v8357, %v8356
  %v8363 = vpack.c.b16 %v8359, %v8358
  %v8364 = vpack.c.b16 %v8361, %v8360
  %v8368 = vsel %vm6962, %v8364, 0
  %8370 = vmatprep.subr.bf16.mxu0 0
  %8371 = vmatpush1.bf16.msra.mxu0 %v8362
  %8372 = vmatprep.subr.bf16.mxu0 0
  %8373 = vmatpush1.bf16.msra.mxu0 %v8363
  %8374 = vmatprep.subr.bf16.mxu0 0
  %8375 = vmatpush1.bf16.msra.mxu0 %v8368
  %8376 = vmatprep.subr.bf16.mxu0 0
  %8377 = vmatpush1.bf16.msra.mxu0 0
  %8378 = vmatprep.subr.bf16.mxu0 0
  %8379 = vmatpush1.bf16.msra.mxu0 0
  %8380 = vmatprep.subr.bf16.mxu0 0
  %8381 = vmatpush1.bf16.msra.mxu0 0
  %8382 = vmatprep.subr.bf16.mxu0 0
  %8383 = vmatpush1.bf16.msra.mxu0 0
  %8384 = vmatprep.subr.bf16.mxu0 0
  %8385 = vmatpush1.bf16.msra.mxu0 0
  %8386 = vmatprep.subr.bf16.mxu0 0
  %8387 = vmatpush1.bf16.msra.mxu0 0
  %8388 = vmatprep.subr.bf16.mxu0 0
  %8389 = vmatpush1.bf16.msra.mxu0 0
  %8390 = vmatprep.subr.bf16.mxu0 0
  %8391 = vmatpush1.bf16.msra.mxu0 0
  %8392 = vmatprep.subr.bf16.mxu0 0
  %8393 = vmatpush1.bf16.msra.mxu0 0
  %8394 = vmatprep.subr.bf16.mxu0 0
  %8395 = vmatpush1.bf16.msra.mxu0 0
  %8396 = vmatprep.subr.bf16.mxu0 0
  %8397 = vmatpush1.bf16.msra.mxu0 0
  %8398 = vmatprep.subr.bf16.mxu0 0
  %8399 = vmatpush1.bf16.msra.mxu0 0
  %8400 = vmatprep.subr.bf16.mxu0 0
  %8401 = vmatpush1.bf16.msra.mxu0 0
  %8402 = vmatprep.mubr.bf16.mxu0 0
  %8403 = vmatmul.mubr.bf16.gmra.mrb[0].mxu0 %v7447
  %v8404 = vpop.f32.mrb[0].mxu0
  %v8405 = vadd.f32 %v7969, %v8404
  %v8406 = vpop.f32.mrb[0].mxu0
  %v8407 = vpop.f32.mrb[0].mxu0
  %v8408 = vadd.f32 %v7972, %v8407
  %v8409 = vpop.f32.mrb[0].mxu0
  %8410 = vmatprep.mubr.bf16.mxu0 0
  %8411 = vmatmul.mubr.bf16.gmra.mrb[0].mxu0 %v7450
  %v8412 = vpop.f32.mrb[0].mxu0
  %v8413 = vadd.f32 %v7977, %v8412
  %v8414 = vpop.f32.mrb[0].mxu0
  %v8415 = vpop.f32.mrb[0].mxu0
  %v8416 = vadd.f32 %v7980, %v8415
  %v8417 = vpop.f32.mrb[0].mxu0
  %8418 = vmatprep.mubr.bf16.mxu0 0
  %8419 = vmatmul.mubr.bf16.gmra.mrb[0].mxu0 %v7453
  %v8420 = vpop.f32.mrb[0].mxu0
  %v8421 = vadd.f32 %v7985, %v8420
  %v8422 = vpop.f32.mrb[0].mxu0
  %v8423 = vpop.f32.mrb[0].mxu0
  %v8424 = vpop.f32.mrb[0].mxu0
  %8425 = vdwg.mxu0
  %v8432 = vunpack.c.l.b16 %v7991
  %v8433 = vunpack.c.l.b16 %v7992
  %v8434 = vunpack.c.l.b16 %v7993
  %v8435 = vunpack.c.l.b16 %v7994
  %v8436 = vunpack.c.l.b16 %v7995
  %v8437 = vunpack.c.l.b16 %v7996
  %v8438 = vpack.c.b16 %v8433, %v8432
  %v8439 = vpack.c.b16 %v8435, %v8434
  %v8440 = vpack.c.b16 %v8437, %v8436
  %v8444 = vsel %vm6962, %v8440, 0
  %8446 = vmatprep.subr.bf16.mxu0 0
  %8447 = vmatpush1.bf16.msra.mxu0 %v8438
  %8448 = vmatprep.subr.bf16.mxu0 0
  %8449 = vmatpush1.bf16.msra.mxu0 %v8439
  %8450 = vmatprep.subr.bf16.mxu0 0
  %8451 = vmatpush1.bf16.msra.mxu0 %v8444
  %8452 = vmatprep.subr.bf16.mxu0 0
  %8453 = vmatpush1.bf16.msra.mxu0 0
  %8454 = vmatprep.subr.bf16.mxu0 0
  %8455 = vmatpush1.bf16.msra.mxu0 0
  %8456 = vmatprep.subr.bf16.mxu0 0
  %8457 = vmatpush1.bf16.msra.mxu0 0
  %8458 = vmatprep.subr.bf16.mxu0 0
  %8459 = vmatpush1.bf16.msra.mxu0 0
  %8460 = vmatprep.subr.bf16.mxu0 0
  %8461 = vmatpush1.bf16.msra.mxu0 0
  %8462 = vmatprep.subr.bf16.mxu0 0
  %8463 = vmatpush1.bf16.msra.mxu0 0
  %8464 = vmatprep.subr.bf16.mxu0 0
  %8465 = vmatpush1.bf16.msra.mxu0 0
  %8466 = vmatprep.subr.bf16.mxu0 0
  %8467 = vmatpush1.bf16.msra.mxu0 0
  %8468 = vmatprep.subr.bf16.mxu0 0
  %8469 = vmatpush1.bf16.msra.mxu0 0
  %8470 = vmatprep.subr.bf16.mxu0 0
  %8471 = vmatpush1.bf16.msra.mxu0 0
  %8472 = vmatprep.subr.bf16.mxu0 0
  %8473 = vmatpush1.bf16.msra.mxu0 0
  %8474 = vmatprep.subr.bf16.mxu0 0
  %8475 = vmatpush1.bf16.msra.mxu0 0
  %8476 = vmatprep.subr.bf16.mxu0 0
  %8477 = vmatpush1.bf16.msra.mxu0 0
  %8478 = vmatprep.mubr.bf16.mxu0 0
  %8479 = vmatmul.mubr.bf16.gmra.mrb[0].mxu0 %v7532
  %v8480 = vpop.f32.mrb[0].mxu0
  %v8481 = vadd.f32 %v8059, %v8480
  %v8482 = vpop.f32.mrb[0].mxu0
  %v8483 = vpop.f32.mrb[0].mxu0
  %v8484 = vadd.f32 %v8062, %v8483
  %v8485 = vpop.f32.mrb[0].mxu0
  %8486 = vmatprep.mubr.bf16.mxu0 0
  %8487 = vmatmul.mubr.bf16.gmra.mrb[0].mxu0 %v7535
  %v8488 = vpop.f32.mrb[0].mxu0
  %v8489 = vadd.f32 %v8067, %v8488
  %v8490 = vpop.f32.mrb[0].mxu0
  %v8491 = vpop.f32.mrb[0].mxu0
  %v8492 = vadd.f32 %v8070, %v8491
  %v8493 = vpop.f32.mrb[0].mxu0
  %8494 = vmatprep.mubr.bf16.mxu0 0
  %8495 = vmatmul.mubr.bf16.gmra.mrb[0].mxu0 %v7538
  %v8496 = vpop.f32.mrb[0].mxu0
  %v8497 = vadd.f32 %v8075, %v8496
  %v8498 = vpop.f32.mrb[0].mxu0
  %v8499 = vpop.f32.mrb[0].mxu0
  %v8500 = vpop.f32.mrb[0].mxu0
  %8501 = vdwg.mxu0
  %v8508 = vunpack.c.l.b16 %v8081
  %v8509 = vunpack.c.l.b16 %v8082
  %v8510 = vunpack.c.l.b16 %v8083
  %v8511 = vunpack.c.l.b16 %v8084
  %v8512 = vunpack.c.l.b16 %v8085
  %v8513 = vunpack.c.l.b16 %v8086
  %v8514 = vpack.c.b16 %v8509, %v8508
  %v8515 = vpack.c.b16 %v8511, %v8510
  %v8516 = vpack.c.b16 %v8513, %v8512
  %v8520 = vsel %vm6962, %v8516, 0
  %8522 = vmatprep.subr.bf16.mxu0 0
  %8523 = vmatpush1.bf16.msra.mxu0 %v8514
  %8524 = vmatprep.subr.bf16.mxu0 0
  %8525 = vmatpush1.bf16.msra.mxu0 %v8515
  %8526 = vmatprep.subr.bf16.mxu0 0
  %8527 = vmatpush1.bf16.msra.mxu0 %v8520
  %8528 = vmatprep.subr.bf16.mxu0 0
  %8529 = vmatpush1.bf16.msra.mxu0 0
  %8530 = vmatprep.subr.bf16.mxu0 0
  %8531 = vmatpush1.bf16.msra.mxu0 0
  %8532 = vmatprep.subr.bf16.mxu0 0
  %8533 = vmatpush1.bf16.msra.mxu0 0
  %8534 = vmatprep.subr.bf16.mxu0 0
  %8535 = vmatpush1.bf16.msra.mxu0 0
  %8536 = vmatprep.subr.bf16.mxu0 0
  %8537 = vmatpush1.bf16.msra.mxu0 0
  %8538 = vmatprep.subr.bf16.mxu0 0
  %8539 = vmatpush1.bf16.msra.mxu0 0
  %8540 = vmatprep.subr.bf16.mxu0 0
  %8541 = vmatpush1.bf16.msra.mxu0 0
  %8542 = vmatprep.subr.bf16.mxu0 0
  %8543 = vmatpush1.bf16.msra.mxu0 0
  %8544 = vmatprep.subr.bf16.mxu0 0
  %8545 = vmatpush1.bf16.msra.mxu0 0
  %8546 = vmatprep.subr.bf16.mxu0 0
  %8547 = vmatpush1.bf16.msra.mxu0 0
  %8548 = vmatprep.subr.bf16.mxu0 0
  %8549 = vmatpush1.bf16.msra.mxu0 0
  %8550 = vmatprep.subr.bf16.mxu0 0
  %8551 = vmatpush1.bf16.msra.mxu0 0
  %8552 = vmatprep.subr.bf16.mxu0 0
  %8553 = vmatpush1.bf16.msra.mxu0 0
  %8554 = vmatprep.mubr.bf16.mxu0 0
  %8555 = vmatmul.mubr.bf16.gmra.mrb[0].mxu0 %v7625
  %v8556 = vpop.f32.mrb[0].mxu0
  %v8557 = vadd.f32 %v8149, %v8556
  %v8558 = vpop.f32.mrb[0].mxu0
  %v8559 = vpop.f32.mrb[0].mxu0
  %v8560 = vadd.f32 %v8152, %v8559
  %v8561 = vpop.f32.mrb[0].mxu0
  %8562 = vmatprep.mubr.bf16.mxu0 0
  %8563 = vmatmul.mubr.bf16.gmra.mrb[0].mxu0 %v7628
  %v8564 = vpop.f32.mrb[0].mxu0
  %v8565 = vadd.f32 %v8157, %v8564
  %v8566 = vpop.f32.mrb[0].mxu0
  %v8567 = vpop.f32.mrb[0].mxu0
  %v8568 = vadd.f32 %v8160, %v8567
  %v8569 = vpop.f32.mrb[0].mxu0
  %8570 = vmatprep.mubr.bf16.mxu0 0
  %8571 = vmatmul.mubr.bf16.gmra.mrb[0].mxu0 %v7631
  %v8572 = vpop.f32.mrb[0].mxu0
  %v8573 = vadd.f32 %v8165, %v8572
  %v8574 = vpop.f32.mrb[0].mxu0
  %v8575 = vpop.f32.mrb[0].mxu0
  %v8576 = vpop.f32.mrb[0].mxu0
  %8577 = vdwg.mxu0
  %v8584 = vunpack.c.l.b16 %v8171
  %v8585 = vunpack.c.l.b16 %v8172
  %v8586 = vunpack.c.l.b16 %v8173
  %v8587 = vunpack.c.l.b16 %v8174
  %v8588 = vunpack.c.l.b16 %v8175
  %v8589 = vunpack.c.l.b16 %v8176
  %v8590 = vpack.c.b16 %v8585, %v8584
  %v8591 = vpack.c.b16 %v8587, %v8586
  %v8592 = vpack.c.b16 %v8589, %v8588
  %v8596 = vsel %vm6962, %v8592, 0
  %8598 = vmatprep.subr.bf16.mxu0 0
  %8599 = vmatpush1.bf16.msra.mxu0 %v8590
  %8600 = vmatprep.subr.bf16.mxu0 0
  %8601 = vmatpush1.bf16.msra.mxu0 %v8591
  %8602 = vmatprep.subr.bf16.mxu0 0
  %8603 = vmatpush1.bf16.msra.mxu0 %v8596
  %8604 = vmatprep.subr.bf16.mxu0 0
  %8605 = vmatpush1.bf16.msra.mxu0 0
  %8606 = vmatprep.subr.bf16.mxu0 0
  %8607 = vmatpush1.bf16.msra.mxu0 0
  %8608 = vmatprep.subr.bf16.mxu0 0
  %8609 = vmatpush1.bf16.msra.mxu0 0
  %8610 = vmatprep.subr.bf16.mxu0 0
  %8611 = vmatpush1.bf16.msra.mxu0 0
  %8612 = vmatprep.subr.bf16.mxu0 0
  %8613 = vmatpush1.bf16.msra.mxu0 0
  %8614 = vmatprep.subr.bf16.mxu0 0
  %8615 = vmatpush1.bf16.msra.mxu0 0
  %8616 = vmatprep.subr.bf16.mxu0 0
  %8617 = vmatpush1.bf16.msra.mxu0 0
  %8618 = vmatprep.subr.bf16.mxu0 0
  %8619 = vmatpush1.bf16.msra.mxu0 0
  %8620 = vmatprep.subr.bf16.mxu0 0
  %8621 = vmatpush1.bf16.msra.mxu0 0
  %8622 = vmatprep.subr.bf16.mxu0 0
  %8623 = vmatpush1.bf16.msra.mxu0 0
  %8624 = vmatprep.subr.bf16.mxu0 0
  %8625 = vmatpush1.bf16.msra.mxu0 0
  %8626 = vmatprep.subr.bf16.mxu0 0
  %8627 = vmatpush1.bf16.msra.mxu0 0
  %8628 = vmatprep.subr.bf16.mxu0 0
  %8629 = vmatpush1.bf16.msra.mxu0 0
  %8630 = vmatprep.mubr.bf16.mxu0 0
  %8631 = vmatmul.mubr.bf16.gmra.mrb[0].mxu0 %v7718
  %v8632 = vpop.f32.mrb[0].mxu0
  %v8633 = vadd.f32 %v8239, %v8632
  %v8634 = vpop.f32.mrb[0].mxu0
  %v8635 = vpop.f32.mrb[0].mxu0
  %v8636 = vadd.f32 %v8242, %v8635
  %v8637 = vpop.f32.mrb[0].mxu0
  %8638 = vmatprep.mubr.bf16.mxu0 0
  %8639 = vmatmul.mubr.bf16.gmra.mrb[0].mxu0 %v7721
  %v8640 = vpop.f32.mrb[0].mxu0
  %v8641 = vadd.f32 %v8247, %v8640
  %v8642 = vpop.f32.mrb[0].mxu0
  %v8643 = vpop.f32.mrb[0].mxu0
  %v8644 = vadd.f32 %v8250, %v8643
  %v8645 = vpop.f32.mrb[0].mxu0
  %8646 = vmatprep.mubr.bf16.mxu0 0
  %8647 = vmatmul.mubr.bf16.gmra.mrb[0].mxu0 %v7724
  %v8648 = vpop.f32.mrb[0].mxu0
  %v8649 = vadd.f32 %v8255, %v8648
  %v8650 = vpop.f32.mrb[0].mxu0
  %v8651 = vpop.f32.mrb[0].mxu0
  %v8652 = vpop.f32.mrb[0].mxu0
  %8653 = vdwg.mxu0
  %v8660 = vunpack.c.l.b16 %v8261
  %v8661 = vunpack.c.l.b16 %v8262
  %v8662 = vunpack.c.l.b16 %v8263
  %v8663 = vunpack.c.l.b16 %v8264
  %v8664 = vunpack.c.l.b16 %v8265
  %v8665 = vunpack.c.l.b16 %v8266
  %v8666 = vpack.c.b16 %v8661, %v8660
  %v8667 = vpack.c.b16 %v8663, %v8662
  %v8668 = vpack.c.b16 %v8665, %v8664
  %v8672 = vsel %vm6962, %v8668, 0
  %8674 = vmatprep.subr.bf16.mxu0 0
  %8675 = vmatpush1.bf16.msra.mxu0 %v8666
  %8676 = vmatprep.subr.bf16.mxu0 0
  %8677 = vmatpush1.bf16.msra.mxu0 %v8667
  %8678 = vmatprep.subr.bf16.mxu0 0
  %8679 = vmatpush1.bf16.msra.mxu0 %v8672
  %8680 = vmatprep.subr.bf16.mxu0 0
  %8681 = vmatpush1.bf16.msra.mxu0 0
  %8682 = vmatprep.subr.bf16.mxu0 0
  %8683 = vmatpush1.bf16.msra.mxu0 0
  %8684 = vmatprep.subr.bf16.mxu0 0
  %8685 = vmatpush1.bf16.msra.mxu0 0
  %8686 = vmatprep.subr.bf16.mxu0 0
  %8687 = vmatpush1.bf16.msra.mxu0 0
  %8688 = vmatprep.subr.bf16.mxu0 0
  %8689 = vmatpush1.bf16.msra.mxu0 0
  %8690 = vmatprep.subr.bf16.mxu0 0
  %8691 = vmatpush1.bf16.msra.mxu0 0
  %8692 = vmatprep.subr.bf16.mxu0 0
  %8693 = vmatpush1.bf16.msra.mxu0 0
  %8694 = vmatprep.subr.bf16.mxu0 0
  %8695 = vmatpush1.bf16.msra.mxu0 0
  %8696 = vmatprep.subr.bf16.mxu0 0
  %8697 = vmatpush1.bf16.msra.mxu0 0
  %8698 = vmatprep.subr.bf16.mxu0 0
  %8699 = vmatpush1.bf16.msra.mxu0 0
  %8700 = vmatprep.subr.bf16.mxu0 0
  %8701 = vmatpush1.bf16.msra.mxu0 0
  %8702 = vmatprep.subr.bf16.mxu0 0
  %8703 = vmatpush1.bf16.msra.mxu0 0
  %8704 = vmatprep.subr.bf16.mxu0 0
  %8705 = vmatpush1.bf16.msra.mxu0 0
  %8706 = vmatprep.mubr.bf16.mxu0 0
  %8707 = vmatmul.mubr.bf16.gmra.mrb[0].mxu0 %v7450
  %v8708 = vpop.f32.mrb[0].mxu0
  %v8709 = vadd.f32 %v8329, %v8708
  %v8710 = vpop.f32.mrb[0].mxu0
  %v8711 = vpop.f32.mrb[0].mxu0
  %v8712 = vadd.f32 %v8332, %v8711
  %v8713 = vpop.f32.mrb[0].mxu0
  %8714 = vmatprep.mubr.bf16.mxu0 0
  %8715 = vmatmul.mubr.bf16.gmra.mrb[0].mxu0 %v7453
  %v8716 = vpop.f32.mrb[0].mxu0
  %v8717 = vadd.f32 %v8337, %v8716
  %v8718 = vpop.f32.mrb[0].mxu0
  %v8719 = vpop.f32.mrb[0].mxu0
  %v8720 = vadd.f32 %v8340, %v8719
  %v8721 = vpop.f32.mrb[0].mxu0
  %8722 = vmatprep.mubr.bf16.mxu0 0
  %8723 = vmatmul.mubr.bf16.gmra.mrb[0].mxu0 %v7803
  %v8724 = vpop.f32.mrb[0].mxu0
  %v8725 = vadd.f32 %v8345, %v8724
  %v8726 = vpop.f32.mrb[0].mxu0
  %v8727 = vpop.f32.mrb[0].mxu0
  %v8728 = vpop.f32.mrb[0].mxu0
  %8729 = vdwg.mxu0
  %v8730 = vadd.f32 %v8405, %v8481
  %v8731 = vadd.f32 %v8408, %v8484
  %v8732 = vadd.f32 %v8413, %v8489
  %v8733 = vadd.f32 %v8416, %v8492
  %v8734 = vadd.f32 %v8421, %v8497
  %v8735 = vadd.f32 %v8557, %v8633
  %v8736 = vadd.f32 %v8560, %v8636
  %v8737 = vadd.f32 %v8565, %v8641
  %v8738 = vadd.f32 %v8568, %v8644
  %v8739 = vadd.f32 %v8573, %v8649
  %v8740 = vadd.f32 %v8730, %v8735
  %v8741 = vadd.f32 %v8731, %v8736
  %v8742 = vadd.f32 %v8732, %v8737
  %v8743 = vadd.f32 %v8733, %v8738
  %v8744 = vadd.f32 %v8734, %v8739
  %v8745 = vadd.f32 %v8740, %v8709
  %v8746 = vadd.f32 %v8741, %v8712
  %v8747 = vadd.f32 %v8742, %v8717
  %v8748 = vadd.f32 %v8743, %v8720
  %v8749 = vadd.f32 %v8744, %v8725
  %v8750 = vadd.f32 %v8745, %v7888
  %v8751 = vadd.f32 %v8746, %v7888
  %v8752 = vadd.f32 %v8747, %v7888
  %v8753 = vadd.f32 %v8748, %v7888
  %v8754 = vadd.f32 %v8749, %v7888
  %v8755 = vmax.f32 %v8750, 0.0
  %v8756 = vmax.f32 %v8751, 0.0
  %v8757 = vmax.f32 %v8752, 0.0
  %v8758 = vmax.f32 %v8753, 0.0
  %v8759 = vmax.f32 %v8754, 0.0
  %v8760 = vmax.f32 %v7895, %v8755
  %v8761 = vmax.f32 %v7896, %v8756
  %v8762 = vmax.f32 %v7897, %v8757
  %v8763 = vmax.f32 %v7898, %v8758
  %v8764 = vmax.f32 %v7899, %v8759
  %8765 = vmatprep.subr.bf16.mxu0 0
  %8766 = vmatpush1.bf16.msra.mxu0 %v6947
  %8767 = vmatprep.subr.bf16.mxu0 0
  %8768 = vmatpush1.bf16.msra.mxu0 %v6948
  %8769 = vmatprep.subr.bf16.mxu0 0
  %8770 = vmatpush1.bf16.msra.mxu0 %v6964
  %8771 = vmatprep.subr.bf16.mxu0 0
  %8772 = vmatpush1.bf16.msra.mxu0 0
  %8773 = vmatprep.subr.bf16.mxu0 0
  %8774 = vmatpush1.bf16.msra.mxu0 0
  %8775 = vmatprep.subr.bf16.mxu0 0
  %8776 = vmatpush1.bf16.msra.mxu0 0
  %8777 = vmatprep.subr.bf16.mxu0 0
  %8778 = vmatpush1.bf16.msra.mxu0 0
  %8779 = vmatprep.subr.bf16.mxu0 0
  %8780 = vmatpush1.bf16.msra.mxu0 0
  %8781 = vmatprep.subr.bf16.mxu0 0
  %8782 = vmatpush1.bf16.msra.mxu0 0
  %8783 = vmatprep.subr.bf16.mxu0 0
  %8784 = vmatpush1.bf16.msra.mxu0 0
  %8785 = vmatprep.subr.bf16.mxu0 0
  %8786 = vmatpush1.bf16.msra.mxu0 0
  %8787 = vmatprep.subr.bf16.mxu0 0
  %8788 = vmatpush1.bf16.msra.mxu0 0
  %8789 = vmatprep.subr.bf16.mxu0 0
  %8790 = vmatpush1.bf16.msra.mxu0 0
  %8791 = vmatprep.subr.bf16.mxu0 0
  %8792 = vmatpush1.bf16.msra.mxu0 0
  %8793 = vmatprep.subr.bf16.mxu0 0
  %8794 = vmatpush1.bf16.msra.mxu0 0
  %8795 = vmatprep.subr.bf16.mxu0 0
  %8796 = vmatpush1.bf16.msra.mxu0 0
  %8797 = vmatprep.mubr.bf16.mxu0 0
  %8798 = vmatmul.mubr.bf16.gmra.mrb[0].mxu0 %v7054
  %v8799 = vpop.f32.mrb[0].mxu0
  %v8800 = vadd.f32 0.0, %v8799
  %v8801 = vpop.f32.mrb[0].mxu0
  %v8802 = vpop.f32.mrb[0].mxu0
  %v8803 = vadd.f32 0.0, %v8802
  %v8804 = vpop.f32.mrb[0].mxu0
  %8805 = vmatprep.mubr.bf16.mxu0 0
  %8806 = vmatmul.mubr.bf16.gmra.mrb[0].mxu0 %v7057
  %v8807 = vpop.f32.mrb[0].mxu0
  %v8808 = vadd.f32 0.0, %v8807
  %v8809 = vpop.f32.mrb[0].mxu0
  %v8810 = vpop.f32.mrb[0].mxu0
  %v8811 = vadd.f32 0.0, %v8810
  %v8812 = vpop.f32.mrb[0].mxu0
  %8813 = vmatprep.mubr.bf16.mxu0 0
  %8814 = vmatmul.mubr.bf16.gmra.mrb[0].mxu0 %v7060
  %v8815 = vpop.f32.mrb[0].mxu0
  %v8816 = vadd.f32 0.0, %v8815
  %v8817 = vpop.f32.mrb[0].mxu0
  %v8818 = vpop.f32.mrb[0].mxu0
  %v8819 = vpop.f32.mrb[0].mxu0
  %8820 = vdwg.mxu0
  %8821 = vmatprep.subr.bf16.mxu0 0
  %8822 = vmatpush1.bf16.msra.mxu0 %v7048
  %8823 = vmatprep.subr.bf16.mxu0 0
  %8824 = vmatpush1.bf16.msra.mxu0 %v7049
  %8825 = vmatprep.subr.bf16.mxu0 0
  %8826 = vmatpush1.bf16.msra.mxu0 %v7063
  %8827 = vmatprep.subr.bf16.mxu0 0
  %8828 = vmatpush1.bf16.msra.mxu0 0
  %8829 = vmatprep.subr.bf16.mxu0 0
  %8830 = vmatpush1.bf16.msra.mxu0 0
  %8831 = vmatprep.subr.bf16.mxu0 0
  %8832 = vmatpush1.bf16.msra.mxu0 0
  %8833 = vmatprep.subr.bf16.mxu0 0
  %8834 = vmatpush1.bf16.msra.mxu0 0
  %8835 = vmatprep.subr.bf16.mxu0 0
  %8836 = vmatpush1.bf16.msra.mxu0 0
  %8837 = vmatprep.subr.bf16.mxu0 0
  %8838 = vmatpush1.bf16.msra.mxu0 0
  %8839 = vmatprep.subr.bf16.mxu0 0
  %8840 = vmatpush1.bf16.msra.mxu0 0
  %8841 = vmatprep.subr.bf16.mxu0 0
  %8842 = vmatpush1.bf16.msra.mxu0 0
  %8843 = vmatprep.subr.bf16.mxu0 0
  %8844 = vmatpush1.bf16.msra.mxu0 0
  %8845 = vmatprep.subr.bf16.mxu0 0
  %8846 = vmatpush1.bf16.msra.mxu0 0
  %8847 = vmatprep.subr.bf16.mxu0 0
  %8848 = vmatpush1.bf16.msra.mxu0 0
  %8849 = vmatprep.subr.bf16.mxu0 0
  %8850 = vmatpush1.bf16.msra.mxu0 0
  %8851 = vmatprep.subr.bf16.mxu0 0
  %8852 = vmatpush1.bf16.msra.mxu0 0
  %8853 = vmatprep.mubr.bf16.mxu0 0
  %8854 = vmatmul.mubr.bf16.gmra.mrb[0].mxu0 %v7162
  %v8855 = vpop.f32.mrb[0].mxu0
  %v8856 = vadd.f32 0.0, %v8855
  %v8857 = vpop.f32.mrb[0].mxu0
  %v8858 = vpop.f32.mrb[0].mxu0
  %v8859 = vadd.f32 0.0, %v8858
  %v8860 = vpop.f32.mrb[0].mxu0
  %8861 = vmatprep.mubr.bf16.mxu0 0
  %8862 = vmatmul.mubr.bf16.gmra.mrb[0].mxu0 %v7165
  %v8863 = vpop.f32.mrb[0].mxu0
  %v8864 = vadd.f32 0.0, %v8863
  %v8865 = vpop.f32.mrb[0].mxu0
  %v8866 = vpop.f32.mrb[0].mxu0
  %v8867 = vadd.f32 0.0, %v8866
  %v8868 = vpop.f32.mrb[0].mxu0
  %8869 = vmatprep.mubr.bf16.mxu0 0
  %8870 = vmatmul.mubr.bf16.gmra.mrb[0].mxu0 %v7168
  %v8871 = vpop.f32.mrb[0].mxu0
  %v8872 = vadd.f32 0.0, %v8871
  %v8873 = vpop.f32.mrb[0].mxu0
  %v8874 = vpop.f32.mrb[0].mxu0
  %v8875 = vpop.f32.mrb[0].mxu0
  %8876 = vdwg.mxu0
  %8877 = vmatprep.subr.bf16.mxu0 0
  %8878 = vmatpush1.bf16.msra.mxu0 %v7156
  %8879 = vmatprep.subr.bf16.mxu0 0
  %8880 = vmatpush1.bf16.msra.mxu0 %v7157
  %8881 = vmatprep.subr.bf16.mxu0 0
  %8882 = vmatpush1.bf16.msra.mxu0 %v7171
  %8883 = vmatprep.subr.bf16.mxu0 0
  %8884 = vmatpush1.bf16.msra.mxu0 0
  %8885 = vmatprep.subr.bf16.mxu0 0
  %8886 = vmatpush1.bf16.msra.mxu0 0
  %8887 = vmatprep.subr.bf16.mxu0 0
  %8888 = vmatpush1.bf16.msra.mxu0 0
  %8889 = vmatprep.subr.bf16.mxu0 0
  %8890 = vmatpush1.bf16.msra.mxu0 0
  %8891 = vmatprep.subr.bf16.mxu0 0
  %8892 = vmatpush1.bf16.msra.mxu0 0
  %8893 = vmatprep.subr.bf16.mxu0 0
  %8894 = vmatpush1.bf16.msra.mxu0 0
  %8895 = vmatprep.subr.bf16.mxu0 0
  %8896 = vmatpush1.bf16.msra.mxu0 0
  %8897 = vmatprep.subr.bf16.mxu0 0
  %8898 = vmatpush1.bf16.msra.mxu0 0
  %8899 = vmatprep.subr.bf16.mxu0 0
  %8900 = vmatpush1.bf16.msra.mxu0 0
  %8901 = vmatprep.subr.bf16.mxu0 0
  %8902 = vmatpush1.bf16.msra.mxu0 0
  %8903 = vmatprep.subr.bf16.mxu0 0
  %8904 = vmatpush1.bf16.msra.mxu0 0
  %8905 = vmatprep.subr.bf16.mxu0 0
  %8906 = vmatpush1.bf16.msra.mxu0 0
  %8907 = vmatprep.subr.bf16.mxu0 0
  %8908 = vmatpush1.bf16.msra.mxu0 0
  %8909 = vmatprep.mubr.bf16.mxu0 0
  %8910 = vmatmul.mubr.bf16.gmra.mrb[0].mxu0 %v7269
  %v8911 = vpop.f32.mrb[0].mxu0
  %v8912 = vadd.f32 0.0, %v8911
  %v8913 = vpop.f32.mrb[0].mxu0
  %v8914 = vpop.f32.mrb[0].mxu0
  %v8915 = vadd.f32 0.0, %v8914
  %v8916 = vpop.f32.mrb[0].mxu0
  %8917 = vmatprep.mubr.bf16.mxu0 0
  %8918 = vmatmul.mubr.bf16.gmra.mrb[0].mxu0 %v7272
  %v8919 = vpop.f32.mrb[0].mxu0
  %v8920 = vadd.f32 0.0, %v8919
  %v8921 = vpop.f32.mrb[0].mxu0
  %v8922 = vpop.f32.mrb[0].mxu0
  %v8923 = vadd.f32 0.0, %v8922
  %v8924 = vpop.f32.mrb[0].mxu0
  %8925 = vmatprep.mubr.bf16.mxu0 0
  %8926 = vmatmul.mubr.bf16.gmra.mrb[0].mxu0 %v7275
  %v8927 = vpop.f32.mrb[0].mxu0
  %v8928 = vadd.f32 0.0, %v8927
  %v8929 = vpop.f32.mrb[0].mxu0
  %v8930 = vpop.f32.mrb[0].mxu0
  %v8931 = vpop.f32.mrb[0].mxu0
  %8932 = vdwg.mxu0
  %8933 = vmatprep.subr.bf16.mxu0 0
  %8934 = vmatpush1.bf16.msra.mxu0 %v7263
  %8935 = vmatprep.subr.bf16.mxu0 0
  %8936 = vmatpush1.bf16.msra.mxu0 %v7264
  %8937 = vmatprep.subr.bf16.mxu0 0
  %8938 = vmatpush1.bf16.msra.mxu0 %v7278
  %8939 = vmatprep.subr.bf16.mxu0 0
  %8940 = vmatpush1.bf16.msra.mxu0 0
  %8941 = vmatprep.subr.bf16.mxu0 0
  %8942 = vmatpush1.bf16.msra.mxu0 0
  %8943 = vmatprep.subr.bf16.mxu0 0
  %8944 = vmatpush1.bf16.msra.mxu0 0
  %8945 = vmatprep.subr.bf16.mxu0 0
  %8946 = vmatpush1.bf16.msra.mxu0 0
  %8947 = vmatprep.subr.bf16.mxu0 0
  %8948 = vmatpush1.bf16.msra.mxu0 0
  %8949 = vmatprep.subr.bf16.mxu0 0
  %8950 = vmatpush1.bf16.msra.mxu0 0
  %8951 = vmatprep.subr.bf16.mxu0 0
  %8952 = vmatpush1.bf16.msra.mxu0 0
  %8953 = vmatprep.subr.bf16.mxu0 0
  %8954 = vmatpush1.bf16.msra.mxu0 0
  %8955 = vmatprep.subr.bf16.mxu0 0
  %8956 = vmatpush1.bf16.msra.mxu0 0
  %8957 = vmatprep.subr.bf16.mxu0 0
  %8958 = vmatpush1.bf16.msra.mxu0 0
  %8959 = vmatprep.subr.bf16.mxu0 0
  %8960 = vmatpush1.bf16.msra.mxu0 0
  %8961 = vmatprep.subr.bf16.mxu0 0
  %8962 = vmatpush1.bf16.msra.mxu0 0
  %8963 = vmatprep.subr.bf16.mxu0 0
  %8964 = vmatpush1.bf16.msra.mxu0 0
  %8965 = vmatprep.mubr.bf16.mxu0 0
  %8966 = vmatmul.mubr.bf16.gmra.mrb[0].mxu0 %v6957
  %v8967 = vpop.f32.mrb[0].mxu0
  %v8968 = vadd.f32 0.0, %v8967
  %v8969 = vpop.f32.mrb[0].mxu0
  %v8970 = vpop.f32.mrb[0].mxu0
  %v8971 = vadd.f32 0.0, %v8970
  %v8972 = vpop.f32.mrb[0].mxu0
  %8973 = vmatprep.mubr.bf16.mxu0 0
  %8974 = vmatmul.mubr.bf16.gmra.mrb[0].mxu0 %v6960
  %v8975 = vpop.f32.mrb[0].mxu0
  %v8976 = vadd.f32 0.0, %v8975
  %v8977 = vpop.f32.mrb[0].mxu0
  %v8978 = vpop.f32.mrb[0].mxu0
  %v8979 = vadd.f32 0.0, %v8978
  %v8980 = vpop.f32.mrb[0].mxu0
  %8981 = vmatprep.mubr.bf16.mxu0 0
  %8982 = vmatmul.mubr.bf16.gmra.mrb[0].mxu0 %v7368
  %v8983 = vpop.f32.mrb[0].mxu0
  %v8984 = vadd.f32 0.0, %v8983
  %v8985 = vpop.f32.mrb[0].mxu0
  %v8986 = vpop.f32.mrb[0].mxu0
  %v8987 = vpop.f32.mrb[0].mxu0
  %8988 = vdwg.mxu0
  %v8990 = vsel %vm6952, %v6921, 0
  %8992 = vmatprep.subr.bf16.mxu0 0
  %8993 = vmatpush1.bf16.msra.mxu0 %v7362
  %8994 = vmatprep.subr.bf16.mxu0 0
  %8995 = vmatpush1.bf16.msra.mxu0 %v7363
  %8996 = vmatprep.subr.bf16.mxu0 0
  %8997 = vmatpush1.bf16.msra.mxu0 %v7371
  %8998 = vmatprep.subr.bf16.mxu0 0
  %8999 = vmatpush1.bf16.msra.mxu0 0
  %9000 = vmatprep.subr.bf16.mxu0 0
  %9001 = vmatpush1.bf16.msra.mxu0 0
  %9002 = vmatprep.subr.bf16.mxu0 0
  %9003 = vmatpush1.bf16.msra.mxu0 0
  %9004 = vmatprep.subr.bf16.mxu0 0
  %9005 = vmatpush1.bf16.msra.mxu0 0
  %9006 = vmatprep.subr.bf16.mxu0 0
  %9007 = vmatpush1.bf16.msra.mxu0 0
  %9008 = vmatprep.subr.bf16.mxu0 0
  %9009 = vmatpush1.bf16.msra.mxu0 0
  %9010 = vmatprep.subr.bf16.mxu0 0
  %9011 = vmatpush1.bf16.msra.mxu0 0
  %9012 = vmatprep.subr.bf16.mxu0 0
  %9013 = vmatpush1.bf16.msra.mxu0 0
  %9014 = vmatprep.subr.bf16.mxu0 0
  %9015 = vmatpush1.bf16.msra.mxu0 0
  %9016 = vmatprep.subr.bf16.mxu0 0
  %9017 = vmatpush1.bf16.msra.mxu0 0
  %9018 = vmatprep.subr.bf16.mxu0 0
  %9019 = vmatpush1.bf16.msra.mxu0 0
  %9020 = vmatprep.subr.bf16.mxu0 0
  %9021 = vmatpush1.bf16.msra.mxu0 0
  %9022 = vmatprep.subr.bf16.mxu0 0
  %9023 = vmatpush1.bf16.msra.mxu0 0
  %9024 = vmatprep.mubr.bf16.mxu0 0
  %9025 = vmatmul.mubr.bf16.gmra.mrb[0].mxu0 %v7057
  %v9026 = vpop.f32.mrb[0].mxu0
  %v9027 = vadd.f32 0.0, %v9026
  %v9028 = vpop.f32.mrb[0].mxu0
  %v9029 = vpop.f32.mrb[0].mxu0
  %v9030 = vadd.f32 0.0, %v9029
  %v9031 = vpop.f32.mrb[0].mxu0
  %9032 = vmatprep.mubr.bf16.mxu0 0
  %9033 = vmatmul.mubr.bf16.gmra.mrb[0].mxu0 %v7060
  %v9034 = vpop.f32.mrb[0].mxu0
  %v9035 = vadd.f32 0.0, %v9034
  %v9036 = vpop.f32.mrb[0].mxu0
  %v9037 = vpop.f32.mrb[0].mxu0
  %v9038 = vadd.f32 0.0, %v9037
  %v9039 = vpop.f32.mrb[0].mxu0
  %9040 = vmatprep.mubr.bf16.mxu0 0
  %9041 = vmatmul.mubr.bf16.gmra.mrb[0].mxu0 %v8990
  %v9042 = vpop.f32.mrb[0].mxu0
  %v9043 = vadd.f32 0.0, %v9042
  %v9044 = vpop.f32.mrb[0].mxu0
  %v9045 = vpop.f32.mrb[0].mxu0
  %v9046 = vpop.f32.mrb[0].mxu0
  %9047 = vdwg.mxu0
  %9048 = vmatprep.subr.bf16.mxu0 0
  %9049 = vmatpush1.bf16.msra.mxu0 %v7441
  %9050 = vmatprep.subr.bf16.mxu0 0
  %9051 = vmatpush1.bf16.msra.mxu0 %v7442
  %9052 = vmatprep.subr.bf16.mxu0 0
  %9053 = vmatpush1.bf16.msra.mxu0 %v7456
  %9054 = vmatprep.subr.bf16.mxu0 0
  %9055 = vmatpush1.bf16.msra.mxu0 0
  %9056 = vmatprep.subr.bf16.mxu0 0
  %9057 = vmatpush1.bf16.msra.mxu0 0
  %9058 = vmatprep.subr.bf16.mxu0 0
  %9059 = vmatpush1.bf16.msra.mxu0 0
  %9060 = vmatprep.subr.bf16.mxu0 0
  %9061 = vmatpush1.bf16.msra.mxu0 0
  %9062 = vmatprep.subr.bf16.mxu0 0
  %9063 = vmatpush1.bf16.msra.mxu0 0
  %9064 = vmatprep.subr.bf16.mxu0 0
  %9065 = vmatpush1.bf16.msra.mxu0 0
  %9066 = vmatprep.subr.bf16.mxu0 0
  %9067 = vmatpush1.bf16.msra.mxu0 0
  %9068 = vmatprep.subr.bf16.mxu0 0
  %9069 = vmatpush1.bf16.msra.mxu0 0
  %9070 = vmatprep.subr.bf16.mxu0 0
  %9071 = vmatpush1.bf16.msra.mxu0 0
  %9072 = vmatprep.subr.bf16.mxu0 0
  %9073 = vmatpush1.bf16.msra.mxu0 0
  %9074 = vmatprep.subr.bf16.mxu0 0
  %9075 = vmatpush1.bf16.msra.mxu0 0
  %9076 = vmatprep.subr.bf16.mxu0 0
  %9077 = vmatpush1.bf16.msra.mxu0 0
  %9078 = vmatprep.subr.bf16.mxu0 0
  %9079 = vmatpush1.bf16.msra.mxu0 0
  %9080 = vmatprep.mubr.bf16.mxu0 0
  %9081 = vmatmul.mubr.bf16.gmra.mrb[0].mxu0 %v7532
  %v9082 = vpop.f32.mrb[0].mxu0
  %v9083 = vadd.f32 %v8800, %v9082
  %v9084 = vpop.f32.mrb[0].mxu0
  %v9085 = vpop.f32.mrb[0].mxu0
  %v9086 = vadd.f32 %v8803, %v9085
  %v9087 = vpop.f32.mrb[0].mxu0
  %9088 = vmatprep.mubr.bf16.mxu0 0
  %9089 = vmatmul.mubr.bf16.gmra.mrb[0].mxu0 %v7535
  %v9090 = vpop.f32.mrb[0].mxu0
  %v9091 = vadd.f32 %v8808, %v9090
  %v9092 = vpop.f32.mrb[0].mxu0
  %v9093 = vpop.f32.mrb[0].mxu0
  %v9094 = vadd.f32 %v8811, %v9093
  %v9095 = vpop.f32.mrb[0].mxu0
  %9096 = vmatprep.mubr.bf16.mxu0 0
  %9097 = vmatmul.mubr.bf16.gmra.mrb[0].mxu0 %v7538
  %v9098 = vpop.f32.mrb[0].mxu0
  %v9099 = vadd.f32 %v8816, %v9098
  %v9100 = vpop.f32.mrb[0].mxu0
  %v9101 = vpop.f32.mrb[0].mxu0
  %v9102 = vpop.f32.mrb[0].mxu0
  %9103 = vdwg.mxu0
  %9104 = vmatprep.subr.bf16.mxu0 0
  %9105 = vmatpush1.bf16.msra.mxu0 %v7526
  %9106 = vmatprep.subr.bf16.mxu0 0
  %9107 = vmatpush1.bf16.msra.mxu0 %v7527
  %9108 = vmatprep.subr.bf16.mxu0 0
  %9109 = vmatpush1.bf16.msra.mxu0 %v7541
  %9110 = vmatprep.subr.bf16.mxu0 0
  %9111 = vmatpush1.bf16.msra.mxu0 0
  %9112 = vmatprep.subr.bf16.mxu0 0
  %9113 = vmatpush1.bf16.msra.mxu0 0
  %9114 = vmatprep.subr.bf16.mxu0 0
  %9115 = vmatpush1.bf16.msra.mxu0 0
  %9116 = vmatprep.subr.bf16.mxu0 0
  %9117 = vmatpush1.bf16.msra.mxu0 0
  %9118 = vmatprep.subr.bf16.mxu0 0
  %9119 = vmatpush1.bf16.msra.mxu0 0
  %9120 = vmatprep.subr.bf16.mxu0 0
  %9121 = vmatpush1.bf16.msra.mxu0 0
  %9122 = vmatprep.subr.bf16.mxu0 0
  %9123 = vmatpush1.bf16.msra.mxu0 0
  %9124 = vmatprep.subr.bf16.mxu0 0
  %9125 = vmatpush1.bf16.msra.mxu0 0
  %9126 = vmatprep.subr.bf16.mxu0 0
  %9127 = vmatpush1.bf16.msra.mxu0 0
  %9128 = vmatprep.subr.bf16.mxu0 0
  %9129 = vmatpush1.bf16.msra.mxu0 0
  %9130 = vmatprep.subr.bf16.mxu0 0
  %9131 = vmatpush1.bf16.msra.mxu0 0
  %9132 = vmatprep.subr.bf16.mxu0 0
  %9133 = vmatpush1.bf16.msra.mxu0 0
  %9134 = vmatprep.subr.bf16.mxu0 0
  %9135 = vmatpush1.bf16.msra.mxu0 0
  %9136 = vmatprep.mubr.bf16.mxu0 0
  %9137 = vmatmul.mubr.bf16.gmra.mrb[0].mxu0 %v7625
  %v9138 = vpop.f32.mrb[0].mxu0
  %v9139 = vadd.f32 %v8856, %v9138
  %v9140 = vpop.f32.mrb[0].mxu0
  %v9141 = vpop.f32.mrb[0].mxu0
  %v9142 = vadd.f32 %v8859, %v9141
  %v9143 = vpop.f32.mrb[0].mxu0
  %9144 = vmatprep.mubr.bf16.mxu0 0
  %9145 = vmatmul.mubr.bf16.gmra.mrb[0].mxu0 %v7628
  %v9146 = vpop.f32.mrb[0].mxu0
  %v9147 = vadd.f32 %v8864, %v9146
  %v9148 = vpop.f32.mrb[0].mxu0
  %v9149 = vpop.f32.mrb[0].mxu0
  %v9150 = vadd.f32 %v8867, %v9149
  %v9151 = vpop.f32.mrb[0].mxu0
  %9152 = vmatprep.mubr.bf16.mxu0 0
  %9153 = vmatmul.mubr.bf16.gmra.mrb[0].mxu0 %v7631
  %v9154 = vpop.f32.mrb[0].mxu0
  %v9155 = vadd.f32 %v8872, %v9154
  %v9156 = vpop.f32.mrb[0].mxu0
  %v9157 = vpop.f32.mrb[0].mxu0
  %v9158 = vpop.f32.mrb[0].mxu0
  %9159 = vdwg.mxu0
  %9160 = vmatprep.subr.bf16.mxu0 0
  %9161 = vmatpush1.bf16.msra.mxu0 %v7619
  %9162 = vmatprep.subr.bf16.mxu0 0
  %9163 = vmatpush1.bf16.msra.mxu0 %v7620
  %9164 = vmatprep.subr.bf16.mxu0 0
  %9165 = vmatpush1.bf16.msra.mxu0 %v7634
  %9166 = vmatprep.subr.bf16.mxu0 0
  %9167 = vmatpush1.bf16.msra.mxu0 0
  %9168 = vmatprep.subr.bf16.mxu0 0
  %9169 = vmatpush1.bf16.msra.mxu0 0
  %9170 = vmatprep.subr.bf16.mxu0 0
  %9171 = vmatpush1.bf16.msra.mxu0 0
  %9172 = vmatprep.subr.bf16.mxu0 0
  %9173 = vmatpush1.bf16.msra.mxu0 0
  %9174 = vmatprep.subr.bf16.mxu0 0
  %9175 = vmatpush1.bf16.msra.mxu0 0
  %9176 = vmatprep.subr.bf16.mxu0 0
  %9177 = vmatpush1.bf16.msra.mxu0 0
  %9178 = vmatprep.subr.bf16.mxu0 0
  %9179 = vmatpush1.bf16.msra.mxu0 0
  %9180 = vmatprep.subr.bf16.mxu0 0
  %9181 = vmatpush1.bf16.msra.mxu0 0
  %9182 = vmatprep.subr.bf16.mxu0 0
  %9183 = vmatpush1.bf16.msra.mxu0 0
  %9184 = vmatprep.subr.bf16.mxu0 0
  %9185 = vmatpush1.bf16.msra.mxu0 0
  %9186 = vmatprep.subr.bf16.mxu0 0
  %9187 = vmatpush1.bf16.msra.mxu0 0
  %9188 = vmatprep.subr.bf16.mxu0 0
  %9189 = vmatpush1.bf16.msra.mxu0 0
  %9190 = vmatprep.subr.bf16.mxu0 0
  %9191 = vmatpush1.bf16.msra.mxu0 0
  %9192 = vmatprep.mubr.bf16.mxu0 0
  %9193 = vmatmul.mubr.bf16.gmra.mrb[0].mxu0 %v7718
  %v9194 = vpop.f32.mrb[0].mxu0
  %v9195 = vadd.f32 %v8912, %v9194
  %v9196 = vpop.f32.mrb[0].mxu0
  %v9197 = vpop.f32.mrb[0].mxu0
  %v9198 = vadd.f32 %v8915, %v9197
  %v9199 = vpop.f32.mrb[0].mxu0
  %9200 = vmatprep.mubr.bf16.mxu0 0
  %9201 = vmatmul.mubr.bf16.gmra.mrb[0].mxu0 %v7721
  %v9202 = vpop.f32.mrb[0].mxu0
  %v9203 = vadd.f32 %v8920, %v9202
  %v9204 = vpop.f32.mrb[0].mxu0
  %v9205 = vpop.f32.mrb[0].mxu0
  %v9206 = vadd.f32 %v8923, %v9205
  %v9207 = vpop.f32.mrb[0].mxu0
  %9208 = vmatprep.mubr.bf16.mxu0 0
  %9209 = vmatmul.mubr.bf16.gmra.mrb[0].mxu0 %v7724
  %v9210 = vpop.f32.mrb[0].mxu0
  %v9211 = vadd.f32 %v8928, %v9210
  %v9212 = vpop.f32.mrb[0].mxu0
  %v9213 = vpop.f32.mrb[0].mxu0
  %v9214 = vpop.f32.mrb[0].mxu0
  %9215 = vdwg.mxu0
  %9216 = vmatprep.subr.bf16.mxu0 0
  %9217 = vmatpush1.bf16.msra.mxu0 %v7712
  %9218 = vmatprep.subr.bf16.mxu0 0
  %9219 = vmatpush1.bf16.msra.mxu0 %v7713
  %9220 = vmatprep.subr.bf16.mxu0 0
  %9221 = vmatpush1.bf16.msra.mxu0 %v7727
  %9222 = vmatprep.subr.bf16.mxu0 0
  %9223 = vmatpush1.bf16.msra.mxu0 0
  %9224 = vmatprep.subr.bf16.mxu0 0
  %9225 = vmatpush1.bf16.msra.mxu0 0
  %9226 = vmatprep.subr.bf16.mxu0 0
  %9227 = vmatpush1.bf16.msra.mxu0 0
  %9228 = vmatprep.subr.bf16.mxu0 0
  %9229 = vmatpush1.bf16.msra.mxu0 0
  %9230 = vmatprep.subr.bf16.mxu0 0
  %9231 = vmatpush1.bf16.msra.mxu0 0
  %9232 = vmatprep.subr.bf16.mxu0 0
  %9233 = vmatpush1.bf16.msra.mxu0 0
  %9234 = vmatprep.subr.bf16.mxu0 0
  %9235 = vmatpush1.bf16.msra.mxu0 0
  %9236 = vmatprep.subr.bf16.mxu0 0
  %9237 = vmatpush1.bf16.msra.mxu0 0
  %9238 = vmatprep.subr.bf16.mxu0 0
  %9239 = vmatpush1.bf16.msra.mxu0 0
  %9240 = vmatprep.subr.bf16.mxu0 0
  %9241 = vmatpush1.bf16.msra.mxu0 0
  %9242 = vmatprep.subr.bf16.mxu0 0
  %9243 = vmatpush1.bf16.msra.mxu0 0
  %9244 = vmatprep.subr.bf16.mxu0 0
  %9245 = vmatpush1.bf16.msra.mxu0 0
  %9246 = vmatprep.subr.bf16.mxu0 0
  %9247 = vmatpush1.bf16.msra.mxu0 0
  %9248 = vmatprep.mubr.bf16.mxu0 0
  %9249 = vmatmul.mubr.bf16.gmra.mrb[0].mxu0 %v7450
  %v9250 = vpop.f32.mrb[0].mxu0
  %v9251 = vadd.f32 %v8968, %v9250
  %v9252 = vpop.f32.mrb[0].mxu0
  %v9253 = vpop.f32.mrb[0].mxu0
  %v9254 = vadd.f32 %v8971, %v9253
  %v9255 = vpop.f32.mrb[0].mxu0
  %9256 = vmatprep.mubr.bf16.mxu0 0
  %9257 = vmatmul.mubr.bf16.gmra.mrb[0].mxu0 %v7453
  %v9258 = vpop.f32.mrb[0].mxu0
  %v9259 = vadd.f32 %v8976, %v9258
  %v9260 = vpop.f32.mrb[0].mxu0
  %v9261 = vpop.f32.mrb[0].mxu0
  %v9262 = vadd.f32 %v8979, %v9261
  %v9263 = vpop.f32.mrb[0].mxu0
  %9264 = vmatprep.mubr.bf16.mxu0 0
  %9265 = vmatmul.mubr.bf16.gmra.mrb[0].mxu0 %v7803
  %v9266 = vpop.f32.mrb[0].mxu0
  %v9267 = vadd.f32 %v8984, %v9266
  %v9268 = vpop.f32.mrb[0].mxu0
  %v9269 = vpop.f32.mrb[0].mxu0
  %v9270 = vpop.f32.mrb[0].mxu0
  %9271 = vdwg.mxu0
  %v9273 = vsel %vm6952, %v5504, 0
  %9275 = vmatprep.subr.bf16.mxu0 0
  %9276 = vmatpush1.bf16.msra.mxu0 %v7797
  %9277 = vmatprep.subr.bf16.mxu0 0
  %9278 = vmatpush1.bf16.msra.mxu0 %v7798
  %9279 = vmatprep.subr.bf16.mxu0 0
  %9280 = vmatpush1.bf16.msra.mxu0 %v7806
  %9281 = vmatprep.subr.bf16.mxu0 0
  %9282 = vmatpush1.bf16.msra.mxu0 0
  %9283 = vmatprep.subr.bf16.mxu0 0
  %9284 = vmatpush1.bf16.msra.mxu0 0
  %9285 = vmatprep.subr.bf16.mxu0 0
  %9286 = vmatpush1.bf16.msra.mxu0 0
  %9287 = vmatprep.subr.bf16.mxu0 0
  %9288 = vmatpush1.bf16.msra.mxu0 0
  %9289 = vmatprep.subr.bf16.mxu0 0
  %9290 = vmatpush1.bf16.msra.mxu0 0
  %9291 = vmatprep.subr.bf16.mxu0 0
  %9292 = vmatpush1.bf16.msra.mxu0 0
  %9293 = vmatprep.subr.bf16.mxu0 0
  %9294 = vmatpush1.bf16.msra.mxu0 0
  %9295 = vmatprep.subr.bf16.mxu0 0
  %9296 = vmatpush1.bf16.msra.mxu0 0
  %9297 = vmatprep.subr.bf16.mxu0 0
  %9298 = vmatpush1.bf16.msra.mxu0 0
  %9299 = vmatprep.subr.bf16.mxu0 0
  %9300 = vmatpush1.bf16.msra.mxu0 0
  %9301 = vmatprep.subr.bf16.mxu0 0
  %9302 = vmatpush1.bf16.msra.mxu0 0
  %9303 = vmatprep.subr.bf16.mxu0 0
  %9304 = vmatpush1.bf16.msra.mxu0 0
  %9305 = vmatprep.subr.bf16.mxu0 0
  %9306 = vmatpush1.bf16.msra.mxu0 0
  %9307 = vmatprep.mubr.bf16.mxu0 0
  %9308 = vmatmul.mubr.bf16.gmra.mrb[0].mxu0 %v7535
  %v9309 = vpop.f32.mrb[0].mxu0
  %v9310 = vadd.f32 %v9027, %v9309
  %v9311 = vpop.f32.mrb[0].mxu0
  %v9312 = vpop.f32.mrb[0].mxu0
  %v9313 = vadd.f32 %v9030, %v9312
  %v9314 = vpop.f32.mrb[0].mxu0
  %9315 = vmatprep.mubr.bf16.mxu0 0
  %9316 = vmatmul.mubr.bf16.gmra.mrb[0].mxu0 %v7538
  %v9317 = vpop.f32.mrb[0].mxu0
  %v9318 = vadd.f32 %v9035, %v9317
  %v9319 = vpop.f32.mrb[0].mxu0
  %v9320 = vpop.f32.mrb[0].mxu0
  %v9321 = vadd.f32 %v9038, %v9320
  %v9322 = vpop.f32.mrb[0].mxu0
  %9323 = vmatprep.mubr.bf16.mxu0 0
  %9324 = vmatmul.mubr.bf16.gmra.mrb[0].mxu0 %v9273
  %v9325 = vpop.f32.mrb[0].mxu0
  %v9326 = vadd.f32 %v9043, %v9325
  %v9327 = vpop.f32.mrb[0].mxu0
  %v9328 = vpop.f32.mrb[0].mxu0
  %v9329 = vpop.f32.mrb[0].mxu0
  %9330 = vdwg.mxu0
  %v9331 = vadd.f32 %v9083, %v9139
  %v9332 = vadd.f32 %v9086, %v9142
  %v9333 = vadd.f32 %v9091, %v9147
  %v9334 = vadd.f32 %v9094, %v9150
  %v9335 = vadd.f32 %v9099, %v9155
  %v9336 = vadd.f32 %v9195, %v9251
  %v9337 = vadd.f32 %v9198, %v9254
  %v9338 = vadd.f32 %v9203, %v9259
  %v9339 = vadd.f32 %v9206, %v9262
  %v9340 = vadd.f32 %v9211, %v9267
  %v9341 = vadd.f32 %v9331, %v9336
  %v9342 = vadd.f32 %v9332, %v9337
  %v9343 = vadd.f32 %v9333, %v9338
  %v9344 = vadd.f32 %v9334, %v9339
  %v9345 = vadd.f32 %v9335, %v9340
  %v9346 = vadd.f32 %v9341, %v9310
  %v9347 = vadd.f32 %v9342, %v9313
  %v9348 = vadd.f32 %v9343, %v9318
  %v9349 = vadd.f32 %v9344, %v9321
  %v9350 = vadd.f32 %v9345, %v9326
  %v9351 = vadd.f32 %v9346, %v7888
  %v9352 = vadd.f32 %v9347, %v7888
  %v9353 = vadd.f32 %v9348, %v7888
  %v9354 = vadd.f32 %v9349, %v7888
  %v9355 = vadd.f32 %v9350, %v7888
  %v9356 = vmax.f32 %v9351, 0.0
  %v9357 = vmax.f32 %v9352, 0.0
  %v9358 = vmax.f32 %v9353, 0.0
  %v9359 = vmax.f32 %v9354, 0.0
  %v9360 = vmax.f32 %v9355, 0.0
  %v9361 = vmax.f32 %v8760, %v9356
  %v9362 = vmax.f32 %v8761, %v9357
  %v9363 = vmax.f32 %v8762, %v9358
  %v9364 = vmax.f32 %v8763, %v9359
  %v9365 = vmax.f32 %v8764, %v9360
  %9366 = vmatprep.subr.bf16.mxu0 0
  %9367 = vmatpush1.bf16.msra.mxu0 %v7926
  %9368 = vmatprep.subr.bf16.mxu0 0
  %9369 = vmatpush1.bf16.msra.mxu0 %v7927
  %9370 = vmatprep.subr.bf16.mxu0 0
  %9371 = vmatpush1.bf16.msra.mxu0 %v7932
  %9372 = vmatprep.subr.bf16.mxu0 0
  %9373 = vmatpush1.bf16.msra.mxu0 0
  %9374 = vmatprep.subr.bf16.mxu0 0
  %9375 = vmatpush1.bf16.msra.mxu0 0
  %9376 = vmatprep.subr.bf16.mxu0 0
  %9377 = vmatpush1.bf16.msra.mxu0 0
  %9378 = vmatprep.subr.bf16.mxu0 0
  %9379 = vmatpush1.bf16.msra.mxu0 0
  %9380 = vmatprep.subr.bf16.mxu0 0
  %9381 = vmatpush1.bf16.msra.mxu0 0
  %9382 = vmatprep.subr.bf16.mxu0 0
  %9383 = vmatpush1.bf16.msra.mxu0 0
  %9384 = vmatprep.subr.bf16.mxu0 0
  %9385 = vmatpush1.bf16.msra.mxu0 0
  %9386 = vmatprep.subr.bf16.mxu0 0
  %9387 = vmatpush1.bf16.msra.mxu0 0
  %9388 = vmatprep.subr.bf16.mxu0 0
  %9389 = vmatpush1.bf16.msra.mxu0 0
  %9390 = vmatprep.subr.bf16.mxu0 0
  %9391 = vmatpush1.bf16.msra.mxu0 0
  %9392 = vmatprep.subr.bf16.mxu0 0
  %9393 = vmatpush1.bf16.msra.mxu0 0
  %9394 = vmatprep.subr.bf16.mxu0 0
  %9395 = vmatpush1.bf16.msra.mxu0 0
  %9396 = vmatprep.subr.bf16.mxu0 0
  %9397 = vmatpush1.bf16.msra.mxu0 0
  %9398 = vmatprep.mubr.bf16.mxu0 0
  %9399 = vmatmul.mubr.bf16.gmra.mrb[0].mxu0 %v7054
  %v9400 = vpop.f32.mrb[0].mxu0
  %v9401 = vadd.f32 0.0, %v9400
  %v9402 = vpop.f32.mrb[0].mxu0
  %v9403 = vpop.f32.mrb[0].mxu0
  %v9404 = vadd.f32 0.0, %v9403
  %v9405 = vpop.f32.mrb[0].mxu0
  %9406 = vmatprep.mubr.bf16.mxu0 0
  %9407 = vmatmul.mubr.bf16.gmra.mrb[0].mxu0 %v7057
  %v9408 = vpop.f32.mrb[0].mxu0
  %v9409 = vadd.f32 0.0, %v9408
  %v9410 = vpop.f32.mrb[0].mxu0
  %v9411 = vpop.f32.mrb[0].mxu0
  %v9412 = vadd.f32 0.0, %v9411
  %v9413 = vpop.f32.mrb[0].mxu0
  %9414 = vmatprep.mubr.bf16.mxu0 0
  %9415 = vmatmul.mubr.bf16.gmra.mrb[0].mxu0 %v7060
  %v9416 = vpop.f32.mrb[0].mxu0
  %v9417 = vadd.f32 0.0, %v9416
  %v9418 = vpop.f32.mrb[0].mxu0
  %v9419 = vpop.f32.mrb[0].mxu0
  %v9420 = vpop.f32.mrb[0].mxu0
  %9421 = vdwg.mxu0
  %9422 = vmatprep.subr.bf16.mxu0 0
  %9423 = vmatpush1.bf16.msra.mxu0 %v8016
  %9424 = vmatprep.subr.bf16.mxu0 0
  %9425 = vmatpush1.bf16.msra.mxu0 %v8017
  %9426 = vmatprep.subr.bf16.mxu0 0
  %9427 = vmatpush1.bf16.msra.mxu0 %v8022
  %9428 = vmatprep.subr.bf16.mxu0 0
  %9429 = vmatpush1.bf16.msra.mxu0 0
  %9430 = vmatprep.subr.bf16.mxu0 0
  %9431 = vmatpush1.bf16.msra.mxu0 0
  %9432 = vmatprep.subr.bf16.mxu0 0
  %9433 = vmatpush1.bf16.msra.mxu0 0
  %9434 = vmatprep.subr.bf16.mxu0 0
  %9435 = vmatpush1.bf16.msra.mxu0 0
  %9436 = vmatprep.subr.bf16.mxu0 0
  %9437 = vmatpush1.bf16.msra.mxu0 0
  %9438 = vmatprep.subr.bf16.mxu0 0
  %9439 = vmatpush1.bf16.msra.mxu0 0
  %9440 = vmatprep.subr.bf16.mxu0 0
  %9441 = vmatpush1.bf16.msra.mxu0 0
  %9442 = vmatprep.subr.bf16.mxu0 0
  %9443 = vmatpush1.bf16.msra.mxu0 0
  %9444 = vmatprep.subr.bf16.mxu0 0
  %9445 = vmatpush1.bf16.msra.mxu0 0
  %9446 = vmatprep.subr.bf16.mxu0 0
  %9447 = vmatpush1.bf16.msra.mxu0 0
  %9448 = vmatprep.subr.bf16.mxu0 0
  %9449 = vmatpush1.bf16.msra.mxu0 0
  %9450 = vmatprep.subr.bf16.mxu0 0
  %9451 = vmatpush1.bf16.msra.mxu0 0
  %9452 = vmatprep.subr.bf16.mxu0 0
  %9453 = vmatpush1.bf16.msra.mxu0 0
  %9454 = vmatprep.mubr.bf16.mxu0 0
  %9455 = vmatmul.mubr.bf16.gmra.mrb[0].mxu0 %v7162
  %v9456 = vpop.f32.mrb[0].mxu0
  %v9457 = vadd.f32 0.0, %v9456
  %v9458 = vpop.f32.mrb[0].mxu0
  %v9459 = vpop.f32.mrb[0].mxu0
  %v9460 = vadd.f32 0.0, %v9459
  %v9461 = vpop.f32.mrb[0].mxu0
  %9462 = vmatprep.mubr.bf16.mxu0 0
  %9463 = vmatmul.mubr.bf16.gmra.mrb[0].mxu0 %v7165
  %v9464 = vpop.f32.mrb[0].mxu0
  %v9465 = vadd.f32 0.0, %v9464
  %v9466 = vpop.f32.mrb[0].mxu0
  %v9467 = vpop.f32.mrb[0].mxu0
  %v9468 = vadd.f32 0.0, %v9467
  %v9469 = vpop.f32.mrb[0].mxu0
  %9470 = vmatprep.mubr.bf16.mxu0 0
  %9471 = vmatmul.mubr.bf16.gmra.mrb[0].mxu0 %v7168
  %v9472 = vpop.f32.mrb[0].mxu0
  %v9473 = vadd.f32 0.0, %v9472
  %v9474 = vpop.f32.mrb[0].mxu0
  %v9475 = vpop.f32.mrb[0].mxu0
  %v9476 = vpop.f32.mrb[0].mxu0
  %9477 = vdwg.mxu0
  %9478 = vmatprep.subr.bf16.mxu0 0
  %9479 = vmatpush1.bf16.msra.mxu0 %v8106
  %9480 = vmatprep.subr.bf16.mxu0 0
  %9481 = vmatpush1.bf16.msra.mxu0 %v8107
  %9482 = vmatprep.subr.bf16.mxu0 0
  %9483 = vmatpush1.bf16.msra.mxu0 %v8112
  %9484 = vmatprep.subr.bf16.mxu0 0
  %9485 = vmatpush1.bf16.msra.mxu0 0
  %9486 = vmatprep.subr.bf16.mxu0 0
  %9487 = vmatpush1.bf16.msra.mxu0 0
  %9488 = vmatprep.subr.bf16.mxu0 0
  %9489 = vmatpush1.bf16.msra.mxu0 0
  %9490 = vmatprep.subr.bf16.mxu0 0
  %9491 = vmatpush1.bf16.msra.mxu0 0
  %9492 = vmatprep.subr.bf16.mxu0 0
  %9493 = vmatpush1.bf16.msra.mxu0 0
  %9494 = vmatprep.subr.bf16.mxu0 0
  %9495 = vmatpush1.bf16.msra.mxu0 0
  %9496 = vmatprep.subr.bf16.mxu0 0
  %9497 = vmatpush1.bf16.msra.mxu0 0
  %9498 = vmatprep.subr.bf16.mxu0 0
  %9499 = vmatpush1.bf16.msra.mxu0 0
  %9500 = vmatprep.subr.bf16.mxu0 0
  %9501 = vmatpush1.bf16.msra.mxu0 0
  %9502 = vmatprep.subr.bf16.mxu0 0
  %9503 = vmatpush1.bf16.msra.mxu0 0
  %9504 = vmatprep.subr.bf16.mxu0 0
  %9505 = vmatpush1.bf16.msra.mxu0 0
  %9506 = vmatprep.subr.bf16.mxu0 0
  %9507 = vmatpush1.bf16.msra.mxu0 0
  %9508 = vmatprep.subr.bf16.mxu0 0
  %9509 = vmatpush1.bf16.msra.mxu0 0
  %9510 = vmatprep.mubr.bf16.mxu0 0
  %9511 = vmatmul.mubr.bf16.gmra.mrb[0].mxu0 %v7269
  %v9512 = vpop.f32.mrb[0].mxu0
  %v9513 = vadd.f32 0.0, %v9512
  %v9514 = vpop.f32.mrb[0].mxu0
  %v9515 = vpop.f32.mrb[0].mxu0
  %v9516 = vadd.f32 0.0, %v9515
  %v9517 = vpop.f32.mrb[0].mxu0
  %9518 = vmatprep.mubr.bf16.mxu0 0
  %9519 = vmatmul.mubr.bf16.gmra.mrb[0].mxu0 %v7272
  %v9520 = vpop.f32.mrb[0].mxu0
  %v9521 = vadd.f32 0.0, %v9520
  %v9522 = vpop.f32.mrb[0].mxu0
  %v9523 = vpop.f32.mrb[0].mxu0
  %v9524 = vadd.f32 0.0, %v9523
  %v9525 = vpop.f32.mrb[0].mxu0
  %9526 = vmatprep.mubr.bf16.mxu0 0
  %9527 = vmatmul.mubr.bf16.gmra.mrb[0].mxu0 %v7275
  %v9528 = vpop.f32.mrb[0].mxu0
  %v9529 = vadd.f32 0.0, %v9528
  %v9530 = vpop.f32.mrb[0].mxu0
  %v9531 = vpop.f32.mrb[0].mxu0
  %v9532 = vpop.f32.mrb[0].mxu0
  %9533 = vdwg.mxu0
  %9534 = vmatprep.subr.bf16.mxu0 0
  %9535 = vmatpush1.bf16.msra.mxu0 %v8196
  %9536 = vmatprep.subr.bf16.mxu0 0
  %9537 = vmatpush1.bf16.msra.mxu0 %v8197
  %9538 = vmatprep.subr.bf16.mxu0 0
  %9539 = vmatpush1.bf16.msra.mxu0 %v8202
  %9540 = vmatprep.subr.bf16.mxu0 0
  %9541 = vmatpush1.bf16.msra.mxu0 0
  %9542 = vmatprep.subr.bf16.mxu0 0
  %9543 = vmatpush1.bf16.msra.mxu0 0
  %9544 = vmatprep.subr.bf16.mxu0 0
  %9545 = vmatpush1.bf16.msra.mxu0 0
  %9546 = vmatprep.subr.bf16.mxu0 0
  %9547 = vmatpush1.bf16.msra.mxu0 0
  %9548 = vmatprep.subr.bf16.mxu0 0
  %9549 = vmatpush1.bf16.msra.mxu0 0
  %9550 = vmatprep.subr.bf16.mxu0 0
  %9551 = vmatpush1.bf16.msra.mxu0 0
  %9552 = vmatprep.subr.bf16.mxu0 0
  %9553 = vmatpush1.bf16.msra.mxu0 0
  %9554 = vmatprep.subr.bf16.mxu0 0
  %9555 = vmatpush1.bf16.msra.mxu0 0
  %9556 = vmatprep.subr.bf16.mxu0 0
  %9557 = vmatpush1.bf16.msra.mxu0 0
  %9558 = vmatprep.subr.bf16.mxu0 0
  %9559 = vmatpush1.bf16.msra.mxu0 0
  %9560 = vmatprep.subr.bf16.mxu0 0
  %9561 = vmatpush1.bf16.msra.mxu0 0
  %9562 = vmatprep.subr.bf16.mxu0 0
  %9563 = vmatpush1.bf16.msra.mxu0 0
  %9564 = vmatprep.subr.bf16.mxu0 0
  %9565 = vmatpush1.bf16.msra.mxu0 0
  %9566 = vmatprep.mubr.bf16.mxu0 0
  %9567 = vmatmul.mubr.bf16.gmra.mrb[0].mxu0 %v6957
  %v9568 = vpop.f32.mrb[0].mxu0
  %v9569 = vadd.f32 0.0, %v9568
  %v9570 = vpop.f32.mrb[0].mxu0
  %v9571 = vpop.f32.mrb[0].mxu0
  %v9572 = vadd.f32 0.0, %v9571
  %v9573 = vpop.f32.mrb[0].mxu0
  %9574 = vmatprep.mubr.bf16.mxu0 0
  %9575 = vmatmul.mubr.bf16.gmra.mrb[0].mxu0 %v6960
  %v9576 = vpop.f32.mrb[0].mxu0
  %v9577 = vadd.f32 0.0, %v9576
  %v9578 = vpop.f32.mrb[0].mxu0
  %v9579 = vpop.f32.mrb[0].mxu0
  %v9580 = vadd.f32 0.0, %v9579
  %v9581 = vpop.f32.mrb[0].mxu0
  %9582 = vmatprep.mubr.bf16.mxu0 0
  %9583 = vmatmul.mubr.bf16.gmra.mrb[0].mxu0 %v7368
  %v9584 = vpop.f32.mrb[0].mxu0
  %v9585 = vadd.f32 0.0, %v9584
  %v9586 = vpop.f32.mrb[0].mxu0
  %v9587 = vpop.f32.mrb[0].mxu0
  %v9588 = vpop.f32.mrb[0].mxu0
  %9589 = vdwg.mxu0
  %9590 = vmatprep.subr.bf16.mxu0 0
  %9591 = vmatpush1.bf16.msra.mxu0 %v8286
  %9592 = vmatprep.subr.bf16.mxu0 0
  %9593 = vmatpush1.bf16.msra.mxu0 %v8287
  %9594 = vmatprep.subr.bf16.mxu0 0
  %9595 = vmatpush1.bf16.msra.mxu0 %v8292
  %9596 = vmatprep.subr.bf16.mxu0 0
  %9597 = vmatpush1.bf16.msra.mxu0 0
  %9598 = vmatprep.subr.bf16.mxu0 0
  %9599 = vmatpush1.bf16.msra.mxu0 0
  %9600 = vmatprep.subr.bf16.mxu0 0
  %9601 = vmatpush1.bf16.msra.mxu0 0
  %9602 = vmatprep.subr.bf16.mxu0 0
  %9603 = vmatpush1.bf16.msra.mxu0 0
  %9604 = vmatprep.subr.bf16.mxu0 0
  %9605 = vmatpush1.bf16.msra.mxu0 0
  %9606 = vmatprep.subr.bf16.mxu0 0
  %9607 = vmatpush1.bf16.msra.mxu0 0
  %9608 = vmatprep.subr.bf16.mxu0 0
  %9609 = vmatpush1.bf16.msra.mxu0 0
  %9610 = vmatprep.subr.bf16.mxu0 0
  %9611 = vmatpush1.bf16.msra.mxu0 0
  %9612 = vmatprep.subr.bf16.mxu0 0
  %9613 = vmatpush1.bf16.msra.mxu0 0
  %9614 = vmatprep.subr.bf16.mxu0 0
  %9615 = vmatpush1.bf16.msra.mxu0 0
  %9616 = vmatprep.subr.bf16.mxu0 0
  %9617 = vmatpush1.bf16.msra.mxu0 0
  %9618 = vmatprep.subr.bf16.mxu0 0
  %9619 = vmatpush1.bf16.msra.mxu0 0
  %9620 = vmatprep.subr.bf16.mxu0 0
  %9621 = vmatpush1.bf16.msra.mxu0 0
  %9622 = vmatprep.mubr.bf16.mxu0 0
  %9623 = vmatmul.mubr.bf16.gmra.mrb[0].mxu0 %v7057
  %v9624 = vpop.f32.mrb[0].mxu0
  %v9625 = vadd.f32 0.0, %v9624
  %v9626 = vpop.f32.mrb[0].mxu0
  %v9627 = vpop.f32.mrb[0].mxu0
  %v9628 = vadd.f32 0.0, %v9627
  %v9629 = vpop.f32.mrb[0].mxu0
  %9630 = vmatprep.mubr.bf16.mxu0 0
  %9631 = vmatmul.mubr.bf16.gmra.mrb[0].mxu0 %v7060
  %v9632 = vpop.f32.mrb[0].mxu0
  %v9633 = vadd.f32 0.0, %v9632
  %v9634 = vpop.f32.mrb[0].mxu0
  %v9635 = vpop.f32.mrb[0].mxu0
  %v9636 = vadd.f32 0.0, %v9635
  %v9637 = vpop.f32.mrb[0].mxu0
  %9638 = vmatprep.mubr.bf16.mxu0 0
  %9639 = vmatmul.mubr.bf16.gmra.mrb[0].mxu0 %v8990
  %v9640 = vpop.f32.mrb[0].mxu0
  %v9641 = vadd.f32 0.0, %v9640
  %v9642 = vpop.f32.mrb[0].mxu0
  %v9643 = vpop.f32.mrb[0].mxu0
  %v9644 = vpop.f32.mrb[0].mxu0
  %9645 = vdwg.mxu0
  %9646 = vmatprep.subr.bf16.mxu0 0
  %9647 = vmatpush1.bf16.msra.mxu0 %v8362
  %9648 = vmatprep.subr.bf16.mxu0 0
  %9649 = vmatpush1.bf16.msra.mxu0 %v8363
  %9650 = vmatprep.subr.bf16.mxu0 0
  %9651 = vmatpush1.bf16.msra.mxu0 %v8368
  %9652 = vmatprep.subr.bf16.mxu0 0
  %9653 = vmatpush1.bf16.msra.mxu0 0
  %9654 = vmatprep.subr.bf16.mxu0 0
  %9655 = vmatpush1.bf16.msra.mxu0 0
  %9656 = vmatprep.subr.bf16.mxu0 0
  %9657 = vmatpush1.bf16.msra.mxu0 0
  %9658 = vmatprep.subr.bf16.mxu0 0
  %9659 = vmatpush1.bf16.msra.mxu0 0
  %9660 = vmatprep.subr.bf16.mxu0 0
  %9661 = vmatpush1.bf16.msra.mxu0 0
  %9662 = vmatprep.subr.bf16.mxu0 0
  %9663 = vmatpush1.bf16.msra.mxu0 0
  %9664 = vmatprep.subr.bf16.mxu0 0
  %9665 = vmatpush1.bf16.msra.mxu0 0
  %9666 = vmatprep.subr.bf16.mxu0 0
  %9667 = vmatpush1.bf16.msra.mxu0 0
  %9668 = vmatprep.subr.bf16.mxu0 0
  %9669 = vmatpush1.bf16.msra.mxu0 0
  %9670 = vmatprep.subr.bf16.mxu0 0
  %9671 = vmatpush1.bf16.msra.mxu0 0
  %9672 = vmatprep.subr.bf16.mxu0 0
  %9673 = vmatpush1.bf16.msra.mxu0 0
  %9674 = vmatprep.subr.bf16.mxu0 0
  %9675 = vmatpush1.bf16.msra.mxu0 0
  %9676 = vmatprep.subr.bf16.mxu0 0
  %9677 = vmatpush1.bf16.msra.mxu0 0
  %9678 = vmatprep.mubr.bf16.mxu0 0
  %9679 = vmatmul.mubr.bf16.gmra.mrb[0].mxu0 %v7532
  %v9680 = vpop.f32.mrb[0].mxu0
  %v9681 = vadd.f32 %v9401, %v9680
  %v9682 = vpop.f32.mrb[0].mxu0
  %v9683 = vpop.f32.mrb[0].mxu0
  %v9684 = vadd.f32 %v9404, %v9683
  %v9685 = vpop.f32.mrb[0].mxu0
  %9686 = vmatprep.mubr.bf16.mxu0 0
  %9687 = vmatmul.mubr.bf16.gmra.mrb[0].mxu0 %v7535
  %v9688 = vpop.f32.mrb[0].mxu0
  %v9689 = vadd.f32 %v9409, %v9688
  %v9690 = vpop.f32.mrb[0].mxu0
  %v9691 = vpop.f32.mrb[0].mxu0
  %v9692 = vadd.f32 %v9412, %v9691
  %v9693 = vpop.f32.mrb[0].mxu0
  %9694 = vmatprep.mubr.bf16.mxu0 0
  %9695 = vmatmul.mubr.bf16.gmra.mrb[0].mxu0 %v7538
  %v9696 = vpop.f32.mrb[0].mxu0
  %v9697 = vadd.f32 %v9417, %v9696
  %v9698 = vpop.f32.mrb[0].mxu0
  %v9699 = vpop.f32.mrb[0].mxu0
  %v9700 = vpop.f32.mrb[0].mxu0
  %9701 = vdwg.mxu0
  %9702 = vmatprep.subr.bf16.mxu0 0
  %9703 = vmatpush1.bf16.msra.mxu0 %v8438
  %9704 = vmatprep.subr.bf16.mxu0 0
  %9705 = vmatpush1.bf16.msra.mxu0 %v8439
  %9706 = vmatprep.subr.bf16.mxu0 0
  %9707 = vmatpush1.bf16.msra.mxu0 %v8444
  %9708 = vmatprep.subr.bf16.mxu0 0
  %9709 = vmatpush1.bf16.msra.mxu0 0
  %9710 = vmatprep.subr.bf16.mxu0 0
  %9711 = vmatpush1.bf16.msra.mxu0 0
  %9712 = vmatprep.subr.bf16.mxu0 0
  %9713 = vmatpush1.bf16.msra.mxu0 0
  %9714 = vmatprep.subr.bf16.mxu0 0
  %9715 = vmatpush1.bf16.msra.mxu0 0
  %9716 = vmatprep.subr.bf16.mxu0 0
  %9717 = vmatpush1.bf16.msra.mxu0 0
  %9718 = vmatprep.subr.bf16.mxu0 0
  %9719 = vmatpush1.bf16.msra.mxu0 0
  %9720 = vmatprep.subr.bf16.mxu0 0
  %9721 = vmatpush1.bf16.msra.mxu0 0
  %9722 = vmatprep.subr.bf16.mxu0 0
  %9723 = vmatpush1.bf16.msra.mxu0 0
  %9724 = vmatprep.subr.bf16.mxu0 0
  %9725 = vmatpush1.bf16.msra.mxu0 0
  %9726 = vmatprep.subr.bf16.mxu0 0
  %9727 = vmatpush1.bf16.msra.mxu0 0
  %9728 = vmatprep.subr.bf16.mxu0 0
  %9729 = vmatpush1.bf16.msra.mxu0 0
  %9730 = vmatprep.subr.bf16.mxu0 0
  %9731 = vmatpush1.bf16.msra.mxu0 0
  %9732 = vmatprep.subr.bf16.mxu0 0
  %9733 = vmatpush1.bf16.msra.mxu0 0
  %9734 = vmatprep.mubr.bf16.mxu0 0
  %9735 = vmatmul.mubr.bf16.gmra.mrb[0].mxu0 %v7625
  %v9736 = vpop.f32.mrb[0].mxu0
  %v9737 = vadd.f32 %v9457, %v9736
  %v9738 = vpop.f32.mrb[0].mxu0
  %v9739 = vpop.f32.mrb[0].mxu0
  %v9740 = vadd.f32 %v9460, %v9739
  %v9741 = vpop.f32.mrb[0].mxu0
  %9742 = vmatprep.mubr.bf16.mxu0 0
  %9743 = vmatmul.mubr.bf16.gmra.mrb[0].mxu0 %v7628
  %v9744 = vpop.f32.mrb[0].mxu0
  %v9745 = vadd.f32 %v9465, %v9744
  %v9746 = vpop.f32.mrb[0].mxu0
  %v9747 = vpop.f32.mrb[0].mxu0
  %v9748 = vadd.f32 %v9468, %v9747
  %v9749 = vpop.f32.mrb[0].mxu0
  %9750 = vmatprep.mubr.bf16.mxu0 0
  %9751 = vmatmul.mubr.bf16.gmra.mrb[0].mxu0 %v7631
  %v9752 = vpop.f32.mrb[0].mxu0
  %v9753 = vadd.f32 %v9473, %v9752
  %v9754 = vpop.f32.mrb[0].mxu0
  %v9755 = vpop.f32.mrb[0].mxu0
  %v9756 = vpop.f32.mrb[0].mxu0
  %9757 = vdwg.mxu0
  %9758 = vmatprep.subr.bf16.mxu0 0
  %9759 = vmatpush1.bf16.msra.mxu0 %v8514
  %9760 = vmatprep.subr.bf16.mxu0 0
  %9761 = vmatpush1.bf16.msra.mxu0 %v8515
  %9762 = vmatprep.subr.bf16.mxu0 0
  %9763 = vmatpush1.bf16.msra.mxu0 %v8520
  %9764 = vmatprep.subr.bf16.mxu0 0
  %9765 = vmatpush1.bf16.msra.mxu0 0
  %9766 = vmatprep.subr.bf16.mxu0 0
  %9767 = vmatpush1.bf16.msra.mxu0 0
  %9768 = vmatprep.subr.bf16.mxu0 0
  %9769 = vmatpush1.bf16.msra.mxu0 0
  %9770 = vmatprep.subr.bf16.mxu0 0
  %9771 = vmatpush1.bf16.msra.mxu0 0
  %9772 = vmatprep.subr.bf16.mxu0 0
  %9773 = vmatpush1.bf16.msra.mxu0 0
  %9774 = vmatprep.subr.bf16.mxu0 0
  %9775 = vmatpush1.bf16.msra.mxu0 0
  %9776 = vmatprep.subr.bf16.mxu0 0
  %9777 = vmatpush1.bf16.msra.mxu0 0
  %9778 = vmatprep.subr.bf16.mxu0 0
  %9779 = vmatpush1.bf16.msra.mxu0 0
  %9780 = vmatprep.subr.bf16.mxu0 0
  %9781 = vmatpush1.bf16.msra.mxu0 0
  %9782 = vmatprep.subr.bf16.mxu0 0
  %9783 = vmatpush1.bf16.msra.mxu0 0
  %9784 = vmatprep.subr.bf16.mxu0 0
  %9785 = vmatpush1.bf16.msra.mxu0 0
  %9786 = vmatprep.subr.bf16.mxu0 0
  %9787 = vmatpush1.bf16.msra.mxu0 0
  %9788 = vmatprep.subr.bf16.mxu0 0
  %9789 = vmatpush1.bf16.msra.mxu0 0
  %9790 = vmatprep.mubr.bf16.mxu0 0
  %9791 = vmatmul.mubr.bf16.gmra.mrb[0].mxu0 %v7718
  %v9792 = vpop.f32.mrb[0].mxu0
  %v9793 = vadd.f32 %v9513, %v9792
  %v9794 = vpop.f32.mrb[0].mxu0
  %v9795 = vpop.f32.mrb[0].mxu0
  %v9796 = vadd.f32 %v9516, %v9795
  %v9797 = vpop.f32.mrb[0].mxu0
  %9798 = vmatprep.mubr.bf16.mxu0 0
  %9799 = vmatmul.mubr.bf16.gmra.mrb[0].mxu0 %v7721
  %v9800 = vpop.f32.mrb[0].mxu0
  %v9801 = vadd.f32 %v9521, %v9800
  %v9802 = vpop.f32.mrb[0].mxu0
  %v9803 = vpop.f32.mrb[0].mxu0
  %v9804 = vadd.f32 %v9524, %v9803
  %v9805 = vpop.f32.mrb[0].mxu0
  %9806 = vmatprep.mubr.bf16.mxu0 0
  %9807 = vmatmul.mubr.bf16.gmra.mrb[0].mxu0 %v7724
  %v9808 = vpop.f32.mrb[0].mxu0
  %v9809 = vadd.f32 %v9529, %v9808
  %v9810 = vpop.f32.mrb[0].mxu0
  %v9811 = vpop.f32.mrb[0].mxu0
  %v9812 = vpop.f32.mrb[0].mxu0
  %9813 = vdwg.mxu0
  %9814 = vmatprep.subr.bf16.mxu0 0
  %9815 = vmatpush1.bf16.msra.mxu0 %v8590
  %9816 = vmatprep.subr.bf16.mxu0 0
  %9817 = vmatpush1.bf16.msra.mxu0 %v8591
  %9818 = vmatprep.subr.bf16.mxu0 0
  %9819 = vmatpush1.bf16.msra.mxu0 %v8596
  %9820 = vmatprep.subr.bf16.mxu0 0
  %9821 = vmatpush1.bf16.msra.mxu0 0
  %9822 = vmatprep.subr.bf16.mxu0 0
  %9823 = vmatpush1.bf16.msra.mxu0 0
  %9824 = vmatprep.subr.bf16.mxu0 0
  %9825 = vmatpush1.bf16.msra.mxu0 0
  %9826 = vmatprep.subr.bf16.mxu0 0
  %9827 = vmatpush1.bf16.msra.mxu0 0
  %9828 = vmatprep.subr.bf16.mxu0 0
  %9829 = vmatpush1.bf16.msra.mxu0 0
  %9830 = vmatprep.subr.bf16.mxu0 0
  %9831 = vmatpush1.bf16.msra.mxu0 0
  %9832 = vmatprep.subr.bf16.mxu0 0
  %9833 = vmatpush1.bf16.msra.mxu0 0
  %9834 = vmatprep.subr.bf16.mxu0 0
  %9835 = vmatpush1.bf16.msra.mxu0 0
  %9836 = vmatprep.subr.bf16.mxu0 0
  %9837 = vmatpush1.bf16.msra.mxu0 0
  %9838 = vmatprep.subr.bf16.mxu0 0
  %9839 = vmatpush1.bf16.msra.mxu0 0
  %9840 = vmatprep.subr.bf16.mxu0 0
  %9841 = vmatpush1.bf16.msra.mxu0 0
  %9842 = vmatprep.subr.bf16.mxu0 0
  %9843 = vmatpush1.bf16.msra.mxu0 0
  %9844 = vmatprep.subr.bf16.mxu0 0
  %9845 = vmatpush1.bf16.msra.mxu0 0
  %9846 = vmatprep.mubr.bf16.mxu0 0
  %9847 = vmatmul.mubr.bf16.gmra.mrb[0].mxu0 %v7450
  %v9848 = vpop.f32.mrb[0].mxu0
  %v9849 = vadd.f32 %v9569, %v9848
  %v9850 = vpop.f32.mrb[0].mxu0
  %v9851 = vpop.f32.mrb[0].mxu0
  %v9852 = vadd.f32 %v9572, %v9851
  %v9853 = vpop.f32.mrb[0].mxu0
  %9854 = vmatprep.mubr.bf16.mxu0 0
  %9855 = vmatmul.mubr.bf16.gmra.mrb[0].mxu0 %v7453
  %v9856 = vpop.f32.mrb[0].mxu0
  %v9857 = vadd.f32 %v9577, %v9856
  %v9858 = vpop.f32.mrb[0].mxu0
  %v9859 = vpop.f32.mrb[0].mxu0
  %v9860 = vadd.f32 %v9580, %v9859
  %v9861 = vpop.f32.mrb[0].mxu0
  %9862 = vmatprep.mubr.bf16.mxu0 0
  %9863 = vmatmul.mubr.bf16.gmra.mrb[0].mxu0 %v7803
  %v9864 = vpop.f32.mrb[0].mxu0
  %v9865 = vadd.f32 %v9585, %v9864
  %v9866 = vpop.f32.mrb[0].mxu0
  %v9867 = vpop.f32.mrb[0].mxu0
  %v9868 = vpop.f32.mrb[0].mxu0
  %9869 = vdwg.mxu0
  %9870 = vmatprep.subr.bf16.mxu0 0
  %9871 = vmatpush1.bf16.msra.mxu0 %v8666
  %9872 = vmatprep.subr.bf16.mxu0 0
  %9873 = vmatpush1.bf16.msra.mxu0 %v8667
  %9874 = vmatprep.subr.bf16.mxu0 0
  %9875 = vmatpush1.bf16.msra.mxu0 %v8672
  %9876 = vmatprep.subr.bf16.mxu0 0
  %9877 = vmatpush1.bf16.msra.mxu0 0
  %9878 = vmatprep.subr.bf16.mxu0 0
  %9879 = vmatpush1.bf16.msra.mxu0 0
  %9880 = vmatprep.subr.bf16.mxu0 0
  %9881 = vmatpush1.bf16.msra.mxu0 0
  %9882 = vmatprep.subr.bf16.mxu0 0
  %9883 = vmatpush1.bf16.msra.mxu0 0
  %9884 = vmatprep.subr.bf16.mxu0 0
  %9885 = vmatpush1.bf16.msra.mxu0 0
  %9886 = vmatprep.subr.bf16.mxu0 0
  %9887 = vmatpush1.bf16.msra.mxu0 0
  %9888 = vmatprep.subr.bf16.mxu0 0
  %9889 = vmatpush1.bf16.msra.mxu0 0
  %9890 = vmatprep.subr.bf16.mxu0 0
  %9891 = vmatpush1.bf16.msra.mxu0 0
  %9892 = vmatprep.subr.bf16.mxu0 0
  %9893 = vmatpush1.bf16.msra.mxu0 0
  %9894 = vmatprep.subr.bf16.mxu0 0
  %9895 = vmatpush1.bf16.msra.mxu0 0
  %9896 = vmatprep.subr.bf16.mxu0 0
  %9897 = vmatpush1.bf16.msra.mxu0 0
  %9898 = vmatprep.subr.bf16.mxu0 0
  %9899 = vmatpush1.bf16.msra.mxu0 0
  %9900 = vmatprep.subr.bf16.mxu0 0
  %9901 = vmatpush1.bf16.msra.mxu0 0
  %9902 = vmatprep.mubr.bf16.mxu0 0
  %9903 = vmatmul.mubr.bf16.gmra.mrb[0].mxu0 %v7535
  %v9904 = vpop.f32.mrb[0].mxu0
  %v9905 = vadd.f32 %v9625, %v9904
  %v9906 = vpop.f32.mrb[0].mxu0
  %v9907 = vpop.f32.mrb[0].mxu0
  %v9908 = vadd.f32 %v9628, %v9907
  %v9909 = vpop.f32.mrb[0].mxu0
  %9910 = vmatprep.mubr.bf16.mxu0 0
  %9911 = vmatmul.mubr.bf16.gmra.mrb[0].mxu0 %v7538
  %v9912 = vpop.f32.mrb[0].mxu0
  %v9913 = vadd.f32 %v9633, %v9912
  %v9914 = vpop.f32.mrb[0].mxu0
  %v9915 = vpop.f32.mrb[0].mxu0
  %v9916 = vadd.f32 %v9636, %v9915
  %v9917 = vpop.f32.mrb[0].mxu0
  %9918 = vmatprep.mubr.bf16.mxu0 0
  %9919 = vmatmul.mubr.bf16.gmra.mrb[0].mxu0 %v9273
  %v9920 = vpop.f32.mrb[0].mxu0
  %v9921 = vadd.f32 %v9641, %v9920
  %v9922 = vpop.f32.mrb[0].mxu0
  %v9923 = vpop.f32.mrb[0].mxu0
  %v9924 = vpop.f32.mrb[0].mxu0
  %9925 = vdwg.mxu0
  %v9926 = vadd.f32 %v9681, %v9737
  %v9927 = vadd.f32 %v9684, %v9740
  %v9928 = vadd.f32 %v9689, %v9745
  %v9929 = vadd.f32 %v9692, %v9748
  %v9930 = vadd.f32 %v9697, %v9753
  %v9931 = vadd.f32 %v9793, %v9849
  %v9932 = vadd.f32 %v9796, %v9852
  %v9933 = vadd.f32 %v9801, %v9857
  %v9934 = vadd.f32 %v9804, %v9860
  %v9935 = vadd.f32 %v9809, %v9865
  %v9936 = vadd.f32 %v9926, %v9931
  %v9937 = vadd.f32 %v9927, %v9932
  %v9938 = vadd.f32 %v9928, %v9933
  %v9939 = vadd.f32 %v9929, %v9934
  %v9940 = vadd.f32 %v9930, %v9935
  %v9941 = vadd.f32 %v9936, %v9905
  %v9942 = vadd.f32 %v9937, %v9908
  %v9943 = vadd.f32 %v9938, %v9913
  %v9944 = vadd.f32 %v9939, %v9916
  %v9945 = vadd.f32 %v9940, %v9921
  %v9946 = vadd.f32 %v9941, %v7888
  %v9947 = vadd.f32 %v9942, %v7888
  %v9948 = vadd.f32 %v9943, %v7888
  %v9949 = vadd.f32 %v9944, %v7888
  %v9950 = vadd.f32 %v9945, %v7888
  %v9951 = vmax.f32 %v9946, 0.0
  %v9952 = vmax.f32 %v9947, 0.0
  %v9953 = vmax.f32 %v9948, 0.0
  %v9954 = vmax.f32 %v9949, 0.0
  %v9955 = vmax.f32 %v9950, 0.0
  %v9956 = vmax.f32 %v9361, %v9951
  %v9957 = vmax.f32 %v9362, %v9952
  %v9958 = vmax.f32 %v9363, %v9953
  %v9959 = vmax.f32 %v9364, %v9954
  %v9960 = vmax.f32 %v9365, %v9955
  %v9961 = vpack.c.bf16 %v9957, %v9956
  %v9962 = vpack.c.bf16 %v9959, %v9958
  %v9963 = vpack.c.bf16 %v9960, %v9960
  %v9964 = vld [vmem:[%s5] sm:$0xf]
  %v9965 = vld [vmem:[%s5 + $0x4] sm:$0xf]
  %v9966 = vld [vmem:[%s5 + $0x8] sm:$0xf]
  %v9967 = vld [vmem:[%s5 + $0xc] sm:$0xf]
  %v9968 = vld [vmem:[%s5 + $0x10] sm:$0xf]
  %v9969 = vld [vmem:[%s5 + $0x14] sm:$0xf]
  %v9970 = vld [vmem:[%s5 + $0x18] sm:$0xf]
  %v9971 = vld [vmem:[%s5 + $0x1c] sm:$0xf]
  %v9972 = vld [vmem:[%s5 + $0x20] sm:$0xf]
  %v9973 = vld [vmem:[%s5 + $0x24] sm:$0xf]
  %s9974 = scalar_lea.vmem %s5, 40
  %v9975 = vld [vmem:[%s9974] sm:$0xf]
  %v9976 = vld [vmem:[%s9974 + $0x4] sm:$0xf]
  %v9977 = vld [vmem:[%s9974 + $0x8] sm:$0xf]
  %v9978 = vld [vmem:[%s9974 + $0xc] sm:$0xf]
  %v9979 = vld [vmem:[%s9974 + $0x10] sm:$0xf]
  %v9980 = vld [vmem:[%s9974 + $0x14] sm:$0xf]
  %v9981 = vld [vmem:[%s9974 + $0x18] sm:$0xf]
  %v9982 = vld [vmem:[%s9974 + $0x1c] sm:$0xf]
  %v9983 = vld [vmem:[%s9974 + $0x20] sm:$0xf]
  %v9984 = vld [vmem:[%s9974 + $0x24] sm:$0xf]
  %v9986 = vrot.slane %v9961, 4
  %v9997 = vunpack.c.l.b16 %v9975
  %v9998 = vunpack.c.l.b16 %v9976
  %v9999 = vunpack.c.l.b16 %v9977
  %v10000 = vunpack.c.l.b16 %v9978
  %v10001 = vunpack.c.l.b16 %v9979
  %v10002 = vunpack.c.l.b16 %v9980
  %v10003 = vunpack.c.l.b16 %v9981
  %v10004 = vunpack.c.l.b16 %v9982
  %v10005 = vunpack.c.l.b16 %v9983
  %v10006 = vunpack.c.l.b16 %v9984
  %v10007 = vpack.c.b16 %v9998, %v9997
  %v10008 = vpack.c.b16 %v10000, %v9999
  %v10009 = vpack.c.b16 %v10002, %v10001
  %v10010 = vpack.c.b16 %v10004, %v10003
  %v10011 = vpack.c.b16 %v10006, %v10005
  %vm10017 = vcmask 654336
  %v10019 = vsel %vm10017, %v9986, 0
  %10021 = vmatprep.subr.bf16.mxu0 0
  %10022 = vmatpush1.bf16.msra.mxu0 %v10007
  %10023 = vmatprep.subr.bf16.mxu0 0
  %10024 = vmatpush1.bf16.msra.mxu0 %v10008
  %10025 = vmatprep.subr.bf16.mxu0 0
  %10026 = vmatpush1.bf16.msra.mxu0 %v10009
  %10027 = vmatprep.subr.bf16.mxu0 0
  %10028 = vmatpush1.bf16.msra.mxu0 %v10010
  %10029 = vmatprep.subr.bf16.mxu0 0
  %10030 = vmatpush1.bf16.msra.mxu0 %v10011
  %10031 = vmatprep.subr.bf16.mxu0 0
  %10032 = vmatpush1.bf16.msra.mxu0 0
  %10033 = vmatprep.subr.bf16.mxu0 0
  %10034 = vmatpush1.bf16.msra.mxu0 0
  %10035 = vmatprep.subr.bf16.mxu0 0
  %10036 = vmatpush1.bf16.msra.mxu0 0
  %10037 = vmatprep.subr.bf16.mxu0 0
  %10038 = vmatpush1.bf16.msra.mxu0 0
  %10039 = vmatprep.subr.bf16.mxu0 0
  %10040 = vmatpush1.bf16.msra.mxu0 0
  %10041 = vmatprep.subr.bf16.mxu0 0
  %10042 = vmatpush1.bf16.msra.mxu0 0
  %10043 = vmatprep.subr.bf16.mxu0 0
  %10044 = vmatpush1.bf16.msra.mxu0 0
  %10045 = vmatprep.subr.bf16.mxu0 0
  %10046 = vmatpush1.bf16.msra.mxu0 0
  %10047 = vmatprep.subr.bf16.mxu0 0
  %10048 = vmatpush1.bf16.msra.mxu0 0
  %10049 = vmatprep.subr.bf16.mxu0 0
  %10050 = vmatpush1.bf16.msra.mxu0 0
  %10051 = vmatprep.subr.bf16.mxu0 0
  %10052 = vmatpush1.bf16.msra.mxu0 0
  %10053 = vmatprep.mubr.bf16.mxu0 0
  %10054 = vmatmul.mubr.bf16.gmra.mrb[0].mxu0 %v10019
  %v10055 = vpop.f32.mrb[0].mxu0
  %v10056 = vadd.f32 0.0, %v10055
  %v10057 = vpop.f32.mrb[0].mxu0
  %v10058 = vpop.f32.mrb[0].mxu0
  %v10059 = vpop.f32.mrb[0].mxu0
  %10060 = vdwg.mxu0
  %s10061 = scalar_lea.vmem %s5, 80
  %v10062 = vld [vmem:[%s10061] sm:$0xf]
  %v10063 = vld [vmem:[%s10061 + $0x4] sm:$0xf]
  %v10064 = vld [vmem:[%s10061 + $0x8] sm:$0xf]
  %v10065 = vld [vmem:[%s10061 + $0xc] sm:$0xf]
  %v10066 = vld [vmem:[%s10061 + $0x10] sm:$0xf]
  %v10067 = vld [vmem:[%s10061 + $0x14] sm:$0xf]
  %v10068 = vld [vmem:[%s10061 + $0x18] sm:$0xf]
  %v10069 = vld [vmem:[%s10061 + $0x1c] sm:$0xf]
  %v10070 = vld [vmem:[%s10061 + $0x20] sm:$0xf]
  %v10071 = vld [vmem:[%s10061 + $0x24] sm:$0xf]
  %s10072 = scalar_lea.vmem %s5, 120
  %v10073 = vld [vmem:[%s10072] sm:$0xf]
  %v10074 = vld [vmem:[%s10072 + $0x4] sm:$0xf]
  %v10075 = vld [vmem:[%s10072 + $0x8] sm:$0xf]
  %v10076 = vld [vmem:[%s10072 + $0xc] sm:$0xf]
  %v10077 = vld [vmem:[%s10072 + $0x10] sm:$0xf]
  %v10078 = vld [vmem:[%s10072 + $0x14] sm:$0xf]
  %v10079 = vld [vmem:[%s10072 + $0x18] sm:$0xf]
  %v10080 = vld [vmem:[%s10072 + $0x1c] sm:$0xf]
  %v10081 = vld [vmem:[%s10072 + $0x20] sm:$0xf]
  %v10082 = vld [vmem:[%s10072 + $0x24] sm:$0xf]
  %v10084 = vrot.slane %v9962, 4
  %v10095 = vunpack.c.l.b16 %v10073
  %v10096 = vunpack.c.l.b16 %v10074
  %v10097 = vunpack.c.l.b16 %v10075
  %v10098 = vunpack.c.l.b16 %v10076
  %v10099 = vunpack.c.l.b16 %v10077
  %v10100 = vunpack.c.l.b16 %v10078
  %v10101 = vunpack.c.l.b16 %v10079
  %v10102 = vunpack.c.l.b16 %v10080
  %v10103 = vunpack.c.l.b16 %v10081
  %v10104 = vunpack.c.l.b16 %v10082
  %v10105 = vpack.c.b16 %v10096, %v10095
  %v10106 = vpack.c.b16 %v10098, %v10097
  %v10107 = vpack.c.b16 %v10100, %v10099
  %v10108 = vpack.c.b16 %v10102, %v10101
  %v10109 = vpack.c.b16 %v10104, %v10103
  %v10116 = vsel %vm10017, %v10084, 0
  %10118 = vmatprep.subr.bf16.mxu0 0
  %10119 = vmatpush1.bf16.msra.mxu0 %v10105
  %10120 = vmatprep.subr.bf16.mxu0 0
  %10121 = vmatpush1.bf16.msra.mxu0 %v10106
  %10122 = vmatprep.subr.bf16.mxu0 0
  %10123 = vmatpush1.bf16.msra.mxu0 %v10107
  %10124 = vmatprep.subr.bf16.mxu0 0
  %10125 = vmatpush1.bf16.msra.mxu0 %v10108
  %10126 = vmatprep.subr.bf16.mxu0 0
  %10127 = vmatpush1.bf16.msra.mxu0 %v10109
  %10128 = vmatprep.subr.bf16.mxu0 0
  %10129 = vmatpush1.bf16.msra.mxu0 0
  %10130 = vmatprep.subr.bf16.mxu0 0
  %10131 = vmatpush1.bf16.msra.mxu0 0
  %10132 = vmatprep.subr.bf16.mxu0 0
  %10133 = vmatpush1.bf16.msra.mxu0 0
  %10134 = vmatprep.subr.bf16.mxu0 0
  %10135 = vmatpush1.bf16.msra.mxu0 0
  %10136 = vmatprep.subr.bf16.mxu0 0
  %10137 = vmatpush1.bf16.msra.mxu0 0
  %10138 = vmatprep.subr.bf16.mxu0 0
  %10139 = vmatpush1.bf16.msra.mxu0 0
  %10140 = vmatprep.subr.bf16.mxu0 0
  %10141 = vmatpush1.bf16.msra.mxu0 0
  %10142 = vmatprep.subr.bf16.mxu0 0
  %10143 = vmatpush1.bf16.msra.mxu0 0
  %10144 = vmatprep.subr.bf16.mxu0 0
  %10145 = vmatpush1.bf16.msra.mxu0 0
  %10146 = vmatprep.subr.bf16.mxu0 0
  %10147 = vmatpush1.bf16.msra.mxu0 0
  %10148 = vmatprep.subr.bf16.mxu0 0
  %10149 = vmatpush1.bf16.msra.mxu0 0
  %10150 = vmatprep.mubr.bf16.mxu0 0
  %10151 = vmatmul.mubr.bf16.gmra.mrb[0].mxu0 %v10116
  %v10152 = vpop.f32.mrb[0].mxu0
  %v10153 = vadd.f32 0.0, %v10152
  %v10154 = vpop.f32.mrb[0].mxu0
  %v10155 = vpop.f32.mrb[0].mxu0
  %v10156 = vpop.f32.mrb[0].mxu0
  %10157 = vdwg.mxu0
  %s10158 = scalar_lea.vmem %s5, 160
  %v10159 = vld [vmem:[%s10158] sm:$0xf]
  %v10160 = vld [vmem:[%s10158 + $0x4] sm:$0xf]
  %v10161 = vld [vmem:[%s10158 + $0x8] sm:$0xf]
  %v10162 = vld [vmem:[%s10158 + $0xc] sm:$0xf]
  %v10163 = vld [vmem:[%s10158 + $0x10] sm:$0xf]
  %v10164 = vld [vmem:[%s10158 + $0x14] sm:$0xf]
  %v10165 = vld [vmem:[%s10158 + $0x18] sm:$0xf]
  %v10166 = vld [vmem:[%s10158 + $0x1c] sm:$0xf]
  %v10167 = vld [vmem:[%s10158 + $0x20] sm:$0xf]
  %v10168 = vld [vmem:[%s10158 + $0x24] sm:$0xf]
  %v10179 = vunpack.c.l.b16 %v10159
  %v10180 = vunpack.c.l.b16 %v10160
  %v10181 = vunpack.c.l.b16 %v10161
  %v10182 = vunpack.c.l.b16 %v10162
  %v10183 = vunpack.c.l.b16 %v10163
  %v10184 = vunpack.c.l.b16 %v10164
  %v10185 = vunpack.c.l.b16 %v10165
  %v10186 = vunpack.c.l.b16 %v10166
  %v10187 = vunpack.c.l.b16 %v10167
  %v10188 = vunpack.c.l.b16 %v10168
  %v10189 = vpack.c.b16 %v10180, %v10179
  %v10190 = vpack.c.b16 %v10182, %v10181
  %v10191 = vpack.c.b16 %v10184, %v10183
  %v10192 = vpack.c.b16 %v10186, %v10185
  %v10193 = vpack.c.b16 %v10188, %v10187
  %v10200 = vsel %vm10017, %v9963, 0
  %10202 = vmatprep.subr.bf16.mxu0 0
  %10203 = vmatpush1.bf16.msra.mxu0 %v10189
  %10204 = vmatprep.subr.bf16.mxu0 0
  %10205 = vmatpush1.bf16.msra.mxu0 %v10190
  %10206 = vmatprep.subr.bf16.mxu0 0
  %10207 = vmatpush1.bf16.msra.mxu0 %v10191
  %10208 = vmatprep.subr.bf16.mxu0 0
  %10209 = vmatpush1.bf16.msra.mxu0 %v10192
  %10210 = vmatprep.subr.bf16.mxu0 0
  %10211 = vmatpush1.bf16.msra.mxu0 %v10193
  %10212 = vmatprep.subr.bf16.mxu0 0
  %10213 = vmatpush1.bf16.msra.mxu0 0
  %10214 = vmatprep.subr.bf16.mxu0 0
  %10215 = vmatpush1.bf16.msra.mxu0 0
  %10216 = vmatprep.subr.bf16.mxu0 0
  %10217 = vmatpush1.bf16.msra.mxu0 0
  %10218 = vmatprep.subr.bf16.mxu0 0
  %10219 = vmatpush1.bf16.msra.mxu0 0
  %10220 = vmatprep.subr.bf16.mxu0 0
  %10221 = vmatpush1.bf16.msra.mxu0 0
  %10222 = vmatprep.subr.bf16.mxu0 0
  %10223 = vmatpush1.bf16.msra.mxu0 0
  %10224 = vmatprep.subr.bf16.mxu0 0
  %10225 = vmatpush1.bf16.msra.mxu0 0
  %10226 = vmatprep.subr.bf16.mxu0 0
  %10227 = vmatpush1.bf16.msra.mxu0 0
  %10228 = vmatprep.subr.bf16.mxu0 0
  %10229 = vmatpush1.bf16.msra.mxu0 0
  %10230 = vmatprep.subr.bf16.mxu0 0
  %10231 = vmatpush1.bf16.msra.mxu0 0
  %10232 = vmatprep.subr.bf16.mxu0 0
  %10233 = vmatpush1.bf16.msra.mxu0 0
  %10234 = vmatprep.mubr.bf16.mxu0 0
  %10235 = vmatmul.mubr.bf16.gmra.mrb[0].mxu0 %v10200
  %v10236 = vpop.f32.mrb[0].mxu0
  %v10237 = vadd.f32 0.0, %v10236
  %v10238 = vpop.f32.mrb[0].mxu0
  %v10239 = vpop.f32.mrb[0].mxu0
  %v10240 = vpop.f32.mrb[0].mxu0
  %10241 = vdwg.mxu0
  %v10252 = vunpack.c.l.b16 %v9964
  %v10253 = vunpack.c.l.b16 %v9965
  %v10254 = vunpack.c.l.b16 %v9966
  %v10255 = vunpack.c.l.b16 %v9967
  %v10256 = vunpack.c.l.b16 %v9968
  %v10257 = vunpack.c.l.b16 %v9969
  %v10258 = vunpack.c.l.b16 %v9970
  %v10259 = vunpack.c.l.b16 %v9971
  %v10260 = vunpack.c.l.b16 %v9972
  %v10261 = vunpack.c.l.b16 %v9973
  %v10262 = vpack.c.b16 %v10253, %v10252
  %v10263 = vpack.c.b16 %v10255, %v10254
  %v10264 = vpack.c.b16 %v10257, %v10256
  %v10265 = vpack.c.b16 %v10259, %v10258
  %v10266 = vpack.c.b16 %v10261, %v10260
  %v10273 = vsel %vm10017, %v9961, 0
  %10275 = vmatprep.subr.bf16.mxu0 0
  %10276 = vmatpush1.bf16.msra.mxu0 %v10262
  %10277 = vmatprep.subr.bf16.mxu0 0
  %10278 = vmatpush1.bf16.msra.mxu0 %v10263
  %10279 = vmatprep.subr.bf16.mxu0 0
  %10280 = vmatpush1.bf16.msra.mxu0 %v10264
  %10281 = vmatprep.subr.bf16.mxu0 0
  %10282 = vmatpush1.bf16.msra.mxu0 %v10265
  %10283 = vmatprep.subr.bf16.mxu0 0
  %10284 = vmatpush1.bf16.msra.mxu0 %v10266
  %10285 = vmatprep.subr.bf16.mxu0 0
  %10286 = vmatpush1.bf16.msra.mxu0 0
  %10287 = vmatprep.subr.bf16.mxu0 0
  %10288 = vmatpush1.bf16.msra.mxu0 0
  %10289 = vmatprep.subr.bf16.mxu0 0
  %10290 = vmatpush1.bf16.msra.mxu0 0
  %10291 = vmatprep.subr.bf16.mxu0 0
  %10292 = vmatpush1.bf16.msra.mxu0 0
  %10293 = vmatprep.subr.bf16.mxu0 0
  %10294 = vmatpush1.bf16.msra.mxu0 0
  %10295 = vmatprep.subr.bf16.mxu0 0
  %10296 = vmatpush1.bf16.msra.mxu0 0
  %10297 = vmatprep.subr.bf16.mxu0 0
  %10298 = vmatpush1.bf16.msra.mxu0 0
  %10299 = vmatprep.subr.bf16.mxu0 0
  %10300 = vmatpush1.bf16.msra.mxu0 0
  %10301 = vmatprep.subr.bf16.mxu0 0
  %10302 = vmatpush1.bf16.msra.mxu0 0
  %10303 = vmatprep.subr.bf16.mxu0 0
  %10304 = vmatpush1.bf16.msra.mxu0 0
  %10305 = vmatprep.subr.bf16.mxu0 0
  %10306 = vmatpush1.bf16.msra.mxu0 0
  %10307 = vmatprep.mubr.bf16.mxu0 0
  %10308 = vmatmul.mubr.bf16.gmra.mrb[0].mxu0 %v10273
  %v10309 = vpop.f32.mrb[0].mxu0
  %v10310 = vadd.f32 %v10056, %v10309
  %v10311 = vpop.f32.mrb[0].mxu0
  %v10312 = vpop.f32.mrb[0].mxu0
  %v10313 = vpop.f32.mrb[0].mxu0
  %10314 = vdwg.mxu0
  %v10325 = vunpack.c.l.b16 %v10062
  %v10326 = vunpack.c.l.b16 %v10063
  %v10327 = vunpack.c.l.b16 %v10064
  %v10328 = vunpack.c.l.b16 %v10065
  %v10329 = vunpack.c.l.b16 %v10066
  %v10330 = vunpack.c.l.b16 %v10067
  %v10331 = vunpack.c.l.b16 %v10068
  %v10332 = vunpack.c.l.b16 %v10069
  %v10333 = vunpack.c.l.b16 %v10070
  %v10334 = vunpack.c.l.b16 %v10071
  %v10335 = vpack.c.b16 %v10326, %v10325
  %v10336 = vpack.c.b16 %v10328, %v10327
  %v10337 = vpack.c.b16 %v10330, %v10329
  %v10338 = vpack.c.b16 %v10332, %v10331
  %v10339 = vpack.c.b16 %v10334, %v10333
  %v10346 = vsel %vm10017, %v9962, 0
  %10348 = vmatprep.subr.bf16.mxu0 0
  %10349 = vmatpush1.bf16.msra.mxu0 %v10335
  %10350 = vmatprep.subr.bf16.mxu0 0
  %10351 = vmatpush1.bf16.msra.mxu0 %v10336
  %10352 = vmatprep.subr.bf16.mxu0 0
  %10353 = vmatpush1.bf16.msra.mxu0 %v10337
  %10354 = vmatprep.subr.bf16.mxu0 0
  %10355 = vmatpush1.bf16.msra.mxu0 %v10338
  %10356 = vmatprep.subr.bf16.mxu0 0
  %10357 = vmatpush1.bf16.msra.mxu0 %v10339
  %10358 = vmatprep.subr.bf16.mxu0 0
  %10359 = vmatpush1.bf16.msra.mxu0 0
  %10360 = vmatprep.subr.bf16.mxu0 0
  %10361 = vmatpush1.bf16.msra.mxu0 0
  %10362 = vmatprep.subr.bf16.mxu0 0
  %10363 = vmatpush1.bf16.msra.mxu0 0
  %10364 = vmatprep.subr.bf16.mxu0 0
  %10365 = vmatpush1.bf16.msra.mxu0 0
  %10366 = vmatprep.subr.bf16.mxu0 0
  %10367 = vmatpush1.bf16.msra.mxu0 0
  %10368 = vmatprep.subr.bf16.mxu0 0
  %10369 = vmatpush1.bf16.msra.mxu0 0
  %10370 = vmatprep.subr.bf16.mxu0 0
  %10371 = vmatpush1.bf16.msra.mxu0 0
  %10372 = vmatprep.subr.bf16.mxu0 0
  %10373 = vmatpush1.bf16.msra.mxu0 0
  %10374 = vmatprep.subr.bf16.mxu0 0
  %10375 = vmatpush1.bf16.msra.mxu0 0
  %10376 = vmatprep.subr.bf16.mxu0 0
  %10377 = vmatpush1.bf16.msra.mxu0 0
  %10378 = vmatprep.subr.bf16.mxu0 0
  %10379 = vmatpush1.bf16.msra.mxu0 0
  %10380 = vmatprep.mubr.bf16.mxu0 0
  %10381 = vmatmul.mubr.bf16.gmra.mrb[0].mxu0 %v10346
  %v10382 = vpop.f32.mrb[0].mxu0
  %v10383 = vadd.f32 %v10153, %v10382
  %v10384 = vpop.f32.mrb[0].mxu0
  %v10385 = vpop.f32.mrb[0].mxu0
  %v10386 = vpop.f32.mrb[0].mxu0
  %10387 = vdwg.mxu0
  %v10388 = vadd.f32 %v10310, %v10383
  %v10389 = vadd.f32 %v10388, %v10237
  %v10390 = vld [vmem:[%s6] sm:$0x1]
  %v10392 = vlaneseq
  %v10393 = vshrl.u32 %v10392, 7
  %v10394 = vsub.s32 0, %v10393
  %v10395 = vrot.slane %v10390, %v10394
  %v10397 = vadd.f32 %v10389, %v10395
  %v10398 = vmax.f32 %v10397, 0.0
  %v10399 = vpack.c.bf16 %v10398, %v10398
  %v10400 = vld [vmem:[%s7] sm:$0xf]
  %v10401 = vld [vmem:[%s7 + $0x4] sm:$0xf]
  %v10402 = vld [vmem:[%s7 + $0x8] sm:$0xf]
  %v10403 = vld [vmem:[%s7 + $0xc] sm:$0xf]
  %v10404 = vld [vmem:[%s7 + $0x10] sm:$0xf]
  %v10405 = vld [vmem:[%s7 + $0x14] sm:$0xf]
  %v10406 = vld [vmem:[%s7 + $0x18] sm:$0xf]
  %v10407 = vld [vmem:[%s7 + $0x1c] sm:$0xf]
  %v10408 = vld [vmem:[%s7 + $0x20] sm:$0xf]
  %v10409 = vld [vmem:[%s7 + $0x24] sm:$0xf]
  %v10410 = vld [vmem:[%s7 + $0x28] sm:$0xf]
  %v10411 = vld [vmem:[%s7 + $0x2c] sm:$0xf]
  %v10412 = vld [vmem:[%s7 + $0x30] sm:$0xf]
  %v10413 = vld [vmem:[%s7 + $0x34] sm:$0xf]
  %v10414 = vld [vmem:[%s7 + $0x38] sm:$0xf]
  %v10415 = vld [vmem:[%s8] sm:$0x1]
  %v10417 = vlaneseq
  %v10418 = vshrl.u32 %v10417, 7
  %v10419 = vsub.s32 0, %v10418
  %v10420 = vrot.slane %v10415, %v10419
  %v10437 = vunpack.c.l.b16 %v10400
  %v10438 = vunpack.c.l.b16 %v10401
  %v10439 = vunpack.c.l.b16 %v10402
  %v10440 = vunpack.c.l.b16 %v10403
  %v10441 = vunpack.c.l.b16 %v10404
  %v10442 = vunpack.c.l.b16 %v10405
  %v10443 = vunpack.c.l.b16 %v10406
  %v10444 = vunpack.c.l.b16 %v10407
  %v10445 = vunpack.c.l.b16 %v10408
  %v10446 = vunpack.c.l.b16 %v10409
  %v10447 = vunpack.c.l.b16 %v10410
  %v10448 = vunpack.c.l.b16 %v10411
  %v10449 = vunpack.c.l.b16 %v10412
  %v10450 = vunpack.c.l.b16 %v10413
  %v10451 = vunpack.c.l.b16 %v10414
  %v10452 = vpack.c.b16 %v10438, %v10437
  %v10453 = vpack.c.b16 %v10440, %v10439
  %v10454 = vpack.c.b16 %v10442, %v10441
  %v10455 = vpack.c.b16 %v10444, %v10443
  %v10456 = vpack.c.b16 %v10446, %v10445
  %v10457 = vpack.c.b16 %v10448, %v10447
  %v10458 = vpack.c.b16 %v10450, %v10449
  %v10459 = vpack.c.b16 %v10451, %v10451
  %vm10467 = vcmask 982016
  %v10469 = vsel %vm10467, %v10399, 0
  %vm10471 = vcmask 1043456
  %v10473 = vsel %vm10471, %v10459, 0
  %10475 = vmatprep.subr.bf16.mxu0 0
  %10476 = vmatpush1.bf16.msra.mxu0 %v10452
  %10477 = vmatprep.subr.bf16.mxu0 0
  %10478 = vmatpush1.bf16.msra.mxu0 %v10453
  %10479 = vmatprep.subr.bf16.mxu0 0
  %10480 = vmatpush1.bf16.msra.mxu0 %v10454
  %10481 = vmatprep.subr.bf16.mxu0 0
  %10482 = vmatpush1.bf16.msra.mxu0 %v10455
  %10483 = vmatprep.subr.bf16.mxu0 0
  %10484 = vmatpush1.bf16.msra.mxu0 %v10456
  %10485 = vmatprep.subr.bf16.mxu0 0
  %10486 = vmatpush1.bf16.msra.mxu0 %v10457
  %10487 = vmatprep.subr.bf16.mxu0 0
  %10488 = vmatpush1.bf16.msra.mxu0 %v10458
  %10489 = vmatprep.subr.bf16.mxu0 0
  %10490 = vmatpush1.bf16.msra.mxu0 %v10473
  %10491 = vmatprep.subr.bf16.mxu0 0
  %10492 = vmatpush1.bf16.msra.mxu0 0
  %10493 = vmatprep.subr.bf16.mxu0 0
  %10494 = vmatpush1.bf16.msra.mxu0 0
  %10495 = vmatprep.subr.bf16.mxu0 0
  %10496 = vmatpush1.bf16.msra.mxu0 0
  %10497 = vmatprep.subr.bf16.mxu0 0
  %10498 = vmatpush1.bf16.msra.mxu0 0
  %10499 = vmatprep.subr.bf16.mxu0 0
  %10500 = vmatpush1.bf16.msra.mxu0 0
  %10501 = vmatprep.subr.bf16.mxu0 0
  %10502 = vmatpush1.bf16.msra.mxu0 0
  %10503 = vmatprep.subr.bf16.mxu0 0
  %10504 = vmatpush1.bf16.msra.mxu0 0
  %10505 = vmatprep.subr.bf16.mxu0 0
  %10506 = vmatpush1.bf16.msra.mxu0 0
  %10507 = vmatprep.mubr.bf16.mxu0 0
  %10508 = vmatmul.mubr.bf16.gmra.mrb[0].mxu0 %v10469
  %v10509 = vpop.f32.mrb[0].mxu0
  %v10510 = vadd.f32 %v10420, %v10509
  %v10511 = vpop.f32.mrb[0].mxu0
  %v10512 = vpop.f32.mrb[0].mxu0
  %v10513 = vpop.f32.mrb[0].mxu0
  %10514 = vdwg.mxu0
  %v10515 = vmax.f32 %v10510, 0.0
  %v10516 = vpack.c.bf16 %v10515, %v10515
  %v10517 = vld [vmem:[%s9] sm:$0xf]
  %v10518 = vld [vmem:[%s9 + $0x4] sm:$0xf]
  %v10519 = vld [vmem:[%s9 + $0x8] sm:$0xf]
  %v10520 = vld [vmem:[%s9 + $0xc] sm:$0xf]
  %v10521 = vld [vmem:[%s9 + $0x10] sm:$0xf]
  %v10522 = vld [vmem:[%s9 + $0x14] sm:$0xf]
  %v10523 = vld [vmem:[%s9 + $0x18] sm:$0xf]
  %v10524 = vld [vmem:[%s9 + $0x1c] sm:$0xf]
  %v10525 = vld [vmem:[%s9 + $0x20] sm:$0xf]
  %v10526 = vld [vmem:[%s9 + $0x24] sm:$0xf]
  %v10527 = vld [vmem:[%s9 + $0x28] sm:$0x3]
  %v10528 = vld [vmem:[%s10] sm:$0x1]
  %v10530 = vlaneseq
  %v10531 = vshrl.u32 %v10530, 7
  %v10532 = vsub.s32 0, %v10531
  %v10533 = vrot.slane %v10528, %v10532
  %v10546 = vunpack.c.l.b16 %v10517
  %v10547 = vunpack.c.l.b16 %v10518
  %v10548 = vunpack.c.l.b16 %v10519
  %v10549 = vunpack.c.l.b16 %v10520
  %v10550 = vunpack.c.l.b16 %v10521
  %v10551 = vunpack.c.l.b16 %v10522
  %v10552 = vunpack.c.l.b16 %v10523
  %v10553 = vunpack.c.l.b16 %v10524
  %v10554 = vunpack.c.l.b16 %v10525
  %v10555 = vunpack.c.l.b16 %v10526
  %v10556 = vunpack.c.l.b16 %v10527
  %v10557 = vpack.c.b16 %v10547, %v10546
  %v10558 = vpack.c.b16 %v10549, %v10548
  %v10559 = vpack.c.b16 %v10551, %v10550
  %v10560 = vpack.c.b16 %v10553, %v10552
  %v10561 = vpack.c.b16 %v10555, %v10554
  %v10562 = vpack.c.b16 %v10556, %v10556
  %vm10568 = vcmask 687104
  %v10570 = vsel %vm10568, %v10516, 0
  %vm10572 = vcmask 1041408
  %v10574 = vsel %vm10572, %v10562, 0
  %10576 = vmatprep.subr.bf16.mxu0 0
  %10577 = vmatpush1.bf16.msra.mxu0 %v10557
  %10578 = vmatprep.subr.bf16.mxu0 0
  %10579 = vmatpush1.bf16.msra.mxu0 %v10558
  %10580 = vmatprep.subr.bf16.mxu0 0
  %10581 = vmatpush1.bf16.msra.mxu0 %v10559
  %10582 = vmatprep.subr.bf16.mxu0 0
  %10583 = vmatpush1.bf16.msra.mxu0 %v10560
  %10584 = vmatprep.subr.bf16.mxu0 0
  %10585 = vmatpush1.bf16.msra.mxu0 %v10561
  %10586 = vmatprep.subr.bf16.mxu0 0
  %10587 = vmatpush1.bf16.msra.mxu0 %v10574
  %10588 = vmatprep.subr.bf16.mxu0 0
  %10589 = vmatpush1.bf16.msra.mxu0 0
  %10590 = vmatprep.subr.bf16.mxu0 0
  %10591 = vmatpush1.bf16.msra.mxu0 0
  %10592 = vmatprep.subr.bf16.mxu0 0
  %10593 = vmatpush1.bf16.msra.mxu0 0
  %10594 = vmatprep.subr.bf16.mxu0 0
  %10595 = vmatpush1.bf16.msra.mxu0 0
  %10596 = vmatprep.subr.bf16.mxu0 0
  %10597 = vmatpush1.bf16.msra.mxu0 0
  %10598 = vmatprep.subr.bf16.mxu0 0
  %10599 = vmatpush1.bf16.msra.mxu0 0
  %10600 = vmatprep.subr.bf16.mxu0 0
  %10601 = vmatpush1.bf16.msra.mxu0 0
  %10602 = vmatprep.subr.bf16.mxu0 0
  %10603 = vmatpush1.bf16.msra.mxu0 0
  %10604 = vmatprep.subr.bf16.mxu0 0
  %10605 = vmatpush1.bf16.msra.mxu0 0
  %10606 = vmatprep.subr.bf16.mxu0 0
  %10607 = vmatpush1.bf16.msra.mxu0 0
  %10608 = vmatprep.mubr.bf16.mxu0 0
  %10609 = vmatmul.mubr.bf16.gmra.mrb[0].mxu0 %v10570
  %v10610 = vpop.f32.mrb[0].mxu0
  %v10611 = vadd.f32 %v10533, %v10610
  %v10612 = vpop.f32.mrb[0].mxu0
  %v10613 = vpop.f32.mrb[0].mxu0
  %v10614 = vpop.f32.mrb[0].mxu0
  %10615 = vdwg.mxu0
  %vm10616 = vcmask 80896
  %10617 = vst.msk [vmem:[%s11] sm:$0xff] %vm10616, %v10611
  // Predicated region
  $region46: #{cnn_cifar_forward.1} parent=0 // pred_check
    _
  $region47: #{cnn_cifar_forward.1} parent=0 // pred_check_branch
    %10619 = sbr.rel (0) target = $region49
  $region48: #{cnn_cifar_forward.1} parent=0 // pred_region
    _
  $region49: #{cnn_cifar_forward.1} parent=0 // pred_fallthru
    _
  // Predicated region
  $region50: #{cnn_cifar_forward.1} parent=0 // pred_check
    _
  $region51: #{cnn_cifar_forward.1} parent=0 // pred_check_branch
    %10621 = sbr.rel (0) target = $region53
  $region52: #{cnn_cifar_forward.1} parent=0 // pred_region
    _
  $region53: #{cnn_cifar_forward.1} parent=0 // pred_fallthru
    _

</llo_original>
